<compile_context>
chip_gen: v5e
topology: v5e:2x2
jax: 0.10.0
libtpu: 0.0.40
codegen_flags: <defaults>
</compile_context>

<pallas_src>
import functools

import jax
import jax.numpy as jnp
from jax import lax
from jax.experimental import pallas as pl
from jax.experimental.pallas import tpu as pltpu

# Module hyper-parameters (BjorckLinear defaults).
POWER_ITERS = 10
POWER_THRES = 1e-6
BJORCK_ORDER = 1          # TODO(synk): only order-1 Björck Taylor expansion (module default) implemented.
BJORCK_ITERS = 20
BJORCK_THRES = 1e-6

_POWER_THRES_SQ = POWER_THRES * POWER_THRES
_BJORCK_THRES_SQ = BJORCK_THRES * BJORCK_THRES
_EPS = 1e-30                       # guards rsqrt(0)
_PREC = lax.Precision.HIGHEST      # explicit f32 MXU passes (not silent bf16)


def _round_up(x, m):
    return ((x + m - 1) // m) * m


# ---------------------------------------------------------------------------
# Kernel 1: params -> orthonormalized weight (transposed, lane-padded)
# ---------------------------------------------------------------------------
def _ortho_kernel(p_ref, v_ref, wt_ref, w_scr, done_smem, *, orig_min, wide):
    """p_ref: (O_pad, I_pad)  v_ref: (1, I_pad)  wt_ref: (I_pad, O_pad)
    w_scr: (O_pad, I_pad) f32   done_smem: (1,) int32.
    orig_min = un-padded min(O, I); wide = (O <= I), both static."""
    W = p_ref[...].astype(jnp.float32)          # (O_pad, I_pad)
    out_p, in_p = W.shape                       # static Python ints

    # ---------------- power iteration (spectral-norm scale) -----------------
    # v-only recursion: v <- normalize(Wᵀ(W v)); the intermediate u
    # normalization cancels, so u is never materialized (halves the serial
    # reduce→rsqrt chain per step).
    v = v_ref[...].astype(jnp.float32)          # (1, I_pad)
    done = jnp.zeros((), jnp.bool_)
    for _ in range(POWER_ITERS):                # fully unrolled: latency-bound
        Wv = lax.dot_general(v, W, (((1,), (1,)), ((), ())),
                             precision=_PREC,
                             preferred_element_type=jnp.float32)       # (1, O_pad)
        WtWv = lax.dot_general(Wv, W, (((1,), (0,)), ((), ())),
                               precision=_PREC,
                               preferred_element_type=jnp.float32)     # (1, I_pad)
        v_new = WtWv * lax.rsqrt(jnp.sum(WtWv * WtWv) + _EPS)
        d = v_new - v
        v = jnp.where(done, v, v_new)
        done = jnp.logical_or(done, jnp.sum(d * d) < _POWER_THRES_SQ)

    # sigma = uᵀ W v with u = normalize(W v)  ==  ||W v||.
    Wv = lax.dot_general(v, W, (((1,), (1,)), ((), ())),
                         precision=_PREC, preferred_element_type=jnp.float32)
    sigma = jnp.sqrt(jnp.sum(Wv * Wv))
    inv_sigma = 1.0 / jnp.maximum(sigma, 1e-12)          # guarded reciprocal
    w_scr[...] = W * inv_sigma

    # ---------------- Björck orthonormalization (order 1), gated ------------
    # Identity masked to the un-padded block (padded diagonal entries stay 0,
    # matching the Gram of the zero-padded weight at convergence).
    g = out_p if wide else in_p
    r = lax.broadcasted_iota(jnp.int32, (g, g), 0)
    c = lax.broadcasted_iota(jnp.int32, (g, g), 1)
    eye_m = jnp.where(jnp.logical_and(r == c, r < orig_min),
                      1.0, 0.0).astype(jnp.float32)

    done_smem[0] = jnp.int32(0)

    def bjorck_body(_, carry):
        # Converged iterations skip BOTH gemms and the full-W store entirely.
        @pl.when(done_smem[0] == 0)
        def _step():
            Wk = w_scr[...]
            if wide:
                # Gram = Wk Wkᵀ : (O_pad, O_pad);  upd = Gram @ Wk
                gram = lax.dot_general(Wk, Wk, (((1,), (1,)), ((), ())),
                                       precision=_PREC,
                                       preferred_element_type=jnp.float32)
                upd = lax.dot_general(gram, Wk, (((1,), (0,)), ((), ())),
                                      precision=_PREC,
                                      preferred_element_type=jnp.float32)
            else:
                # Gram = Wkᵀ Wk : (I_pad, I_pad);  upd = Wk @ Gram
                gram = lax.dot_general(Wk, Wk, (((0,), (0,)), ((), ())),
                                       precision=_PREC,
                                       preferred_element_type=jnp.float32)
                upd = lax.dot_general(Wk, gram, (((1,), (0,)), ((), ())),
                                      precision=_PREC,
                                      preferred_element_type=jnp.float32)
            w_scr[...] = 1.5 * Wk - 0.5 * upd
            # ||Wn - Wk||² = 0.25 ||(Gram - I) Wk||² ≈ 0.25 ||Gram - I||² near
            # convergence; tested on the small Gram, not a full (O,I) diff.
            d = gram - eye_m
            err2 = 0.25 * jnp.sum(d * d)
            done_smem[0] = jnp.where(err2 < _BJORCK_THRES_SQ, 1, 0).astype(jnp.int32)
        return carry

    lax.fori_loop(0, BJORCK_ITERS, bjorck_body, 0)

    # Write W_orthoᵀ (I_pad, O_pad): a single XLU transpose here makes the
    # forward matmul the canonical (B,I)x(I,O) with a lane-dense output.
    wt_ref[...] = w_scr[...].T.astype(wt_ref.dtype)


@jax.jit
def bjorck_orthonormal_weight_t(params, v_vec):
    """params (O, I), v_vec (I,) -> W_orthoᵀ zero-padded to (I_pad, O_pad).

    Cacheable: reuse the result across micro-batches / repeated applications
    instead of re-running ~20 gemms of orthonormalization per forward."""
    out_f, in_f = params.shape
    o_pad = _round_up(out_f, 128)
    i_pad = _round_up(in_f, 128)
    # Zero padding is exactly preserved by every step of the kernel.
    p_pad = jnp.pad(params.astype(jnp.float32),
                    ((0, o_pad - out_f), (0, i_pad - in_f)))
    v_pad = jnp.pad(v_vec.astype(jnp.float32).reshape(1, in_f),
                    ((0, 0), (0, i_pad - in_f)))

    g = o_pad if out_f <= in_f else i_pad
    # VMEM budget: input + output + w_scr + ~3 full-size temps + 2 gram temps.
    est = 4 * (6 * o_pad * i_pad + 2 * g * g + 2 * i_pad) + (2 << 20)
    vmem_limit = min(max(est, 32 << 20), 120 << 20)
    # TODO(synk): if `est` exceeds ~56 MiB (v7x VMEM), tile the two Björck gemms
    # with pltpu.emit_pipeline (and split rows across the 2 v7x TensorCores)
    # instead of whole-array dot_general.

    kernel = functools.partial(_ortho_kernel,
                               orig_min=min(out_f, in_f),
                               wide=(out_f <= in_f))
    return pl.pallas_call(
        kernel,
        out_shape=jax.ShapeDtypeStruct((i_pad, o_pad), jnp.float32),
        in_specs=[
            pl.BlockSpec(memory_space=pltpu.MemorySpace.VMEM),
            pl.BlockSpec(memory_space=pltpu.MemorySpace.VMEM),
        ],
        out_specs=pl.BlockSpec(memory_space=pltpu.MemorySpace.VMEM),
        scratch_shapes=[pltpu.VMEM((o_pad, i_pad), jnp.float32),
                        pltpu.SMEM((1,), jnp.int32)],
        compiler_params=pltpu.CompilerParams(vmem_limit_bytes=vmem_limit),
    )(p_pad, v_pad)


# ---------------------------------------------------------------------------
# Kernel 2: tiled forward matmul  y = x @ W_ortho^T  (bias=False)
# ---------------------------------------------------------------------------
def _linear_kernel(x_ref, wt_ref, o_ref, acc_ref):
    @pl.when(pl.program_id(2) == 0)
    def _():
        acc_ref[...] = jnp.zeros_like(acc_ref)
    acc_ref[...] += lax.dot_general(
        x_ref[...].astype(jnp.float32), wt_ref[...],
        (((1,), (0,)), ((), ())),
        precision=_PREC, preferred_element_type=jnp.float32)

    @pl.when(pl.program_id(2) == pl.num_programs(2) - 1)
    def _():
        o_ref[...] = acc_ref[...].astype(o_ref.dtype)


@functools.partial(jax.jit, static_argnames=("out_features",))
def bjorck_linear_apply(x, wt_pad, *, out_features):
    """y = x @ W_orthoᵀ given the (cached) padded transposed weight."""
    batch, in_f = x.shape
    i_pad, o_pad = wt_pad.shape

    b_pad = _round_up(batch, 8)
    if b_pad <= 256:
        bm = b_pad
    else:
        bm = 256
        b_pad = _round_up(b_pad, 256)
    bk = 256 if i_pad % 256 == 0 else 128
    bn = 256 if o_pad % 256 == 0 else 128

    x_pad = jnp.pad(x.astype(jnp.float32),
                    ((0, b_pad - batch), (0, i_pad - in_f)))

    y = pl.pallas_call(
        _linear_kernel,
        out_shape=jax.ShapeDtypeStruct((b_pad, o_pad), x.dtype),
        grid_spec=pltpu.PrefetchScalarGridSpec(
            num_scalar_prefetch=0,
            grid=(b_pad // bm, o_pad // bn, i_pad // bk),
            in_specs=[pl.BlockSpec((bm, bk), lambda i, j, k: (i, k)),
                      pl.BlockSpec((bk, bn), lambda i, j, k: (k, j))],
            out_specs=pl.BlockSpec((bm, bn), lambda i, j, k: (i, j)),
            scratch_shapes=[pltpu.VMEM((bm, bn), jnp.float32)]),
        compiler_params=pltpu.CompilerParams(
            dimension_semantics=("parallel", "parallel", "arbitrary")),
    )(x_pad, wt_pad)
    return y[:batch, :out_features]


def bjorck_linear(x, params, v_vec):
    """Full BjorckLinear forward (bias=False, inverse=False)."""
    # TODO(synk): bias=True and inverse=True module paths not implemented.
    wt_pad = bjorck_orthonormal_weight_t(params, v_vec)
    return bjorck_linear_apply(x, wt_pad, out_features=params.shape[0])


def init_bjorck_params(key, in_features, out_features, init="permutation"):
    """Deterministic re-implementation of BjorckLinear._initialize + v_vec init."""
    k_perm, k_v = jax.random.split(key, 2)
    max_f = max(out_features, in_features)
    min_f = min(out_features, in_features)
    perm = jax.random.permutation(k_perm, max_f)[:min_f]
    if init == "identical":
        perm = jnp.sort(perm)
    elif init == "reverse":
        perm = jnp.sort(perm)[::-1]
    # init == "permutation": keep the random order.
    matrix = jnp.zeros((out_features, in_features), jnp.float32)
    eye = jnp.eye(min_f, dtype=jnp.float32)
    if out_features < in_features:
        matrix = matrix.at[:, perm].set(eye)
    else:
        matrix = matrix.at[perm, :].set(eye)
    v_vec = jax.random.normal(k_v, (in_features,), dtype=jnp.float32)
    return matrix, v_vec


if __name__ == "__main__":
    key = jax.random.PRNGKey(0)
    k_init, k_x = jax.random.split(key)

    batch, in_features, out_features = 8, 32, 32
    params, v_vec = init_bjorck_params(k_init, in_features, out_features,
                                       init="permutation")
    x = jax.random.normal(k_x, (batch, in_features), dtype=jnp.float32)

    out = bjorck_linear(x, params, v_vec)
    out = jax.block_until_ready(out)

    assert out.shape == (batch, out_features)
    # Sanity: an orthonormalized square weight preserves row norms.
    row_in = jnp.linalg.norm(x, axis=-1)
    row_out = jnp.linalg.norm(out, axis=-1)
    assert jnp.allclose(row_in, row_out, atol=1e-3), (row_in, row_out)

    print("KERNEL_OK")
</pallas_src>

<mosaic_0001>
module attributes {stable_mosaic.version = 11 : i64} {
  func.func @_ortho_kernel(%arg0: memref<128x128xf32, #tpu.memory_space<vmem>>, %arg1: memref<1x128xf32, #tpu.memory_space<vmem>>, %arg2: memref<128x128xf32, #tpu.memory_space<vmem>>, %arg3: memref<128x128xf32, #tpu.memory_space<vmem>>, %arg4: memref<1xi32, #tpu.memory_space<smem>>) attributes {dimension_semantics = [], scalar_prefetch = 0 : i64, scratch_operands = 2 : i64, tpu.core_type = #tpu.core_type<tc>} {
    %c0 = arith.constant 0 : index
    %c0_0 = arith.constant 0 : index
    %0 = vector.load %arg0[%c0, %c0_0] : memref<128x128xf32, #tpu.memory_space<vmem>>, vector<128x128xf32>
    %c0_1 = arith.constant 0 : index
    %c0_2 = arith.constant 0 : index
    %1 = vector.load %arg1[%c0_1, %c0_2] : memref<1x128xf32, #tpu.memory_space<vmem>>, vector<1x128xf32>
    %cst = arith.constant dense<0.000000e+00> : vector<1x128xf32>
    %2 = tpu.matmul %1, %0, %cst {dimension_numbers = #tpu.dot_dimension_numbers<[1], [1], [0], [0], [0, 0, 1, 0], [], []>, precision = #tpu.contract_precision<fp32>} : vector<1x128xf32>, vector<128x128xf32>, vector<1x128xf32> -> vector<1x128xf32>
    %cst_3 = arith.constant dense<0.000000e+00> : vector<1x128xf32>
    %3 = tpu.matmul %2, %0, %cst_3 {dimension_numbers = #tpu.dot_dimension_numbers<[1], [0], [0], [1], [0, 0, 1, 1], [], []>, precision = #tpu.contract_precision<fp32>} : vector<1x128xf32>, vector<128x128xf32>, vector<1x128xf32> -> vector<1x128xf32>
    %4 = arith.mulf %3, %3 : vector<1x128xf32>
    %5 = vector.shape_cast %4 : vector<1x128xf32> to vector<1x1x128xf32>
    %cst_4 = arith.constant dense<0.000000e+00> : vector<1xf32>
    %6 = vector.multi_reduction <add>, %5, %cst_4 [1, 2] : vector<1x1x128xf32> to vector<1xf32>
    %7 = vector.shape_cast %6 : vector<1xf32> to vector<1x1x1xf32>
    %8 = vector.extract %7[0, 0, 0] : f32 from vector<1x1x1xf32>
    %cst_5 = arith.constant 1.000000e-30 : f32
    %9 = arith.addf %8, %cst_5 : f32
    %10 = math.rsqrt %9 : f32
    %11 = vector.broadcast %10 : f32 to vector<1x128xf32>
    %12 = arith.mulf %3, %11 : vector<1x128xf32>
    %13 = arith.subf %12, %1 : vector<1x128xf32>
    %false = arith.constant false
    %14 = arith.select %false, %1, %12 : vector<1x128xf32>
    %15 = arith.mulf %13, %13 : vector<1x128xf32>
    %16 = vector.shape_cast %15 : vector<1x128xf32> to vector<1x1x128xf32>
    %cst_6 = arith.constant dense<0.000000e+00> : vector<1xf32>
    %17 = vector.multi_reduction <add>, %16, %cst_6 [1, 2] : vector<1x1x128xf32> to vector<1xf32>
    %18 = vector.shape_cast %17 : vector<1xf32> to vector<1x1x1xf32>
    %19 = vector.extract %18[0, 0, 0] : f32 from vector<1x1x1xf32>
    %cst_7 = arith.constant 9.99999996E-13 : f32
    %20 = arith.cmpf olt, %19, %cst_7 : f32
    %false_8 = arith.constant false
    %21 = arith.ori %false_8, %20 : i1
    %cst_9 = arith.constant dense<0.000000e+00> : vector<1x128xf32>
    %22 = tpu.matmul %14, %0, %cst_9 {dimension_numbers = #tpu.dot_dimension_numbers<[1], [1], [0], [0], [0, 0, 1, 0], [], []>, precision = #tpu.contract_precision<fp32>} : vector<1x128xf32>, vector<128x128xf32>, vector<1x128xf32> -> vector<1x128xf32>
    %cst_10 = arith.constant dense<0.000000e+00> : vector<1x128xf32>
    %23 = tpu.matmul %22, %0, %cst_10 {dimension_numbers = #tpu.dot_dimension_numbers<[1], [0], [0], [1], [0, 0, 1, 1], [], []>, precision = #tpu.contract_precision<fp32>} : vector<1x128xf32>, vector<128x128xf32>, vector<1x128xf32> -> vector<1x128xf32>
    %24 = arith.mulf %23, %23 : vector<1x128xf32>
    %25 = vector.shape_cast %24 : vector<1x128xf32> to vector<1x1x128xf32>
    %cst_11 = arith.constant dense<0.000000e+00> : vector<1xf32>
    %26 = vector.multi_reduction <add>, %25, %cst_11 [1, 2] : vector<1x1x128xf32> to vector<1xf32>
    %27 = vector.shape_cast %26 : vector<1xf32> to vector<1x1x1xf32>
    %28 = vector.extract %27[0, 0, 0] : f32 from vector<1x1x1xf32>
    %cst_12 = arith.constant 1.000000e-30 : f32
    %29 = arith.addf %28, %cst_12 : f32
    %30 = math.rsqrt %29 : f32
    %31 = vector.broadcast %30 : f32 to vector<1x128xf32>
    %32 = arith.mulf %23, %31 : vector<1x128xf32>
    %33 = arith.subf %32, %14 : vector<1x128xf32>
    %34 = arith.select %21, %14, %32 : vector<1x128xf32>
    %35 = arith.mulf %33, %33 : vector<1x128xf32>
    %36 = vector.shape_cast %35 : vector<1x128xf32> to vector<1x1x128xf32>
    %cst_13 = arith.constant dense<0.000000e+00> : vector<1xf32>
    %37 = vector.multi_reduction <add>, %36, %cst_13 [1, 2] : vector<1x1x128xf32> to vector<1xf32>
    %38 = vector.shape_cast %37 : vector<1xf32> to vector<1x1x1xf32>
    %39 = vector.extract %38[0, 0, 0] : f32 from vector<1x1x1xf32>
    %cst_14 = arith.constant 9.99999996E-13 : f32
    %40 = arith.cmpf olt, %39, %cst_14 : f32
    %41 = arith.ori %21, %40 : i1
    %cst_15 = arith.constant dense<0.000000e+00> : vector<1x128xf32>
    %42 = tpu.matmul %34, %0, %cst_15 {dimension_numbers = #tpu.dot_dimension_numbers<[1], [1], [0], [0], [0, 0, 1, 0], [], []>, precision = #tpu.contract_precision<fp32>} : vector<1x128xf32>, vector<128x128xf32>, vector<1x128xf32> -> vector<1x128xf32>
    %cst_16 = arith.constant dense<0.000000e+00> : vector<1x128xf32>
    %43 = tpu.matmul %42, %0, %cst_16 {dimension_numbers = #tpu.dot_dimension_numbers<[1], [0], [0], [1], [0, 0, 1, 1], [], []>, precision = #tpu.contract_precision<fp32>} : vector<1x128xf32>, vector<128x128xf32>, vector<1x128xf32> -> vector<1x128xf32>
    %44 = arith.mulf %43, %43 : vector<1x128xf32>
    %45 = vector.shape_cast %44 : vector<1x128xf32> to vector<1x1x128xf32>
    %cst_17 = arith.constant dense<0.000000e+00> : vector<1xf32>
    %46 = vector.multi_reduction <add>, %45, %cst_17 [1, 2] : vector<1x1x128xf32> to vector<1xf32>
    %47 = vector.shape_cast %46 : vector<1xf32> to vector<1x1x1xf32>
    %48 = vector.extract %47[0, 0, 0] : f32 from vector<1x1x1xf32>
    %cst_18 = arith.constant 1.000000e-30 : f32
    %49 = arith.addf %48, %cst_18 : f32
    %50 = math.rsqrt %49 : f32
    %51 = vector.broadcast %50 : f32 to vector<1x128xf32>
    %52 = arith.mulf %43, %51 : vector<1x128xf32>
    %53 = arith.subf %52, %34 : vector<1x128xf32>
    %54 = arith.select %41, %34, %52 : vector<1x128xf32>
    %55 = arith.mulf %53, %53 : vector<1x128xf32>
    %56 = vector.shape_cast %55 : vector<1x128xf32> to vector<1x1x128xf32>
    %cst_19 = arith.constant dense<0.000000e+00> : vector<1xf32>
    %57 = vector.multi_reduction <add>, %56, %cst_19 [1, 2] : vector<1x1x128xf32> to vector<1xf32>
    %58 = vector.shape_cast %57 : vector<1xf32> to vector<1x1x1xf32>
    %59 = vector.extract %58[0, 0, 0] : f32 from vector<1x1x1xf32>
    %cst_20 = arith.constant 9.99999996E-13 : f32
    %60 = arith.cmpf olt, %59, %cst_20 : f32
    %61 = arith.ori %41, %60 : i1
    %cst_21 = arith.constant dense<0.000000e+00> : vector<1x128xf32>
    %62 = tpu.matmul %54, %0, %cst_21 {dimension_numbers = #tpu.dot_dimension_numbers<[1], [1], [0], [0], [0, 0, 1, 0], [], []>, precision = #tpu.contract_precision<fp32>} : vector<1x128xf32>, vector<128x128xf32>, vector<1x128xf32> -> vector<1x128xf32>
    %cst_22 = arith.constant dense<0.000000e+00> : vector<1x128xf32>
    %63 = tpu.matmul %62, %0, %cst_22 {dimension_numbers = #tpu.dot_dimension_numbers<[1], [0], [0], [1], [0, 0, 1, 1], [], []>, precision = #tpu.contract_precision<fp32>} : vector<1x128xf32>, vector<128x128xf32>, vector<1x128xf32> -> vector<1x128xf32>
    %64 = arith.mulf %63, %63 : vector<1x128xf32>
    %65 = vector.shape_cast %64 : vector<1x128xf32> to vector<1x1x128xf32>
    %cst_23 = arith.constant dense<0.000000e+00> : vector<1xf32>
    %66 = vector.multi_reduction <add>, %65, %cst_23 [1, 2] : vector<1x1x128xf32> to vector<1xf32>
    %67 = vector.shape_cast %66 : vector<1xf32> to vector<1x1x1xf32>
    %68 = vector.extract %67[0, 0, 0] : f32 from vector<1x1x1xf32>
    %cst_24 = arith.constant 1.000000e-30 : f32
    %69 = arith.addf %68, %cst_24 : f32
    %70 = math.rsqrt %69 : f32
    %71 = vector.broadcast %70 : f32 to vector<1x128xf32>
    %72 = arith.mulf %63, %71 : vector<1x128xf32>
    %73 = arith.subf %72, %54 : vector<1x128xf32>
    %74 = arith.select %61, %54, %72 : vector<1x128xf32>
    %75 = arith.mulf %73, %73 : vector<1x128xf32>
    %76 = vector.shape_cast %75 : vector<1x128xf32> to vector<1x1x128xf32>
    %cst_25 = arith.constant dense<0.000000e+00> : vector<1xf32>
    %77 = vector.multi_reduction <add>, %76, %cst_25 [1, 2] : vector<1x1x128xf32> to vector<1xf32>
    %78 = vector.shape_cast %77 : vector<1xf32> to vector<1x1x1xf32>
    %79 = vector.extract %78[0, 0, 0] : f32 from vector<1x1x1xf32>
    %cst_26 = arith.constant 9.99999996E-13 : f32
    %80 = arith.cmpf olt, %79, %cst_26 : f32
    %81 = arith.ori %61, %80 : i1
    %cst_27 = arith.constant dense<0.000000e+00> : vector<1x128xf32>
    %82 = tpu.matmul %74, %0, %cst_27 {dimension_numbers = #tpu.dot_dimension_numbers<[1], [1], [0], [0], [0, 0, 1, 0], [], []>, precision = #tpu.contract_precision<fp32>} : vector<1x128xf32>, vector<128x128xf32>, vector<1x128xf32> -> vector<1x128xf32>
    %cst_28 = arith.constant dense<0.000000e+00> : vector<1x128xf32>
    %83 = tpu.matmul %82, %0, %cst_28 {dimension_numbers = #tpu.dot_dimension_numbers<[1], [0], [0], [1], [0, 0, 1, 1], [], []>, precision = #tpu.contract_precision<fp32>} : vector<1x128xf32>, vector<128x128xf32>, vector<1x128xf32> -> vector<1x128xf32>
    %84 = arith.mulf %83, %83 : vector<1x128xf32>
    %85 = vector.shape_cast %84 : vector<1x128xf32> to vector<1x1x128xf32>
    %cst_29 = arith.constant dense<0.000000e+00> : vector<1xf32>
    %86 = vector.multi_reduction <add>, %85, %cst_29 [1, 2] : vector<1x1x128xf32> to vector<1xf32>
    %87 = vector.shape_cast %86 : vector<1xf32> to vector<1x1x1xf32>
    %88 = vector.extract %87[0, 0, 0] : f32 from vector<1x1x1xf32>
    %cst_30 = arith.constant 1.000000e-30 : f32
    %89 = arith.addf %88, %cst_30 : f32
    %90 = math.rsqrt %89 : f32
    %91 = vector.broadcast %90 : f32 to vector<1x128xf32>
    %92 = arith.mulf %83, %91 : vector<1x128xf32>
    %93 = arith.subf %92, %74 : vector<1x128xf32>
    %94 = arith.select %81, %74, %92 : vector<1x128xf32>
    %95 = arith.mulf %93, %93 : vector<1x128xf32>
    %96 = vector.shape_cast %95 : vector<1x128xf32> to vector<1x1x128xf32>
    %cst_31 = arith.constant dense<0.000000e+00> : vector<1xf32>
    %97 = vector.multi_reduction <add>, %96, %cst_31 [1, 2] : vector<1x1x128xf32> to vector<1xf32>
    %98 = vector.shape_cast %97 : vector<1xf32> to vector<1x1x1xf32>
    %99 = vector.extract %98[0, 0, 0] : f32 from vector<1x1x1xf32>
    %cst_32 = arith.constant 9.99999996E-13 : f32
    %100 = arith.cmpf olt, %99, %cst_32 : f32
    %101 = arith.ori %81, %100 : i1
    %cst_33 = arith.constant dense<0.000000e+00> : vector<1x128xf32>
    %102 = tpu.matmul %94, %0, %cst_33 {dimension_numbers = #tpu.dot_dimension_numbers<[1], [1], [0], [0], [0, 0, 1, 0], [], []>, precision = #tpu.contract_precision<fp32>} : vector<1x128xf32>, vector<128x128xf32>, vector<1x128xf32> -> vector<1x128xf32>
    %cst_34 = arith.constant dense<0.000000e+00> : vector<1x128xf32>
    %103 = tpu.matmul %102, %0, %cst_34 {dimension_numbers = #tpu.dot_dimension_numbers<[1], [0], [0], [1], [0, 0, 1, 1], [], []>, precision = #tpu.contract_precision<fp32>} : vector<1x128xf32>, vector<128x128xf32>, vector<1x128xf32> -> vector<1x128xf32>
    %104 = arith.mulf %103, %103 : vector<1x128xf32>
    %105 = vector.shape_cast %104 : vector<1x128xf32> to vector<1x1x128xf32>
    %cst_35 = arith.constant dense<0.000000e+00> : vector<1xf32>
    %106 = vector.multi_reduction <add>, %105, %cst_35 [1, 2] : vector<1x1x128xf32> to vector<1xf32>
    %107 = vector.shape_cast %106 : vector<1xf32> to vector<1x1x1xf32>
    %108 = vector.extract %107[0, 0, 0] : f32 from vector<1x1x1xf32>
    %cst_36 = arith.constant 1.000000e-30 : f32
    %109 = arith.addf %108, %cst_36 : f32
    %110 = math.rsqrt %109 : f32
    %111 = vector.broadcast %110 : f32 to vector<1x128xf32>
    %112 = arith.mulf %103, %111 : vector<1x128xf32>
    %113 = arith.subf %112, %94 : vector<1x128xf32>
    %114 = arith.select %101, %94, %112 : vector<1x128xf32>
    %115 = arith.mulf %113, %113 : vector<1x128xf32>
    %116 = vector.shape_cast %115 : vector<1x128xf32> to vector<1x1x128xf32>
    %cst_37 = arith.constant dense<0.000000e+00> : vector<1xf32>
    %117 = vector.multi_reduction <add>, %116, %cst_37 [1, 2] : vector<1x1x128xf32> to vector<1xf32>
    %118 = vector.shape_cast %117 : vector<1xf32> to vector<1x1x1xf32>
    %119 = vector.extract %118[0, 0, 0] : f32 from vector<1x1x1xf32>
    %cst_38 = arith.constant 9.99999996E-13 : f32
    %120 = arith.cmpf olt, %119, %cst_38 : f32
    %121 = arith.ori %101, %120 : i1
    %cst_39 = arith.constant dense<0.000000e+00> : vector<1x128xf32>
    %122 = tpu.matmul %114, %0, %cst_39 {dimension_numbers = #tpu.dot_dimension_numbers<[1], [1], [0], [0], [0, 0, 1, 0], [], []>, precision = #tpu.contract_precision<fp32>} : vector<1x128xf32>, vector<128x128xf32>, vector<1x128xf32> -> vector<1x128xf32>
    %cst_40 = arith.constant dense<0.000000e+00> : vector<1x128xf32>
    %123 = tpu.matmul %122, %0, %cst_40 {dimension_numbers = #tpu.dot_dimension_numbers<[1], [0], [0], [1], [0, 0, 1, 1], [], []>, precision = #tpu.contract_precision<fp32>} : vector<1x128xf32>, vector<128x128xf32>, vector<1x128xf32> -> vector<1x128xf32>
    %124 = arith.mulf %123, %123 : vector<1x128xf32>
    %125 = vector.shape_cast %124 : vector<1x128xf32> to vector<1x1x128xf32>
    %cst_41 = arith.constant dense<0.000000e+00> : vector<1xf32>
    %126 = vector.multi_reduction <add>, %125, %cst_41 [1, 2] : vector<1x1x128xf32> to vector<1xf32>
    %127 = vector.shape_cast %126 : vector<1xf32> to vector<1x1x1xf32>
    %128 = vector.extract %127[0, 0, 0] : f32 from vector<1x1x1xf32>
    %cst_42 = arith.constant 1.000000e-30 : f32
    %129 = arith.addf %128, %cst_42 : f32
    %130 = math.rsqrt %129 : f32
    %131 = vector.broadcast %130 : f32 to vector<1x128xf32>
    %132 = arith.mulf %123, %131 : vector<1x128xf32>
    %133 = arith.subf %132, %114 : vector<1x128xf32>
    %134 = arith.select %121, %114, %132 : vector<1x128xf32>
    %135 = arith.mulf %133, %133 : vector<1x128xf32>
    %136 = vector.shape_cast %135 : vector<1x128xf32> to vector<1x1x128xf32>
    %cst_43 = arith.constant dense<0.000000e+00> : vector<1xf32>
    %137 = vector.multi_reduction <add>, %136, %cst_43 [1, 2] : vector<1x1x128xf32> to vector<1xf32>
    %138 = vector.shape_cast %137 : vector<1xf32> to vector<1x1x1xf32>
    %139 = vector.extract %138[0, 0, 0] : f32 from vector<1x1x1xf32>
    %cst_44 = arith.constant 9.99999996E-13 : f32
    %140 = arith.cmpf olt, %139, %cst_44 : f32
    %141 = arith.ori %121, %140 : i1
    %cst_45 = arith.constant dense<0.000000e+00> : vector<1x128xf32>
    %142 = tpu.matmul %134, %0, %cst_45 {dimension_numbers = #tpu.dot_dimension_numbers<[1], [1], [0], [0], [0, 0, 1, 0], [], []>, precision = #tpu.contract_precision<fp32>} : vector<1x128xf32>, vector<128x128xf32>, vector<1x128xf32> -> vector<1x128xf32>
    %cst_46 = arith.constant dense<0.000000e+00> : vector<1x128xf32>
    %143 = tpu.matmul %142, %0, %cst_46 {dimension_numbers = #tpu.dot_dimension_numbers<[1], [0], [0], [1], [0, 0, 1, 1], [], []>, precision = #tpu.contract_precision<fp32>} : vector<1x128xf32>, vector<128x128xf32>, vector<1x128xf32> -> vector<1x128xf32>
    %144 = arith.mulf %143, %143 : vector<1x128xf32>
    %145 = vector.shape_cast %144 : vector<1x128xf32> to vector<1x1x128xf32>
    %cst_47 = arith.constant dense<0.000000e+00> : vector<1xf32>
    %146 = vector.multi_reduction <add>, %145, %cst_47 [1, 2] : vector<1x1x128xf32> to vector<1xf32>
    %147 = vector.shape_cast %146 : vector<1xf32> to vector<1x1x1xf32>
    %148 = vector.extract %147[0, 0, 0] : f32 from vector<1x1x1xf32>
    %cst_48 = arith.constant 1.000000e-30 : f32
    %149 = arith.addf %148, %cst_48 : f32
    %150 = math.rsqrt %149 : f32
    %151 = vector.broadcast %150 : f32 to vector<1x128xf32>
    %152 = arith.mulf %143, %151 : vector<1x128xf32>
    %153 = arith.subf %152, %134 : vector<1x128xf32>
    %154 = arith.select %141, %134, %152 : vector<1x128xf32>
    %155 = arith.mulf %153, %153 : vector<1x128xf32>
    %156 = vector.shape_cast %155 : vector<1x128xf32> to vector<1x1x128xf32>
    %cst_49 = arith.constant dense<0.000000e+00> : vector<1xf32>
    %157 = vector.multi_reduction <add>, %156, %cst_49 [1, 2] : vector<1x1x128xf32> to vector<1xf32>
    %158 = vector.shape_cast %157 : vector<1xf32> to vector<1x1x1xf32>
    %159 = vector.extract %158[0, 0, 0] : f32 from vector<1x1x1xf32>
    %cst_50 = arith.constant 9.99999996E-13 : f32
    %160 = arith.cmpf olt, %159, %cst_50 : f32
    %161 = arith.ori %141, %160 : i1
    %cst_51 = arith.constant dense<0.000000e+00> : vector<1x128xf32>
    %162 = tpu.matmul %154, %0, %cst_51 {dimension_numbers = #tpu.dot_dimension_numbers<[1], [1], [0], [0], [0, 0, 1, 0], [], []>, precision = #tpu.contract_precision<fp32>} : vector<1x128xf32>, vector<128x128xf32>, vector<1x128xf32> -> vector<1x128xf32>
    %cst_52 = arith.constant dense<0.000000e+00> : vector<1x128xf32>
    %163 = tpu.matmul %162, %0, %cst_52 {dimension_numbers = #tpu.dot_dimension_numbers<[1], [0], [0], [1], [0, 0, 1, 1], [], []>, precision = #tpu.contract_precision<fp32>} : vector<1x128xf32>, vector<128x128xf32>, vector<1x128xf32> -> vector<1x128xf32>
    %164 = arith.mulf %163, %163 : vector<1x128xf32>
    %165 = vector.shape_cast %164 : vector<1x128xf32> to vector<1x1x128xf32>
    %cst_53 = arith.constant dense<0.000000e+00> : vector<1xf32>
    %166 = vector.multi_reduction <add>, %165, %cst_53 [1, 2] : vector<1x1x128xf32> to vector<1xf32>
    %167 = vector.shape_cast %166 : vector<1xf32> to vector<1x1x1xf32>
    %168 = vector.extract %167[0, 0, 0] : f32 from vector<1x1x1xf32>
    %cst_54 = arith.constant 1.000000e-30 : f32
    %169 = arith.addf %168, %cst_54 : f32
    %170 = math.rsqrt %169 : f32
    %171 = vector.broadcast %170 : f32 to vector<1x128xf32>
    %172 = arith.mulf %163, %171 : vector<1x128xf32>
    %173 = arith.subf %172, %154 : vector<1x128xf32>
    %174 = arith.select %161, %154, %172 : vector<1x128xf32>
    %175 = arith.mulf %173, %173 : vector<1x128xf32>
    %176 = vector.shape_cast %175 : vector<1x128xf32> to vector<1x1x128xf32>
    %cst_55 = arith.constant dense<0.000000e+00> : vector<1xf32>
    %177 = vector.multi_reduction <add>, %176, %cst_55 [1, 2] : vector<1x1x128xf32> to vector<1xf32>
    %178 = vector.shape_cast %177 : vector<1xf32> to vector<1x1x1xf32>
    %179 = vector.extract %178[0, 0, 0] : f32 from vector<1x1x1xf32>
    %cst_56 = arith.constant 9.99999996E-13 : f32
    %180 = arith.cmpf olt, %179, %cst_56 : f32
    %181 = arith.ori %161, %180 : i1
    %cst_57 = arith.constant dense<0.000000e+00> : vector<1x128xf32>
    %182 = tpu.matmul %174, %0, %cst_57 {dimension_numbers = #tpu.dot_dimension_numbers<[1], [1], [0], [0], [0, 0, 1, 0], [], []>, precision = #tpu.contract_precision<fp32>} : vector<1x128xf32>, vector<128x128xf32>, vector<1x128xf32> -> vector<1x128xf32>
    %cst_58 = arith.constant dense<0.000000e+00> : vector<1x128xf32>
    %183 = tpu.matmul %182, %0, %cst_58 {dimension_numbers = #tpu.dot_dimension_numbers<[1], [0], [0], [1], [0, 0, 1, 1], [], []>, precision = #tpu.contract_precision<fp32>} : vector<1x128xf32>, vector<128x128xf32>, vector<1x128xf32> -> vector<1x128xf32>
    %184 = arith.mulf %183, %183 : vector<1x128xf32>
    %185 = vector.shape_cast %184 : vector<1x128xf32> to vector<1x1x128xf32>
    %cst_59 = arith.constant dense<0.000000e+00> : vector<1xf32>
    %186 = vector.multi_reduction <add>, %185, %cst_59 [1, 2] : vector<1x1x128xf32> to vector<1xf32>
    %187 = vector.shape_cast %186 : vector<1xf32> to vector<1x1x1xf32>
    %188 = vector.extract %187[0, 0, 0] : f32 from vector<1x1x1xf32>
    %cst_60 = arith.constant 1.000000e-30 : f32
    %189 = arith.addf %188, %cst_60 : f32
    %190 = math.rsqrt %189 : f32
    %191 = vector.broadcast %190 : f32 to vector<1x128xf32>
    %192 = arith.mulf %183, %191 : vector<1x128xf32>
    %193 = arith.select %181, %174, %192 : vector<1x128xf32>
    %cst_61 = arith.constant dense<0.000000e+00> : vector<1x128xf32>
    %194 = tpu.matmul %193, %0, %cst_61 {dimension_numbers = #tpu.dot_dimension_numbers<[1], [1], [0], [0], [0, 0, 1, 0], [], []>, precision = #tpu.contract_precision<fp32>} : vector<1x128xf32>, vector<128x128xf32>, vector<1x128xf32> -> vector<1x128xf32>
    %195 = arith.mulf %194, %194 : vector<1x128xf32>
    %196 = vector.shape_cast %195 : vector<1x128xf32> to vector<1x1x128xf32>
    %cst_62 = arith.constant dense<0.000000e+00> : vector<1xf32>
    %197 = vector.multi_reduction <add>, %196, %cst_62 [1, 2] : vector<1x1x128xf32> to vector<1xf32>
    %198 = vector.shape_cast %197 : vector<1xf32> to vector<1x1x1xf32>
    %199 = vector.extract %198[0, 0, 0] : f32 from vector<1x1x1xf32>
    %200 = math.sqrt %199 : f32
    %cst_63 = arith.constant 9.99999996E-13 : f32
    %201 = arith.maximumf %200, %cst_63 : f32
    %cst_64 = arith.constant 1.000000e+00 : f32
    %202 = arith.divf %cst_64, %201 : f32
    %203 = vector.broadcast %202 : f32 to vector<128x128xf32>
    %204 = arith.mulf %0, %203 : vector<128x128xf32>
    %c0_65 = arith.constant 0 : index
    %c0_66 = arith.constant 0 : index
    %205 = vector.load %arg3[%c0_65, %c0_66] : memref<128x128xf32, #tpu.memory_space<vmem>>, vector<128x128xf32>
    tpu.vector_store %arg3[%c0_65, %c0_66], %204 {strides = array<i32>} : memref<128x128xf32, #tpu.memory_space<vmem>>, vector<128x128xf32>,
    %206 = tpu.iota {dimensions = array<i32: 0>} : vector<128x128xi32>
    %207 = tpu.iota {dimensions = array<i32: 1>} : vector<128x128xi32>
    %208 = arith.cmpi eq, %206, %207 : vector<128x128xi32>
    %c32_i32 = arith.constant 32 : i32
    %209 = vector.broadcast %c32_i32 : i32 to vector<128x128xi32>
    %210 = arith.cmpi slt, %206, %209 : vector<128x128xi32>
    %211 = arith.andi %208, %210 : vector<128x128xi1>
    %cst_67 = arith.constant 1.000000e+00 : f32
    %cst_68 = arith.constant 0.000000e+00 : f32
    %212 = vector.broadcast %cst_67 : f32 to vector<128x128xf32>
    %213 = vector.broadcast %cst_68 : f32 to vector<128x128xf32>
    %214 = arith.select %211, %212, %213 : vector<128x128xi1>, vector<128x128xf32>
    %c0_i32 = arith.constant 0 : i32
    %c0_69 = arith.constant 0 : index
    %215 = memref.load %arg4[%c0_69] : memref<1xi32, #tpu.memory_space<smem>>
    memref.store %c0_i32, %arg4[%c0_69] : memref<1xi32, #tpu.memory_space<smem>>
    %c0_i32_70 = arith.constant 0 : i32
    %c20_i32 = arith.constant 20 : i32
    %216 = arith.addi %c0_i32_70, %c20_i32 : i32
    %c1_i32 = arith.constant 1 : i32
    scf.for %arg5 = %c0_i32_70 to %216 step %c1_i32  : i32 {
      %c0_75 = arith.constant 0 : index
      %220 = memref.load %arg4[%c0_75] : memref<1xi32, #tpu.memory_space<smem>>
      %c0_i32_76 = arith.constant 0 : i32
      %221 = arith.cmpi eq, %220, %c0_i32_76 : i32
      %222 = arith.extui %221 : i1 to i32
      %c0_i32_77 = arith.constant 0 : i32
      %223 = arith.cmpi ne, %222, %c0_i32_77 : i32
      scf.if %223 {
        %c0_78 = arith.constant 0 : index
        %c0_79 = arith.constant 0 : index
        %224 = vector.load %arg3[%c0_78, %c0_79] : memref<128x128xf32, #tpu.memory_space<vmem>>, vector<128x128xf32>
        %cst_80 = arith.constant dense<0.000000e+00> : vector<128x128xf32>
        %225 = tpu.matmul %224, %224, %cst_80 {dimension_numbers = #tpu.dot_dimension_numbers<[1], [1], [0], [0], [0, 0, 1, 0], [], []>, precision = #tpu.contract_precision<fp32>} : vector<128x128xf32>, vector<128x128xf32>, vector<128x128xf32> -> vector<128x128xf32>
        %cst_81 = arith.constant dense<0.000000e+00> : vector<128x128xf32>
        %226 = tpu.matmul %225, %224, %cst_81 {dimension_numbers = #tpu.dot_dimension_numbers<[1], [0], [0], [1], [0, 0, 1, 1], [], []>, precision = #tpu.contract_precision<fp32>} : vector<128x128xf32>, vector<128x128xf32>, vector<128x128xf32> -> vector<128x128xf32>
        %cst_82 = arith.constant 1.500000e+00 : f32
        %227 = vector.broadcast %cst_82 : f32 to vector<128x128xf32>
        %228 = arith.mulf %227, %224 : vector<128x128xf32>
        %cst_83 = arith.constant 5.000000e-01 : f32
        %229 = vector.broadcast %cst_83 : f32 to vector<128x128xf32>
        %230 = arith.mulf %229, %226 : vector<128x128xf32>
        %231 = arith.subf %228, %230 : vector<128x128xf32>
        %c0_84 = arith.constant 0 : index
        %c0_85 = arith.constant 0 : index
        %232 = vector.load %arg3[%c0_84, %c0_85] : memref<128x128xf32, #tpu.memory_space<vmem>>, vector<128x128xf32>
        tpu.vector_store %arg3[%c0_84, %c0_85], %231 {strides = array<i32>} : memref<128x128xf32, #tpu.memory_space<vmem>>, vector<128x128xf32>,
        %233 = arith.subf %225, %214 : vector<128x128xf32>
        %234 = arith.mulf %233, %233 : vector<128x128xf32>
        %235 = vector.shape_cast %234 : vector<128x128xf32> to vector<1x128x128xf32>
        %cst_86 = arith.constant dense<0.000000e+00> : vector<1xf32>
        %236 = vector.multi_reduction <add>, %235, %cst_86 [1, 2] : vector<1x128x128xf32> to vector<1xf32>
        %237 = vector.shape_cast %236 : vector<1xf32> to vector<1x1x1xf32>
        %238 = vector.extract %237[0, 0, 0] : f32 from vector<1x1x1xf32>
        %cst_87 = arith.constant 2.500000e-01 : f32
        %239 = arith.mulf %cst_87, %238 : f32
        %cst_88 = arith.constant 9.99999996E-13 : f32
        %240 = arith.cmpf olt, %239, %cst_88 : f32
        %c1_i32_89 = arith.constant 1 : i32
        %c0_i32_90 = arith.constant 0 : i32
        %241 = arith.select %240, %c1_i32_89, %c0_i32_90 : i32
        %c0_91 = arith.constant 0 : index
        %242 = memref.load %arg4[%c0_91] : memref<1xi32, #tpu.memory_space<smem>>
        memref.store %241, %arg4[%c0_91] : memref<1xi32, #tpu.memory_space<smem>>
      } else {
      }
    }
    %c0_71 = arith.constant 0 : index
    %c0_72 = arith.constant 0 : index
    %217 = vector.load %arg3[%c0_71, %c0_72] : memref<128x128xf32, #tpu.memory_space<vmem>>, vector<128x128xf32>
    %218 = tpu.transpose %217, [1, 0] : vector<128x128xf32> -> vector<128x128xf32>
    %c0_73 = arith.constant 0 : index
    %c0_74 = arith.constant 0 : index
    %219 = vector.load %arg2[%c0_73, %c0_74] : memref<128x128xf32, #tpu.memory_space<vmem>>, vector<128x128xf32>
    tpu.vector_store %arg2[%c0_73, %c0_74], %218 {strides = array<i32>} : memref<128x128xf32, #tpu.memory_space<vmem>>, vector<128x128xf32>,
    return
  }
}

</mosaic_0001>

<llo_original>
// kernel: bjorck_orthonormal_weight_t.1
$region0: #{bjorck_orthonormal_weight_t.1}
  #allocation0 [shape = 'u32[]', space=smem, size = 0x4, offset = 0x4, fixed_abs, tag = 'smem constant byte address 0x4 - core index']
  #allocation1 [shape = 'u32[72,128]{1,0:T(1,128)}', space=vmem, size = 0x9000, scoped, tag = 'internal scratch']
  #allocation2 [shape = 'f32[128,128]{1,0:T(8,128)}', space=vmem, size = 0x10000, scoped, tag = 'scratch operand']
  #allocation3 [shape = 's32[1]{0:T(128)}', space=smem, size = 0x200, scoped, tag = 'scratch operand']
  %s0 = inlined_call_operand.vmem [shape: f32[128,128], index: 0, kind: input, shape index: {}]
  %s1 = inlined_call_operand.vmem [shape: f32[1,128], index: 1, kind: input, shape index: {}]
  %s2 = inlined_call_operand.hbm [shape: f32[128,128], index: 2, kind: output, shape index: {}]
  %s3 = sld [smem:[#allocation0]]
  $region29: #{bjorck_orthonormal_weight_t.1} parent=0
    _
  %s5 = ssub.s32 1, %s3
  %s6 = scalar_select 0, %s5, %s3
  $region1: #{bjorck_orthonormal_weight_t.1} parent=0
    #allocation4 [shape = 'u8[65536]{0}', space=vmem, size = 0x10000, scoped, tag = 'output window, operand 0, single buffered']
    #allocation5 [shape = 's32[1]{0}', space=sflag, size = 0x4, scoped, tag = 'scoped memory for bjorck_orthonormal_weight_t.1']
    %7 = vsyncpa [#allocation5], 0
    // Predicated region
    $region2: #{bjorck_orthonormal_weight_t.1} parent=1 // pred_check
      _
    $region3: #{bjorck_orthonormal_weight_t.1} parent=1 // pred_check_branch
      %9 = sbr.rel (0) target = $region5
    $region4: #{bjorck_orthonormal_weight_t.1} parent=1 // pred_region
      _
    $region5: #{bjorck_orthonormal_weight_t.1} parent=1 // pred_fallthru
      _
    // Predicated region
    $region6: #{bjorck_orthonormal_weight_t.1} parent=1 // pred_check
      _
    $region7: #{bjorck_orthonormal_weight_t.1} parent=1 // pred_check_branch
      %11 = sbr.rel (0) target = $region9
    $region8: #{bjorck_orthonormal_weight_t.1} parent=1 // pred_region
      _
    $region9: #{bjorck_orthonormal_weight_t.1} parent=1 // pred_fallthru
      _
    %v12 = vld [vmem:[%s0] sm:$0xff]
    %v13 = vld [vmem:[%s0 + $0x8] sm:$0xff]
    %v14 = vld [vmem:[%s0 + $0x10] sm:$0xff]
    %v15 = vld [vmem:[%s0 + $0x18] sm:$0xff]
    %v16 = vld [vmem:[%s0 + $0x20] sm:$0xff]
    %v17 = vld [vmem:[%s0 + $0x28] sm:$0xff]
    %v18 = vld [vmem:[%s0 + $0x30] sm:$0xff]
    %v19 = vld [vmem:[%s0 + $0x38] sm:$0xff]
    %v20 = vld [vmem:[%s0 + $0x40] sm:$0xff]
    %v21 = vld [vmem:[%s0 + $0x48] sm:$0xff]
    %v22 = vld [vmem:[%s0 + $0x50] sm:$0xff]
    %v23 = vld [vmem:[%s0 + $0x58] sm:$0xff]
    %v24 = vld [vmem:[%s0 + $0x60] sm:$0xff]
    %v25 = vld [vmem:[%s0 + $0x68] sm:$0xff]
    %v26 = vld [vmem:[%s0 + $0x70] sm:$0xff]
    %v27 = vld [vmem:[%s0 + $0x78] sm:$0xff]
    %v28 = vld [vmem:[%s1] sm:$0x1]
    %v29 = vand.u32 %v27, 4294901760
    %30 = vmatpush.xpose.msra.mxu0 %v29
    %v31 = vand.u32 %v26, 4294901760
    %32 = vmatpush.xpose.msra.mxu0 %v31
    %v33 = vand.u32 %v25, 4294901760
    %34 = vmatpush.xpose.msra.mxu0 %v33
    %v35 = vand.u32 %v24, 4294901760
    %36 = vmatpush.xpose.msra.mxu0 %v35
    %v37 = vand.u32 %v23, 4294901760
    %38 = vmatpush.xpose.msra.mxu0 %v37
    %v39 = vand.u32 %v22, 4294901760
    %40 = vmatpush.xpose.msra.mxu0 %v39
    %v41 = vand.u32 %v21, 4294901760
    %42 = vmatpush.xpose.msra.mxu0 %v41
    %v43 = vand.u32 %v20, 4294901760
    %44 = vmatpush.xpose.msra.mxu0 %v43
    %v45 = vand.u32 %v19, 4294901760
    %46 = vmatpush.xpose.msra.mxu0 %v45
    %v47 = vand.u32 %v18, 4294901760
    %48 = vmatpush.xpose.msra.mxu0 %v47
    %v49 = vand.u32 %v17, 4294901760
    %50 = vmatpush.xpose.msra.mxu0 %v49
    %v51 = vand.u32 %v16, 4294901760
    %52 = vmatpush.xpose.msra.mxu0 %v51
    %v53 = vand.u32 %v15, 4294901760
    %54 = vmatpush.xpose.msra.mxu0 %v53
    %v55 = vand.u32 %v14, 4294901760
    %56 = vmatpush.xpose.msra.mxu0 %v55
    %v57 = vand.u32 %v13, 4294901760
    %58 = vmatpush.xpose.msra.mxu0 %v57
    %v59 = vand.u32 %v12, 4294901760
    %60 = vmatpush.xpose.msra.mxu0 %v59
    %v61 = vand.u32 %v28, 4294901760
    %v62 = vsub.f32 %v28, %v61
    %v63 = vand.u32 %v62, 4294901760
    %v64 = vsub.f32 %v62, %v63
    %v65 = vand.u32 %v64, 4294901760
    %66 = vmatmul.f32.gmra.mxu0 %v65
    %v67 = vpop.f32.mrf.mxu0
    %v68 = vadd.f32 0.0, %v67
    %69 = vdwg.mxu0
    %v70 = vand.u32 %v27, 4294901760
    %v71 = vsub.f32 %v27, %v70
    %v72 = vand.u32 %v71, 4294901760
    %v73 = vsub.f32 %v71, %v72
    %v74 = vand.u32 %v73, 4294901760
    %75 = vmatpush.xpose.msra.mxu0 %v74
    %v76 = vand.u32 %v26, 4294901760
    %v77 = vsub.f32 %v26, %v76
    %v78 = vand.u32 %v77, 4294901760
    %v79 = vsub.f32 %v77, %v78
    %v80 = vand.u32 %v79, 4294901760
    %81 = vmatpush.xpose.msra.mxu0 %v80
    %v82 = vand.u32 %v25, 4294901760
    %v83 = vsub.f32 %v25, %v82
    %v84 = vand.u32 %v83, 4294901760
    %v85 = vsub.f32 %v83, %v84
    %v86 = vand.u32 %v85, 4294901760
    %87 = vmatpush.xpose.msra.mxu0 %v86
    %v88 = vand.u32 %v24, 4294901760
    %v89 = vsub.f32 %v24, %v88
    %v90 = vand.u32 %v89, 4294901760
    %v91 = vsub.f32 %v89, %v90
    %v92 = vand.u32 %v91, 4294901760
    %93 = vmatpush.xpose.msra.mxu0 %v92
    %v94 = vand.u32 %v23, 4294901760
    %v95 = vsub.f32 %v23, %v94
    %v96 = vand.u32 %v95, 4294901760
    %v97 = vsub.f32 %v95, %v96
    %v98 = vand.u32 %v97, 4294901760
    %99 = vmatpush.xpose.msra.mxu0 %v98
    %v100 = vand.u32 %v22, 4294901760
    %v101 = vsub.f32 %v22, %v100
    %v102 = vand.u32 %v101, 4294901760
    %v103 = vsub.f32 %v101, %v102
    %v104 = vand.u32 %v103, 4294901760
    %105 = vmatpush.xpose.msra.mxu0 %v104
    %v106 = vand.u32 %v21, 4294901760
    %v107 = vsub.f32 %v21, %v106
    %v108 = vand.u32 %v107, 4294901760
    %v109 = vsub.f32 %v107, %v108
    %v110 = vand.u32 %v109, 4294901760
    %111 = vmatpush.xpose.msra.mxu0 %v110
    %v112 = vand.u32 %v20, 4294901760
    %v113 = vsub.f32 %v20, %v112
    %v114 = vand.u32 %v113, 4294901760
    %v115 = vsub.f32 %v113, %v114
    %v116 = vand.u32 %v115, 4294901760
    %117 = vmatpush.xpose.msra.mxu0 %v116
    %v118 = vand.u32 %v19, 4294901760
    %v119 = vsub.f32 %v19, %v118
    %v120 = vand.u32 %v119, 4294901760
    %v121 = vsub.f32 %v119, %v120
    %v122 = vand.u32 %v121, 4294901760
    %123 = vmatpush.xpose.msra.mxu0 %v122
    %v124 = vand.u32 %v18, 4294901760
    %v125 = vsub.f32 %v18, %v124
    %v126 = vand.u32 %v125, 4294901760
    %v127 = vsub.f32 %v125, %v126
    %v128 = vand.u32 %v127, 4294901760
    %129 = vmatpush.xpose.msra.mxu0 %v128
    %v130 = vand.u32 %v17, 4294901760
    %v131 = vsub.f32 %v17, %v130
    %v132 = vand.u32 %v131, 4294901760
    %v133 = vsub.f32 %v131, %v132
    %v134 = vand.u32 %v133, 4294901760
    %135 = vmatpush.xpose.msra.mxu0 %v134
    %v136 = vand.u32 %v16, 4294901760
    %v137 = vsub.f32 %v16, %v136
    %v138 = vand.u32 %v137, 4294901760
    %v139 = vsub.f32 %v137, %v138
    %v140 = vand.u32 %v139, 4294901760
    %141 = vmatpush.xpose.msra.mxu0 %v140
    %v142 = vand.u32 %v15, 4294901760
    %v143 = vsub.f32 %v15, %v142
    %v144 = vand.u32 %v143, 4294901760
    %v145 = vsub.f32 %v143, %v144
    %v146 = vand.u32 %v145, 4294901760
    %147 = vmatpush.xpose.msra.mxu0 %v146
    %v148 = vand.u32 %v14, 4294901760
    %v149 = vsub.f32 %v14, %v148
    %v150 = vand.u32 %v149, 4294901760
    %v151 = vsub.f32 %v149, %v150
    %v152 = vand.u32 %v151, 4294901760
    %153 = vmatpush.xpose.msra.mxu0 %v152
    %v154 = vand.u32 %v13, 4294901760
    %v155 = vsub.f32 %v13, %v154
    %v156 = vand.u32 %v155, 4294901760
    %v157 = vsub.f32 %v155, %v156
    %v158 = vand.u32 %v157, 4294901760
    %159 = vmatpush.xpose.msra.mxu0 %v158
    %v160 = vand.u32 %v12, 4294901760
    %v161 = vsub.f32 %v12, %v160
    %v162 = vand.u32 %v161, 4294901760
    %v163 = vsub.f32 %v161, %v162
    %v164 = vand.u32 %v163, 4294901760
    %165 = vmatpush.xpose.msra.mxu0 %v164
    %v166 = vand.u32 %v28, 4294901760
    %167 = vmatmul.f32.gmra.mxu0 %v166
    %v168 = vpop.f32.mrf.mxu0
    %v169 = vadd.f32 %v68, %v168
    %170 = vdwg.mxu0
    %v171 = vand.u32 %v27, 4294901760
    %v172 = vsub.f32 %v27, %v171
    %173 = vmatpush.xpose.msra.mxu0 %v172
    %v174 = vand.u32 %v26, 4294901760
    %v175 = vsub.f32 %v26, %v174
    %176 = vmatpush.xpose.msra.mxu0 %v175
    %v177 = vand.u32 %v25, 4294901760
    %v178 = vsub.f32 %v25, %v177
    %179 = vmatpush.xpose.msra.mxu0 %v178
    %v180 = vand.u32 %v24, 4294901760
    %v181 = vsub.f32 %v24, %v180
    %182 = vmatpush.xpose.msra.mxu0 %v181
    %v183 = vand.u32 %v23, 4294901760
    %v184 = vsub.f32 %v23, %v183
    %185 = vmatpush.xpose.msra.mxu0 %v184
    %v186 = vand.u32 %v22, 4294901760
    %v187 = vsub.f32 %v22, %v186
    %188 = vmatpush.xpose.msra.mxu0 %v187
    %v189 = vand.u32 %v21, 4294901760
    %v190 = vsub.f32 %v21, %v189
    %191 = vmatpush.xpose.msra.mxu0 %v190
    %v192 = vand.u32 %v20, 4294901760
    %v193 = vsub.f32 %v20, %v192
    %194 = vmatpush.xpose.msra.mxu0 %v193
    %v195 = vand.u32 %v19, 4294901760
    %v196 = vsub.f32 %v19, %v195
    %197 = vmatpush.xpose.msra.mxu0 %v196
    %v198 = vand.u32 %v18, 4294901760
    %v199 = vsub.f32 %v18, %v198
    %200 = vmatpush.xpose.msra.mxu0 %v199
    %v201 = vand.u32 %v17, 4294901760
    %v202 = vsub.f32 %v17, %v201
    %203 = vmatpush.xpose.msra.mxu0 %v202
    %v204 = vand.u32 %v16, 4294901760
    %v205 = vsub.f32 %v16, %v204
    %206 = vmatpush.xpose.msra.mxu0 %v205
    %v207 = vand.u32 %v15, 4294901760
    %v208 = vsub.f32 %v15, %v207
    %209 = vmatpush.xpose.msra.mxu0 %v208
    %v210 = vand.u32 %v14, 4294901760
    %v211 = vsub.f32 %v14, %v210
    %212 = vmatpush.xpose.msra.mxu0 %v211
    %v213 = vand.u32 %v13, 4294901760
    %v214 = vsub.f32 %v13, %v213
    %215 = vmatpush.xpose.msra.mxu0 %v214
    %v216 = vand.u32 %v12, 4294901760
    %v217 = vsub.f32 %v12, %v216
    %218 = vmatpush.xpose.msra.mxu0 %v217
    %v219 = vand.u32 %v28, 4294901760
    %v220 = vsub.f32 %v28, %v219
    %221 = vmatmul.f32.gmra.mxu0 %v220
    %v222 = vpop.f32.mrf.mxu0
    %v223 = vadd.f32 %v169, %v222
    %224 = vdwg.mxu0
    %v225 = vand.u32 %v27, 4294901760
    %226 = vmatpush.xpose.msra.mxu0 %v225
    %v227 = vand.u32 %v26, 4294901760
    %228 = vmatpush.xpose.msra.mxu0 %v227
    %v229 = vand.u32 %v25, 4294901760
    %230 = vmatpush.xpose.msra.mxu0 %v229
    %v231 = vand.u32 %v24, 4294901760
    %232 = vmatpush.xpose.msra.mxu0 %v231
    %v233 = vand.u32 %v23, 4294901760
    %234 = vmatpush.xpose.msra.mxu0 %v233
    %v235 = vand.u32 %v22, 4294901760
    %236 = vmatpush.xpose.msra.mxu0 %v235
    %v237 = vand.u32 %v21, 4294901760
    %238 = vmatpush.xpose.msra.mxu0 %v237
    %v239 = vand.u32 %v20, 4294901760
    %240 = vmatpush.xpose.msra.mxu0 %v239
    %v241 = vand.u32 %v19, 4294901760
    %242 = vmatpush.xpose.msra.mxu0 %v241
    %v243 = vand.u32 %v18, 4294901760
    %244 = vmatpush.xpose.msra.mxu0 %v243
    %v245 = vand.u32 %v17, 4294901760
    %246 = vmatpush.xpose.msra.mxu0 %v245
    %v247 = vand.u32 %v16, 4294901760
    %248 = vmatpush.xpose.msra.mxu0 %v247
    %v249 = vand.u32 %v15, 4294901760
    %250 = vmatpush.xpose.msra.mxu0 %v249
    %v251 = vand.u32 %v14, 4294901760
    %252 = vmatpush.xpose.msra.mxu0 %v251
    %v253 = vand.u32 %v13, 4294901760
    %254 = vmatpush.xpose.msra.mxu0 %v253
    %v255 = vand.u32 %v12, 4294901760
    %256 = vmatpush.xpose.msra.mxu0 %v255
    %v257 = vand.u32 %v28, 4294901760
    %v258 = vsub.f32 %v28, %v257
    %v259 = vand.u32 %v258, 4294901760
    %260 = vmatmul.f32.gmra.mxu0 %v259
    %v261 = vpop.f32.mrf.mxu0
    %v262 = vadd.f32 %v223, %v261
    %263 = vdwg.mxu0
    %v264 = vand.u32 %v27, 4294901760
    %v265 = vsub.f32 %v27, %v264
    %v266 = vand.u32 %v265, 4294901760
    %267 = vmatpush.xpose.msra.mxu0 %v266
    %v268 = vand.u32 %v26, 4294901760
    %v269 = vsub.f32 %v26, %v268
    %v270 = vand.u32 %v269, 4294901760
    %271 = vmatpush.xpose.msra.mxu0 %v270
    %v272 = vand.u32 %v25, 4294901760
    %v273 = vsub.f32 %v25, %v272
    %v274 = vand.u32 %v273, 4294901760
    %275 = vmatpush.xpose.msra.mxu0 %v274
    %v276 = vand.u32 %v24, 4294901760
    %v277 = vsub.f32 %v24, %v276
    %v278 = vand.u32 %v277, 4294901760
    %279 = vmatpush.xpose.msra.mxu0 %v278
    %v280 = vand.u32 %v23, 4294901760
    %v281 = vsub.f32 %v23, %v280
    %v282 = vand.u32 %v281, 4294901760
    %283 = vmatpush.xpose.msra.mxu0 %v282
    %v284 = vand.u32 %v22, 4294901760
    %v285 = vsub.f32 %v22, %v284
    %v286 = vand.u32 %v285, 4294901760
    %287 = vmatpush.xpose.msra.mxu0 %v286
    %v288 = vand.u32 %v21, 4294901760
    %v289 = vsub.f32 %v21, %v288
    %v290 = vand.u32 %v289, 4294901760
    %291 = vmatpush.xpose.msra.mxu0 %v290
    %v292 = vand.u32 %v20, 4294901760
    %v293 = vsub.f32 %v20, %v292
    %v294 = vand.u32 %v293, 4294901760
    %295 = vmatpush.xpose.msra.mxu0 %v294
    %v296 = vand.u32 %v19, 4294901760
    %v297 = vsub.f32 %v19, %v296
    %v298 = vand.u32 %v297, 4294901760
    %299 = vmatpush.xpose.msra.mxu0 %v298
    %v300 = vand.u32 %v18, 4294901760
    %v301 = vsub.f32 %v18, %v300
    %v302 = vand.u32 %v301, 4294901760
    %303 = vmatpush.xpose.msra.mxu0 %v302
    %v304 = vand.u32 %v17, 4294901760
    %v305 = vsub.f32 %v17, %v304
    %v306 = vand.u32 %v305, 4294901760
    %307 = vmatpush.xpose.msra.mxu0 %v306
    %v308 = vand.u32 %v16, 4294901760
    %v309 = vsub.f32 %v16, %v308
    %v310 = vand.u32 %v309, 4294901760
    %311 = vmatpush.xpose.msra.mxu0 %v310
    %v312 = vand.u32 %v15, 4294901760
    %v313 = vsub.f32 %v15, %v312
    %v314 = vand.u32 %v313, 4294901760
    %315 = vmatpush.xpose.msra.mxu0 %v314
    %v316 = vand.u32 %v14, 4294901760
    %v317 = vsub.f32 %v14, %v316
    %v318 = vand.u32 %v317, 4294901760
    %319 = vmatpush.xpose.msra.mxu0 %v318
    %v320 = vand.u32 %v13, 4294901760
    %v321 = vsub.f32 %v13, %v320
    %v322 = vand.u32 %v321, 4294901760
    %323 = vmatpush.xpose.msra.mxu0 %v322
    %v324 = vand.u32 %v12, 4294901760
    %v325 = vsub.f32 %v12, %v324
    %v326 = vand.u32 %v325, 4294901760
    %327 = vmatpush.xpose.msra.mxu0 %v326
    %v328 = vand.u32 %v28, 4294901760
    %329 = vmatmul.f32.gmra.mxu0 %v328
    %v330 = vpop.f32.mrf.mxu0
    %v331 = vadd.f32 %v262, %v330
    %332 = vdwg.mxu0
    %v333 = vand.u32 %v27, 4294901760
    %334 = vmatpush.xpose.msra.mxu0 %v333
    %v335 = vand.u32 %v26, 4294901760
    %336 = vmatpush.xpose.msra.mxu0 %v335
    %v337 = vand.u32 %v25, 4294901760
    %338 = vmatpush.xpose.msra.mxu0 %v337
    %v339 = vand.u32 %v24, 4294901760
    %340 = vmatpush.xpose.msra.mxu0 %v339
    %v341 = vand.u32 %v23, 4294901760
    %342 = vmatpush.xpose.msra.mxu0 %v341
    %v343 = vand.u32 %v22, 4294901760
    %344 = vmatpush.xpose.msra.mxu0 %v343
    %v345 = vand.u32 %v21, 4294901760
    %346 = vmatpush.xpose.msra.mxu0 %v345
    %v347 = vand.u32 %v20, 4294901760
    %348 = vmatpush.xpose.msra.mxu0 %v347
    %v349 = vand.u32 %v19, 4294901760
    %350 = vmatpush.xpose.msra.mxu0 %v349
    %v351 = vand.u32 %v18, 4294901760
    %352 = vmatpush.xpose.msra.mxu0 %v351
    %v353 = vand.u32 %v17, 4294901760
    %354 = vmatpush.xpose.msra.mxu0 %v353
    %v355 = vand.u32 %v16, 4294901760
    %356 = vmatpush.xpose.msra.mxu0 %v355
    %v357 = vand.u32 %v15, 4294901760
    %358 = vmatpush.xpose.msra.mxu0 %v357
    %v359 = vand.u32 %v14, 4294901760
    %360 = vmatpush.xpose.msra.mxu0 %v359
    %v361 = vand.u32 %v13, 4294901760
    %362 = vmatpush.xpose.msra.mxu0 %v361
    %v363 = vand.u32 %v12, 4294901760
    %364 = vmatpush.xpose.msra.mxu0 %v363
    %v365 = vand.u32 %v28, 4294901760
    %366 = vmatmul.f32.gmra.mxu0 %v365
    %v367 = vpop.f32.mrf.mxu0
    %v368 = vadd.f32 %v331, %v367
    %369 = vdwg.mxu0
    %v370 = vand.u32 %v27, 4294901760
    %371 = vmatpush.msra.mxu0 %v370
    %v372 = vand.u32 %v26, 4294901760
    %373 = vmatpush.msra.mxu0 %v372
    %v374 = vand.u32 %v25, 4294901760
    %375 = vmatpush.msra.mxu0 %v374
    %v376 = vand.u32 %v24, 4294901760
    %377 = vmatpush.msra.mxu0 %v376
    %v378 = vand.u32 %v23, 4294901760
    %379 = vmatpush.msra.mxu0 %v378
    %v380 = vand.u32 %v22, 4294901760
    %381 = vmatpush.msra.mxu0 %v380
    %v382 = vand.u32 %v21, 4294901760
    %383 = vmatpush.msra.mxu0 %v382
    %v384 = vand.u32 %v20, 4294901760
    %385 = vmatpush.msra.mxu0 %v384
    %v386 = vand.u32 %v19, 4294901760
    %387 = vmatpush.msra.mxu0 %v386
    %v388 = vand.u32 %v18, 4294901760
    %389 = vmatpush.msra.mxu0 %v388
    %v390 = vand.u32 %v17, 4294901760
    %391 = vmatpush.msra.mxu0 %v390
    %v392 = vand.u32 %v16, 4294901760
    %393 = vmatpush.msra.mxu0 %v392
    %v394 = vand.u32 %v15, 4294901760
    %395 = vmatpush.msra.mxu0 %v394
    %v396 = vand.u32 %v14, 4294901760
    %397 = vmatpush.msra.mxu0 %v396
    %v398 = vand.u32 %v13, 4294901760
    %399 = vmatpush.msra.mxu0 %v398
    %v400 = vand.u32 %v12, 4294901760
    %401 = vmatpush.msra.mxu0 %v400
    %v402 = vand.u32 %v368, 4294901760
    %v403 = vsub.f32 %v368, %v402
    %v404 = vand.u32 %v403, 4294901760
    %v405 = vsub.f32 %v403, %v404
    %v406 = vand.u32 %v405, 4294901760
    %407 = vmatmul.f32.gmra.mxu0 %v406
    %v408 = vpop.f32.mrf.mxu0
    %v409 = vadd.f32 0.0, %v408
    %410 = vdwg.mxu0
    %v411 = vand.u32 %v27, 4294901760
    %v412 = vsub.f32 %v27, %v411
    %v413 = vand.u32 %v412, 4294901760
    %v414 = vsub.f32 %v412, %v413
    %v415 = vand.u32 %v414, 4294901760
    %416 = vmatpush.msra.mxu0 %v415
    %v417 = vand.u32 %v26, 4294901760
    %v418 = vsub.f32 %v26, %v417
    %v419 = vand.u32 %v418, 4294901760
    %v420 = vsub.f32 %v418, %v419
    %v421 = vand.u32 %v420, 4294901760
    %422 = vmatpush.msra.mxu0 %v421
    %v423 = vand.u32 %v25, 4294901760
    %v424 = vsub.f32 %v25, %v423
    %v425 = vand.u32 %v424, 4294901760
    %v426 = vsub.f32 %v424, %v425
    %v427 = vand.u32 %v426, 4294901760
    %428 = vmatpush.msra.mxu0 %v427
    %v429 = vand.u32 %v24, 4294901760
    %v430 = vsub.f32 %v24, %v429
    %v431 = vand.u32 %v430, 4294901760
    %v432 = vsub.f32 %v430, %v431
    %v433 = vand.u32 %v432, 4294901760
    %434 = vmatpush.msra.mxu0 %v433
    %v435 = vand.u32 %v23, 4294901760
    %v436 = vsub.f32 %v23, %v435
    %v437 = vand.u32 %v436, 4294901760
    %v438 = vsub.f32 %v436, %v437
    %v439 = vand.u32 %v438, 4294901760
    %440 = vmatpush.msra.mxu0 %v439
    %v441 = vand.u32 %v22, 4294901760
    %v442 = vsub.f32 %v22, %v441
    %v443 = vand.u32 %v442, 4294901760
    %v444 = vsub.f32 %v442, %v443
    %v445 = vand.u32 %v444, 4294901760
    %446 = vmatpush.msra.mxu0 %v445
    %v447 = vand.u32 %v21, 4294901760
    %v448 = vsub.f32 %v21, %v447
    %v449 = vand.u32 %v448, 4294901760
    %v450 = vsub.f32 %v448, %v449
    %v451 = vand.u32 %v450, 4294901760
    %452 = vmatpush.msra.mxu0 %v451
    %v453 = vand.u32 %v20, 4294901760
    %v454 = vsub.f32 %v20, %v453
    %v455 = vand.u32 %v454, 4294901760
    %v456 = vsub.f32 %v454, %v455
    %v457 = vand.u32 %v456, 4294901760
    %458 = vmatpush.msra.mxu0 %v457
    %v459 = vand.u32 %v19, 4294901760
    %v460 = vsub.f32 %v19, %v459
    %v461 = vand.u32 %v460, 4294901760
    %v462 = vsub.f32 %v460, %v461
    %v463 = vand.u32 %v462, 4294901760
    %464 = vmatpush.msra.mxu0 %v463
    %v465 = vand.u32 %v18, 4294901760
    %v466 = vsub.f32 %v18, %v465
    %v467 = vand.u32 %v466, 4294901760
    %v468 = vsub.f32 %v466, %v467
    %v469 = vand.u32 %v468, 4294901760
    %470 = vmatpush.msra.mxu0 %v469
    %v471 = vand.u32 %v17, 4294901760
    %v472 = vsub.f32 %v17, %v471
    %v473 = vand.u32 %v472, 4294901760
    %v474 = vsub.f32 %v472, %v473
    %v475 = vand.u32 %v474, 4294901760
    %476 = vmatpush.msra.mxu0 %v475
    %v477 = vand.u32 %v16, 4294901760
    %v478 = vsub.f32 %v16, %v477
    %v479 = vand.u32 %v478, 4294901760
    %v480 = vsub.f32 %v478, %v479
    %v481 = vand.u32 %v480, 4294901760
    %482 = vmatpush.msra.mxu0 %v481
    %v483 = vand.u32 %v15, 4294901760
    %v484 = vsub.f32 %v15, %v483
    %v485 = vand.u32 %v484, 4294901760
    %v486 = vsub.f32 %v484, %v485
    %v487 = vand.u32 %v486, 4294901760
    %488 = vmatpush.msra.mxu0 %v487
    %v489 = vand.u32 %v14, 4294901760
    %v490 = vsub.f32 %v14, %v489
    %v491 = vand.u32 %v490, 4294901760
    %v492 = vsub.f32 %v490, %v491
    %v493 = vand.u32 %v492, 4294901760
    %494 = vmatpush.msra.mxu0 %v493
    %v495 = vand.u32 %v13, 4294901760
    %v496 = vsub.f32 %v13, %v495
    %v497 = vand.u32 %v496, 4294901760
    %v498 = vsub.f32 %v496, %v497
    %v499 = vand.u32 %v498, 4294901760
    %500 = vmatpush.msra.mxu0 %v499
    %v501 = vand.u32 %v12, 4294901760
    %v502 = vsub.f32 %v12, %v501
    %v503 = vand.u32 %v502, 4294901760
    %v504 = vsub.f32 %v502, %v503
    %v505 = vand.u32 %v504, 4294901760
    %506 = vmatpush.msra.mxu0 %v505
    %v507 = vand.u32 %v368, 4294901760
    %508 = vmatmul.f32.gmra.mxu0 %v507
    %v509 = vpop.f32.mrf.mxu0
    %v510 = vadd.f32 %v409, %v509
    %511 = vdwg.mxu0
    %v512 = vand.u32 %v27, 4294901760
    %v513 = vsub.f32 %v27, %v512
    %514 = vmatpush.msra.mxu0 %v513
    %v515 = vand.u32 %v26, 4294901760
    %v516 = vsub.f32 %v26, %v515
    %517 = vmatpush.msra.mxu0 %v516
    %v518 = vand.u32 %v25, 4294901760
    %v519 = vsub.f32 %v25, %v518
    %520 = vmatpush.msra.mxu0 %v519
    %v521 = vand.u32 %v24, 4294901760
    %v522 = vsub.f32 %v24, %v521
    %523 = vmatpush.msra.mxu0 %v522
    %v524 = vand.u32 %v23, 4294901760
    %v525 = vsub.f32 %v23, %v524
    %526 = vmatpush.msra.mxu0 %v525
    %v527 = vand.u32 %v22, 4294901760
    %v528 = vsub.f32 %v22, %v527
    %529 = vmatpush.msra.mxu0 %v528
    %v530 = vand.u32 %v21, 4294901760
    %v531 = vsub.f32 %v21, %v530
    %532 = vmatpush.msra.mxu0 %v531
    %v533 = vand.u32 %v20, 4294901760
    %v534 = vsub.f32 %v20, %v533
    %535 = vmatpush.msra.mxu0 %v534
    %v536 = vand.u32 %v19, 4294901760
    %v537 = vsub.f32 %v19, %v536
    %538 = vmatpush.msra.mxu0 %v537
    %v539 = vand.u32 %v18, 4294901760
    %v540 = vsub.f32 %v18, %v539
    %541 = vmatpush.msra.mxu0 %v540
    %v542 = vand.u32 %v17, 4294901760
    %v543 = vsub.f32 %v17, %v542
    %544 = vmatpush.msra.mxu0 %v543
    %v545 = vand.u32 %v16, 4294901760
    %v546 = vsub.f32 %v16, %v545
    %547 = vmatpush.msra.mxu0 %v546
    %v548 = vand.u32 %v15, 4294901760
    %v549 = vsub.f32 %v15, %v548
    %550 = vmatpush.msra.mxu0 %v549
    %v551 = vand.u32 %v14, 4294901760
    %v552 = vsub.f32 %v14, %v551
    %553 = vmatpush.msra.mxu0 %v552
    %v554 = vand.u32 %v13, 4294901760
    %v555 = vsub.f32 %v13, %v554
    %556 = vmatpush.msra.mxu0 %v555
    %v557 = vand.u32 %v12, 4294901760
    %v558 = vsub.f32 %v12, %v557
    %559 = vmatpush.msra.mxu0 %v558
    %v560 = vand.u32 %v368, 4294901760
    %v561 = vsub.f32 %v368, %v560
    %562 = vmatmul.f32.gmra.mxu0 %v561
    %v563 = vpop.f32.mrf.mxu0
    %v564 = vadd.f32 %v510, %v563
    %565 = vdwg.mxu0
    %v566 = vand.u32 %v27, 4294901760
    %567 = vmatpush.msra.mxu0 %v566
    %v568 = vand.u32 %v26, 4294901760
    %569 = vmatpush.msra.mxu0 %v568
    %v570 = vand.u32 %v25, 4294901760
    %571 = vmatpush.msra.mxu0 %v570
    %v572 = vand.u32 %v24, 4294901760
    %573 = vmatpush.msra.mxu0 %v572
    %v574 = vand.u32 %v23, 4294901760
    %575 = vmatpush.msra.mxu0 %v574
    %v576 = vand.u32 %v22, 4294901760
    %577 = vmatpush.msra.mxu0 %v576
    %v578 = vand.u32 %v21, 4294901760
    %579 = vmatpush.msra.mxu0 %v578
    %v580 = vand.u32 %v20, 4294901760
    %581 = vmatpush.msra.mxu0 %v580
    %v582 = vand.u32 %v19, 4294901760
    %583 = vmatpush.msra.mxu0 %v582
    %v584 = vand.u32 %v18, 4294901760
    %585 = vmatpush.msra.mxu0 %v584
    %v586 = vand.u32 %v17, 4294901760
    %587 = vmatpush.msra.mxu0 %v586
    %v588 = vand.u32 %v16, 4294901760
    %589 = vmatpush.msra.mxu0 %v588
    %v590 = vand.u32 %v15, 4294901760
    %591 = vmatpush.msra.mxu0 %v590
    %v592 = vand.u32 %v14, 4294901760
    %593 = vmatpush.msra.mxu0 %v592
    %v594 = vand.u32 %v13, 4294901760
    %595 = vmatpush.msra.mxu0 %v594
    %v596 = vand.u32 %v12, 4294901760
    %597 = vmatpush.msra.mxu0 %v596
    %v598 = vand.u32 %v368, 4294901760
    %v599 = vsub.f32 %v368, %v598
    %v600 = vand.u32 %v599, 4294901760
    %601 = vmatmul.f32.gmra.mxu0 %v600
    %v602 = vpop.f32.mrf.mxu0
    %v603 = vadd.f32 %v564, %v602
    %604 = vdwg.mxu0
    %v605 = vand.u32 %v27, 4294901760
    %v606 = vsub.f32 %v27, %v605
    %v607 = vand.u32 %v606, 4294901760
    %608 = vmatpush.msra.mxu0 %v607
    %v609 = vand.u32 %v26, 4294901760
    %v610 = vsub.f32 %v26, %v609
    %v611 = vand.u32 %v610, 4294901760
    %612 = vmatpush.msra.mxu0 %v611
    %v613 = vand.u32 %v25, 4294901760
    %v614 = vsub.f32 %v25, %v613
    %v615 = vand.u32 %v614, 4294901760
    %616 = vmatpush.msra.mxu0 %v615
    %v617 = vand.u32 %v24, 4294901760
    %v618 = vsub.f32 %v24, %v617
    %v619 = vand.u32 %v618, 4294901760
    %620 = vmatpush.msra.mxu0 %v619
    %v621 = vand.u32 %v23, 4294901760
    %v622 = vsub.f32 %v23, %v621
    %v623 = vand.u32 %v622, 4294901760
    %624 = vmatpush.msra.mxu0 %v623
    %v625 = vand.u32 %v22, 4294901760
    %v626 = vsub.f32 %v22, %v625
    %v627 = vand.u32 %v626, 4294901760
    %628 = vmatpush.msra.mxu0 %v627
    %v629 = vand.u32 %v21, 4294901760
    %v630 = vsub.f32 %v21, %v629
    %v631 = vand.u32 %v630, 4294901760
    %632 = vmatpush.msra.mxu0 %v631
    %v633 = vand.u32 %v20, 4294901760
    %v634 = vsub.f32 %v20, %v633
    %v635 = vand.u32 %v634, 4294901760
    %636 = vmatpush.msra.mxu0 %v635
    %v637 = vand.u32 %v19, 4294901760
    %v638 = vsub.f32 %v19, %v637
    %v639 = vand.u32 %v638, 4294901760
    %640 = vmatpush.msra.mxu0 %v639
    %v641 = vand.u32 %v18, 4294901760
    %v642 = vsub.f32 %v18, %v641
    %v643 = vand.u32 %v642, 4294901760
    %644 = vmatpush.msra.mxu0 %v643
    %v645 = vand.u32 %v17, 4294901760
    %v646 = vsub.f32 %v17, %v645
    %v647 = vand.u32 %v646, 4294901760
    %648 = vmatpush.msra.mxu0 %v647
    %v649 = vand.u32 %v16, 4294901760
    %v650 = vsub.f32 %v16, %v649
    %v651 = vand.u32 %v650, 4294901760
    %652 = vmatpush.msra.mxu0 %v651
    %v653 = vand.u32 %v15, 4294901760
    %v654 = vsub.f32 %v15, %v653
    %v655 = vand.u32 %v654, 4294901760
    %656 = vmatpush.msra.mxu0 %v655
    %v657 = vand.u32 %v14, 4294901760
    %v658 = vsub.f32 %v14, %v657
    %v659 = vand.u32 %v658, 4294901760
    %660 = vmatpush.msra.mxu0 %v659
    %v661 = vand.u32 %v13, 4294901760
    %v662 = vsub.f32 %v13, %v661
    %v663 = vand.u32 %v662, 4294901760
    %664 = vmatpush.msra.mxu0 %v663
    %v665 = vand.u32 %v12, 4294901760
    %v666 = vsub.f32 %v12, %v665
    %v667 = vand.u32 %v666, 4294901760
    %668 = vmatpush.msra.mxu0 %v667
    %v669 = vand.u32 %v368, 4294901760
    %670 = vmatmul.f32.gmra.mxu0 %v669
    %v671 = vpop.f32.mrf.mxu0
    %v672 = vadd.f32 %v603, %v671
    %673 = vdwg.mxu0
    %v674 = vand.u32 %v27, 4294901760
    %675 = vmatpush.msra.mxu0 %v674
    %v676 = vand.u32 %v26, 4294901760
    %677 = vmatpush.msra.mxu0 %v676
    %v678 = vand.u32 %v25, 4294901760
    %679 = vmatpush.msra.mxu0 %v678
    %v680 = vand.u32 %v24, 4294901760
    %681 = vmatpush.msra.mxu0 %v680
    %v682 = vand.u32 %v23, 4294901760
    %683 = vmatpush.msra.mxu0 %v682
    %v684 = vand.u32 %v22, 4294901760
    %685 = vmatpush.msra.mxu0 %v684
    %v686 = vand.u32 %v21, 4294901760
    %687 = vmatpush.msra.mxu0 %v686
    %v688 = vand.u32 %v20, 4294901760
    %689 = vmatpush.msra.mxu0 %v688
    %v690 = vand.u32 %v19, 4294901760
    %691 = vmatpush.msra.mxu0 %v690
    %v692 = vand.u32 %v18, 4294901760
    %693 = vmatpush.msra.mxu0 %v692
    %v694 = vand.u32 %v17, 4294901760
    %695 = vmatpush.msra.mxu0 %v694
    %v696 = vand.u32 %v16, 4294901760
    %697 = vmatpush.msra.mxu0 %v696
    %v698 = vand.u32 %v15, 4294901760
    %699 = vmatpush.msra.mxu0 %v698
    %v700 = vand.u32 %v14, 4294901760
    %701 = vmatpush.msra.mxu0 %v700
    %v702 = vand.u32 %v13, 4294901760
    %703 = vmatpush.msra.mxu0 %v702
    %v704 = vand.u32 %v12, 4294901760
    %705 = vmatpush.msra.mxu0 %v704
    %v706 = vand.u32 %v368, 4294901760
    %707 = vmatmul.f32.gmra.mxu0 %v706
    %v708 = vpop.f32.mrf.mxu0
    %v709 = vadd.f32 %v672, %v708
    %710 = vdwg.mxu0
    %v711 = vmul.f32 %v709, %v709
    %vm712 = vcmask 1040384
    %v713 = vsel %vm712, %v711, 0.0
    %714 = vadd.xlane.f32.xlu0 %v713
    %v715 = vpop.xlane.xlu0 %714
    %v716 = vrot.slane %v715, 4
    %v717 = vadd.f32 %v715, %v716
    %v718 = vrot.slane %v717, 2
    %v719 = vadd.f32 %v717, %v718
    %v720 = vrot.slane %v719, 1
    %v721 = vadd.f32 %v719, %v720
    %s722 = vtos %v721
    %s723 = sadd.f32 %s722, 1e-30
    %v724 = vstv %s723
    %v725 = vrsqrt.pop %v724
    %v726 = vmul.f32 %v725, %v724
    %v727 = vmul.f32 %v726, %v725
    %v728 = vmul.f32 0.5, %v727
    %v729 = vsub.f32 1.5, %v728
    %v730 = vmul.f32 %v725, %v729
    %vm731 = vweird.f32 %v724
    %vm732 = vweird.f32 %v725
    %vm733 = vmor %vm731, %vm732
    %v734 = vsel %vm733, %v725, %v730
    %s735 = vtos %v734
    %v736 = vstv %s735
    %v737 = vmul.f32 %v709, %v736
    %v738 = vsub.f32 %v737, %v28
    %v739 = vmul.f32 %v738, %v738
    %v740 = vsel %vm712, %v739, 0.0
    %741 = vadd.xlane.f32.xlu0 %v740
    %v742 = vpop.xlane.xlu0 %741
    %v743 = vrot.slane %v742, 4
    %v744 = vadd.f32 %v742, %v743
    %v745 = vrot.slane %v744, 2
    %v746 = vadd.f32 %v744, %v745
    %v747 = vrot.slane %v746, 1
    %v748 = vadd.f32 %v746, %v747
    %s749 = vtos %v748
    %p750 = scmp.lt.f32.partialorder %s749, 1e-12
    %v751 = vand.u32 %v27, 4294901760
    %752 = vmatpush.xpose.msra.mxu0 %v751
    %v753 = vand.u32 %v26, 4294901760
    %754 = vmatpush.xpose.msra.mxu0 %v753
    %v755 = vand.u32 %v25, 4294901760
    %756 = vmatpush.xpose.msra.mxu0 %v755
    %v757 = vand.u32 %v24, 4294901760
    %758 = vmatpush.xpose.msra.mxu0 %v757
    %v759 = vand.u32 %v23, 4294901760
    %760 = vmatpush.xpose.msra.mxu0 %v759
    %v761 = vand.u32 %v22, 4294901760
    %762 = vmatpush.xpose.msra.mxu0 %v761
    %v763 = vand.u32 %v21, 4294901760
    %764 = vmatpush.xpose.msra.mxu0 %v763
    %v765 = vand.u32 %v20, 4294901760
    %766 = vmatpush.xpose.msra.mxu0 %v765
    %v767 = vand.u32 %v19, 4294901760
    %768 = vmatpush.xpose.msra.mxu0 %v767
    %v769 = vand.u32 %v18, 4294901760
    %770 = vmatpush.xpose.msra.mxu0 %v769
    %v771 = vand.u32 %v17, 4294901760
    %772 = vmatpush.xpose.msra.mxu0 %v771
    %v773 = vand.u32 %v16, 4294901760
    %774 = vmatpush.xpose.msra.mxu0 %v773
    %v775 = vand.u32 %v15, 4294901760
    %776 = vmatpush.xpose.msra.mxu0 %v775
    %v777 = vand.u32 %v14, 4294901760
    %778 = vmatpush.xpose.msra.mxu0 %v777
    %v779 = vand.u32 %v13, 4294901760
    %780 = vmatpush.xpose.msra.mxu0 %v779
    %v781 = vand.u32 %v12, 4294901760
    %782 = vmatpush.xpose.msra.mxu0 %v781
    %v783 = vand.u32 %v737, 4294901760
    %v784 = vsub.f32 %v737, %v783
    %v785 = vand.u32 %v784, 4294901760
    %v786 = vsub.f32 %v784, %v785
    %v787 = vand.u32 %v786, 4294901760
    %788 = vmatmul.f32.gmra.mxu0 %v787
    %v789 = vpop.f32.mrf.mxu0
    %v790 = vadd.f32 0.0, %v789
    %791 = vdwg.mxu0
    %v792 = vand.u32 %v27, 4294901760
    %v793 = vsub.f32 %v27, %v792
    %v794 = vand.u32 %v793, 4294901760
    %v795 = vsub.f32 %v793, %v794
    %v796 = vand.u32 %v795, 4294901760
    %797 = vmatpush.xpose.msra.mxu0 %v796
    %v798 = vand.u32 %v26, 4294901760
    %v799 = vsub.f32 %v26, %v798
    %v800 = vand.u32 %v799, 4294901760
    %v801 = vsub.f32 %v799, %v800
    %v802 = vand.u32 %v801, 4294901760
    %803 = vmatpush.xpose.msra.mxu0 %v802
    %v804 = vand.u32 %v25, 4294901760
    %v805 = vsub.f32 %v25, %v804
    %v806 = vand.u32 %v805, 4294901760
    %v807 = vsub.f32 %v805, %v806
    %v808 = vand.u32 %v807, 4294901760
    %809 = vmatpush.xpose.msra.mxu0 %v808
    %v810 = vand.u32 %v24, 4294901760
    %v811 = vsub.f32 %v24, %v810
    %v812 = vand.u32 %v811, 4294901760
    %v813 = vsub.f32 %v811, %v812
    %v814 = vand.u32 %v813, 4294901760
    %815 = vmatpush.xpose.msra.mxu0 %v814
    %v816 = vand.u32 %v23, 4294901760
    %v817 = vsub.f32 %v23, %v816
    %v818 = vand.u32 %v817, 4294901760
    %v819 = vsub.f32 %v817, %v818
    %v820 = vand.u32 %v819, 4294901760
    %821 = vmatpush.xpose.msra.mxu0 %v820
    %v822 = vand.u32 %v22, 4294901760
    %v823 = vsub.f32 %v22, %v822
    %v824 = vand.u32 %v823, 4294901760
    %v825 = vsub.f32 %v823, %v824
    %v826 = vand.u32 %v825, 4294901760
    %827 = vmatpush.xpose.msra.mxu0 %v826
    %v828 = vand.u32 %v21, 4294901760
    %v829 = vsub.f32 %v21, %v828
    %v830 = vand.u32 %v829, 4294901760
    %v831 = vsub.f32 %v829, %v830
    %v832 = vand.u32 %v831, 4294901760
    %833 = vmatpush.xpose.msra.mxu0 %v832
    %v834 = vand.u32 %v20, 4294901760
    %v835 = vsub.f32 %v20, %v834
    %v836 = vand.u32 %v835, 4294901760
    %v837 = vsub.f32 %v835, %v836
    %v838 = vand.u32 %v837, 4294901760
    %839 = vmatpush.xpose.msra.mxu0 %v838
    %v840 = vand.u32 %v19, 4294901760
    %v841 = vsub.f32 %v19, %v840
    %v842 = vand.u32 %v841, 4294901760
    %v843 = vsub.f32 %v841, %v842
    %v844 = vand.u32 %v843, 4294901760
    %845 = vmatpush.xpose.msra.mxu0 %v844
    %v846 = vand.u32 %v18, 4294901760
    %v847 = vsub.f32 %v18, %v846
    %v848 = vand.u32 %v847, 4294901760
    %v849 = vsub.f32 %v847, %v848
    %v850 = vand.u32 %v849, 4294901760
    %851 = vmatpush.xpose.msra.mxu0 %v850
    %v852 = vand.u32 %v17, 4294901760
    %v853 = vsub.f32 %v17, %v852
    %v854 = vand.u32 %v853, 4294901760
    %v855 = vsub.f32 %v853, %v854
    %v856 = vand.u32 %v855, 4294901760
    %857 = vmatpush.xpose.msra.mxu0 %v856
    %v858 = vand.u32 %v16, 4294901760
    %v859 = vsub.f32 %v16, %v858
    %v860 = vand.u32 %v859, 4294901760
    %v861 = vsub.f32 %v859, %v860
    %v862 = vand.u32 %v861, 4294901760
    %863 = vmatpush.xpose.msra.mxu0 %v862
    %v864 = vand.u32 %v15, 4294901760
    %v865 = vsub.f32 %v15, %v864
    %v866 = vand.u32 %v865, 4294901760
    %v867 = vsub.f32 %v865, %v866
    %v868 = vand.u32 %v867, 4294901760
    %869 = vmatpush.xpose.msra.mxu0 %v868
    %v870 = vand.u32 %v14, 4294901760
    %v871 = vsub.f32 %v14, %v870
    %v872 = vand.u32 %v871, 4294901760
    %v873 = vsub.f32 %v871, %v872
    %v874 = vand.u32 %v873, 4294901760
    %875 = vmatpush.xpose.msra.mxu0 %v874
    %v876 = vand.u32 %v13, 4294901760
    %v877 = vsub.f32 %v13, %v876
    %v878 = vand.u32 %v877, 4294901760
    %v879 = vsub.f32 %v877, %v878
    %v880 = vand.u32 %v879, 4294901760
    %881 = vmatpush.xpose.msra.mxu0 %v880
    %v882 = vand.u32 %v12, 4294901760
    %v883 = vsub.f32 %v12, %v882
    %v884 = vand.u32 %v883, 4294901760
    %v885 = vsub.f32 %v883, %v884
    %v886 = vand.u32 %v885, 4294901760
    %887 = vmatpush.xpose.msra.mxu0 %v886
    %v888 = vand.u32 %v737, 4294901760
    %889 = vmatmul.f32.gmra.mxu0 %v888
    %v890 = vpop.f32.mrf.mxu0
    %v891 = vadd.f32 %v790, %v890
    %892 = vdwg.mxu0
    %v893 = vand.u32 %v27, 4294901760
    %v894 = vsub.f32 %v27, %v893
    %895 = vmatpush.xpose.msra.mxu0 %v894
    %v896 = vand.u32 %v26, 4294901760
    %v897 = vsub.f32 %v26, %v896
    %898 = vmatpush.xpose.msra.mxu0 %v897
    %v899 = vand.u32 %v25, 4294901760
    %v900 = vsub.f32 %v25, %v899
    %901 = vmatpush.xpose.msra.mxu0 %v900
    %v902 = vand.u32 %v24, 4294901760
    %v903 = vsub.f32 %v24, %v902
    %904 = vmatpush.xpose.msra.mxu0 %v903
    %v905 = vand.u32 %v23, 4294901760
    %v906 = vsub.f32 %v23, %v905
    %907 = vmatpush.xpose.msra.mxu0 %v906
    %v908 = vand.u32 %v22, 4294901760
    %v909 = vsub.f32 %v22, %v908
    %910 = vmatpush.xpose.msra.mxu0 %v909
    %v911 = vand.u32 %v21, 4294901760
    %v912 = vsub.f32 %v21, %v911
    %913 = vmatpush.xpose.msra.mxu0 %v912
    %v914 = vand.u32 %v20, 4294901760
    %v915 = vsub.f32 %v20, %v914
    %916 = vmatpush.xpose.msra.mxu0 %v915
    %v917 = vand.u32 %v19, 4294901760
    %v918 = vsub.f32 %v19, %v917
    %919 = vmatpush.xpose.msra.mxu0 %v918
    %v920 = vand.u32 %v18, 4294901760
    %v921 = vsub.f32 %v18, %v920
    %922 = vmatpush.xpose.msra.mxu0 %v921
    %v923 = vand.u32 %v17, 4294901760
    %v924 = vsub.f32 %v17, %v923
    %925 = vmatpush.xpose.msra.mxu0 %v924
    %v926 = vand.u32 %v16, 4294901760
    %v927 = vsub.f32 %v16, %v926
    %928 = vmatpush.xpose.msra.mxu0 %v927
    %v929 = vand.u32 %v15, 4294901760
    %v930 = vsub.f32 %v15, %v929
    %931 = vmatpush.xpose.msra.mxu0 %v930
    %v932 = vand.u32 %v14, 4294901760
    %v933 = vsub.f32 %v14, %v932
    %934 = vmatpush.xpose.msra.mxu0 %v933
    %v935 = vand.u32 %v13, 4294901760
    %v936 = vsub.f32 %v13, %v935
    %937 = vmatpush.xpose.msra.mxu0 %v936
    %v938 = vand.u32 %v12, 4294901760
    %v939 = vsub.f32 %v12, %v938
    %940 = vmatpush.xpose.msra.mxu0 %v939
    %v941 = vand.u32 %v737, 4294901760
    %v942 = vsub.f32 %v737, %v941
    %943 = vmatmul.f32.gmra.mxu0 %v942
    %v944 = vpop.f32.mrf.mxu0
    %v945 = vadd.f32 %v891, %v944
    %946 = vdwg.mxu0
    %v947 = vand.u32 %v27, 4294901760
    %948 = vmatpush.xpose.msra.mxu0 %v947
    %v949 = vand.u32 %v26, 4294901760
    %950 = vmatpush.xpose.msra.mxu0 %v949
    %v951 = vand.u32 %v25, 4294901760
    %952 = vmatpush.xpose.msra.mxu0 %v951
    %v953 = vand.u32 %v24, 4294901760
    %954 = vmatpush.xpose.msra.mxu0 %v953
    %v955 = vand.u32 %v23, 4294901760
    %956 = vmatpush.xpose.msra.mxu0 %v955
    %v957 = vand.u32 %v22, 4294901760
    %958 = vmatpush.xpose.msra.mxu0 %v957
    %v959 = vand.u32 %v21, 4294901760
    %960 = vmatpush.xpose.msra.mxu0 %v959
    %v961 = vand.u32 %v20, 4294901760
    %962 = vmatpush.xpose.msra.mxu0 %v961
    %v963 = vand.u32 %v19, 4294901760
    %964 = vmatpush.xpose.msra.mxu0 %v963
    %v965 = vand.u32 %v18, 4294901760
    %966 = vmatpush.xpose.msra.mxu0 %v965
    %v967 = vand.u32 %v17, 4294901760
    %968 = vmatpush.xpose.msra.mxu0 %v967
    %v969 = vand.u32 %v16, 4294901760
    %970 = vmatpush.xpose.msra.mxu0 %v969
    %v971 = vand.u32 %v15, 4294901760
    %972 = vmatpush.xpose.msra.mxu0 %v971
    %v973 = vand.u32 %v14, 4294901760
    %974 = vmatpush.xpose.msra.mxu0 %v973
    %v975 = vand.u32 %v13, 4294901760
    %976 = vmatpush.xpose.msra.mxu0 %v975
    %v977 = vand.u32 %v12, 4294901760
    %978 = vmatpush.xpose.msra.mxu0 %v977
    %v979 = vand.u32 %v737, 4294901760
    %v980 = vsub.f32 %v737, %v979
    %v981 = vand.u32 %v980, 4294901760
    %982 = vmatmul.f32.gmra.mxu0 %v981
    %v983 = vpop.f32.mrf.mxu0
    %v984 = vadd.f32 %v945, %v983
    %985 = vdwg.mxu0
    %v986 = vand.u32 %v27, 4294901760
    %v987 = vsub.f32 %v27, %v986
    %v988 = vand.u32 %v987, 4294901760
    %989 = vmatpush.xpose.msra.mxu0 %v988
    %v990 = vand.u32 %v26, 4294901760
    %v991 = vsub.f32 %v26, %v990
    %v992 = vand.u32 %v991, 4294901760
    %993 = vmatpush.xpose.msra.mxu0 %v992
    %v994 = vand.u32 %v25, 4294901760
    %v995 = vsub.f32 %v25, %v994
    %v996 = vand.u32 %v995, 4294901760
    %997 = vmatpush.xpose.msra.mxu0 %v996
    %v998 = vand.u32 %v24, 4294901760
    %v999 = vsub.f32 %v24, %v998
    %v1000 = vand.u32 %v999, 4294901760
    %1001 = vmatpush.xpose.msra.mxu0 %v1000
    %v1002 = vand.u32 %v23, 4294901760
    %v1003 = vsub.f32 %v23, %v1002
    %v1004 = vand.u32 %v1003, 4294901760
    %1005 = vmatpush.xpose.msra.mxu0 %v1004
    %v1006 = vand.u32 %v22, 4294901760
    %v1007 = vsub.f32 %v22, %v1006
    %v1008 = vand.u32 %v1007, 4294901760
    %1009 = vmatpush.xpose.msra.mxu0 %v1008
    %v1010 = vand.u32 %v21, 4294901760
    %v1011 = vsub.f32 %v21, %v1010
    %v1012 = vand.u32 %v1011, 4294901760
    %1013 = vmatpush.xpose.msra.mxu0 %v1012
    %v1014 = vand.u32 %v20, 4294901760
    %v1015 = vsub.f32 %v20, %v1014
    %v1016 = vand.u32 %v1015, 4294901760
    %1017 = vmatpush.xpose.msra.mxu0 %v1016
    %v1018 = vand.u32 %v19, 4294901760
    %v1019 = vsub.f32 %v19, %v1018
    %v1020 = vand.u32 %v1019, 4294901760
    %1021 = vmatpush.xpose.msra.mxu0 %v1020
    %v1022 = vand.u32 %v18, 4294901760
    %v1023 = vsub.f32 %v18, %v1022
    %v1024 = vand.u32 %v1023, 4294901760
    %1025 = vmatpush.xpose.msra.mxu0 %v1024
    %v1026 = vand.u32 %v17, 4294901760
    %v1027 = vsub.f32 %v17, %v1026
    %v1028 = vand.u32 %v1027, 4294901760
    %1029 = vmatpush.xpose.msra.mxu0 %v1028
    %v1030 = vand.u32 %v16, 4294901760
    %v1031 = vsub.f32 %v16, %v1030
    %v1032 = vand.u32 %v1031, 4294901760
    %1033 = vmatpush.xpose.msra.mxu0 %v1032
    %v1034 = vand.u32 %v15, 4294901760
    %v1035 = vsub.f32 %v15, %v1034
    %v1036 = vand.u32 %v1035, 4294901760
    %1037 = vmatpush.xpose.msra.mxu0 %v1036
    %v1038 = vand.u32 %v14, 4294901760
    %v1039 = vsub.f32 %v14, %v1038
    %v1040 = vand.u32 %v1039, 4294901760
    %1041 = vmatpush.xpose.msra.mxu0 %v1040
    %v1042 = vand.u32 %v13, 4294901760
    %v1043 = vsub.f32 %v13, %v1042
    %v1044 = vand.u32 %v1043, 4294901760
    %1045 = vmatpush.xpose.msra.mxu0 %v1044
    %v1046 = vand.u32 %v12, 4294901760
    %v1047 = vsub.f32 %v12, %v1046
    %v1048 = vand.u32 %v1047, 4294901760
    %1049 = vmatpush.xpose.msra.mxu0 %v1048
    %v1050 = vand.u32 %v737, 4294901760
    %1051 = vmatmul.f32.gmra.mxu0 %v1050
    %v1052 = vpop.f32.mrf.mxu0
    %v1053 = vadd.f32 %v984, %v1052
    %1054 = vdwg.mxu0
    %v1055 = vand.u32 %v27, 4294901760
    %1056 = vmatpush.xpose.msra.mxu0 %v1055
    %v1057 = vand.u32 %v26, 4294901760
    %1058 = vmatpush.xpose.msra.mxu0 %v1057
    %v1059 = vand.u32 %v25, 4294901760
    %1060 = vmatpush.xpose.msra.mxu0 %v1059
    %v1061 = vand.u32 %v24, 4294901760
    %1062 = vmatpush.xpose.msra.mxu0 %v1061
    %v1063 = vand.u32 %v23, 4294901760
    %1064 = vmatpush.xpose.msra.mxu0 %v1063
    %v1065 = vand.u32 %v22, 4294901760
    %1066 = vmatpush.xpose.msra.mxu0 %v1065
    %v1067 = vand.u32 %v21, 4294901760
    %1068 = vmatpush.xpose.msra.mxu0 %v1067
    %v1069 = vand.u32 %v20, 4294901760
    %1070 = vmatpush.xpose.msra.mxu0 %v1069
    %v1071 = vand.u32 %v19, 4294901760
    %1072 = vmatpush.xpose.msra.mxu0 %v1071
    %v1073 = vand.u32 %v18, 4294901760
    %1074 = vmatpush.xpose.msra.mxu0 %v1073
    %v1075 = vand.u32 %v17, 4294901760
    %1076 = vmatpush.xpose.msra.mxu0 %v1075
    %v1077 = vand.u32 %v16, 4294901760
    %1078 = vmatpush.xpose.msra.mxu0 %v1077
    %v1079 = vand.u32 %v15, 4294901760
    %1080 = vmatpush.xpose.msra.mxu0 %v1079
    %v1081 = vand.u32 %v14, 4294901760
    %1082 = vmatpush.xpose.msra.mxu0 %v1081
    %v1083 = vand.u32 %v13, 4294901760
    %1084 = vmatpush.xpose.msra.mxu0 %v1083
    %v1085 = vand.u32 %v12, 4294901760
    %1086 = vmatpush.xpose.msra.mxu0 %v1085
    %v1087 = vand.u32 %v737, 4294901760
    %1088 = vmatmul.f32.gmra.mxu0 %v1087
    %v1089 = vpop.f32.mrf.mxu0
    %v1090 = vadd.f32 %v1053, %v1089
    %1091 = vdwg.mxu0
    %v1092 = vand.u32 %v27, 4294901760
    %1093 = vmatpush.msra.mxu0 %v1092
    %v1094 = vand.u32 %v26, 4294901760
    %1095 = vmatpush.msra.mxu0 %v1094
    %v1096 = vand.u32 %v25, 4294901760
    %1097 = vmatpush.msra.mxu0 %v1096
    %v1098 = vand.u32 %v24, 4294901760
    %1099 = vmatpush.msra.mxu0 %v1098
    %v1100 = vand.u32 %v23, 4294901760
    %1101 = vmatpush.msra.mxu0 %v1100
    %v1102 = vand.u32 %v22, 4294901760
    %1103 = vmatpush.msra.mxu0 %v1102
    %v1104 = vand.u32 %v21, 4294901760
    %1105 = vmatpush.msra.mxu0 %v1104
    %v1106 = vand.u32 %v20, 4294901760
    %1107 = vmatpush.msra.mxu0 %v1106
    %v1108 = vand.u32 %v19, 4294901760
    %1109 = vmatpush.msra.mxu0 %v1108
    %v1110 = vand.u32 %v18, 4294901760
    %1111 = vmatpush.msra.mxu0 %v1110
    %v1112 = vand.u32 %v17, 4294901760
    %1113 = vmatpush.msra.mxu0 %v1112
    %v1114 = vand.u32 %v16, 4294901760
    %1115 = vmatpush.msra.mxu0 %v1114
    %v1116 = vand.u32 %v15, 4294901760
    %1117 = vmatpush.msra.mxu0 %v1116
    %v1118 = vand.u32 %v14, 4294901760
    %1119 = vmatpush.msra.mxu0 %v1118
    %v1120 = vand.u32 %v13, 4294901760
    %1121 = vmatpush.msra.mxu0 %v1120
    %v1122 = vand.u32 %v12, 4294901760
    %1123 = vmatpush.msra.mxu0 %v1122
    %v1124 = vand.u32 %v1090, 4294901760
    %v1125 = vsub.f32 %v1090, %v1124
    %v1126 = vand.u32 %v1125, 4294901760
    %v1127 = vsub.f32 %v1125, %v1126
    %v1128 = vand.u32 %v1127, 4294901760
    %1129 = vmatmul.f32.gmra.mxu0 %v1128
    %v1130 = vpop.f32.mrf.mxu0
    %v1131 = vadd.f32 0.0, %v1130
    %1132 = vdwg.mxu0
    %v1133 = vand.u32 %v27, 4294901760
    %v1134 = vsub.f32 %v27, %v1133
    %v1135 = vand.u32 %v1134, 4294901760
    %v1136 = vsub.f32 %v1134, %v1135
    %v1137 = vand.u32 %v1136, 4294901760
    %1138 = vmatpush.msra.mxu0 %v1137
    %v1139 = vand.u32 %v26, 4294901760
    %v1140 = vsub.f32 %v26, %v1139
    %v1141 = vand.u32 %v1140, 4294901760
    %v1142 = vsub.f32 %v1140, %v1141
    %v1143 = vand.u32 %v1142, 4294901760
    %1144 = vmatpush.msra.mxu0 %v1143
    %v1145 = vand.u32 %v25, 4294901760
    %v1146 = vsub.f32 %v25, %v1145
    %v1147 = vand.u32 %v1146, 4294901760
    %v1148 = vsub.f32 %v1146, %v1147
    %v1149 = vand.u32 %v1148, 4294901760
    %1150 = vmatpush.msra.mxu0 %v1149
    %v1151 = vand.u32 %v24, 4294901760
    %v1152 = vsub.f32 %v24, %v1151
    %v1153 = vand.u32 %v1152, 4294901760
    %v1154 = vsub.f32 %v1152, %v1153
    %v1155 = vand.u32 %v1154, 4294901760
    %1156 = vmatpush.msra.mxu0 %v1155
    %v1157 = vand.u32 %v23, 4294901760
    %v1158 = vsub.f32 %v23, %v1157
    %v1159 = vand.u32 %v1158, 4294901760
    %v1160 = vsub.f32 %v1158, %v1159
    %v1161 = vand.u32 %v1160, 4294901760
    %1162 = vmatpush.msra.mxu0 %v1161
    %v1163 = vand.u32 %v22, 4294901760
    %v1164 = vsub.f32 %v22, %v1163
    %v1165 = vand.u32 %v1164, 4294901760
    %v1166 = vsub.f32 %v1164, %v1165
    %v1167 = vand.u32 %v1166, 4294901760
    %1168 = vmatpush.msra.mxu0 %v1167
    %v1169 = vand.u32 %v21, 4294901760
    %v1170 = vsub.f32 %v21, %v1169
    %v1171 = vand.u32 %v1170, 4294901760
    %v1172 = vsub.f32 %v1170, %v1171
    %v1173 = vand.u32 %v1172, 4294901760
    %1174 = vmatpush.msra.mxu0 %v1173
    %v1175 = vand.u32 %v20, 4294901760
    %v1176 = vsub.f32 %v20, %v1175
    %v1177 = vand.u32 %v1176, 4294901760
    %v1178 = vsub.f32 %v1176, %v1177
    %v1179 = vand.u32 %v1178, 4294901760
    %1180 = vmatpush.msra.mxu0 %v1179
    %v1181 = vand.u32 %v19, 4294901760
    %v1182 = vsub.f32 %v19, %v1181
    %v1183 = vand.u32 %v1182, 4294901760
    %v1184 = vsub.f32 %v1182, %v1183
    %v1185 = vand.u32 %v1184, 4294901760
    %1186 = vmatpush.msra.mxu0 %v1185
    %v1187 = vand.u32 %v18, 4294901760
    %v1188 = vsub.f32 %v18, %v1187
    %v1189 = vand.u32 %v1188, 4294901760
    %v1190 = vsub.f32 %v1188, %v1189
    %v1191 = vand.u32 %v1190, 4294901760
    %1192 = vmatpush.msra.mxu0 %v1191
    %v1193 = vand.u32 %v17, 4294901760
    %v1194 = vsub.f32 %v17, %v1193
    %v1195 = vand.u32 %v1194, 4294901760
    %v1196 = vsub.f32 %v1194, %v1195
    %v1197 = vand.u32 %v1196, 4294901760
    %1198 = vmatpush.msra.mxu0 %v1197
    %v1199 = vand.u32 %v16, 4294901760
    %v1200 = vsub.f32 %v16, %v1199
    %v1201 = vand.u32 %v1200, 4294901760
    %v1202 = vsub.f32 %v1200, %v1201
    %v1203 = vand.u32 %v1202, 4294901760
    %1204 = vmatpush.msra.mxu0 %v1203
    %v1205 = vand.u32 %v15, 4294901760
    %v1206 = vsub.f32 %v15, %v1205
    %v1207 = vand.u32 %v1206, 4294901760
    %v1208 = vsub.f32 %v1206, %v1207
    %v1209 = vand.u32 %v1208, 4294901760
    %1210 = vmatpush.msra.mxu0 %v1209
    %v1211 = vand.u32 %v14, 4294901760
    %v1212 = vsub.f32 %v14, %v1211
    %v1213 = vand.u32 %v1212, 4294901760
    %v1214 = vsub.f32 %v1212, %v1213
    %v1215 = vand.u32 %v1214, 4294901760
    %1216 = vmatpush.msra.mxu0 %v1215
    %v1217 = vand.u32 %v13, 4294901760
    %v1218 = vsub.f32 %v13, %v1217
    %v1219 = vand.u32 %v1218, 4294901760
    %v1220 = vsub.f32 %v1218, %v1219
    %v1221 = vand.u32 %v1220, 4294901760
    %1222 = vmatpush.msra.mxu0 %v1221
    %v1223 = vand.u32 %v12, 4294901760
    %v1224 = vsub.f32 %v12, %v1223
    %v1225 = vand.u32 %v1224, 4294901760
    %v1226 = vsub.f32 %v1224, %v1225
    %v1227 = vand.u32 %v1226, 4294901760
    %1228 = vmatpush.msra.mxu0 %v1227
    %v1229 = vand.u32 %v1090, 4294901760
    %1230 = vmatmul.f32.gmra.mxu0 %v1229
    %v1231 = vpop.f32.mrf.mxu0
    %v1232 = vadd.f32 %v1131, %v1231
    %1233 = vdwg.mxu0
    %v1234 = vand.u32 %v27, 4294901760
    %v1235 = vsub.f32 %v27, %v1234
    %1236 = vmatpush.msra.mxu0 %v1235
    %v1237 = vand.u32 %v26, 4294901760
    %v1238 = vsub.f32 %v26, %v1237
    %1239 = vmatpush.msra.mxu0 %v1238
    %v1240 = vand.u32 %v25, 4294901760
    %v1241 = vsub.f32 %v25, %v1240
    %1242 = vmatpush.msra.mxu0 %v1241
    %v1243 = vand.u32 %v24, 4294901760
    %v1244 = vsub.f32 %v24, %v1243
    %1245 = vmatpush.msra.mxu0 %v1244
    %v1246 = vand.u32 %v23, 4294901760
    %v1247 = vsub.f32 %v23, %v1246
    %1248 = vmatpush.msra.mxu0 %v1247
    %v1249 = vand.u32 %v22, 4294901760
    %v1250 = vsub.f32 %v22, %v1249
    %1251 = vmatpush.msra.mxu0 %v1250
    %v1252 = vand.u32 %v21, 4294901760
    %v1253 = vsub.f32 %v21, %v1252
    %1254 = vmatpush.msra.mxu0 %v1253
    %v1255 = vand.u32 %v20, 4294901760
    %v1256 = vsub.f32 %v20, %v1255
    %1257 = vmatpush.msra.mxu0 %v1256
    %v1258 = vand.u32 %v19, 4294901760
    %v1259 = vsub.f32 %v19, %v1258
    %1260 = vmatpush.msra.mxu0 %v1259
    %v1261 = vand.u32 %v18, 4294901760
    %v1262 = vsub.f32 %v18, %v1261
    %1263 = vmatpush.msra.mxu0 %v1262
    %v1264 = vand.u32 %v17, 4294901760
    %v1265 = vsub.f32 %v17, %v1264
    %1266 = vmatpush.msra.mxu0 %v1265
    %v1267 = vand.u32 %v16, 4294901760
    %v1268 = vsub.f32 %v16, %v1267
    %1269 = vmatpush.msra.mxu0 %v1268
    %v1270 = vand.u32 %v15, 4294901760
    %v1271 = vsub.f32 %v15, %v1270
    %1272 = vmatpush.msra.mxu0 %v1271
    %v1273 = vand.u32 %v14, 4294901760
    %v1274 = vsub.f32 %v14, %v1273
    %1275 = vmatpush.msra.mxu0 %v1274
    %v1276 = vand.u32 %v13, 4294901760
    %v1277 = vsub.f32 %v13, %v1276
    %1278 = vmatpush.msra.mxu0 %v1277
    %v1279 = vand.u32 %v12, 4294901760
    %v1280 = vsub.f32 %v12, %v1279
    %1281 = vmatpush.msra.mxu0 %v1280
    %v1282 = vand.u32 %v1090, 4294901760
    %v1283 = vsub.f32 %v1090, %v1282
    %1284 = vmatmul.f32.gmra.mxu0 %v1283
    %v1285 = vpop.f32.mrf.mxu0
    %v1286 = vadd.f32 %v1232, %v1285
    %1287 = vdwg.mxu0
    %v1288 = vand.u32 %v27, 4294901760
    %1289 = vmatpush.msra.mxu0 %v1288
    %v1290 = vand.u32 %v26, 4294901760
    %1291 = vmatpush.msra.mxu0 %v1290
    %v1292 = vand.u32 %v25, 4294901760
    %1293 = vmatpush.msra.mxu0 %v1292
    %v1294 = vand.u32 %v24, 4294901760
    %1295 = vmatpush.msra.mxu0 %v1294
    %v1296 = vand.u32 %v23, 4294901760
    %1297 = vmatpush.msra.mxu0 %v1296
    %v1298 = vand.u32 %v22, 4294901760
    %1299 = vmatpush.msra.mxu0 %v1298
    %v1300 = vand.u32 %v21, 4294901760
    %1301 = vmatpush.msra.mxu0 %v1300
    %v1302 = vand.u32 %v20, 4294901760
    %1303 = vmatpush.msra.mxu0 %v1302
    %v1304 = vand.u32 %v19, 4294901760
    %1305 = vmatpush.msra.mxu0 %v1304
    %v1306 = vand.u32 %v18, 4294901760
    %1307 = vmatpush.msra.mxu0 %v1306
    %v1308 = vand.u32 %v17, 4294901760
    %1309 = vmatpush.msra.mxu0 %v1308
    %v1310 = vand.u32 %v16, 4294901760
    %1311 = vmatpush.msra.mxu0 %v1310
    %v1312 = vand.u32 %v15, 4294901760
    %1313 = vmatpush.msra.mxu0 %v1312
    %v1314 = vand.u32 %v14, 4294901760
    %1315 = vmatpush.msra.mxu0 %v1314
    %v1316 = vand.u32 %v13, 4294901760
    %1317 = vmatpush.msra.mxu0 %v1316
    %v1318 = vand.u32 %v12, 4294901760
    %1319 = vmatpush.msra.mxu0 %v1318
    %v1320 = vand.u32 %v1090, 4294901760
    %v1321 = vsub.f32 %v1090, %v1320
    %v1322 = vand.u32 %v1321, 4294901760
    %1323 = vmatmul.f32.gmra.mxu0 %v1322
    %v1324 = vpop.f32.mrf.mxu0
    %v1325 = vadd.f32 %v1286, %v1324
    %1326 = vdwg.mxu0
    %v1327 = vand.u32 %v27, 4294901760
    %v1328 = vsub.f32 %v27, %v1327
    %v1329 = vand.u32 %v1328, 4294901760
    %1330 = vmatpush.msra.mxu0 %v1329
    %v1331 = vand.u32 %v26, 4294901760
    %v1332 = vsub.f32 %v26, %v1331
    %v1333 = vand.u32 %v1332, 4294901760
    %1334 = vmatpush.msra.mxu0 %v1333
    %v1335 = vand.u32 %v25, 4294901760
    %v1336 = vsub.f32 %v25, %v1335
    %v1337 = vand.u32 %v1336, 4294901760
    %1338 = vmatpush.msra.mxu0 %v1337
    %v1339 = vand.u32 %v24, 4294901760
    %v1340 = vsub.f32 %v24, %v1339
    %v1341 = vand.u32 %v1340, 4294901760
    %1342 = vmatpush.msra.mxu0 %v1341
    %v1343 = vand.u32 %v23, 4294901760
    %v1344 = vsub.f32 %v23, %v1343
    %v1345 = vand.u32 %v1344, 4294901760
    %1346 = vmatpush.msra.mxu0 %v1345
    %v1347 = vand.u32 %v22, 4294901760
    %v1348 = vsub.f32 %v22, %v1347
    %v1349 = vand.u32 %v1348, 4294901760
    %1350 = vmatpush.msra.mxu0 %v1349
    %v1351 = vand.u32 %v21, 4294901760
    %v1352 = vsub.f32 %v21, %v1351
    %v1353 = vand.u32 %v1352, 4294901760
    %1354 = vmatpush.msra.mxu0 %v1353
    %v1355 = vand.u32 %v20, 4294901760
    %v1356 = vsub.f32 %v20, %v1355
    %v1357 = vand.u32 %v1356, 4294901760
    %1358 = vmatpush.msra.mxu0 %v1357
    %v1359 = vand.u32 %v19, 4294901760
    %v1360 = vsub.f32 %v19, %v1359
    %v1361 = vand.u32 %v1360, 4294901760
    %1362 = vmatpush.msra.mxu0 %v1361
    %v1363 = vand.u32 %v18, 4294901760
    %v1364 = vsub.f32 %v18, %v1363
    %v1365 = vand.u32 %v1364, 4294901760
    %1366 = vmatpush.msra.mxu0 %v1365
    %v1367 = vand.u32 %v17, 4294901760
    %v1368 = vsub.f32 %v17, %v1367
    %v1369 = vand.u32 %v1368, 4294901760
    %1370 = vmatpush.msra.mxu0 %v1369
    %v1371 = vand.u32 %v16, 4294901760
    %v1372 = vsub.f32 %v16, %v1371
    %v1373 = vand.u32 %v1372, 4294901760
    %1374 = vmatpush.msra.mxu0 %v1373
    %v1375 = vand.u32 %v15, 4294901760
    %v1376 = vsub.f32 %v15, %v1375
    %v1377 = vand.u32 %v1376, 4294901760
    %1378 = vmatpush.msra.mxu0 %v1377
    %v1379 = vand.u32 %v14, 4294901760
    %v1380 = vsub.f32 %v14, %v1379
    %v1381 = vand.u32 %v1380, 4294901760
    %1382 = vmatpush.msra.mxu0 %v1381
    %v1383 = vand.u32 %v13, 4294901760
    %v1384 = vsub.f32 %v13, %v1383
    %v1385 = vand.u32 %v1384, 4294901760
    %1386 = vmatpush.msra.mxu0 %v1385
    %v1387 = vand.u32 %v12, 4294901760
    %v1388 = vsub.f32 %v12, %v1387
    %v1389 = vand.u32 %v1388, 4294901760
    %1390 = vmatpush.msra.mxu0 %v1389
    %v1391 = vand.u32 %v1090, 4294901760
    %1392 = vmatmul.f32.gmra.mxu0 %v1391
    %v1393 = vpop.f32.mrf.mxu0
    %v1394 = vadd.f32 %v1325, %v1393
    %1395 = vdwg.mxu0
    %v1396 = vand.u32 %v27, 4294901760
    %1397 = vmatpush.msra.mxu0 %v1396
    %v1398 = vand.u32 %v26, 4294901760
    %1399 = vmatpush.msra.mxu0 %v1398
    %v1400 = vand.u32 %v25, 4294901760
    %1401 = vmatpush.msra.mxu0 %v1400
    %v1402 = vand.u32 %v24, 4294901760
    %1403 = vmatpush.msra.mxu0 %v1402
    %v1404 = vand.u32 %v23, 4294901760
    %1405 = vmatpush.msra.mxu0 %v1404
    %v1406 = vand.u32 %v22, 4294901760
    %1407 = vmatpush.msra.mxu0 %v1406
    %v1408 = vand.u32 %v21, 4294901760
    %1409 = vmatpush.msra.mxu0 %v1408
    %v1410 = vand.u32 %v20, 4294901760
    %1411 = vmatpush.msra.mxu0 %v1410
    %v1412 = vand.u32 %v19, 4294901760
    %1413 = vmatpush.msra.mxu0 %v1412
    %v1414 = vand.u32 %v18, 4294901760
    %1415 = vmatpush.msra.mxu0 %v1414
    %v1416 = vand.u32 %v17, 4294901760
    %1417 = vmatpush.msra.mxu0 %v1416
    %v1418 = vand.u32 %v16, 4294901760
    %1419 = vmatpush.msra.mxu0 %v1418
    %v1420 = vand.u32 %v15, 4294901760
    %1421 = vmatpush.msra.mxu0 %v1420
    %v1422 = vand.u32 %v14, 4294901760
    %1423 = vmatpush.msra.mxu0 %v1422
    %v1424 = vand.u32 %v13, 4294901760
    %1425 = vmatpush.msra.mxu0 %v1424
    %v1426 = vand.u32 %v12, 4294901760
    %1427 = vmatpush.msra.mxu0 %v1426
    %v1428 = vand.u32 %v1090, 4294901760
    %1429 = vmatmul.f32.gmra.mxu0 %v1428
    %v1430 = vpop.f32.mrf.mxu0
    %v1431 = vadd.f32 %v1394, %v1430
    %1432 = vdwg.mxu0
    %v1433 = vmul.f32 %v1431, %v1431
    %v1434 = vsel %vm712, %v1433, 0.0
    %1435 = vadd.xlane.f32.xlu0 %v1434
    %v1436 = vpop.xlane.xlu0 %1435
    %v1437 = vrot.slane %v1436, 4
    %v1438 = vadd.f32 %v1436, %v1437
    %v1439 = vrot.slane %v1438, 2
    %v1440 = vadd.f32 %v1438, %v1439
    %v1441 = vrot.slane %v1440, 1
    %v1442 = vadd.f32 %v1440, %v1441
    %s1443 = vtos %v1442
    %s1444 = sadd.f32 %s1443, 1e-30
    %v1445 = vstv %s1444
    %v1446 = vrsqrt.pop %v1445
    %v1447 = vmul.f32 %v1446, %v1445
    %v1448 = vmul.f32 %v1447, %v1446
    %v1449 = vmul.f32 0.5, %v1448
    %v1450 = vsub.f32 1.5, %v1449
    %v1451 = vmul.f32 %v1446, %v1450
    %vm1452 = vweird.f32 %v1445
    %vm1453 = vweird.f32 %v1446
    %vm1454 = vmor %vm1452, %vm1453
    %v1455 = vsel %vm1454, %v1446, %v1451
    %s1456 = vtos %v1455
    %v1457 = vstv %s1456
    %v1458 = vmul.f32 %v1431, %v1457
    %v1459 = vsub.f32 %v1458, %v737
    %s1460 = scalar_select %p750, 1, 0
    %v1461 = vstv %s1460
    %vm1462 = vcmp.eq.s32.totalorder %v1461, 1
    %v1463 = vsel %vm1462, %v737, %v1458
    %v1464 = vmul.f32 %v1459, %v1459
    %v1465 = vsel %vm712, %v1464, 0.0
    %1466 = vadd.xlane.f32.xlu0 %v1465
    %v1467 = vpop.xlane.xlu0 %1466
    %v1468 = vrot.slane %v1467, 4
    %v1469 = vadd.f32 %v1467, %v1468
    %v1470 = vrot.slane %v1469, 2
    %v1471 = vadd.f32 %v1469, %v1470
    %v1472 = vrot.slane %v1471, 1
    %v1473 = vadd.f32 %v1471, %v1472
    %s1474 = vtos %v1473
    %p1475 = scmp.lt.f32.partialorder %s1474, 1e-12
    %p1476 = por %p750, %p1475
    %v1477 = vand.u32 %v27, 4294901760
    %1478 = vmatpush.xpose.msra.mxu0 %v1477
    %v1479 = vand.u32 %v26, 4294901760
    %1480 = vmatpush.xpose.msra.mxu0 %v1479
    %v1481 = vand.u32 %v25, 4294901760
    %1482 = vmatpush.xpose.msra.mxu0 %v1481
    %v1483 = vand.u32 %v24, 4294901760
    %1484 = vmatpush.xpose.msra.mxu0 %v1483
    %v1485 = vand.u32 %v23, 4294901760
    %1486 = vmatpush.xpose.msra.mxu0 %v1485
    %v1487 = vand.u32 %v22, 4294901760
    %1488 = vmatpush.xpose.msra.mxu0 %v1487
    %v1489 = vand.u32 %v21, 4294901760
    %1490 = vmatpush.xpose.msra.mxu0 %v1489
    %v1491 = vand.u32 %v20, 4294901760
    %1492 = vmatpush.xpose.msra.mxu0 %v1491
    %v1493 = vand.u32 %v19, 4294901760
    %1494 = vmatpush.xpose.msra.mxu0 %v1493
    %v1495 = vand.u32 %v18, 4294901760
    %1496 = vmatpush.xpose.msra.mxu0 %v1495
    %v1497 = vand.u32 %v17, 4294901760
    %1498 = vmatpush.xpose.msra.mxu0 %v1497
    %v1499 = vand.u32 %v16, 4294901760
    %1500 = vmatpush.xpose.msra.mxu0 %v1499
    %v1501 = vand.u32 %v15, 4294901760
    %1502 = vmatpush.xpose.msra.mxu0 %v1501
    %v1503 = vand.u32 %v14, 4294901760
    %1504 = vmatpush.xpose.msra.mxu0 %v1503
    %v1505 = vand.u32 %v13, 4294901760
    %1506 = vmatpush.xpose.msra.mxu0 %v1505
    %v1507 = vand.u32 %v12, 4294901760
    %1508 = vmatpush.xpose.msra.mxu0 %v1507
    %v1509 = vand.u32 %v1463, 4294901760
    %v1510 = vsub.f32 %v1463, %v1509
    %v1511 = vand.u32 %v1510, 4294901760
    %v1512 = vsub.f32 %v1510, %v1511
    %v1513 = vand.u32 %v1512, 4294901760
    %1514 = vmatmul.f32.gmra.mxu0 %v1513
    %v1515 = vpop.f32.mrf.mxu0
    %v1516 = vadd.f32 0.0, %v1515
    %1517 = vdwg.mxu0
    %v1518 = vand.u32 %v27, 4294901760
    %v1519 = vsub.f32 %v27, %v1518
    %v1520 = vand.u32 %v1519, 4294901760
    %v1521 = vsub.f32 %v1519, %v1520
    %v1522 = vand.u32 %v1521, 4294901760
    %1523 = vmatpush.xpose.msra.mxu0 %v1522
    %v1524 = vand.u32 %v26, 4294901760
    %v1525 = vsub.f32 %v26, %v1524
    %v1526 = vand.u32 %v1525, 4294901760
    %v1527 = vsub.f32 %v1525, %v1526
    %v1528 = vand.u32 %v1527, 4294901760
    %1529 = vmatpush.xpose.msra.mxu0 %v1528
    %v1530 = vand.u32 %v25, 4294901760
    %v1531 = vsub.f32 %v25, %v1530
    %v1532 = vand.u32 %v1531, 4294901760
    %v1533 = vsub.f32 %v1531, %v1532
    %v1534 = vand.u32 %v1533, 4294901760
    %1535 = vmatpush.xpose.msra.mxu0 %v1534
    %v1536 = vand.u32 %v24, 4294901760
    %v1537 = vsub.f32 %v24, %v1536
    %v1538 = vand.u32 %v1537, 4294901760
    %v1539 = vsub.f32 %v1537, %v1538
    %v1540 = vand.u32 %v1539, 4294901760
    %1541 = vmatpush.xpose.msra.mxu0 %v1540
    %v1542 = vand.u32 %v23, 4294901760
    %v1543 = vsub.f32 %v23, %v1542
    %v1544 = vand.u32 %v1543, 4294901760
    %v1545 = vsub.f32 %v1543, %v1544
    %v1546 = vand.u32 %v1545, 4294901760
    %1547 = vmatpush.xpose.msra.mxu0 %v1546
    %v1548 = vand.u32 %v22, 4294901760
    %v1549 = vsub.f32 %v22, %v1548
    %v1550 = vand.u32 %v1549, 4294901760
    %v1551 = vsub.f32 %v1549, %v1550
    %v1552 = vand.u32 %v1551, 4294901760
    %1553 = vmatpush.xpose.msra.mxu0 %v1552
    %v1554 = vand.u32 %v21, 4294901760
    %v1555 = vsub.f32 %v21, %v1554
    %v1556 = vand.u32 %v1555, 4294901760
    %v1557 = vsub.f32 %v1555, %v1556
    %v1558 = vand.u32 %v1557, 4294901760
    %1559 = vmatpush.xpose.msra.mxu0 %v1558
    %v1560 = vand.u32 %v20, 4294901760
    %v1561 = vsub.f32 %v20, %v1560
    %v1562 = vand.u32 %v1561, 4294901760
    %v1563 = vsub.f32 %v1561, %v1562
    %v1564 = vand.u32 %v1563, 4294901760
    %1565 = vmatpush.xpose.msra.mxu0 %v1564
    %v1566 = vand.u32 %v19, 4294901760
    %v1567 = vsub.f32 %v19, %v1566
    %v1568 = vand.u32 %v1567, 4294901760
    %v1569 = vsub.f32 %v1567, %v1568
    %v1570 = vand.u32 %v1569, 4294901760
    %1571 = vmatpush.xpose.msra.mxu0 %v1570
    %v1572 = vand.u32 %v18, 4294901760
    %v1573 = vsub.f32 %v18, %v1572
    %v1574 = vand.u32 %v1573, 4294901760
    %v1575 = vsub.f32 %v1573, %v1574
    %v1576 = vand.u32 %v1575, 4294901760
    %1577 = vmatpush.xpose.msra.mxu0 %v1576
    %v1578 = vand.u32 %v17, 4294901760
    %v1579 = vsub.f32 %v17, %v1578
    %v1580 = vand.u32 %v1579, 4294901760
    %v1581 = vsub.f32 %v1579, %v1580
    %v1582 = vand.u32 %v1581, 4294901760
    %1583 = vmatpush.xpose.msra.mxu0 %v1582
    %v1584 = vand.u32 %v16, 4294901760
    %v1585 = vsub.f32 %v16, %v1584
    %v1586 = vand.u32 %v1585, 4294901760
    %v1587 = vsub.f32 %v1585, %v1586
    %v1588 = vand.u32 %v1587, 4294901760
    %1589 = vmatpush.xpose.msra.mxu0 %v1588
    %v1590 = vand.u32 %v15, 4294901760
    %v1591 = vsub.f32 %v15, %v1590
    %v1592 = vand.u32 %v1591, 4294901760
    %v1593 = vsub.f32 %v1591, %v1592
    %v1594 = vand.u32 %v1593, 4294901760
    %1595 = vmatpush.xpose.msra.mxu0 %v1594
    %v1596 = vand.u32 %v14, 4294901760
    %v1597 = vsub.f32 %v14, %v1596
    %v1598 = vand.u32 %v1597, 4294901760
    %v1599 = vsub.f32 %v1597, %v1598
    %v1600 = vand.u32 %v1599, 4294901760
    %1601 = vmatpush.xpose.msra.mxu0 %v1600
    %v1602 = vand.u32 %v13, 4294901760
    %v1603 = vsub.f32 %v13, %v1602
    %v1604 = vand.u32 %v1603, 4294901760
    %v1605 = vsub.f32 %v1603, %v1604
    %v1606 = vand.u32 %v1605, 4294901760
    %1607 = vmatpush.xpose.msra.mxu0 %v1606
    %v1608 = vand.u32 %v12, 4294901760
    %v1609 = vsub.f32 %v12, %v1608
    %v1610 = vand.u32 %v1609, 4294901760
    %v1611 = vsub.f32 %v1609, %v1610
    %v1612 = vand.u32 %v1611, 4294901760
    %1613 = vmatpush.xpose.msra.mxu0 %v1612
    %v1614 = vand.u32 %v1463, 4294901760
    %1615 = vmatmul.f32.gmra.mxu0 %v1614
    %v1616 = vpop.f32.mrf.mxu0
    %v1617 = vadd.f32 %v1516, %v1616
    %1618 = vdwg.mxu0
    %v1619 = vand.u32 %v27, 4294901760
    %v1620 = vsub.f32 %v27, %v1619
    %1621 = vmatpush.xpose.msra.mxu0 %v1620
    %v1622 = vand.u32 %v26, 4294901760
    %v1623 = vsub.f32 %v26, %v1622
    %1624 = vmatpush.xpose.msra.mxu0 %v1623
    %v1625 = vand.u32 %v25, 4294901760
    %v1626 = vsub.f32 %v25, %v1625
    %1627 = vmatpush.xpose.msra.mxu0 %v1626
    %v1628 = vand.u32 %v24, 4294901760
    %v1629 = vsub.f32 %v24, %v1628
    %1630 = vmatpush.xpose.msra.mxu0 %v1629
    %v1631 = vand.u32 %v23, 4294901760
    %v1632 = vsub.f32 %v23, %v1631
    %1633 = vmatpush.xpose.msra.mxu0 %v1632
    %v1634 = vand.u32 %v22, 4294901760
    %v1635 = vsub.f32 %v22, %v1634
    %1636 = vmatpush.xpose.msra.mxu0 %v1635
    %v1637 = vand.u32 %v21, 4294901760
    %v1638 = vsub.f32 %v21, %v1637
    %1639 = vmatpush.xpose.msra.mxu0 %v1638
    %v1640 = vand.u32 %v20, 4294901760
    %v1641 = vsub.f32 %v20, %v1640
    %1642 = vmatpush.xpose.msra.mxu0 %v1641
    %v1643 = vand.u32 %v19, 4294901760
    %v1644 = vsub.f32 %v19, %v1643
    %1645 = vmatpush.xpose.msra.mxu0 %v1644
    %v1646 = vand.u32 %v18, 4294901760
    %v1647 = vsub.f32 %v18, %v1646
    %1648 = vmatpush.xpose.msra.mxu0 %v1647
    %v1649 = vand.u32 %v17, 4294901760
    %v1650 = vsub.f32 %v17, %v1649
    %1651 = vmatpush.xpose.msra.mxu0 %v1650
    %v1652 = vand.u32 %v16, 4294901760
    %v1653 = vsub.f32 %v16, %v1652
    %1654 = vmatpush.xpose.msra.mxu0 %v1653
    %v1655 = vand.u32 %v15, 4294901760
    %v1656 = vsub.f32 %v15, %v1655
    %1657 = vmatpush.xpose.msra.mxu0 %v1656
    %v1658 = vand.u32 %v14, 4294901760
    %v1659 = vsub.f32 %v14, %v1658
    %1660 = vmatpush.xpose.msra.mxu0 %v1659
    %v1661 = vand.u32 %v13, 4294901760
    %v1662 = vsub.f32 %v13, %v1661
    %1663 = vmatpush.xpose.msra.mxu0 %v1662
    %v1664 = vand.u32 %v12, 4294901760
    %v1665 = vsub.f32 %v12, %v1664
    %1666 = vmatpush.xpose.msra.mxu0 %v1665
    %v1667 = vand.u32 %v1463, 4294901760
    %v1668 = vsub.f32 %v1463, %v1667
    %1669 = vmatmul.f32.gmra.mxu0 %v1668
    %v1670 = vpop.f32.mrf.mxu0
    %v1671 = vadd.f32 %v1617, %v1670
    %1672 = vdwg.mxu0
    %v1673 = vand.u32 %v27, 4294901760
    %1674 = vmatpush.xpose.msra.mxu0 %v1673
    %v1675 = vand.u32 %v26, 4294901760
    %1676 = vmatpush.xpose.msra.mxu0 %v1675
    %v1677 = vand.u32 %v25, 4294901760
    %1678 = vmatpush.xpose.msra.mxu0 %v1677
    %v1679 = vand.u32 %v24, 4294901760
    %1680 = vmatpush.xpose.msra.mxu0 %v1679
    %v1681 = vand.u32 %v23, 4294901760
    %1682 = vmatpush.xpose.msra.mxu0 %v1681
    %v1683 = vand.u32 %v22, 4294901760
    %1684 = vmatpush.xpose.msra.mxu0 %v1683
    %v1685 = vand.u32 %v21, 4294901760
    %1686 = vmatpush.xpose.msra.mxu0 %v1685
    %v1687 = vand.u32 %v20, 4294901760
    %1688 = vmatpush.xpose.msra.mxu0 %v1687
    %v1689 = vand.u32 %v19, 4294901760
    %1690 = vmatpush.xpose.msra.mxu0 %v1689
    %v1691 = vand.u32 %v18, 4294901760
    %1692 = vmatpush.xpose.msra.mxu0 %v1691
    %v1693 = vand.u32 %v17, 4294901760
    %1694 = vmatpush.xpose.msra.mxu0 %v1693
    %v1695 = vand.u32 %v16, 4294901760
    %1696 = vmatpush.xpose.msra.mxu0 %v1695
    %v1697 = vand.u32 %v15, 4294901760
    %1698 = vmatpush.xpose.msra.mxu0 %v1697
    %v1699 = vand.u32 %v14, 4294901760
    %1700 = vmatpush.xpose.msra.mxu0 %v1699
    %v1701 = vand.u32 %v13, 4294901760
    %1702 = vmatpush.xpose.msra.mxu0 %v1701
    %v1703 = vand.u32 %v12, 4294901760
    %1704 = vmatpush.xpose.msra.mxu0 %v1703
    %v1705 = vand.u32 %v1463, 4294901760
    %v1706 = vsub.f32 %v1463, %v1705
    %v1707 = vand.u32 %v1706, 4294901760
    %1708 = vmatmul.f32.gmra.mxu0 %v1707
    %v1709 = vpop.f32.mrf.mxu0
    %v1710 = vadd.f32 %v1671, %v1709
    %1711 = vdwg.mxu0
    %v1712 = vand.u32 %v27, 4294901760
    %v1713 = vsub.f32 %v27, %v1712
    %v1714 = vand.u32 %v1713, 4294901760
    %1715 = vmatpush.xpose.msra.mxu0 %v1714
    %v1716 = vand.u32 %v26, 4294901760
    %v1717 = vsub.f32 %v26, %v1716
    %v1718 = vand.u32 %v1717, 4294901760
    %1719 = vmatpush.xpose.msra.mxu0 %v1718
    %v1720 = vand.u32 %v25, 4294901760
    %v1721 = vsub.f32 %v25, %v1720
    %v1722 = vand.u32 %v1721, 4294901760
    %1723 = vmatpush.xpose.msra.mxu0 %v1722
    %v1724 = vand.u32 %v24, 4294901760
    %v1725 = vsub.f32 %v24, %v1724
    %v1726 = vand.u32 %v1725, 4294901760
    %1727 = vmatpush.xpose.msra.mxu0 %v1726
    %v1728 = vand.u32 %v23, 4294901760
    %v1729 = vsub.f32 %v23, %v1728
    %v1730 = vand.u32 %v1729, 4294901760
    %1731 = vmatpush.xpose.msra.mxu0 %v1730
    %v1732 = vand.u32 %v22, 4294901760
    %v1733 = vsub.f32 %v22, %v1732
    %v1734 = vand.u32 %v1733, 4294901760
    %1735 = vmatpush.xpose.msra.mxu0 %v1734
    %v1736 = vand.u32 %v21, 4294901760
    %v1737 = vsub.f32 %v21, %v1736
    %v1738 = vand.u32 %v1737, 4294901760
    %1739 = vmatpush.xpose.msra.mxu0 %v1738
    %v1740 = vand.u32 %v20, 4294901760
    %v1741 = vsub.f32 %v20, %v1740
    %v1742 = vand.u32 %v1741, 4294901760
    %1743 = vmatpush.xpose.msra.mxu0 %v1742
    %v1744 = vand.u32 %v19, 4294901760
    %v1745 = vsub.f32 %v19, %v1744
    %v1746 = vand.u32 %v1745, 4294901760
    %1747 = vmatpush.xpose.msra.mxu0 %v1746
    %v1748 = vand.u32 %v18, 4294901760
    %v1749 = vsub.f32 %v18, %v1748
    %v1750 = vand.u32 %v1749, 4294901760
    %1751 = vmatpush.xpose.msra.mxu0 %v1750
    %v1752 = vand.u32 %v17, 4294901760
    %v1753 = vsub.f32 %v17, %v1752
    %v1754 = vand.u32 %v1753, 4294901760
    %1755 = vmatpush.xpose.msra.mxu0 %v1754
    %v1756 = vand.u32 %v16, 4294901760
    %v1757 = vsub.f32 %v16, %v1756
    %v1758 = vand.u32 %v1757, 4294901760
    %1759 = vmatpush.xpose.msra.mxu0 %v1758
    %v1760 = vand.u32 %v15, 4294901760
    %v1761 = vsub.f32 %v15, %v1760
    %v1762 = vand.u32 %v1761, 4294901760
    %1763 = vmatpush.xpose.msra.mxu0 %v1762
    %v1764 = vand.u32 %v14, 4294901760
    %v1765 = vsub.f32 %v14, %v1764
    %v1766 = vand.u32 %v1765, 4294901760
    %1767 = vmatpush.xpose.msra.mxu0 %v1766
    %v1768 = vand.u32 %v13, 4294901760
    %v1769 = vsub.f32 %v13, %v1768
    %v1770 = vand.u32 %v1769, 4294901760
    %1771 = vmatpush.xpose.msra.mxu0 %v1770
    %v1772 = vand.u32 %v12, 4294901760
    %v1773 = vsub.f32 %v12, %v1772
    %v1774 = vand.u32 %v1773, 4294901760
    %1775 = vmatpush.xpose.msra.mxu0 %v1774
    %v1776 = vand.u32 %v1463, 4294901760
    %1777 = vmatmul.f32.gmra.mxu0 %v1776
    %v1778 = vpop.f32.mrf.mxu0
    %v1779 = vadd.f32 %v1710, %v1778
    %1780 = vdwg.mxu0
    %v1781 = vand.u32 %v27, 4294901760
    %1782 = vmatpush.xpose.msra.mxu0 %v1781
    %v1783 = vand.u32 %v26, 4294901760
    %1784 = vmatpush.xpose.msra.mxu0 %v1783
    %v1785 = vand.u32 %v25, 4294901760
    %1786 = vmatpush.xpose.msra.mxu0 %v1785
    %v1787 = vand.u32 %v24, 4294901760
    %1788 = vmatpush.xpose.msra.mxu0 %v1787
    %v1789 = vand.u32 %v23, 4294901760
    %1790 = vmatpush.xpose.msra.mxu0 %v1789
    %v1791 = vand.u32 %v22, 4294901760
    %1792 = vmatpush.xpose.msra.mxu0 %v1791
    %v1793 = vand.u32 %v21, 4294901760
    %1794 = vmatpush.xpose.msra.mxu0 %v1793
    %v1795 = vand.u32 %v20, 4294901760
    %1796 = vmatpush.xpose.msra.mxu0 %v1795
    %v1797 = vand.u32 %v19, 4294901760
    %1798 = vmatpush.xpose.msra.mxu0 %v1797
    %v1799 = vand.u32 %v18, 4294901760
    %1800 = vmatpush.xpose.msra.mxu0 %v1799
    %v1801 = vand.u32 %v17, 4294901760
    %1802 = vmatpush.xpose.msra.mxu0 %v1801
    %v1803 = vand.u32 %v16, 4294901760
    %1804 = vmatpush.xpose.msra.mxu0 %v1803
    %v1805 = vand.u32 %v15, 4294901760
    %1806 = vmatpush.xpose.msra.mxu0 %v1805
    %v1807 = vand.u32 %v14, 4294901760
    %1808 = vmatpush.xpose.msra.mxu0 %v1807
    %v1809 = vand.u32 %v13, 4294901760
    %1810 = vmatpush.xpose.msra.mxu0 %v1809
    %v1811 = vand.u32 %v12, 4294901760
    %1812 = vmatpush.xpose.msra.mxu0 %v1811
    %v1813 = vand.u32 %v1463, 4294901760
    %1814 = vmatmul.f32.gmra.mxu0 %v1813
    %v1815 = vpop.f32.mrf.mxu0
    %v1816 = vadd.f32 %v1779, %v1815
    %1817 = vdwg.mxu0
    %v1818 = vand.u32 %v27, 4294901760
    %1819 = vmatpush.msra.mxu0 %v1818
    %v1820 = vand.u32 %v26, 4294901760
    %1821 = vmatpush.msra.mxu0 %v1820
    %v1822 = vand.u32 %v25, 4294901760
    %1823 = vmatpush.msra.mxu0 %v1822
    %v1824 = vand.u32 %v24, 4294901760
    %1825 = vmatpush.msra.mxu0 %v1824
    %v1826 = vand.u32 %v23, 4294901760
    %1827 = vmatpush.msra.mxu0 %v1826
    %v1828 = vand.u32 %v22, 4294901760
    %1829 = vmatpush.msra.mxu0 %v1828
    %v1830 = vand.u32 %v21, 4294901760
    %1831 = vmatpush.msra.mxu0 %v1830
    %v1832 = vand.u32 %v20, 4294901760
    %1833 = vmatpush.msra.mxu0 %v1832
    %v1834 = vand.u32 %v19, 4294901760
    %1835 = vmatpush.msra.mxu0 %v1834
    %v1836 = vand.u32 %v18, 4294901760
    %1837 = vmatpush.msra.mxu0 %v1836
    %v1838 = vand.u32 %v17, 4294901760
    %1839 = vmatpush.msra.mxu0 %v1838
    %v1840 = vand.u32 %v16, 4294901760
    %1841 = vmatpush.msra.mxu0 %v1840
    %v1842 = vand.u32 %v15, 4294901760
    %1843 = vmatpush.msra.mxu0 %v1842
    %v1844 = vand.u32 %v14, 4294901760
    %1845 = vmatpush.msra.mxu0 %v1844
    %v1846 = vand.u32 %v13, 4294901760
    %1847 = vmatpush.msra.mxu0 %v1846
    %v1848 = vand.u32 %v12, 4294901760
    %1849 = vmatpush.msra.mxu0 %v1848
    %v1850 = vand.u32 %v1816, 4294901760
    %v1851 = vsub.f32 %v1816, %v1850
    %v1852 = vand.u32 %v1851, 4294901760
    %v1853 = vsub.f32 %v1851, %v1852
    %v1854 = vand.u32 %v1853, 4294901760
    %1855 = vmatmul.f32.gmra.mxu0 %v1854
    %v1856 = vpop.f32.mrf.mxu0
    %v1857 = vadd.f32 0.0, %v1856
    %1858 = vdwg.mxu0
    %v1859 = vand.u32 %v27, 4294901760
    %v1860 = vsub.f32 %v27, %v1859
    %v1861 = vand.u32 %v1860, 4294901760
    %v1862 = vsub.f32 %v1860, %v1861
    %v1863 = vand.u32 %v1862, 4294901760
    %1864 = vmatpush.msra.mxu0 %v1863
    %v1865 = vand.u32 %v26, 4294901760
    %v1866 = vsub.f32 %v26, %v1865
    %v1867 = vand.u32 %v1866, 4294901760
    %v1868 = vsub.f32 %v1866, %v1867
    %v1869 = vand.u32 %v1868, 4294901760
    %1870 = vmatpush.msra.mxu0 %v1869
    %v1871 = vand.u32 %v25, 4294901760
    %v1872 = vsub.f32 %v25, %v1871
    %v1873 = vand.u32 %v1872, 4294901760
    %v1874 = vsub.f32 %v1872, %v1873
    %v1875 = vand.u32 %v1874, 4294901760
    %1876 = vmatpush.msra.mxu0 %v1875
    %v1877 = vand.u32 %v24, 4294901760
    %v1878 = vsub.f32 %v24, %v1877
    %v1879 = vand.u32 %v1878, 4294901760
    %v1880 = vsub.f32 %v1878, %v1879
    %v1881 = vand.u32 %v1880, 4294901760
    %1882 = vmatpush.msra.mxu0 %v1881
    %v1883 = vand.u32 %v23, 4294901760
    %v1884 = vsub.f32 %v23, %v1883
    %v1885 = vand.u32 %v1884, 4294901760
    %v1886 = vsub.f32 %v1884, %v1885
    %v1887 = vand.u32 %v1886, 4294901760
    %1888 = vmatpush.msra.mxu0 %v1887
    %v1889 = vand.u32 %v22, 4294901760
    %v1890 = vsub.f32 %v22, %v1889
    %v1891 = vand.u32 %v1890, 4294901760
    %v1892 = vsub.f32 %v1890, %v1891
    %v1893 = vand.u32 %v1892, 4294901760
    %1894 = vmatpush.msra.mxu0 %v1893
    %v1895 = vand.u32 %v21, 4294901760
    %v1896 = vsub.f32 %v21, %v1895
    %v1897 = vand.u32 %v1896, 4294901760
    %v1898 = vsub.f32 %v1896, %v1897
    %v1899 = vand.u32 %v1898, 4294901760
    %1900 = vmatpush.msra.mxu0 %v1899
    %v1901 = vand.u32 %v20, 4294901760
    %v1902 = vsub.f32 %v20, %v1901
    %v1903 = vand.u32 %v1902, 4294901760
    %v1904 = vsub.f32 %v1902, %v1903
    %v1905 = vand.u32 %v1904, 4294901760
    %1906 = vmatpush.msra.mxu0 %v1905
    %v1907 = vand.u32 %v19, 4294901760
    %v1908 = vsub.f32 %v19, %v1907
    %v1909 = vand.u32 %v1908, 4294901760
    %v1910 = vsub.f32 %v1908, %v1909
    %v1911 = vand.u32 %v1910, 4294901760
    %1912 = vmatpush.msra.mxu0 %v1911
    %v1913 = vand.u32 %v18, 4294901760
    %v1914 = vsub.f32 %v18, %v1913
    %v1915 = vand.u32 %v1914, 4294901760
    %v1916 = vsub.f32 %v1914, %v1915
    %v1917 = vand.u32 %v1916, 4294901760
    %1918 = vmatpush.msra.mxu0 %v1917
    %v1919 = vand.u32 %v17, 4294901760
    %v1920 = vsub.f32 %v17, %v1919
    %v1921 = vand.u32 %v1920, 4294901760
    %v1922 = vsub.f32 %v1920, %v1921
    %v1923 = vand.u32 %v1922, 4294901760
    %1924 = vmatpush.msra.mxu0 %v1923
    %v1925 = vand.u32 %v16, 4294901760
    %v1926 = vsub.f32 %v16, %v1925
    %v1927 = vand.u32 %v1926, 4294901760
    %v1928 = vsub.f32 %v1926, %v1927
    %v1929 = vand.u32 %v1928, 4294901760
    %1930 = vmatpush.msra.mxu0 %v1929
    %v1931 = vand.u32 %v15, 4294901760
    %v1932 = vsub.f32 %v15, %v1931
    %v1933 = vand.u32 %v1932, 4294901760
    %v1934 = vsub.f32 %v1932, %v1933
    %v1935 = vand.u32 %v1934, 4294901760
    %1936 = vmatpush.msra.mxu0 %v1935
    %v1937 = vand.u32 %v14, 4294901760
    %v1938 = vsub.f32 %v14, %v1937
    %v1939 = vand.u32 %v1938, 4294901760
    %v1940 = vsub.f32 %v1938, %v1939
    %v1941 = vand.u32 %v1940, 4294901760
    %1942 = vmatpush.msra.mxu0 %v1941
    %v1943 = vand.u32 %v13, 4294901760
    %v1944 = vsub.f32 %v13, %v1943
    %v1945 = vand.u32 %v1944, 4294901760
    %v1946 = vsub.f32 %v1944, %v1945
    %v1947 = vand.u32 %v1946, 4294901760
    %1948 = vmatpush.msra.mxu0 %v1947
    %v1949 = vand.u32 %v12, 4294901760
    %v1950 = vsub.f32 %v12, %v1949
    %v1951 = vand.u32 %v1950, 4294901760
    %v1952 = vsub.f32 %v1950, %v1951
    %v1953 = vand.u32 %v1952, 4294901760
    %1954 = vmatpush.msra.mxu0 %v1953
    %v1955 = vand.u32 %v1816, 4294901760
    %1956 = vmatmul.f32.gmra.mxu0 %v1955
    %v1957 = vpop.f32.mrf.mxu0
    %v1958 = vadd.f32 %v1857, %v1957
    %1959 = vdwg.mxu0
    %v1960 = vand.u32 %v27, 4294901760
    %v1961 = vsub.f32 %v27, %v1960
    %1962 = vmatpush.msra.mxu0 %v1961
    %v1963 = vand.u32 %v26, 4294901760
    %v1964 = vsub.f32 %v26, %v1963
    %1965 = vmatpush.msra.mxu0 %v1964
    %v1966 = vand.u32 %v25, 4294901760
    %v1967 = vsub.f32 %v25, %v1966
    %1968 = vmatpush.msra.mxu0 %v1967
    %v1969 = vand.u32 %v24, 4294901760
    %v1970 = vsub.f32 %v24, %v1969
    %1971 = vmatpush.msra.mxu0 %v1970
    %v1972 = vand.u32 %v23, 4294901760
    %v1973 = vsub.f32 %v23, %v1972
    %1974 = vmatpush.msra.mxu0 %v1973
    %v1975 = vand.u32 %v22, 4294901760
    %v1976 = vsub.f32 %v22, %v1975
    %1977 = vmatpush.msra.mxu0 %v1976
    %v1978 = vand.u32 %v21, 4294901760
    %v1979 = vsub.f32 %v21, %v1978
    %1980 = vmatpush.msra.mxu0 %v1979
    %v1981 = vand.u32 %v20, 4294901760
    %v1982 = vsub.f32 %v20, %v1981
    %1983 = vmatpush.msra.mxu0 %v1982
    %v1984 = vand.u32 %v19, 4294901760
    %v1985 = vsub.f32 %v19, %v1984
    %1986 = vmatpush.msra.mxu0 %v1985
    %v1987 = vand.u32 %v18, 4294901760
    %v1988 = vsub.f32 %v18, %v1987
    %1989 = vmatpush.msra.mxu0 %v1988
    %v1990 = vand.u32 %v17, 4294901760
    %v1991 = vsub.f32 %v17, %v1990
    %1992 = vmatpush.msra.mxu0 %v1991
    %v1993 = vand.u32 %v16, 4294901760
    %v1994 = vsub.f32 %v16, %v1993
    %1995 = vmatpush.msra.mxu0 %v1994
    %v1996 = vand.u32 %v15, 4294901760
    %v1997 = vsub.f32 %v15, %v1996
    %1998 = vmatpush.msra.mxu0 %v1997
    %v1999 = vand.u32 %v14, 4294901760
    %v2000 = vsub.f32 %v14, %v1999
    %2001 = vmatpush.msra.mxu0 %v2000
    %v2002 = vand.u32 %v13, 4294901760
    %v2003 = vsub.f32 %v13, %v2002
    %2004 = vmatpush.msra.mxu0 %v2003
    %v2005 = vand.u32 %v12, 4294901760
    %v2006 = vsub.f32 %v12, %v2005
    %2007 = vmatpush.msra.mxu0 %v2006
    %v2008 = vand.u32 %v1816, 4294901760
    %v2009 = vsub.f32 %v1816, %v2008
    %2010 = vmatmul.f32.gmra.mxu0 %v2009
    %v2011 = vpop.f32.mrf.mxu0
    %v2012 = vadd.f32 %v1958, %v2011
    %2013 = vdwg.mxu0
    %v2014 = vand.u32 %v27, 4294901760
    %2015 = vmatpush.msra.mxu0 %v2014
    %v2016 = vand.u32 %v26, 4294901760
    %2017 = vmatpush.msra.mxu0 %v2016
    %v2018 = vand.u32 %v25, 4294901760
    %2019 = vmatpush.msra.mxu0 %v2018
    %v2020 = vand.u32 %v24, 4294901760
    %2021 = vmatpush.msra.mxu0 %v2020
    %v2022 = vand.u32 %v23, 4294901760
    %2023 = vmatpush.msra.mxu0 %v2022
    %v2024 = vand.u32 %v22, 4294901760
    %2025 = vmatpush.msra.mxu0 %v2024
    %v2026 = vand.u32 %v21, 4294901760
    %2027 = vmatpush.msra.mxu0 %v2026
    %v2028 = vand.u32 %v20, 4294901760
    %2029 = vmatpush.msra.mxu0 %v2028
    %v2030 = vand.u32 %v19, 4294901760
    %2031 = vmatpush.msra.mxu0 %v2030
    %v2032 = vand.u32 %v18, 4294901760
    %2033 = vmatpush.msra.mxu0 %v2032
    %v2034 = vand.u32 %v17, 4294901760
    %2035 = vmatpush.msra.mxu0 %v2034
    %v2036 = vand.u32 %v16, 4294901760
    %2037 = vmatpush.msra.mxu0 %v2036
    %v2038 = vand.u32 %v15, 4294901760
    %2039 = vmatpush.msra.mxu0 %v2038
    %v2040 = vand.u32 %v14, 4294901760
    %2041 = vmatpush.msra.mxu0 %v2040
    %v2042 = vand.u32 %v13, 4294901760
    %2043 = vmatpush.msra.mxu0 %v2042
    %v2044 = vand.u32 %v12, 4294901760
    %2045 = vmatpush.msra.mxu0 %v2044
    %v2046 = vand.u32 %v1816, 4294901760
    %v2047 = vsub.f32 %v1816, %v2046
    %v2048 = vand.u32 %v2047, 4294901760
    %2049 = vmatmul.f32.gmra.mxu0 %v2048
    %v2050 = vpop.f32.mrf.mxu0
    %v2051 = vadd.f32 %v2012, %v2050
    %2052 = vdwg.mxu0
    %v2053 = vand.u32 %v27, 4294901760
    %v2054 = vsub.f32 %v27, %v2053
    %v2055 = vand.u32 %v2054, 4294901760
    %2056 = vmatpush.msra.mxu0 %v2055
    %v2057 = vand.u32 %v26, 4294901760
    %v2058 = vsub.f32 %v26, %v2057
    %v2059 = vand.u32 %v2058, 4294901760
    %2060 = vmatpush.msra.mxu0 %v2059
    %v2061 = vand.u32 %v25, 4294901760
    %v2062 = vsub.f32 %v25, %v2061
    %v2063 = vand.u32 %v2062, 4294901760
    %2064 = vmatpush.msra.mxu0 %v2063
    %v2065 = vand.u32 %v24, 4294901760
    %v2066 = vsub.f32 %v24, %v2065
    %v2067 = vand.u32 %v2066, 4294901760
    %2068 = vmatpush.msra.mxu0 %v2067
    %v2069 = vand.u32 %v23, 4294901760
    %v2070 = vsub.f32 %v23, %v2069
    %v2071 = vand.u32 %v2070, 4294901760
    %2072 = vmatpush.msra.mxu0 %v2071
    %v2073 = vand.u32 %v22, 4294901760
    %v2074 = vsub.f32 %v22, %v2073
    %v2075 = vand.u32 %v2074, 4294901760
    %2076 = vmatpush.msra.mxu0 %v2075
    %v2077 = vand.u32 %v21, 4294901760
    %v2078 = vsub.f32 %v21, %v2077
    %v2079 = vand.u32 %v2078, 4294901760
    %2080 = vmatpush.msra.mxu0 %v2079
    %v2081 = vand.u32 %v20, 4294901760
    %v2082 = vsub.f32 %v20, %v2081
    %v2083 = vand.u32 %v2082, 4294901760
    %2084 = vmatpush.msra.mxu0 %v2083
    %v2085 = vand.u32 %v19, 4294901760
    %v2086 = vsub.f32 %v19, %v2085
    %v2087 = vand.u32 %v2086, 4294901760
    %2088 = vmatpush.msra.mxu0 %v2087
    %v2089 = vand.u32 %v18, 4294901760
    %v2090 = vsub.f32 %v18, %v2089
    %v2091 = vand.u32 %v2090, 4294901760
    %2092 = vmatpush.msra.mxu0 %v2091
    %v2093 = vand.u32 %v17, 4294901760
    %v2094 = vsub.f32 %v17, %v2093
    %v2095 = vand.u32 %v2094, 4294901760
    %2096 = vmatpush.msra.mxu0 %v2095
    %v2097 = vand.u32 %v16, 4294901760
    %v2098 = vsub.f32 %v16, %v2097
    %v2099 = vand.u32 %v2098, 4294901760
    %2100 = vmatpush.msra.mxu0 %v2099
    %v2101 = vand.u32 %v15, 4294901760
    %v2102 = vsub.f32 %v15, %v2101
    %v2103 = vand.u32 %v2102, 4294901760
    %2104 = vmatpush.msra.mxu0 %v2103
    %v2105 = vand.u32 %v14, 4294901760
    %v2106 = vsub.f32 %v14, %v2105
    %v2107 = vand.u32 %v2106, 4294901760
    %2108 = vmatpush.msra.mxu0 %v2107
    %v2109 = vand.u32 %v13, 4294901760
    %v2110 = vsub.f32 %v13, %v2109
    %v2111 = vand.u32 %v2110, 4294901760
    %2112 = vmatpush.msra.mxu0 %v2111
    %v2113 = vand.u32 %v12, 4294901760
    %v2114 = vsub.f32 %v12, %v2113
    %v2115 = vand.u32 %v2114, 4294901760
    %2116 = vmatpush.msra.mxu0 %v2115
    %v2117 = vand.u32 %v1816, 4294901760
    %2118 = vmatmul.f32.gmra.mxu0 %v2117
    %v2119 = vpop.f32.mrf.mxu0
    %v2120 = vadd.f32 %v2051, %v2119
    %2121 = vdwg.mxu0
    %v2122 = vand.u32 %v27, 4294901760
    %2123 = vmatpush.msra.mxu0 %v2122
    %v2124 = vand.u32 %v26, 4294901760
    %2125 = vmatpush.msra.mxu0 %v2124
    %v2126 = vand.u32 %v25, 4294901760
    %2127 = vmatpush.msra.mxu0 %v2126
    %v2128 = vand.u32 %v24, 4294901760
    %2129 = vmatpush.msra.mxu0 %v2128
    %v2130 = vand.u32 %v23, 4294901760
    %2131 = vmatpush.msra.mxu0 %v2130
    %v2132 = vand.u32 %v22, 4294901760
    %2133 = vmatpush.msra.mxu0 %v2132
    %v2134 = vand.u32 %v21, 4294901760
    %2135 = vmatpush.msra.mxu0 %v2134
    %v2136 = vand.u32 %v20, 4294901760
    %2137 = vmatpush.msra.mxu0 %v2136
    %v2138 = vand.u32 %v19, 4294901760
    %2139 = vmatpush.msra.mxu0 %v2138
    %v2140 = vand.u32 %v18, 4294901760
    %2141 = vmatpush.msra.mxu0 %v2140
    %v2142 = vand.u32 %v17, 4294901760
    %2143 = vmatpush.msra.mxu0 %v2142
    %v2144 = vand.u32 %v16, 4294901760
    %2145 = vmatpush.msra.mxu0 %v2144
    %v2146 = vand.u32 %v15, 4294901760
    %2147 = vmatpush.msra.mxu0 %v2146
    %v2148 = vand.u32 %v14, 4294901760
    %2149 = vmatpush.msra.mxu0 %v2148
    %v2150 = vand.u32 %v13, 4294901760
    %2151 = vmatpush.msra.mxu0 %v2150
    %v2152 = vand.u32 %v12, 4294901760
    %2153 = vmatpush.msra.mxu0 %v2152
    %v2154 = vand.u32 %v1816, 4294901760
    %2155 = vmatmul.f32.gmra.mxu0 %v2154
    %v2156 = vpop.f32.mrf.mxu0
    %v2157 = vadd.f32 %v2120, %v2156
    %2158 = vdwg.mxu0
    %v2159 = vmul.f32 %v2157, %v2157
    %v2160 = vsel %vm712, %v2159, 0.0
    %2161 = vadd.xlane.f32.xlu0 %v2160
    %v2162 = vpop.xlane.xlu0 %2161
    %v2163 = vrot.slane %v2162, 4
    %v2164 = vadd.f32 %v2162, %v2163
    %v2165 = vrot.slane %v2164, 2
    %v2166 = vadd.f32 %v2164, %v2165
    %v2167 = vrot.slane %v2166, 1
    %v2168 = vadd.f32 %v2166, %v2167
    %s2169 = vtos %v2168
    %s2170 = sadd.f32 %s2169, 1e-30
    %v2171 = vstv %s2170
    %v2172 = vrsqrt.pop %v2171
    %v2173 = vmul.f32 %v2172, %v2171
    %v2174 = vmul.f32 %v2173, %v2172
    %v2175 = vmul.f32 0.5, %v2174
    %v2176 = vsub.f32 1.5, %v2175
    %v2177 = vmul.f32 %v2172, %v2176
    %vm2178 = vweird.f32 %v2171
    %vm2179 = vweird.f32 %v2172
    %vm2180 = vmor %vm2178, %vm2179
    %v2181 = vsel %vm2180, %v2172, %v2177
    %s2182 = vtos %v2181
    %v2183 = vstv %s2182
    %v2184 = vmul.f32 %v2157, %v2183
    %v2185 = vsub.f32 %v2184, %v1463
    %s2186 = scalar_select %p1476, 1, 0
    %v2187 = vstv %s2186
    %vm2188 = vcmp.eq.s32.totalorder %v2187, 1
    %v2189 = vsel %vm2188, %v1463, %v2184
    %v2190 = vmul.f32 %v2185, %v2185
    %v2191 = vsel %vm712, %v2190, 0.0
    %2192 = vadd.xlane.f32.xlu0 %v2191
    %v2193 = vpop.xlane.xlu0 %2192
    %v2194 = vrot.slane %v2193, 4
    %v2195 = vadd.f32 %v2193, %v2194
    %v2196 = vrot.slane %v2195, 2
    %v2197 = vadd.f32 %v2195, %v2196
    %v2198 = vrot.slane %v2197, 1
    %v2199 = vadd.f32 %v2197, %v2198
    %s2200 = vtos %v2199
    %p2201 = scmp.lt.f32.partialorder %s2200, 1e-12
    %p2202 = por %p1476, %p2201
    %v2203 = vand.u32 %v27, 4294901760
    %2204 = vmatpush.xpose.msra.mxu0 %v2203
    %v2205 = vand.u32 %v26, 4294901760
    %2206 = vmatpush.xpose.msra.mxu0 %v2205
    %v2207 = vand.u32 %v25, 4294901760
    %2208 = vmatpush.xpose.msra.mxu0 %v2207
    %v2209 = vand.u32 %v24, 4294901760
    %2210 = vmatpush.xpose.msra.mxu0 %v2209
    %v2211 = vand.u32 %v23, 4294901760
    %2212 = vmatpush.xpose.msra.mxu0 %v2211
    %v2213 = vand.u32 %v22, 4294901760
    %2214 = vmatpush.xpose.msra.mxu0 %v2213
    %v2215 = vand.u32 %v21, 4294901760
    %2216 = vmatpush.xpose.msra.mxu0 %v2215
    %v2217 = vand.u32 %v20, 4294901760
    %2218 = vmatpush.xpose.msra.mxu0 %v2217
    %v2219 = vand.u32 %v19, 4294901760
    %2220 = vmatpush.xpose.msra.mxu0 %v2219
    %v2221 = vand.u32 %v18, 4294901760
    %2222 = vmatpush.xpose.msra.mxu0 %v2221
    %v2223 = vand.u32 %v17, 4294901760
    %2224 = vmatpush.xpose.msra.mxu0 %v2223
    %v2225 = vand.u32 %v16, 4294901760
    %2226 = vmatpush.xpose.msra.mxu0 %v2225
    %v2227 = vand.u32 %v15, 4294901760
    %2228 = vmatpush.xpose.msra.mxu0 %v2227
    %v2229 = vand.u32 %v14, 4294901760
    %2230 = vmatpush.xpose.msra.mxu0 %v2229
    %v2231 = vand.u32 %v13, 4294901760
    %2232 = vmatpush.xpose.msra.mxu0 %v2231
    %v2233 = vand.u32 %v12, 4294901760
    %2234 = vmatpush.xpose.msra.mxu0 %v2233
    %v2235 = vand.u32 %v2189, 4294901760
    %v2236 = vsub.f32 %v2189, %v2235
    %v2237 = vand.u32 %v2236, 4294901760
    %v2238 = vsub.f32 %v2236, %v2237
    %v2239 = vand.u32 %v2238, 4294901760
    %2240 = vmatmul.f32.gmra.mxu0 %v2239
    %v2241 = vpop.f32.mrf.mxu0
    %v2242 = vadd.f32 0.0, %v2241
    %2243 = vdwg.mxu0
    %v2244 = vand.u32 %v27, 4294901760
    %v2245 = vsub.f32 %v27, %v2244
    %v2246 = vand.u32 %v2245, 4294901760
    %v2247 = vsub.f32 %v2245, %v2246
    %v2248 = vand.u32 %v2247, 4294901760
    %2249 = vmatpush.xpose.msra.mxu0 %v2248
    %v2250 = vand.u32 %v26, 4294901760
    %v2251 = vsub.f32 %v26, %v2250
    %v2252 = vand.u32 %v2251, 4294901760
    %v2253 = vsub.f32 %v2251, %v2252
    %v2254 = vand.u32 %v2253, 4294901760
    %2255 = vmatpush.xpose.msra.mxu0 %v2254
    %v2256 = vand.u32 %v25, 4294901760
    %v2257 = vsub.f32 %v25, %v2256
    %v2258 = vand.u32 %v2257, 4294901760
    %v2259 = vsub.f32 %v2257, %v2258
    %v2260 = vand.u32 %v2259, 4294901760
    %2261 = vmatpush.xpose.msra.mxu0 %v2260
    %v2262 = vand.u32 %v24, 4294901760
    %v2263 = vsub.f32 %v24, %v2262
    %v2264 = vand.u32 %v2263, 4294901760
    %v2265 = vsub.f32 %v2263, %v2264
    %v2266 = vand.u32 %v2265, 4294901760
    %2267 = vmatpush.xpose.msra.mxu0 %v2266
    %v2268 = vand.u32 %v23, 4294901760
    %v2269 = vsub.f32 %v23, %v2268
    %v2270 = vand.u32 %v2269, 4294901760
    %v2271 = vsub.f32 %v2269, %v2270
    %v2272 = vand.u32 %v2271, 4294901760
    %2273 = vmatpush.xpose.msra.mxu0 %v2272
    %v2274 = vand.u32 %v22, 4294901760
    %v2275 = vsub.f32 %v22, %v2274
    %v2276 = vand.u32 %v2275, 4294901760
    %v2277 = vsub.f32 %v2275, %v2276
    %v2278 = vand.u32 %v2277, 4294901760
    %2279 = vmatpush.xpose.msra.mxu0 %v2278
    %v2280 = vand.u32 %v21, 4294901760
    %v2281 = vsub.f32 %v21, %v2280
    %v2282 = vand.u32 %v2281, 4294901760
    %v2283 = vsub.f32 %v2281, %v2282
    %v2284 = vand.u32 %v2283, 4294901760
    %2285 = vmatpush.xpose.msra.mxu0 %v2284
    %v2286 = vand.u32 %v20, 4294901760
    %v2287 = vsub.f32 %v20, %v2286
    %v2288 = vand.u32 %v2287, 4294901760
    %v2289 = vsub.f32 %v2287, %v2288
    %v2290 = vand.u32 %v2289, 4294901760
    %2291 = vmatpush.xpose.msra.mxu0 %v2290
    %v2292 = vand.u32 %v19, 4294901760
    %v2293 = vsub.f32 %v19, %v2292
    %v2294 = vand.u32 %v2293, 4294901760
    %v2295 = vsub.f32 %v2293, %v2294
    %v2296 = vand.u32 %v2295, 4294901760
    %2297 = vmatpush.xpose.msra.mxu0 %v2296
    %v2298 = vand.u32 %v18, 4294901760
    %v2299 = vsub.f32 %v18, %v2298
    %v2300 = vand.u32 %v2299, 4294901760
    %v2301 = vsub.f32 %v2299, %v2300
    %v2302 = vand.u32 %v2301, 4294901760
    %2303 = vmatpush.xpose.msra.mxu0 %v2302
    %v2304 = vand.u32 %v17, 4294901760
    %v2305 = vsub.f32 %v17, %v2304
    %v2306 = vand.u32 %v2305, 4294901760
    %v2307 = vsub.f32 %v2305, %v2306
    %v2308 = vand.u32 %v2307, 4294901760
    %2309 = vmatpush.xpose.msra.mxu0 %v2308
    %v2310 = vand.u32 %v16, 4294901760
    %v2311 = vsub.f32 %v16, %v2310
    %v2312 = vand.u32 %v2311, 4294901760
    %v2313 = vsub.f32 %v2311, %v2312
    %v2314 = vand.u32 %v2313, 4294901760
    %2315 = vmatpush.xpose.msra.mxu0 %v2314
    %v2316 = vand.u32 %v15, 4294901760
    %v2317 = vsub.f32 %v15, %v2316
    %v2318 = vand.u32 %v2317, 4294901760
    %v2319 = vsub.f32 %v2317, %v2318
    %v2320 = vand.u32 %v2319, 4294901760
    %2321 = vmatpush.xpose.msra.mxu0 %v2320
    %v2322 = vand.u32 %v14, 4294901760
    %v2323 = vsub.f32 %v14, %v2322
    %v2324 = vand.u32 %v2323, 4294901760
    %v2325 = vsub.f32 %v2323, %v2324
    %v2326 = vand.u32 %v2325, 4294901760
    %2327 = vmatpush.xpose.msra.mxu0 %v2326
    %v2328 = vand.u32 %v13, 4294901760
    %v2329 = vsub.f32 %v13, %v2328
    %v2330 = vand.u32 %v2329, 4294901760
    %v2331 = vsub.f32 %v2329, %v2330
    %v2332 = vand.u32 %v2331, 4294901760
    %2333 = vmatpush.xpose.msra.mxu0 %v2332
    %v2334 = vand.u32 %v12, 4294901760
    %v2335 = vsub.f32 %v12, %v2334
    %v2336 = vand.u32 %v2335, 4294901760
    %v2337 = vsub.f32 %v2335, %v2336
    %v2338 = vand.u32 %v2337, 4294901760
    %2339 = vmatpush.xpose.msra.mxu0 %v2338
    %v2340 = vand.u32 %v2189, 4294901760
    %2341 = vmatmul.f32.gmra.mxu0 %v2340
    %v2342 = vpop.f32.mrf.mxu0
    %v2343 = vadd.f32 %v2242, %v2342
    %2344 = vdwg.mxu0
    %v2345 = vand.u32 %v27, 4294901760
    %v2346 = vsub.f32 %v27, %v2345
    %2347 = vmatpush.xpose.msra.mxu0 %v2346
    %v2348 = vand.u32 %v26, 4294901760
    %v2349 = vsub.f32 %v26, %v2348
    %2350 = vmatpush.xpose.msra.mxu0 %v2349
    %v2351 = vand.u32 %v25, 4294901760
    %v2352 = vsub.f32 %v25, %v2351
    %2353 = vmatpush.xpose.msra.mxu0 %v2352
    %v2354 = vand.u32 %v24, 4294901760
    %v2355 = vsub.f32 %v24, %v2354
    %2356 = vmatpush.xpose.msra.mxu0 %v2355
    %v2357 = vand.u32 %v23, 4294901760
    %v2358 = vsub.f32 %v23, %v2357
    %2359 = vmatpush.xpose.msra.mxu0 %v2358
    %v2360 = vand.u32 %v22, 4294901760
    %v2361 = vsub.f32 %v22, %v2360
    %2362 = vmatpush.xpose.msra.mxu0 %v2361
    %v2363 = vand.u32 %v21, 4294901760
    %v2364 = vsub.f32 %v21, %v2363
    %2365 = vmatpush.xpose.msra.mxu0 %v2364
    %v2366 = vand.u32 %v20, 4294901760
    %v2367 = vsub.f32 %v20, %v2366
    %2368 = vmatpush.xpose.msra.mxu0 %v2367
    %v2369 = vand.u32 %v19, 4294901760
    %v2370 = vsub.f32 %v19, %v2369
    %2371 = vmatpush.xpose.msra.mxu0 %v2370
    %v2372 = vand.u32 %v18, 4294901760
    %v2373 = vsub.f32 %v18, %v2372
    %2374 = vmatpush.xpose.msra.mxu0 %v2373
    %v2375 = vand.u32 %v17, 4294901760
    %v2376 = vsub.f32 %v17, %v2375
    %2377 = vmatpush.xpose.msra.mxu0 %v2376
    %v2378 = vand.u32 %v16, 4294901760
    %v2379 = vsub.f32 %v16, %v2378
    %2380 = vmatpush.xpose.msra.mxu0 %v2379
    %v2381 = vand.u32 %v15, 4294901760
    %v2382 = vsub.f32 %v15, %v2381
    %2383 = vmatpush.xpose.msra.mxu0 %v2382
    %v2384 = vand.u32 %v14, 4294901760
    %v2385 = vsub.f32 %v14, %v2384
    %2386 = vmatpush.xpose.msra.mxu0 %v2385
    %v2387 = vand.u32 %v13, 4294901760
    %v2388 = vsub.f32 %v13, %v2387
    %2389 = vmatpush.xpose.msra.mxu0 %v2388
    %v2390 = vand.u32 %v12, 4294901760
    %v2391 = vsub.f32 %v12, %v2390
    %2392 = vmatpush.xpose.msra.mxu0 %v2391
    %v2393 = vand.u32 %v2189, 4294901760
    %v2394 = vsub.f32 %v2189, %v2393
    %2395 = vmatmul.f32.gmra.mxu0 %v2394
    %v2396 = vpop.f32.mrf.mxu0
    %v2397 = vadd.f32 %v2343, %v2396
    %2398 = vdwg.mxu0
    %v2399 = vand.u32 %v27, 4294901760
    %2400 = vmatpush.xpose.msra.mxu0 %v2399
    %v2401 = vand.u32 %v26, 4294901760
    %2402 = vmatpush.xpose.msra.mxu0 %v2401
    %v2403 = vand.u32 %v25, 4294901760
    %2404 = vmatpush.xpose.msra.mxu0 %v2403
    %v2405 = vand.u32 %v24, 4294901760
    %2406 = vmatpush.xpose.msra.mxu0 %v2405
    %v2407 = vand.u32 %v23, 4294901760
    %2408 = vmatpush.xpose.msra.mxu0 %v2407
    %v2409 = vand.u32 %v22, 4294901760
    %2410 = vmatpush.xpose.msra.mxu0 %v2409
    %v2411 = vand.u32 %v21, 4294901760
    %2412 = vmatpush.xpose.msra.mxu0 %v2411
    %v2413 = vand.u32 %v20, 4294901760
    %2414 = vmatpush.xpose.msra.mxu0 %v2413
    %v2415 = vand.u32 %v19, 4294901760
    %2416 = vmatpush.xpose.msra.mxu0 %v2415
    %v2417 = vand.u32 %v18, 4294901760
    %2418 = vmatpush.xpose.msra.mxu0 %v2417
    %v2419 = vand.u32 %v17, 4294901760
    %2420 = vmatpush.xpose.msra.mxu0 %v2419
    %v2421 = vand.u32 %v16, 4294901760
    %2422 = vmatpush.xpose.msra.mxu0 %v2421
    %v2423 = vand.u32 %v15, 4294901760
    %2424 = vmatpush.xpose.msra.mxu0 %v2423
    %v2425 = vand.u32 %v14, 4294901760
    %2426 = vmatpush.xpose.msra.mxu0 %v2425
    %v2427 = vand.u32 %v13, 4294901760
    %2428 = vmatpush.xpose.msra.mxu0 %v2427
    %v2429 = vand.u32 %v12, 4294901760
    %2430 = vmatpush.xpose.msra.mxu0 %v2429
    %v2431 = vand.u32 %v2189, 4294901760
    %v2432 = vsub.f32 %v2189, %v2431
    %v2433 = vand.u32 %v2432, 4294901760
    %2434 = vmatmul.f32.gmra.mxu0 %v2433
    %v2435 = vpop.f32.mrf.mxu0
    %v2436 = vadd.f32 %v2397, %v2435
    %2437 = vdwg.mxu0
    %v2438 = vand.u32 %v27, 4294901760
    %v2439 = vsub.f32 %v27, %v2438
    %v2440 = vand.u32 %v2439, 4294901760
    %2441 = vmatpush.xpose.msra.mxu0 %v2440
    %v2442 = vand.u32 %v26, 4294901760
    %v2443 = vsub.f32 %v26, %v2442
    %v2444 = vand.u32 %v2443, 4294901760
    %2445 = vmatpush.xpose.msra.mxu0 %v2444
    %v2446 = vand.u32 %v25, 4294901760
    %v2447 = vsub.f32 %v25, %v2446
    %v2448 = vand.u32 %v2447, 4294901760
    %2449 = vmatpush.xpose.msra.mxu0 %v2448
    %v2450 = vand.u32 %v24, 4294901760
    %v2451 = vsub.f32 %v24, %v2450
    %v2452 = vand.u32 %v2451, 4294901760
    %2453 = vmatpush.xpose.msra.mxu0 %v2452
    %v2454 = vand.u32 %v23, 4294901760
    %v2455 = vsub.f32 %v23, %v2454
    %v2456 = vand.u32 %v2455, 4294901760
    %2457 = vmatpush.xpose.msra.mxu0 %v2456
    %v2458 = vand.u32 %v22, 4294901760
    %v2459 = vsub.f32 %v22, %v2458
    %v2460 = vand.u32 %v2459, 4294901760
    %2461 = vmatpush.xpose.msra.mxu0 %v2460
    %v2462 = vand.u32 %v21, 4294901760
    %v2463 = vsub.f32 %v21, %v2462
    %v2464 = vand.u32 %v2463, 4294901760
    %2465 = vmatpush.xpose.msra.mxu0 %v2464
    %v2466 = vand.u32 %v20, 4294901760
    %v2467 = vsub.f32 %v20, %v2466
    %v2468 = vand.u32 %v2467, 4294901760
    %2469 = vmatpush.xpose.msra.mxu0 %v2468
    %v2470 = vand.u32 %v19, 4294901760
    %v2471 = vsub.f32 %v19, %v2470
    %v2472 = vand.u32 %v2471, 4294901760
    %2473 = vmatpush.xpose.msra.mxu0 %v2472
    %v2474 = vand.u32 %v18, 4294901760
    %v2475 = vsub.f32 %v18, %v2474
    %v2476 = vand.u32 %v2475, 4294901760
    %2477 = vmatpush.xpose.msra.mxu0 %v2476
    %v2478 = vand.u32 %v17, 4294901760
    %v2479 = vsub.f32 %v17, %v2478
    %v2480 = vand.u32 %v2479, 4294901760
    %2481 = vmatpush.xpose.msra.mxu0 %v2480
    %v2482 = vand.u32 %v16, 4294901760
    %v2483 = vsub.f32 %v16, %v2482
    %v2484 = vand.u32 %v2483, 4294901760
    %2485 = vmatpush.xpose.msra.mxu0 %v2484
    %v2486 = vand.u32 %v15, 4294901760
    %v2487 = vsub.f32 %v15, %v2486
    %v2488 = vand.u32 %v2487, 4294901760
    %2489 = vmatpush.xpose.msra.mxu0 %v2488
    %v2490 = vand.u32 %v14, 4294901760
    %v2491 = vsub.f32 %v14, %v2490
    %v2492 = vand.u32 %v2491, 4294901760
    %2493 = vmatpush.xpose.msra.mxu0 %v2492
    %v2494 = vand.u32 %v13, 4294901760
    %v2495 = vsub.f32 %v13, %v2494
    %v2496 = vand.u32 %v2495, 4294901760
    %2497 = vmatpush.xpose.msra.mxu0 %v2496
    %v2498 = vand.u32 %v12, 4294901760
    %v2499 = vsub.f32 %v12, %v2498
    %v2500 = vand.u32 %v2499, 4294901760
    %2501 = vmatpush.xpose.msra.mxu0 %v2500
    %v2502 = vand.u32 %v2189, 4294901760
    %2503 = vmatmul.f32.gmra.mxu0 %v2502
    %v2504 = vpop.f32.mrf.mxu0
    %v2505 = vadd.f32 %v2436, %v2504
    %2506 = vdwg.mxu0
    %v2507 = vand.u32 %v27, 4294901760
    %2508 = vmatpush.xpose.msra.mxu0 %v2507
    %v2509 = vand.u32 %v26, 4294901760
    %2510 = vmatpush.xpose.msra.mxu0 %v2509
    %v2511 = vand.u32 %v25, 4294901760
    %2512 = vmatpush.xpose.msra.mxu0 %v2511
    %v2513 = vand.u32 %v24, 4294901760
    %2514 = vmatpush.xpose.msra.mxu0 %v2513
    %v2515 = vand.u32 %v23, 4294901760
    %2516 = vmatpush.xpose.msra.mxu0 %v2515
    %v2517 = vand.u32 %v22, 4294901760
    %2518 = vmatpush.xpose.msra.mxu0 %v2517
    %v2519 = vand.u32 %v21, 4294901760
    %2520 = vmatpush.xpose.msra.mxu0 %v2519
    %v2521 = vand.u32 %v20, 4294901760
    %2522 = vmatpush.xpose.msra.mxu0 %v2521
    %v2523 = vand.u32 %v19, 4294901760
    %2524 = vmatpush.xpose.msra.mxu0 %v2523
    %v2525 = vand.u32 %v18, 4294901760
    %2526 = vmatpush.xpose.msra.mxu0 %v2525
    %v2527 = vand.u32 %v17, 4294901760
    %2528 = vmatpush.xpose.msra.mxu0 %v2527
    %v2529 = vand.u32 %v16, 4294901760
    %2530 = vmatpush.xpose.msra.mxu0 %v2529
    %v2531 = vand.u32 %v15, 4294901760
    %2532 = vmatpush.xpose.msra.mxu0 %v2531
    %v2533 = vand.u32 %v14, 4294901760
    %2534 = vmatpush.xpose.msra.mxu0 %v2533
    %v2535 = vand.u32 %v13, 4294901760
    %2536 = vmatpush.xpose.msra.mxu0 %v2535
    %v2537 = vand.u32 %v12, 4294901760
    %2538 = vmatpush.xpose.msra.mxu0 %v2537
    %v2539 = vand.u32 %v2189, 4294901760
    %2540 = vmatmul.f32.gmra.mxu0 %v2539
    %v2541 = vpop.f32.mrf.mxu0
    %v2542 = vadd.f32 %v2505, %v2541
    %2543 = vdwg.mxu0
    %v2544 = vand.u32 %v27, 4294901760
    %2545 = vmatpush.msra.mxu0 %v2544
    %v2546 = vand.u32 %v26, 4294901760
    %2547 = vmatpush.msra.mxu0 %v2546
    %v2548 = vand.u32 %v25, 4294901760
    %2549 = vmatpush.msra.mxu0 %v2548
    %v2550 = vand.u32 %v24, 4294901760
    %2551 = vmatpush.msra.mxu0 %v2550
    %v2552 = vand.u32 %v23, 4294901760
    %2553 = vmatpush.msra.mxu0 %v2552
    %v2554 = vand.u32 %v22, 4294901760
    %2555 = vmatpush.msra.mxu0 %v2554
    %v2556 = vand.u32 %v21, 4294901760
    %2557 = vmatpush.msra.mxu0 %v2556
    %v2558 = vand.u32 %v20, 4294901760
    %2559 = vmatpush.msra.mxu0 %v2558
    %v2560 = vand.u32 %v19, 4294901760
    %2561 = vmatpush.msra.mxu0 %v2560
    %v2562 = vand.u32 %v18, 4294901760
    %2563 = vmatpush.msra.mxu0 %v2562
    %v2564 = vand.u32 %v17, 4294901760
    %2565 = vmatpush.msra.mxu0 %v2564
    %v2566 = vand.u32 %v16, 4294901760
    %2567 = vmatpush.msra.mxu0 %v2566
    %v2568 = vand.u32 %v15, 4294901760
    %2569 = vmatpush.msra.mxu0 %v2568
    %v2570 = vand.u32 %v14, 4294901760
    %2571 = vmatpush.msra.mxu0 %v2570
    %v2572 = vand.u32 %v13, 4294901760
    %2573 = vmatpush.msra.mxu0 %v2572
    %v2574 = vand.u32 %v12, 4294901760
    %2575 = vmatpush.msra.mxu0 %v2574
    %v2576 = vand.u32 %v2542, 4294901760
    %v2577 = vsub.f32 %v2542, %v2576
    %v2578 = vand.u32 %v2577, 4294901760
    %v2579 = vsub.f32 %v2577, %v2578
    %v2580 = vand.u32 %v2579, 4294901760
    %2581 = vmatmul.f32.gmra.mxu0 %v2580
    %v2582 = vpop.f32.mrf.mxu0
    %v2583 = vadd.f32 0.0, %v2582
    %2584 = vdwg.mxu0
    %v2585 = vand.u32 %v27, 4294901760
    %v2586 = vsub.f32 %v27, %v2585
    %v2587 = vand.u32 %v2586, 4294901760
    %v2588 = vsub.f32 %v2586, %v2587
    %v2589 = vand.u32 %v2588, 4294901760
    %2590 = vmatpush.msra.mxu0 %v2589
    %v2591 = vand.u32 %v26, 4294901760
    %v2592 = vsub.f32 %v26, %v2591
    %v2593 = vand.u32 %v2592, 4294901760
    %v2594 = vsub.f32 %v2592, %v2593
    %v2595 = vand.u32 %v2594, 4294901760
    %2596 = vmatpush.msra.mxu0 %v2595
    %v2597 = vand.u32 %v25, 4294901760
    %v2598 = vsub.f32 %v25, %v2597
    %v2599 = vand.u32 %v2598, 4294901760
    %v2600 = vsub.f32 %v2598, %v2599
    %v2601 = vand.u32 %v2600, 4294901760
    %2602 = vmatpush.msra.mxu0 %v2601
    %v2603 = vand.u32 %v24, 4294901760
    %v2604 = vsub.f32 %v24, %v2603
    %v2605 = vand.u32 %v2604, 4294901760
    %v2606 = vsub.f32 %v2604, %v2605
    %v2607 = vand.u32 %v2606, 4294901760
    %2608 = vmatpush.msra.mxu0 %v2607
    %v2609 = vand.u32 %v23, 4294901760
    %v2610 = vsub.f32 %v23, %v2609
    %v2611 = vand.u32 %v2610, 4294901760
    %v2612 = vsub.f32 %v2610, %v2611
    %v2613 = vand.u32 %v2612, 4294901760
    %2614 = vmatpush.msra.mxu0 %v2613
    %v2615 = vand.u32 %v22, 4294901760
    %v2616 = vsub.f32 %v22, %v2615
    %v2617 = vand.u32 %v2616, 4294901760
    %v2618 = vsub.f32 %v2616, %v2617
    %v2619 = vand.u32 %v2618, 4294901760
    %2620 = vmatpush.msra.mxu0 %v2619
    %v2621 = vand.u32 %v21, 4294901760
    %v2622 = vsub.f32 %v21, %v2621
    %v2623 = vand.u32 %v2622, 4294901760
    %v2624 = vsub.f32 %v2622, %v2623
    %v2625 = vand.u32 %v2624, 4294901760
    %2626 = vmatpush.msra.mxu0 %v2625
    %v2627 = vand.u32 %v20, 4294901760
    %v2628 = vsub.f32 %v20, %v2627
    %v2629 = vand.u32 %v2628, 4294901760
    %v2630 = vsub.f32 %v2628, %v2629
    %v2631 = vand.u32 %v2630, 4294901760
    %2632 = vmatpush.msra.mxu0 %v2631
    %v2633 = vand.u32 %v19, 4294901760
    %v2634 = vsub.f32 %v19, %v2633
    %v2635 = vand.u32 %v2634, 4294901760
    %v2636 = vsub.f32 %v2634, %v2635
    %v2637 = vand.u32 %v2636, 4294901760
    %2638 = vmatpush.msra.mxu0 %v2637
    %v2639 = vand.u32 %v18, 4294901760
    %v2640 = vsub.f32 %v18, %v2639
    %v2641 = vand.u32 %v2640, 4294901760
    %v2642 = vsub.f32 %v2640, %v2641
    %v2643 = vand.u32 %v2642, 4294901760
    %2644 = vmatpush.msra.mxu0 %v2643
    %v2645 = vand.u32 %v17, 4294901760
    %v2646 = vsub.f32 %v17, %v2645
    %v2647 = vand.u32 %v2646, 4294901760
    %v2648 = vsub.f32 %v2646, %v2647
    %v2649 = vand.u32 %v2648, 4294901760
    %2650 = vmatpush.msra.mxu0 %v2649
    %v2651 = vand.u32 %v16, 4294901760
    %v2652 = vsub.f32 %v16, %v2651
    %v2653 = vand.u32 %v2652, 4294901760
    %v2654 = vsub.f32 %v2652, %v2653
    %v2655 = vand.u32 %v2654, 4294901760
    %2656 = vmatpush.msra.mxu0 %v2655
    %v2657 = vand.u32 %v15, 4294901760
    %v2658 = vsub.f32 %v15, %v2657
    %v2659 = vand.u32 %v2658, 4294901760
    %v2660 = vsub.f32 %v2658, %v2659
    %v2661 = vand.u32 %v2660, 4294901760
    %2662 = vmatpush.msra.mxu0 %v2661
    %v2663 = vand.u32 %v14, 4294901760
    %v2664 = vsub.f32 %v14, %v2663
    %v2665 = vand.u32 %v2664, 4294901760
    %v2666 = vsub.f32 %v2664, %v2665
    %v2667 = vand.u32 %v2666, 4294901760
    %2668 = vmatpush.msra.mxu0 %v2667
    %v2669 = vand.u32 %v13, 4294901760
    %v2670 = vsub.f32 %v13, %v2669
    %v2671 = vand.u32 %v2670, 4294901760
    %v2672 = vsub.f32 %v2670, %v2671
    %v2673 = vand.u32 %v2672, 4294901760
    %2674 = vmatpush.msra.mxu0 %v2673
    %v2675 = vand.u32 %v12, 4294901760
    %v2676 = vsub.f32 %v12, %v2675
    %v2677 = vand.u32 %v2676, 4294901760
    %v2678 = vsub.f32 %v2676, %v2677
    %v2679 = vand.u32 %v2678, 4294901760
    %2680 = vmatpush.msra.mxu0 %v2679
    %v2681 = vand.u32 %v2542, 4294901760
    %2682 = vmatmul.f32.gmra.mxu0 %v2681
    %v2683 = vpop.f32.mrf.mxu0
    %v2684 = vadd.f32 %v2583, %v2683
    %2685 = vdwg.mxu0
    %v2686 = vand.u32 %v27, 4294901760
    %v2687 = vsub.f32 %v27, %v2686
    %2688 = vmatpush.msra.mxu0 %v2687
    %v2689 = vand.u32 %v26, 4294901760
    %v2690 = vsub.f32 %v26, %v2689
    %2691 = vmatpush.msra.mxu0 %v2690
    %v2692 = vand.u32 %v25, 4294901760
    %v2693 = vsub.f32 %v25, %v2692
    %2694 = vmatpush.msra.mxu0 %v2693
    %v2695 = vand.u32 %v24, 4294901760
    %v2696 = vsub.f32 %v24, %v2695
    %2697 = vmatpush.msra.mxu0 %v2696
    %v2698 = vand.u32 %v23, 4294901760
    %v2699 = vsub.f32 %v23, %v2698
    %2700 = vmatpush.msra.mxu0 %v2699
    %v2701 = vand.u32 %v22, 4294901760
    %v2702 = vsub.f32 %v22, %v2701
    %2703 = vmatpush.msra.mxu0 %v2702
    %v2704 = vand.u32 %v21, 4294901760
    %v2705 = vsub.f32 %v21, %v2704
    %2706 = vmatpush.msra.mxu0 %v2705
    %v2707 = vand.u32 %v20, 4294901760
    %v2708 = vsub.f32 %v20, %v2707
    %2709 = vmatpush.msra.mxu0 %v2708
    %v2710 = vand.u32 %v19, 4294901760
    %v2711 = vsub.f32 %v19, %v2710
    %2712 = vmatpush.msra.mxu0 %v2711
    %v2713 = vand.u32 %v18, 4294901760
    %v2714 = vsub.f32 %v18, %v2713
    %2715 = vmatpush.msra.mxu0 %v2714
    %v2716 = vand.u32 %v17, 4294901760
    %v2717 = vsub.f32 %v17, %v2716
    %2718 = vmatpush.msra.mxu0 %v2717
    %v2719 = vand.u32 %v16, 4294901760
    %v2720 = vsub.f32 %v16, %v2719
    %2721 = vmatpush.msra.mxu0 %v2720
    %v2722 = vand.u32 %v15, 4294901760
    %v2723 = vsub.f32 %v15, %v2722
    %2724 = vmatpush.msra.mxu0 %v2723
    %v2725 = vand.u32 %v14, 4294901760
    %v2726 = vsub.f32 %v14, %v2725
    %2727 = vmatpush.msra.mxu0 %v2726
    %v2728 = vand.u32 %v13, 4294901760
    %v2729 = vsub.f32 %v13, %v2728
    %2730 = vmatpush.msra.mxu0 %v2729
    %v2731 = vand.u32 %v12, 4294901760
    %v2732 = vsub.f32 %v12, %v2731
    %2733 = vmatpush.msra.mxu0 %v2732
    %v2734 = vand.u32 %v2542, 4294901760
    %v2735 = vsub.f32 %v2542, %v2734
    %2736 = vmatmul.f32.gmra.mxu0 %v2735
    %v2737 = vpop.f32.mrf.mxu0
    %v2738 = vadd.f32 %v2684, %v2737
    %2739 = vdwg.mxu0
    %v2740 = vand.u32 %v27, 4294901760
    %2741 = vmatpush.msra.mxu0 %v2740
    %v2742 = vand.u32 %v26, 4294901760
    %2743 = vmatpush.msra.mxu0 %v2742
    %v2744 = vand.u32 %v25, 4294901760
    %2745 = vmatpush.msra.mxu0 %v2744
    %v2746 = vand.u32 %v24, 4294901760
    %2747 = vmatpush.msra.mxu0 %v2746
    %v2748 = vand.u32 %v23, 4294901760
    %2749 = vmatpush.msra.mxu0 %v2748
    %v2750 = vand.u32 %v22, 4294901760
    %2751 = vmatpush.msra.mxu0 %v2750
    %v2752 = vand.u32 %v21, 4294901760
    %2753 = vmatpush.msra.mxu0 %v2752
    %v2754 = vand.u32 %v20, 4294901760
    %2755 = vmatpush.msra.mxu0 %v2754
    %v2756 = vand.u32 %v19, 4294901760
    %2757 = vmatpush.msra.mxu0 %v2756
    %v2758 = vand.u32 %v18, 4294901760
    %2759 = vmatpush.msra.mxu0 %v2758
    %v2760 = vand.u32 %v17, 4294901760
    %2761 = vmatpush.msra.mxu0 %v2760
    %v2762 = vand.u32 %v16, 4294901760
    %2763 = vmatpush.msra.mxu0 %v2762
    %v2764 = vand.u32 %v15, 4294901760
    %2765 = vmatpush.msra.mxu0 %v2764
    %v2766 = vand.u32 %v14, 4294901760
    %2767 = vmatpush.msra.mxu0 %v2766
    %v2768 = vand.u32 %v13, 4294901760
    %2769 = vmatpush.msra.mxu0 %v2768
    %v2770 = vand.u32 %v12, 4294901760
    %2771 = vmatpush.msra.mxu0 %v2770
    %v2772 = vand.u32 %v2542, 4294901760
    %v2773 = vsub.f32 %v2542, %v2772
    %v2774 = vand.u32 %v2773, 4294901760
    %2775 = vmatmul.f32.gmra.mxu0 %v2774
    %v2776 = vpop.f32.mrf.mxu0
    %v2777 = vadd.f32 %v2738, %v2776
    %2778 = vdwg.mxu0
    %v2779 = vand.u32 %v27, 4294901760
    %v2780 = vsub.f32 %v27, %v2779
    %v2781 = vand.u32 %v2780, 4294901760
    %2782 = vmatpush.msra.mxu0 %v2781
    %v2783 = vand.u32 %v26, 4294901760
    %v2784 = vsub.f32 %v26, %v2783
    %v2785 = vand.u32 %v2784, 4294901760
    %2786 = vmatpush.msra.mxu0 %v2785
    %v2787 = vand.u32 %v25, 4294901760
    %v2788 = vsub.f32 %v25, %v2787
    %v2789 = vand.u32 %v2788, 4294901760
    %2790 = vmatpush.msra.mxu0 %v2789
    %v2791 = vand.u32 %v24, 4294901760
    %v2792 = vsub.f32 %v24, %v2791
    %v2793 = vand.u32 %v2792, 4294901760
    %2794 = vmatpush.msra.mxu0 %v2793
    %v2795 = vand.u32 %v23, 4294901760
    %v2796 = vsub.f32 %v23, %v2795
    %v2797 = vand.u32 %v2796, 4294901760
    %2798 = vmatpush.msra.mxu0 %v2797
    %v2799 = vand.u32 %v22, 4294901760
    %v2800 = vsub.f32 %v22, %v2799
    %v2801 = vand.u32 %v2800, 4294901760
    %2802 = vmatpush.msra.mxu0 %v2801
    %v2803 = vand.u32 %v21, 4294901760
    %v2804 = vsub.f32 %v21, %v2803
    %v2805 = vand.u32 %v2804, 4294901760
    %2806 = vmatpush.msra.mxu0 %v2805
    %v2807 = vand.u32 %v20, 4294901760
    %v2808 = vsub.f32 %v20, %v2807
    %v2809 = vand.u32 %v2808, 4294901760
    %2810 = vmatpush.msra.mxu0 %v2809
    %v2811 = vand.u32 %v19, 4294901760
    %v2812 = vsub.f32 %v19, %v2811
    %v2813 = vand.u32 %v2812, 4294901760
    %2814 = vmatpush.msra.mxu0 %v2813
    %v2815 = vand.u32 %v18, 4294901760
    %v2816 = vsub.f32 %v18, %v2815
    %v2817 = vand.u32 %v2816, 4294901760
    %2818 = vmatpush.msra.mxu0 %v2817
    %v2819 = vand.u32 %v17, 4294901760
    %v2820 = vsub.f32 %v17, %v2819
    %v2821 = vand.u32 %v2820, 4294901760
    %2822 = vmatpush.msra.mxu0 %v2821
    %v2823 = vand.u32 %v16, 4294901760
    %v2824 = vsub.f32 %v16, %v2823
    %v2825 = vand.u32 %v2824, 4294901760
    %2826 = vmatpush.msra.mxu0 %v2825
    %v2827 = vand.u32 %v15, 4294901760
    %v2828 = vsub.f32 %v15, %v2827
    %v2829 = vand.u32 %v2828, 4294901760
    %2830 = vmatpush.msra.mxu0 %v2829
    %v2831 = vand.u32 %v14, 4294901760
    %v2832 = vsub.f32 %v14, %v2831
    %v2833 = vand.u32 %v2832, 4294901760
    %2834 = vmatpush.msra.mxu0 %v2833
    %v2835 = vand.u32 %v13, 4294901760
    %v2836 = vsub.f32 %v13, %v2835
    %v2837 = vand.u32 %v2836, 4294901760
    %2838 = vmatpush.msra.mxu0 %v2837
    %v2839 = vand.u32 %v12, 4294901760
    %v2840 = vsub.f32 %v12, %v2839
    %v2841 = vand.u32 %v2840, 4294901760
    %2842 = vmatpush.msra.mxu0 %v2841
    %v2843 = vand.u32 %v2542, 4294901760
    %2844 = vmatmul.f32.gmra.mxu0 %v2843
    %v2845 = vpop.f32.mrf.mxu0
    %v2846 = vadd.f32 %v2777, %v2845
    %2847 = vdwg.mxu0
    %v2848 = vand.u32 %v27, 4294901760
    %2849 = vmatpush.msra.mxu0 %v2848
    %v2850 = vand.u32 %v26, 4294901760
    %2851 = vmatpush.msra.mxu0 %v2850
    %v2852 = vand.u32 %v25, 4294901760
    %2853 = vmatpush.msra.mxu0 %v2852
    %v2854 = vand.u32 %v24, 4294901760
    %2855 = vmatpush.msra.mxu0 %v2854
    %v2856 = vand.u32 %v23, 4294901760
    %2857 = vmatpush.msra.mxu0 %v2856
    %v2858 = vand.u32 %v22, 4294901760
    %2859 = vmatpush.msra.mxu0 %v2858
    %v2860 = vand.u32 %v21, 4294901760
    %2861 = vmatpush.msra.mxu0 %v2860
    %v2862 = vand.u32 %v20, 4294901760
    %2863 = vmatpush.msra.mxu0 %v2862
    %v2864 = vand.u32 %v19, 4294901760
    %2865 = vmatpush.msra.mxu0 %v2864
    %v2866 = vand.u32 %v18, 4294901760
    %2867 = vmatpush.msra.mxu0 %v2866
    %v2868 = vand.u32 %v17, 4294901760
    %2869 = vmatpush.msra.mxu0 %v2868
    %v2870 = vand.u32 %v16, 4294901760
    %2871 = vmatpush.msra.mxu0 %v2870
    %v2872 = vand.u32 %v15, 4294901760
    %2873 = vmatpush.msra.mxu0 %v2872
    %v2874 = vand.u32 %v14, 4294901760
    %2875 = vmatpush.msra.mxu0 %v2874
    %v2876 = vand.u32 %v13, 4294901760
    %2877 = vmatpush.msra.mxu0 %v2876
    %v2878 = vand.u32 %v12, 4294901760
    %2879 = vmatpush.msra.mxu0 %v2878
    %v2880 = vand.u32 %v2542, 4294901760
    %2881 = vmatmul.f32.gmra.mxu0 %v2880
    %v2882 = vpop.f32.mrf.mxu0
    %v2883 = vadd.f32 %v2846, %v2882
    %2884 = vdwg.mxu0
    %v2885 = vmul.f32 %v2883, %v2883
    %v2886 = vsel %vm712, %v2885, 0.0
    %2887 = vadd.xlane.f32.xlu0 %v2886
    %v2888 = vpop.xlane.xlu0 %2887
    %v2889 = vrot.slane %v2888, 4
    %v2890 = vadd.f32 %v2888, %v2889
    %v2891 = vrot.slane %v2890, 2
    %v2892 = vadd.f32 %v2890, %v2891
    %v2893 = vrot.slane %v2892, 1
    %v2894 = vadd.f32 %v2892, %v2893
    %s2895 = vtos %v2894
    %s2896 = sadd.f32 %s2895, 1e-30
    %v2897 = vstv %s2896
    %v2898 = vrsqrt.pop %v2897
    %v2899 = vmul.f32 %v2898, %v2897
    %v2900 = vmul.f32 %v2899, %v2898
    %v2901 = vmul.f32 0.5, %v2900
    %v2902 = vsub.f32 1.5, %v2901
    %v2903 = vmul.f32 %v2898, %v2902
    %vm2904 = vweird.f32 %v2897
    %vm2905 = vweird.f32 %v2898
    %vm2906 = vmor %vm2904, %vm2905
    %v2907 = vsel %vm2906, %v2898, %v2903
    %s2908 = vtos %v2907
    %v2909 = vstv %s2908
    %v2910 = vmul.f32 %v2883, %v2909
    %v2911 = vsub.f32 %v2910, %v2189
    %s2912 = scalar_select %p2202, 1, 0
    %v2913 = vstv %s2912
    %vm2914 = vcmp.eq.s32.totalorder %v2913, 1
    %v2915 = vsel %vm2914, %v2189, %v2910
    %v2916 = vmul.f32 %v2911, %v2911
    %v2917 = vsel %vm712, %v2916, 0.0
    %2918 = vadd.xlane.f32.xlu0 %v2917
    %v2919 = vpop.xlane.xlu0 %2918
    %v2920 = vrot.slane %v2919, 4
    %v2921 = vadd.f32 %v2919, %v2920
    %v2922 = vrot.slane %v2921, 2
    %v2923 = vadd.f32 %v2921, %v2922
    %v2924 = vrot.slane %v2923, 1
    %v2925 = vadd.f32 %v2923, %v2924
    %s2926 = vtos %v2925
    %p2927 = scmp.lt.f32.partialorder %s2926, 1e-12
    %p2928 = por %p2202, %p2927
    %v2929 = vand.u32 %v27, 4294901760
    %2930 = vmatpush.xpose.msra.mxu0 %v2929
    %v2931 = vand.u32 %v26, 4294901760
    %2932 = vmatpush.xpose.msra.mxu0 %v2931
    %v2933 = vand.u32 %v25, 4294901760
    %2934 = vmatpush.xpose.msra.mxu0 %v2933
    %v2935 = vand.u32 %v24, 4294901760
    %2936 = vmatpush.xpose.msra.mxu0 %v2935
    %v2937 = vand.u32 %v23, 4294901760
    %2938 = vmatpush.xpose.msra.mxu0 %v2937
    %v2939 = vand.u32 %v22, 4294901760
    %2940 = vmatpush.xpose.msra.mxu0 %v2939
    %v2941 = vand.u32 %v21, 4294901760
    %2942 = vmatpush.xpose.msra.mxu0 %v2941
    %v2943 = vand.u32 %v20, 4294901760
    %2944 = vmatpush.xpose.msra.mxu0 %v2943
    %v2945 = vand.u32 %v19, 4294901760
    %2946 = vmatpush.xpose.msra.mxu0 %v2945
    %v2947 = vand.u32 %v18, 4294901760
    %2948 = vmatpush.xpose.msra.mxu0 %v2947
    %v2949 = vand.u32 %v17, 4294901760
    %2950 = vmatpush.xpose.msra.mxu0 %v2949
    %v2951 = vand.u32 %v16, 4294901760
    %2952 = vmatpush.xpose.msra.mxu0 %v2951
    %v2953 = vand.u32 %v15, 4294901760
    %2954 = vmatpush.xpose.msra.mxu0 %v2953
    %v2955 = vand.u32 %v14, 4294901760
    %2956 = vmatpush.xpose.msra.mxu0 %v2955
    %v2957 = vand.u32 %v13, 4294901760
    %2958 = vmatpush.xpose.msra.mxu0 %v2957
    %v2959 = vand.u32 %v12, 4294901760
    %2960 = vmatpush.xpose.msra.mxu0 %v2959
    %v2961 = vand.u32 %v2915, 4294901760
    %v2962 = vsub.f32 %v2915, %v2961
    %v2963 = vand.u32 %v2962, 4294901760
    %v2964 = vsub.f32 %v2962, %v2963
    %v2965 = vand.u32 %v2964, 4294901760
    %2966 = vmatmul.f32.gmra.mxu0 %v2965
    %v2967 = vpop.f32.mrf.mxu0
    %v2968 = vadd.f32 0.0, %v2967
    %2969 = vdwg.mxu0
    %v2970 = vand.u32 %v27, 4294901760
    %v2971 = vsub.f32 %v27, %v2970
    %v2972 = vand.u32 %v2971, 4294901760
    %v2973 = vsub.f32 %v2971, %v2972
    %v2974 = vand.u32 %v2973, 4294901760
    %2975 = vmatpush.xpose.msra.mxu0 %v2974
    %v2976 = vand.u32 %v26, 4294901760
    %v2977 = vsub.f32 %v26, %v2976
    %v2978 = vand.u32 %v2977, 4294901760
    %v2979 = vsub.f32 %v2977, %v2978
    %v2980 = vand.u32 %v2979, 4294901760
    %2981 = vmatpush.xpose.msra.mxu0 %v2980
    %v2982 = vand.u32 %v25, 4294901760
    %v2983 = vsub.f32 %v25, %v2982
    %v2984 = vand.u32 %v2983, 4294901760
    %v2985 = vsub.f32 %v2983, %v2984
    %v2986 = vand.u32 %v2985, 4294901760
    %2987 = vmatpush.xpose.msra.mxu0 %v2986
    %v2988 = vand.u32 %v24, 4294901760
    %v2989 = vsub.f32 %v24, %v2988
    %v2990 = vand.u32 %v2989, 4294901760
    %v2991 = vsub.f32 %v2989, %v2990
    %v2992 = vand.u32 %v2991, 4294901760
    %2993 = vmatpush.xpose.msra.mxu0 %v2992
    %v2994 = vand.u32 %v23, 4294901760
    %v2995 = vsub.f32 %v23, %v2994
    %v2996 = vand.u32 %v2995, 4294901760
    %v2997 = vsub.f32 %v2995, %v2996
    %v2998 = vand.u32 %v2997, 4294901760
    %2999 = vmatpush.xpose.msra.mxu0 %v2998
    %v3000 = vand.u32 %v22, 4294901760
    %v3001 = vsub.f32 %v22, %v3000
    %v3002 = vand.u32 %v3001, 4294901760
    %v3003 = vsub.f32 %v3001, %v3002
    %v3004 = vand.u32 %v3003, 4294901760
    %3005 = vmatpush.xpose.msra.mxu0 %v3004
    %v3006 = vand.u32 %v21, 4294901760
    %v3007 = vsub.f32 %v21, %v3006
    %v3008 = vand.u32 %v3007, 4294901760
    %v3009 = vsub.f32 %v3007, %v3008
    %v3010 = vand.u32 %v3009, 4294901760
    %3011 = vmatpush.xpose.msra.mxu0 %v3010
    %v3012 = vand.u32 %v20, 4294901760
    %v3013 = vsub.f32 %v20, %v3012
    %v3014 = vand.u32 %v3013, 4294901760
    %v3015 = vsub.f32 %v3013, %v3014
    %v3016 = vand.u32 %v3015, 4294901760
    %3017 = vmatpush.xpose.msra.mxu0 %v3016
    %v3018 = vand.u32 %v19, 4294901760
    %v3019 = vsub.f32 %v19, %v3018
    %v3020 = vand.u32 %v3019, 4294901760
    %v3021 = vsub.f32 %v3019, %v3020
    %v3022 = vand.u32 %v3021, 4294901760
    %3023 = vmatpush.xpose.msra.mxu0 %v3022
    %v3024 = vand.u32 %v18, 4294901760
    %v3025 = vsub.f32 %v18, %v3024
    %v3026 = vand.u32 %v3025, 4294901760
    %v3027 = vsub.f32 %v3025, %v3026
    %v3028 = vand.u32 %v3027, 4294901760
    %3029 = vmatpush.xpose.msra.mxu0 %v3028
    %v3030 = vand.u32 %v17, 4294901760
    %v3031 = vsub.f32 %v17, %v3030
    %v3032 = vand.u32 %v3031, 4294901760
    %v3033 = vsub.f32 %v3031, %v3032
    %v3034 = vand.u32 %v3033, 4294901760
    %3035 = vmatpush.xpose.msra.mxu0 %v3034
    %v3036 = vand.u32 %v16, 4294901760
    %v3037 = vsub.f32 %v16, %v3036
    %v3038 = vand.u32 %v3037, 4294901760
    %v3039 = vsub.f32 %v3037, %v3038
    %v3040 = vand.u32 %v3039, 4294901760
    %3041 = vmatpush.xpose.msra.mxu0 %v3040
    %v3042 = vand.u32 %v15, 4294901760
    %v3043 = vsub.f32 %v15, %v3042
    %v3044 = vand.u32 %v3043, 4294901760
    %v3045 = vsub.f32 %v3043, %v3044
    %v3046 = vand.u32 %v3045, 4294901760
    %3047 = vmatpush.xpose.msra.mxu0 %v3046
    %v3048 = vand.u32 %v14, 4294901760
    %v3049 = vsub.f32 %v14, %v3048
    %v3050 = vand.u32 %v3049, 4294901760
    %v3051 = vsub.f32 %v3049, %v3050
    %v3052 = vand.u32 %v3051, 4294901760
    %3053 = vmatpush.xpose.msra.mxu0 %v3052
    %v3054 = vand.u32 %v13, 4294901760
    %v3055 = vsub.f32 %v13, %v3054
    %v3056 = vand.u32 %v3055, 4294901760
    %v3057 = vsub.f32 %v3055, %v3056
    %v3058 = vand.u32 %v3057, 4294901760
    %3059 = vmatpush.xpose.msra.mxu0 %v3058
    %v3060 = vand.u32 %v12, 4294901760
    %v3061 = vsub.f32 %v12, %v3060
    %v3062 = vand.u32 %v3061, 4294901760
    %v3063 = vsub.f32 %v3061, %v3062
    %v3064 = vand.u32 %v3063, 4294901760
    %3065 = vmatpush.xpose.msra.mxu0 %v3064
    %v3066 = vand.u32 %v2915, 4294901760
    %3067 = vmatmul.f32.gmra.mxu0 %v3066
    %v3068 = vpop.f32.mrf.mxu0
    %v3069 = vadd.f32 %v2968, %v3068
    %3070 = vdwg.mxu0
    %v3071 = vand.u32 %v27, 4294901760
    %v3072 = vsub.f32 %v27, %v3071
    %3073 = vmatpush.xpose.msra.mxu0 %v3072
    %v3074 = vand.u32 %v26, 4294901760
    %v3075 = vsub.f32 %v26, %v3074
    %3076 = vmatpush.xpose.msra.mxu0 %v3075
    %v3077 = vand.u32 %v25, 4294901760
    %v3078 = vsub.f32 %v25, %v3077
    %3079 = vmatpush.xpose.msra.mxu0 %v3078
    %v3080 = vand.u32 %v24, 4294901760
    %v3081 = vsub.f32 %v24, %v3080
    %3082 = vmatpush.xpose.msra.mxu0 %v3081
    %v3083 = vand.u32 %v23, 4294901760
    %v3084 = vsub.f32 %v23, %v3083
    %3085 = vmatpush.xpose.msra.mxu0 %v3084
    %v3086 = vand.u32 %v22, 4294901760
    %v3087 = vsub.f32 %v22, %v3086
    %3088 = vmatpush.xpose.msra.mxu0 %v3087
    %v3089 = vand.u32 %v21, 4294901760
    %v3090 = vsub.f32 %v21, %v3089
    %3091 = vmatpush.xpose.msra.mxu0 %v3090
    %v3092 = vand.u32 %v20, 4294901760
    %v3093 = vsub.f32 %v20, %v3092
    %3094 = vmatpush.xpose.msra.mxu0 %v3093
    %v3095 = vand.u32 %v19, 4294901760
    %v3096 = vsub.f32 %v19, %v3095
    %3097 = vmatpush.xpose.msra.mxu0 %v3096
    %v3098 = vand.u32 %v18, 4294901760
    %v3099 = vsub.f32 %v18, %v3098
    %3100 = vmatpush.xpose.msra.mxu0 %v3099
    %v3101 = vand.u32 %v17, 4294901760
    %v3102 = vsub.f32 %v17, %v3101
    %3103 = vmatpush.xpose.msra.mxu0 %v3102
    %v3104 = vand.u32 %v16, 4294901760
    %v3105 = vsub.f32 %v16, %v3104
    %3106 = vmatpush.xpose.msra.mxu0 %v3105
    %v3107 = vand.u32 %v15, 4294901760
    %v3108 = vsub.f32 %v15, %v3107
    %3109 = vmatpush.xpose.msra.mxu0 %v3108
    %v3110 = vand.u32 %v14, 4294901760
    %v3111 = vsub.f32 %v14, %v3110
    %3112 = vmatpush.xpose.msra.mxu0 %v3111
    %v3113 = vand.u32 %v13, 4294901760
    %v3114 = vsub.f32 %v13, %v3113
    %3115 = vmatpush.xpose.msra.mxu0 %v3114
    %v3116 = vand.u32 %v12, 4294901760
    %v3117 = vsub.f32 %v12, %v3116
    %3118 = vmatpush.xpose.msra.mxu0 %v3117
    %v3119 = vand.u32 %v2915, 4294901760
    %v3120 = vsub.f32 %v2915, %v3119
    %3121 = vmatmul.f32.gmra.mxu0 %v3120
    %v3122 = vpop.f32.mrf.mxu0
    %v3123 = vadd.f32 %v3069, %v3122
    %3124 = vdwg.mxu0
    %v3125 = vand.u32 %v27, 4294901760
    %3126 = vmatpush.xpose.msra.mxu0 %v3125
    %v3127 = vand.u32 %v26, 4294901760
    %3128 = vmatpush.xpose.msra.mxu0 %v3127
    %v3129 = vand.u32 %v25, 4294901760
    %3130 = vmatpush.xpose.msra.mxu0 %v3129
    %v3131 = vand.u32 %v24, 4294901760
    %3132 = vmatpush.xpose.msra.mxu0 %v3131
    %v3133 = vand.u32 %v23, 4294901760
    %3134 = vmatpush.xpose.msra.mxu0 %v3133
    %v3135 = vand.u32 %v22, 4294901760
    %3136 = vmatpush.xpose.msra.mxu0 %v3135
    %v3137 = vand.u32 %v21, 4294901760
    %3138 = vmatpush.xpose.msra.mxu0 %v3137
    %v3139 = vand.u32 %v20, 4294901760
    %3140 = vmatpush.xpose.msra.mxu0 %v3139
    %v3141 = vand.u32 %v19, 4294901760
    %3142 = vmatpush.xpose.msra.mxu0 %v3141
    %v3143 = vand.u32 %v18, 4294901760
    %3144 = vmatpush.xpose.msra.mxu0 %v3143
    %v3145 = vand.u32 %v17, 4294901760
    %3146 = vmatpush.xpose.msra.mxu0 %v3145
    %v3147 = vand.u32 %v16, 4294901760
    %3148 = vmatpush.xpose.msra.mxu0 %v3147
    %v3149 = vand.u32 %v15, 4294901760
    %3150 = vmatpush.xpose.msra.mxu0 %v3149
    %v3151 = vand.u32 %v14, 4294901760
    %3152 = vmatpush.xpose.msra.mxu0 %v3151
    %v3153 = vand.u32 %v13, 4294901760
    %3154 = vmatpush.xpose.msra.mxu0 %v3153
    %v3155 = vand.u32 %v12, 4294901760
    %3156 = vmatpush.xpose.msra.mxu0 %v3155
    %v3157 = vand.u32 %v2915, 4294901760
    %v3158 = vsub.f32 %v2915, %v3157
    %v3159 = vand.u32 %v3158, 4294901760
    %3160 = vmatmul.f32.gmra.mxu0 %v3159
    %v3161 = vpop.f32.mrf.mxu0
    %v3162 = vadd.f32 %v3123, %v3161
    %3163 = vdwg.mxu0
    %v3164 = vand.u32 %v27, 4294901760
    %v3165 = vsub.f32 %v27, %v3164
    %v3166 = vand.u32 %v3165, 4294901760
    %3167 = vmatpush.xpose.msra.mxu0 %v3166
    %v3168 = vand.u32 %v26, 4294901760
    %v3169 = vsub.f32 %v26, %v3168
    %v3170 = vand.u32 %v3169, 4294901760
    %3171 = vmatpush.xpose.msra.mxu0 %v3170
    %v3172 = vand.u32 %v25, 4294901760
    %v3173 = vsub.f32 %v25, %v3172
    %v3174 = vand.u32 %v3173, 4294901760
    %3175 = vmatpush.xpose.msra.mxu0 %v3174
    %v3176 = vand.u32 %v24, 4294901760
    %v3177 = vsub.f32 %v24, %v3176
    %v3178 = vand.u32 %v3177, 4294901760
    %3179 = vmatpush.xpose.msra.mxu0 %v3178
    %v3180 = vand.u32 %v23, 4294901760
    %v3181 = vsub.f32 %v23, %v3180
    %v3182 = vand.u32 %v3181, 4294901760
    %3183 = vmatpush.xpose.msra.mxu0 %v3182
    %v3184 = vand.u32 %v22, 4294901760
    %v3185 = vsub.f32 %v22, %v3184
    %v3186 = vand.u32 %v3185, 4294901760
    %3187 = vmatpush.xpose.msra.mxu0 %v3186
    %v3188 = vand.u32 %v21, 4294901760
    %v3189 = vsub.f32 %v21, %v3188
    %v3190 = vand.u32 %v3189, 4294901760
    %3191 = vmatpush.xpose.msra.mxu0 %v3190
    %v3192 = vand.u32 %v20, 4294901760
    %v3193 = vsub.f32 %v20, %v3192
    %v3194 = vand.u32 %v3193, 4294901760
    %3195 = vmatpush.xpose.msra.mxu0 %v3194
    %v3196 = vand.u32 %v19, 4294901760
    %v3197 = vsub.f32 %v19, %v3196
    %v3198 = vand.u32 %v3197, 4294901760
    %3199 = vmatpush.xpose.msra.mxu0 %v3198
    %v3200 = vand.u32 %v18, 4294901760
    %v3201 = vsub.f32 %v18, %v3200
    %v3202 = vand.u32 %v3201, 4294901760
    %3203 = vmatpush.xpose.msra.mxu0 %v3202
    %v3204 = vand.u32 %v17, 4294901760
    %v3205 = vsub.f32 %v17, %v3204
    %v3206 = vand.u32 %v3205, 4294901760
    %3207 = vmatpush.xpose.msra.mxu0 %v3206
    %v3208 = vand.u32 %v16, 4294901760
    %v3209 = vsub.f32 %v16, %v3208
    %v3210 = vand.u32 %v3209, 4294901760
    %3211 = vmatpush.xpose.msra.mxu0 %v3210
    %v3212 = vand.u32 %v15, 4294901760
    %v3213 = vsub.f32 %v15, %v3212
    %v3214 = vand.u32 %v3213, 4294901760
    %3215 = vmatpush.xpose.msra.mxu0 %v3214
    %v3216 = vand.u32 %v14, 4294901760
    %v3217 = vsub.f32 %v14, %v3216
    %v3218 = vand.u32 %v3217, 4294901760
    %3219 = vmatpush.xpose.msra.mxu0 %v3218
    %v3220 = vand.u32 %v13, 4294901760
    %v3221 = vsub.f32 %v13, %v3220
    %v3222 = vand.u32 %v3221, 4294901760
    %3223 = vmatpush.xpose.msra.mxu0 %v3222
    %v3224 = vand.u32 %v12, 4294901760
    %v3225 = vsub.f32 %v12, %v3224
    %v3226 = vand.u32 %v3225, 4294901760
    %3227 = vmatpush.xpose.msra.mxu0 %v3226
    %v3228 = vand.u32 %v2915, 4294901760
    %3229 = vmatmul.f32.gmra.mxu0 %v3228
    %v3230 = vpop.f32.mrf.mxu0
    %v3231 = vadd.f32 %v3162, %v3230
    %3232 = vdwg.mxu0
    %v3233 = vand.u32 %v27, 4294901760
    %3234 = vmatpush.xpose.msra.mxu0 %v3233
    %v3235 = vand.u32 %v26, 4294901760
    %3236 = vmatpush.xpose.msra.mxu0 %v3235
    %v3237 = vand.u32 %v25, 4294901760
    %3238 = vmatpush.xpose.msra.mxu0 %v3237
    %v3239 = vand.u32 %v24, 4294901760
    %3240 = vmatpush.xpose.msra.mxu0 %v3239
    %v3241 = vand.u32 %v23, 4294901760
    %3242 = vmatpush.xpose.msra.mxu0 %v3241
    %v3243 = vand.u32 %v22, 4294901760
    %3244 = vmatpush.xpose.msra.mxu0 %v3243
    %v3245 = vand.u32 %v21, 4294901760
    %3246 = vmatpush.xpose.msra.mxu0 %v3245
    %v3247 = vand.u32 %v20, 4294901760
    %3248 = vmatpush.xpose.msra.mxu0 %v3247
    %v3249 = vand.u32 %v19, 4294901760
    %3250 = vmatpush.xpose.msra.mxu0 %v3249
    %v3251 = vand.u32 %v18, 4294901760
    %3252 = vmatpush.xpose.msra.mxu0 %v3251
    %v3253 = vand.u32 %v17, 4294901760
    %3254 = vmatpush.xpose.msra.mxu0 %v3253
    %v3255 = vand.u32 %v16, 4294901760
    %3256 = vmatpush.xpose.msra.mxu0 %v3255
    %v3257 = vand.u32 %v15, 4294901760
    %3258 = vmatpush.xpose.msra.mxu0 %v3257
    %v3259 = vand.u32 %v14, 4294901760
    %3260 = vmatpush.xpose.msra.mxu0 %v3259
    %v3261 = vand.u32 %v13, 4294901760
    %3262 = vmatpush.xpose.msra.mxu0 %v3261
    %v3263 = vand.u32 %v12, 4294901760
    %3264 = vmatpush.xpose.msra.mxu0 %v3263
    %v3265 = vand.u32 %v2915, 4294901760
    %3266 = vmatmul.f32.gmra.mxu0 %v3265
    %v3267 = vpop.f32.mrf.mxu0
    %v3268 = vadd.f32 %v3231, %v3267
    %3269 = vdwg.mxu0
    %v3270 = vand.u32 %v27, 4294901760
    %3271 = vmatpush.msra.mxu0 %v3270
    %v3272 = vand.u32 %v26, 4294901760
    %3273 = vmatpush.msra.mxu0 %v3272
    %v3274 = vand.u32 %v25, 4294901760
    %3275 = vmatpush.msra.mxu0 %v3274
    %v3276 = vand.u32 %v24, 4294901760
    %3277 = vmatpush.msra.mxu0 %v3276
    %v3278 = vand.u32 %v23, 4294901760
    %3279 = vmatpush.msra.mxu0 %v3278
    %v3280 = vand.u32 %v22, 4294901760
    %3281 = vmatpush.msra.mxu0 %v3280
    %v3282 = vand.u32 %v21, 4294901760
    %3283 = vmatpush.msra.mxu0 %v3282
    %v3284 = vand.u32 %v20, 4294901760
    %3285 = vmatpush.msra.mxu0 %v3284
    %v3286 = vand.u32 %v19, 4294901760
    %3287 = vmatpush.msra.mxu0 %v3286
    %v3288 = vand.u32 %v18, 4294901760
    %3289 = vmatpush.msra.mxu0 %v3288
    %v3290 = vand.u32 %v17, 4294901760
    %3291 = vmatpush.msra.mxu0 %v3290
    %v3292 = vand.u32 %v16, 4294901760
    %3293 = vmatpush.msra.mxu0 %v3292
    %v3294 = vand.u32 %v15, 4294901760
    %3295 = vmatpush.msra.mxu0 %v3294
    %v3296 = vand.u32 %v14, 4294901760
    %3297 = vmatpush.msra.mxu0 %v3296
    %v3298 = vand.u32 %v13, 4294901760
    %3299 = vmatpush.msra.mxu0 %v3298
    %v3300 = vand.u32 %v12, 4294901760
    %3301 = vmatpush.msra.mxu0 %v3300
    %v3302 = vand.u32 %v3268, 4294901760
    %v3303 = vsub.f32 %v3268, %v3302
    %v3304 = vand.u32 %v3303, 4294901760
    %v3305 = vsub.f32 %v3303, %v3304
    %v3306 = vand.u32 %v3305, 4294901760
    %3307 = vmatmul.f32.gmra.mxu0 %v3306
    %v3308 = vpop.f32.mrf.mxu0
    %v3309 = vadd.f32 0.0, %v3308
    %3310 = vdwg.mxu0
    %v3311 = vand.u32 %v27, 4294901760
    %v3312 = vsub.f32 %v27, %v3311
    %v3313 = vand.u32 %v3312, 4294901760
    %v3314 = vsub.f32 %v3312, %v3313
    %v3315 = vand.u32 %v3314, 4294901760
    %3316 = vmatpush.msra.mxu0 %v3315
    %v3317 = vand.u32 %v26, 4294901760
    %v3318 = vsub.f32 %v26, %v3317
    %v3319 = vand.u32 %v3318, 4294901760
    %v3320 = vsub.f32 %v3318, %v3319
    %v3321 = vand.u32 %v3320, 4294901760
    %3322 = vmatpush.msra.mxu0 %v3321
    %v3323 = vand.u32 %v25, 4294901760
    %v3324 = vsub.f32 %v25, %v3323
    %v3325 = vand.u32 %v3324, 4294901760
    %v3326 = vsub.f32 %v3324, %v3325
    %v3327 = vand.u32 %v3326, 4294901760
    %3328 = vmatpush.msra.mxu0 %v3327
    %v3329 = vand.u32 %v24, 4294901760
    %v3330 = vsub.f32 %v24, %v3329
    %v3331 = vand.u32 %v3330, 4294901760
    %v3332 = vsub.f32 %v3330, %v3331
    %v3333 = vand.u32 %v3332, 4294901760
    %3334 = vmatpush.msra.mxu0 %v3333
    %v3335 = vand.u32 %v23, 4294901760
    %v3336 = vsub.f32 %v23, %v3335
    %v3337 = vand.u32 %v3336, 4294901760
    %v3338 = vsub.f32 %v3336, %v3337
    %v3339 = vand.u32 %v3338, 4294901760
    %3340 = vmatpush.msra.mxu0 %v3339
    %v3341 = vand.u32 %v22, 4294901760
    %v3342 = vsub.f32 %v22, %v3341
    %v3343 = vand.u32 %v3342, 4294901760
    %v3344 = vsub.f32 %v3342, %v3343
    %v3345 = vand.u32 %v3344, 4294901760
    %3346 = vmatpush.msra.mxu0 %v3345
    %v3347 = vand.u32 %v21, 4294901760
    %v3348 = vsub.f32 %v21, %v3347
    %v3349 = vand.u32 %v3348, 4294901760
    %v3350 = vsub.f32 %v3348, %v3349
    %v3351 = vand.u32 %v3350, 4294901760
    %3352 = vmatpush.msra.mxu0 %v3351
    %v3353 = vand.u32 %v20, 4294901760
    %v3354 = vsub.f32 %v20, %v3353
    %v3355 = vand.u32 %v3354, 4294901760
    %v3356 = vsub.f32 %v3354, %v3355
    %v3357 = vand.u32 %v3356, 4294901760
    %3358 = vmatpush.msra.mxu0 %v3357
    %v3359 = vand.u32 %v19, 4294901760
    %v3360 = vsub.f32 %v19, %v3359
    %v3361 = vand.u32 %v3360, 4294901760
    %v3362 = vsub.f32 %v3360, %v3361
    %v3363 = vand.u32 %v3362, 4294901760
    %3364 = vmatpush.msra.mxu0 %v3363
    %v3365 = vand.u32 %v18, 4294901760
    %v3366 = vsub.f32 %v18, %v3365
    %v3367 = vand.u32 %v3366, 4294901760
    %v3368 = vsub.f32 %v3366, %v3367
    %v3369 = vand.u32 %v3368, 4294901760
    %3370 = vmatpush.msra.mxu0 %v3369
    %v3371 = vand.u32 %v17, 4294901760
    %v3372 = vsub.f32 %v17, %v3371
    %v3373 = vand.u32 %v3372, 4294901760
    %v3374 = vsub.f32 %v3372, %v3373
    %v3375 = vand.u32 %v3374, 4294901760
    %3376 = vmatpush.msra.mxu0 %v3375
    %v3377 = vand.u32 %v16, 4294901760
    %v3378 = vsub.f32 %v16, %v3377
    %v3379 = vand.u32 %v3378, 4294901760
    %v3380 = vsub.f32 %v3378, %v3379
    %v3381 = vand.u32 %v3380, 4294901760
    %3382 = vmatpush.msra.mxu0 %v3381
    %v3383 = vand.u32 %v15, 4294901760
    %v3384 = vsub.f32 %v15, %v3383
    %v3385 = vand.u32 %v3384, 4294901760
    %v3386 = vsub.f32 %v3384, %v3385
    %v3387 = vand.u32 %v3386, 4294901760
    %3388 = vmatpush.msra.mxu0 %v3387
    %v3389 = vand.u32 %v14, 4294901760
    %v3390 = vsub.f32 %v14, %v3389
    %v3391 = vand.u32 %v3390, 4294901760
    %v3392 = vsub.f32 %v3390, %v3391
    %v3393 = vand.u32 %v3392, 4294901760
    %3394 = vmatpush.msra.mxu0 %v3393
    %v3395 = vand.u32 %v13, 4294901760
    %v3396 = vsub.f32 %v13, %v3395
    %v3397 = vand.u32 %v3396, 4294901760
    %v3398 = vsub.f32 %v3396, %v3397
    %v3399 = vand.u32 %v3398, 4294901760
    %3400 = vmatpush.msra.mxu0 %v3399
    %v3401 = vand.u32 %v12, 4294901760
    %v3402 = vsub.f32 %v12, %v3401
    %v3403 = vand.u32 %v3402, 4294901760
    %v3404 = vsub.f32 %v3402, %v3403
    %v3405 = vand.u32 %v3404, 4294901760
    %3406 = vmatpush.msra.mxu0 %v3405
    %v3407 = vand.u32 %v3268, 4294901760
    %3408 = vmatmul.f32.gmra.mxu0 %v3407
    %v3409 = vpop.f32.mrf.mxu0
    %v3410 = vadd.f32 %v3309, %v3409
    %3411 = vdwg.mxu0
    %v3412 = vand.u32 %v27, 4294901760
    %v3413 = vsub.f32 %v27, %v3412
    %3414 = vmatpush.msra.mxu0 %v3413
    %v3415 = vand.u32 %v26, 4294901760
    %v3416 = vsub.f32 %v26, %v3415
    %3417 = vmatpush.msra.mxu0 %v3416
    %v3418 = vand.u32 %v25, 4294901760
    %v3419 = vsub.f32 %v25, %v3418
    %3420 = vmatpush.msra.mxu0 %v3419
    %v3421 = vand.u32 %v24, 4294901760
    %v3422 = vsub.f32 %v24, %v3421
    %3423 = vmatpush.msra.mxu0 %v3422
    %v3424 = vand.u32 %v23, 4294901760
    %v3425 = vsub.f32 %v23, %v3424
    %3426 = vmatpush.msra.mxu0 %v3425
    %v3427 = vand.u32 %v22, 4294901760
    %v3428 = vsub.f32 %v22, %v3427
    %3429 = vmatpush.msra.mxu0 %v3428
    %v3430 = vand.u32 %v21, 4294901760
    %v3431 = vsub.f32 %v21, %v3430
    %3432 = vmatpush.msra.mxu0 %v3431
    %v3433 = vand.u32 %v20, 4294901760
    %v3434 = vsub.f32 %v20, %v3433
    %3435 = vmatpush.msra.mxu0 %v3434
    %v3436 = vand.u32 %v19, 4294901760
    %v3437 = vsub.f32 %v19, %v3436
    %3438 = vmatpush.msra.mxu0 %v3437
    %v3439 = vand.u32 %v18, 4294901760
    %v3440 = vsub.f32 %v18, %v3439
    %3441 = vmatpush.msra.mxu0 %v3440
    %v3442 = vand.u32 %v17, 4294901760
    %v3443 = vsub.f32 %v17, %v3442
    %3444 = vmatpush.msra.mxu0 %v3443
    %v3445 = vand.u32 %v16, 4294901760
    %v3446 = vsub.f32 %v16, %v3445
    %3447 = vmatpush.msra.mxu0 %v3446
    %v3448 = vand.u32 %v15, 4294901760
    %v3449 = vsub.f32 %v15, %v3448
    %3450 = vmatpush.msra.mxu0 %v3449
    %v3451 = vand.u32 %v14, 4294901760
    %v3452 = vsub.f32 %v14, %v3451
    %3453 = vmatpush.msra.mxu0 %v3452
    %v3454 = vand.u32 %v13, 4294901760
    %v3455 = vsub.f32 %v13, %v3454
    %3456 = vmatpush.msra.mxu0 %v3455
    %v3457 = vand.u32 %v12, 4294901760
    %v3458 = vsub.f32 %v12, %v3457
    %3459 = vmatpush.msra.mxu0 %v3458
    %v3460 = vand.u32 %v3268, 4294901760
    %v3461 = vsub.f32 %v3268, %v3460
    %3462 = vmatmul.f32.gmra.mxu0 %v3461
    %v3463 = vpop.f32.mrf.mxu0
    %v3464 = vadd.f32 %v3410, %v3463
    %3465 = vdwg.mxu0
    %v3466 = vand.u32 %v27, 4294901760
    %3467 = vmatpush.msra.mxu0 %v3466
    %v3468 = vand.u32 %v26, 4294901760
    %3469 = vmatpush.msra.mxu0 %v3468
    %v3470 = vand.u32 %v25, 4294901760
    %3471 = vmatpush.msra.mxu0 %v3470
    %v3472 = vand.u32 %v24, 4294901760
    %3473 = vmatpush.msra.mxu0 %v3472
    %v3474 = vand.u32 %v23, 4294901760
    %3475 = vmatpush.msra.mxu0 %v3474
    %v3476 = vand.u32 %v22, 4294901760
    %3477 = vmatpush.msra.mxu0 %v3476
    %v3478 = vand.u32 %v21, 4294901760
    %3479 = vmatpush.msra.mxu0 %v3478
    %v3480 = vand.u32 %v20, 4294901760
    %3481 = vmatpush.msra.mxu0 %v3480
    %v3482 = vand.u32 %v19, 4294901760
    %3483 = vmatpush.msra.mxu0 %v3482
    %v3484 = vand.u32 %v18, 4294901760
    %3485 = vmatpush.msra.mxu0 %v3484
    %v3486 = vand.u32 %v17, 4294901760
    %3487 = vmatpush.msra.mxu0 %v3486
    %v3488 = vand.u32 %v16, 4294901760
    %3489 = vmatpush.msra.mxu0 %v3488
    %v3490 = vand.u32 %v15, 4294901760
    %3491 = vmatpush.msra.mxu0 %v3490
    %v3492 = vand.u32 %v14, 4294901760
    %3493 = vmatpush.msra.mxu0 %v3492
    %v3494 = vand.u32 %v13, 4294901760
    %3495 = vmatpush.msra.mxu0 %v3494
    %v3496 = vand.u32 %v12, 4294901760
    %3497 = vmatpush.msra.mxu0 %v3496
    %v3498 = vand.u32 %v3268, 4294901760
    %v3499 = vsub.f32 %v3268, %v3498
    %v3500 = vand.u32 %v3499, 4294901760
    %3501 = vmatmul.f32.gmra.mxu0 %v3500
    %v3502 = vpop.f32.mrf.mxu0
    %v3503 = vadd.f32 %v3464, %v3502
    %3504 = vdwg.mxu0
    %v3505 = vand.u32 %v27, 4294901760
    %v3506 = vsub.f32 %v27, %v3505
    %v3507 = vand.u32 %v3506, 4294901760
    %3508 = vmatpush.msra.mxu0 %v3507
    %v3509 = vand.u32 %v26, 4294901760
    %v3510 = vsub.f32 %v26, %v3509
    %v3511 = vand.u32 %v3510, 4294901760
    %3512 = vmatpush.msra.mxu0 %v3511
    %v3513 = vand.u32 %v25, 4294901760
    %v3514 = vsub.f32 %v25, %v3513
    %v3515 = vand.u32 %v3514, 4294901760
    %3516 = vmatpush.msra.mxu0 %v3515
    %v3517 = vand.u32 %v24, 4294901760
    %v3518 = vsub.f32 %v24, %v3517
    %v3519 = vand.u32 %v3518, 4294901760
    %3520 = vmatpush.msra.mxu0 %v3519
    %v3521 = vand.u32 %v23, 4294901760
    %v3522 = vsub.f32 %v23, %v3521
    %v3523 = vand.u32 %v3522, 4294901760
    %3524 = vmatpush.msra.mxu0 %v3523
    %v3525 = vand.u32 %v22, 4294901760
    %v3526 = vsub.f32 %v22, %v3525
    %v3527 = vand.u32 %v3526, 4294901760
    %3528 = vmatpush.msra.mxu0 %v3527
    %v3529 = vand.u32 %v21, 4294901760
    %v3530 = vsub.f32 %v21, %v3529
    %v3531 = vand.u32 %v3530, 4294901760
    %3532 = vmatpush.msra.mxu0 %v3531
    %v3533 = vand.u32 %v20, 4294901760
    %v3534 = vsub.f32 %v20, %v3533
    %v3535 = vand.u32 %v3534, 4294901760
    %3536 = vmatpush.msra.mxu0 %v3535
    %v3537 = vand.u32 %v19, 4294901760
    %v3538 = vsub.f32 %v19, %v3537
    %v3539 = vand.u32 %v3538, 4294901760
    %3540 = vmatpush.msra.mxu0 %v3539
    %v3541 = vand.u32 %v18, 4294901760
    %v3542 = vsub.f32 %v18, %v3541
    %v3543 = vand.u32 %v3542, 4294901760
    %3544 = vmatpush.msra.mxu0 %v3543
    %v3545 = vand.u32 %v17, 4294901760
    %v3546 = vsub.f32 %v17, %v3545
    %v3547 = vand.u32 %v3546, 4294901760
    %3548 = vmatpush.msra.mxu0 %v3547
    %v3549 = vand.u32 %v16, 4294901760
    %v3550 = vsub.f32 %v16, %v3549
    %v3551 = vand.u32 %v3550, 4294901760
    %3552 = vmatpush.msra.mxu0 %v3551
    %v3553 = vand.u32 %v15, 4294901760
    %v3554 = vsub.f32 %v15, %v3553
    %v3555 = vand.u32 %v3554, 4294901760
    %3556 = vmatpush.msra.mxu0 %v3555
    %v3557 = vand.u32 %v14, 4294901760
    %v3558 = vsub.f32 %v14, %v3557
    %v3559 = vand.u32 %v3558, 4294901760
    %3560 = vmatpush.msra.mxu0 %v3559
    %v3561 = vand.u32 %v13, 4294901760
    %v3562 = vsub.f32 %v13, %v3561
    %v3563 = vand.u32 %v3562, 4294901760
    %3564 = vmatpush.msra.mxu0 %v3563
    %v3565 = vand.u32 %v12, 4294901760
    %v3566 = vsub.f32 %v12, %v3565
    %v3567 = vand.u32 %v3566, 4294901760
    %3568 = vmatpush.msra.mxu0 %v3567
    %v3569 = vand.u32 %v3268, 4294901760
    %3570 = vmatmul.f32.gmra.mxu0 %v3569
    %v3571 = vpop.f32.mrf.mxu0
    %v3572 = vadd.f32 %v3503, %v3571
    %3573 = vdwg.mxu0
    %v3574 = vand.u32 %v27, 4294901760
    %3575 = vmatpush.msra.mxu0 %v3574
    %v3576 = vand.u32 %v26, 4294901760
    %3577 = vmatpush.msra.mxu0 %v3576
    %v3578 = vand.u32 %v25, 4294901760
    %3579 = vmatpush.msra.mxu0 %v3578
    %v3580 = vand.u32 %v24, 4294901760
    %3581 = vmatpush.msra.mxu0 %v3580
    %v3582 = vand.u32 %v23, 4294901760
    %3583 = vmatpush.msra.mxu0 %v3582
    %v3584 = vand.u32 %v22, 4294901760
    %3585 = vmatpush.msra.mxu0 %v3584
    %v3586 = vand.u32 %v21, 4294901760
    %3587 = vmatpush.msra.mxu0 %v3586
    %v3588 = vand.u32 %v20, 4294901760
    %3589 = vmatpush.msra.mxu0 %v3588
    %v3590 = vand.u32 %v19, 4294901760
    %3591 = vmatpush.msra.mxu0 %v3590
    %v3592 = vand.u32 %v18, 4294901760
    %3593 = vmatpush.msra.mxu0 %v3592
    %v3594 = vand.u32 %v17, 4294901760
    %3595 = vmatpush.msra.mxu0 %v3594
    %v3596 = vand.u32 %v16, 4294901760
    %3597 = vmatpush.msra.mxu0 %v3596
    %v3598 = vand.u32 %v15, 4294901760
    %3599 = vmatpush.msra.mxu0 %v3598
    %v3600 = vand.u32 %v14, 4294901760
    %3601 = vmatpush.msra.mxu0 %v3600
    %v3602 = vand.u32 %v13, 4294901760
    %3603 = vmatpush.msra.mxu0 %v3602
    %v3604 = vand.u32 %v12, 4294901760
    %3605 = vmatpush.msra.mxu0 %v3604
    %v3606 = vand.u32 %v3268, 4294901760
    %3607 = vmatmul.f32.gmra.mxu0 %v3606
    %v3608 = vpop.f32.mrf.mxu0
    %v3609 = vadd.f32 %v3572, %v3608
    %3610 = vdwg.mxu0
    %v3611 = vmul.f32 %v3609, %v3609
    %v3612 = vsel %vm712, %v3611, 0.0
    %3613 = vadd.xlane.f32.xlu0 %v3612
    %v3614 = vpop.xlane.xlu0 %3613
    %v3615 = vrot.slane %v3614, 4
    %v3616 = vadd.f32 %v3614, %v3615
    %v3617 = vrot.slane %v3616, 2
    %v3618 = vadd.f32 %v3616, %v3617
    %v3619 = vrot.slane %v3618, 1
    %v3620 = vadd.f32 %v3618, %v3619
    %s3621 = vtos %v3620
    %s3622 = sadd.f32 %s3621, 1e-30
    %v3623 = vstv %s3622
    %v3624 = vrsqrt.pop %v3623
    %v3625 = vmul.f32 %v3624, %v3623
    %v3626 = vmul.f32 %v3625, %v3624
    %v3627 = vmul.f32 0.5, %v3626
    %v3628 = vsub.f32 1.5, %v3627
    %v3629 = vmul.f32 %v3624, %v3628
    %vm3630 = vweird.f32 %v3623
    %vm3631 = vweird.f32 %v3624
    %vm3632 = vmor %vm3630, %vm3631
    %v3633 = vsel %vm3632, %v3624, %v3629
    %s3634 = vtos %v3633
    %v3635 = vstv %s3634
    %v3636 = vmul.f32 %v3609, %v3635
    %v3637 = vsub.f32 %v3636, %v2915
    %s3638 = scalar_select %p2928, 1, 0
    %v3639 = vstv %s3638
    %vm3640 = vcmp.eq.s32.totalorder %v3639, 1
    %v3641 = vsel %vm3640, %v2915, %v3636
    %v3642 = vmul.f32 %v3637, %v3637
    %v3643 = vsel %vm712, %v3642, 0.0
    %3644 = vadd.xlane.f32.xlu0 %v3643
    %v3645 = vpop.xlane.xlu0 %3644
    %v3646 = vrot.slane %v3645, 4
    %v3647 = vadd.f32 %v3645, %v3646
    %v3648 = vrot.slane %v3647, 2
    %v3649 = vadd.f32 %v3647, %v3648
    %v3650 = vrot.slane %v3649, 1
    %v3651 = vadd.f32 %v3649, %v3650
    %s3652 = vtos %v3651
    %p3653 = scmp.lt.f32.partialorder %s3652, 1e-12
    %p3654 = por %p2928, %p3653
    %v3655 = vand.u32 %v27, 4294901760
    %3656 = vmatpush.xpose.msra.mxu0 %v3655
    %v3657 = vand.u32 %v26, 4294901760
    %3658 = vmatpush.xpose.msra.mxu0 %v3657
    %v3659 = vand.u32 %v25, 4294901760
    %3660 = vmatpush.xpose.msra.mxu0 %v3659
    %v3661 = vand.u32 %v24, 4294901760
    %3662 = vmatpush.xpose.msra.mxu0 %v3661
    %v3663 = vand.u32 %v23, 4294901760
    %3664 = vmatpush.xpose.msra.mxu0 %v3663
    %v3665 = vand.u32 %v22, 4294901760
    %3666 = vmatpush.xpose.msra.mxu0 %v3665
    %v3667 = vand.u32 %v21, 4294901760
    %3668 = vmatpush.xpose.msra.mxu0 %v3667
    %v3669 = vand.u32 %v20, 4294901760
    %3670 = vmatpush.xpose.msra.mxu0 %v3669
    %v3671 = vand.u32 %v19, 4294901760
    %3672 = vmatpush.xpose.msra.mxu0 %v3671
    %v3673 = vand.u32 %v18, 4294901760
    %3674 = vmatpush.xpose.msra.mxu0 %v3673
    %v3675 = vand.u32 %v17, 4294901760
    %3676 = vmatpush.xpose.msra.mxu0 %v3675
    %v3677 = vand.u32 %v16, 4294901760
    %3678 = vmatpush.xpose.msra.mxu0 %v3677
    %v3679 = vand.u32 %v15, 4294901760
    %3680 = vmatpush.xpose.msra.mxu0 %v3679
    %v3681 = vand.u32 %v14, 4294901760
    %3682 = vmatpush.xpose.msra.mxu0 %v3681
    %v3683 = vand.u32 %v13, 4294901760
    %3684 = vmatpush.xpose.msra.mxu0 %v3683
    %v3685 = vand.u32 %v12, 4294901760
    %3686 = vmatpush.xpose.msra.mxu0 %v3685
    %v3687 = vand.u32 %v3641, 4294901760
    %v3688 = vsub.f32 %v3641, %v3687
    %v3689 = vand.u32 %v3688, 4294901760
    %v3690 = vsub.f32 %v3688, %v3689
    %v3691 = vand.u32 %v3690, 4294901760
    %3692 = vmatmul.f32.gmra.mxu0 %v3691
    %v3693 = vpop.f32.mrf.mxu0
    %v3694 = vadd.f32 0.0, %v3693
    %3695 = vdwg.mxu0
    %v3696 = vand.u32 %v27, 4294901760
    %v3697 = vsub.f32 %v27, %v3696
    %v3698 = vand.u32 %v3697, 4294901760
    %v3699 = vsub.f32 %v3697, %v3698
    %v3700 = vand.u32 %v3699, 4294901760
    %3701 = vmatpush.xpose.msra.mxu0 %v3700
    %v3702 = vand.u32 %v26, 4294901760
    %v3703 = vsub.f32 %v26, %v3702
    %v3704 = vand.u32 %v3703, 4294901760
    %v3705 = vsub.f32 %v3703, %v3704
    %v3706 = vand.u32 %v3705, 4294901760
    %3707 = vmatpush.xpose.msra.mxu0 %v3706
    %v3708 = vand.u32 %v25, 4294901760
    %v3709 = vsub.f32 %v25, %v3708
    %v3710 = vand.u32 %v3709, 4294901760
    %v3711 = vsub.f32 %v3709, %v3710
    %v3712 = vand.u32 %v3711, 4294901760
    %3713 = vmatpush.xpose.msra.mxu0 %v3712
    %v3714 = vand.u32 %v24, 4294901760
    %v3715 = vsub.f32 %v24, %v3714
    %v3716 = vand.u32 %v3715, 4294901760
    %v3717 = vsub.f32 %v3715, %v3716
    %v3718 = vand.u32 %v3717, 4294901760
    %3719 = vmatpush.xpose.msra.mxu0 %v3718
    %v3720 = vand.u32 %v23, 4294901760
    %v3721 = vsub.f32 %v23, %v3720
    %v3722 = vand.u32 %v3721, 4294901760
    %v3723 = vsub.f32 %v3721, %v3722
    %v3724 = vand.u32 %v3723, 4294901760
    %3725 = vmatpush.xpose.msra.mxu0 %v3724
    %v3726 = vand.u32 %v22, 4294901760
    %v3727 = vsub.f32 %v22, %v3726
    %v3728 = vand.u32 %v3727, 4294901760
    %v3729 = vsub.f32 %v3727, %v3728
    %v3730 = vand.u32 %v3729, 4294901760
    %3731 = vmatpush.xpose.msra.mxu0 %v3730
    %v3732 = vand.u32 %v21, 4294901760
    %v3733 = vsub.f32 %v21, %v3732
    %v3734 = vand.u32 %v3733, 4294901760
    %v3735 = vsub.f32 %v3733, %v3734
    %v3736 = vand.u32 %v3735, 4294901760
    %3737 = vmatpush.xpose.msra.mxu0 %v3736
    %v3738 = vand.u32 %v20, 4294901760
    %v3739 = vsub.f32 %v20, %v3738
    %v3740 = vand.u32 %v3739, 4294901760
    %v3741 = vsub.f32 %v3739, %v3740
    %v3742 = vand.u32 %v3741, 4294901760
    %3743 = vmatpush.xpose.msra.mxu0 %v3742
    %v3744 = vand.u32 %v19, 4294901760
    %v3745 = vsub.f32 %v19, %v3744
    %v3746 = vand.u32 %v3745, 4294901760
    %v3747 = vsub.f32 %v3745, %v3746
    %v3748 = vand.u32 %v3747, 4294901760
    %3749 = vmatpush.xpose.msra.mxu0 %v3748
    %v3750 = vand.u32 %v18, 4294901760
    %v3751 = vsub.f32 %v18, %v3750
    %v3752 = vand.u32 %v3751, 4294901760
    %v3753 = vsub.f32 %v3751, %v3752
    %v3754 = vand.u32 %v3753, 4294901760
    %3755 = vmatpush.xpose.msra.mxu0 %v3754
    %v3756 = vand.u32 %v17, 4294901760
    %v3757 = vsub.f32 %v17, %v3756
    %v3758 = vand.u32 %v3757, 4294901760
    %v3759 = vsub.f32 %v3757, %v3758
    %v3760 = vand.u32 %v3759, 4294901760
    %3761 = vmatpush.xpose.msra.mxu0 %v3760
    %v3762 = vand.u32 %v16, 4294901760
    %v3763 = vsub.f32 %v16, %v3762
    %v3764 = vand.u32 %v3763, 4294901760
    %v3765 = vsub.f32 %v3763, %v3764
    %v3766 = vand.u32 %v3765, 4294901760
    %3767 = vmatpush.xpose.msra.mxu0 %v3766
    %v3768 = vand.u32 %v15, 4294901760
    %v3769 = vsub.f32 %v15, %v3768
    %v3770 = vand.u32 %v3769, 4294901760
    %v3771 = vsub.f32 %v3769, %v3770
    %v3772 = vand.u32 %v3771, 4294901760
    %3773 = vmatpush.xpose.msra.mxu0 %v3772
    %v3774 = vand.u32 %v14, 4294901760
    %v3775 = vsub.f32 %v14, %v3774
    %v3776 = vand.u32 %v3775, 4294901760
    %v3777 = vsub.f32 %v3775, %v3776
    %v3778 = vand.u32 %v3777, 4294901760
    %3779 = vmatpush.xpose.msra.mxu0 %v3778
    %v3780 = vand.u32 %v13, 4294901760
    %v3781 = vsub.f32 %v13, %v3780
    %v3782 = vand.u32 %v3781, 4294901760
    %v3783 = vsub.f32 %v3781, %v3782
    %v3784 = vand.u32 %v3783, 4294901760
    %3785 = vmatpush.xpose.msra.mxu0 %v3784
    %v3786 = vand.u32 %v12, 4294901760
    %v3787 = vsub.f32 %v12, %v3786
    %v3788 = vand.u32 %v3787, 4294901760
    %v3789 = vsub.f32 %v3787, %v3788
    %v3790 = vand.u32 %v3789, 4294901760
    %3791 = vmatpush.xpose.msra.mxu0 %v3790
    %v3792 = vand.u32 %v3641, 4294901760
    %3793 = vmatmul.f32.gmra.mxu0 %v3792
    %v3794 = vpop.f32.mrf.mxu0
    %v3795 = vadd.f32 %v3694, %v3794
    %3796 = vdwg.mxu0
    %v3797 = vand.u32 %v27, 4294901760
    %v3798 = vsub.f32 %v27, %v3797
    %3799 = vmatpush.xpose.msra.mxu0 %v3798
    %v3800 = vand.u32 %v26, 4294901760
    %v3801 = vsub.f32 %v26, %v3800
    %3802 = vmatpush.xpose.msra.mxu0 %v3801
    %v3803 = vand.u32 %v25, 4294901760
    %v3804 = vsub.f32 %v25, %v3803
    %3805 = vmatpush.xpose.msra.mxu0 %v3804
    %v3806 = vand.u32 %v24, 4294901760
    %v3807 = vsub.f32 %v24, %v3806
    %3808 = vmatpush.xpose.msra.mxu0 %v3807
    %v3809 = vand.u32 %v23, 4294901760
    %v3810 = vsub.f32 %v23, %v3809
    %3811 = vmatpush.xpose.msra.mxu0 %v3810
    %v3812 = vand.u32 %v22, 4294901760
    %v3813 = vsub.f32 %v22, %v3812
    %3814 = vmatpush.xpose.msra.mxu0 %v3813
    %v3815 = vand.u32 %v21, 4294901760
    %v3816 = vsub.f32 %v21, %v3815
    %3817 = vmatpush.xpose.msra.mxu0 %v3816
    %v3818 = vand.u32 %v20, 4294901760
    %v3819 = vsub.f32 %v20, %v3818
    %3820 = vmatpush.xpose.msra.mxu0 %v3819
    %v3821 = vand.u32 %v19, 4294901760
    %v3822 = vsub.f32 %v19, %v3821
    %3823 = vmatpush.xpose.msra.mxu0 %v3822
    %v3824 = vand.u32 %v18, 4294901760
    %v3825 = vsub.f32 %v18, %v3824
    %3826 = vmatpush.xpose.msra.mxu0 %v3825
    %v3827 = vand.u32 %v17, 4294901760
    %v3828 = vsub.f32 %v17, %v3827
    %3829 = vmatpush.xpose.msra.mxu0 %v3828
    %v3830 = vand.u32 %v16, 4294901760
    %v3831 = vsub.f32 %v16, %v3830
    %3832 = vmatpush.xpose.msra.mxu0 %v3831
    %v3833 = vand.u32 %v15, 4294901760
    %v3834 = vsub.f32 %v15, %v3833
    %3835 = vmatpush.xpose.msra.mxu0 %v3834
    %v3836 = vand.u32 %v14, 4294901760
    %v3837 = vsub.f32 %v14, %v3836
    %3838 = vmatpush.xpose.msra.mxu0 %v3837
    %v3839 = vand.u32 %v13, 4294901760
    %v3840 = vsub.f32 %v13, %v3839
    %3841 = vmatpush.xpose.msra.mxu0 %v3840
    %v3842 = vand.u32 %v12, 4294901760
    %v3843 = vsub.f32 %v12, %v3842
    %3844 = vmatpush.xpose.msra.mxu0 %v3843
    %v3845 = vand.u32 %v3641, 4294901760
    %v3846 = vsub.f32 %v3641, %v3845
    %3847 = vmatmul.f32.gmra.mxu0 %v3846
    %v3848 = vpop.f32.mrf.mxu0
    %v3849 = vadd.f32 %v3795, %v3848
    %3850 = vdwg.mxu0
    %v3851 = vand.u32 %v27, 4294901760
    %3852 = vmatpush.xpose.msra.mxu0 %v3851
    %v3853 = vand.u32 %v26, 4294901760
    %3854 = vmatpush.xpose.msra.mxu0 %v3853
    %v3855 = vand.u32 %v25, 4294901760
    %3856 = vmatpush.xpose.msra.mxu0 %v3855
    %v3857 = vand.u32 %v24, 4294901760
    %3858 = vmatpush.xpose.msra.mxu0 %v3857
    %v3859 = vand.u32 %v23, 4294901760
    %3860 = vmatpush.xpose.msra.mxu0 %v3859
    %v3861 = vand.u32 %v22, 4294901760
    %3862 = vmatpush.xpose.msra.mxu0 %v3861
    %v3863 = vand.u32 %v21, 4294901760
    %3864 = vmatpush.xpose.msra.mxu0 %v3863
    %v3865 = vand.u32 %v20, 4294901760
    %3866 = vmatpush.xpose.msra.mxu0 %v3865
    %v3867 = vand.u32 %v19, 4294901760
    %3868 = vmatpush.xpose.msra.mxu0 %v3867
    %v3869 = vand.u32 %v18, 4294901760
    %3870 = vmatpush.xpose.msra.mxu0 %v3869
    %v3871 = vand.u32 %v17, 4294901760
    %3872 = vmatpush.xpose.msra.mxu0 %v3871
    %v3873 = vand.u32 %v16, 4294901760
    %3874 = vmatpush.xpose.msra.mxu0 %v3873
    %v3875 = vand.u32 %v15, 4294901760
    %3876 = vmatpush.xpose.msra.mxu0 %v3875
    %v3877 = vand.u32 %v14, 4294901760
    %3878 = vmatpush.xpose.msra.mxu0 %v3877
    %v3879 = vand.u32 %v13, 4294901760
    %3880 = vmatpush.xpose.msra.mxu0 %v3879
    %v3881 = vand.u32 %v12, 4294901760
    %3882 = vmatpush.xpose.msra.mxu0 %v3881
    %v3883 = vand.u32 %v3641, 4294901760
    %v3884 = vsub.f32 %v3641, %v3883
    %v3885 = vand.u32 %v3884, 4294901760
    %3886 = vmatmul.f32.gmra.mxu0 %v3885
    %v3887 = vpop.f32.mrf.mxu0
    %v3888 = vadd.f32 %v3849, %v3887
    %3889 = vdwg.mxu0
    %v3890 = vand.u32 %v27, 4294901760
    %v3891 = vsub.f32 %v27, %v3890
    %v3892 = vand.u32 %v3891, 4294901760
    %3893 = vmatpush.xpose.msra.mxu0 %v3892
    %v3894 = vand.u32 %v26, 4294901760
    %v3895 = vsub.f32 %v26, %v3894
    %v3896 = vand.u32 %v3895, 4294901760
    %3897 = vmatpush.xpose.msra.mxu0 %v3896
    %v3898 = vand.u32 %v25, 4294901760
    %v3899 = vsub.f32 %v25, %v3898
    %v3900 = vand.u32 %v3899, 4294901760
    %3901 = vmatpush.xpose.msra.mxu0 %v3900
    %v3902 = vand.u32 %v24, 4294901760
    %v3903 = vsub.f32 %v24, %v3902
    %v3904 = vand.u32 %v3903, 4294901760
    %3905 = vmatpush.xpose.msra.mxu0 %v3904
    %v3906 = vand.u32 %v23, 4294901760
    %v3907 = vsub.f32 %v23, %v3906
    %v3908 = vand.u32 %v3907, 4294901760
    %3909 = vmatpush.xpose.msra.mxu0 %v3908
    %v3910 = vand.u32 %v22, 4294901760
    %v3911 = vsub.f32 %v22, %v3910
    %v3912 = vand.u32 %v3911, 4294901760
    %3913 = vmatpush.xpose.msra.mxu0 %v3912
    %v3914 = vand.u32 %v21, 4294901760
    %v3915 = vsub.f32 %v21, %v3914
    %v3916 = vand.u32 %v3915, 4294901760
    %3917 = vmatpush.xpose.msra.mxu0 %v3916
    %v3918 = vand.u32 %v20, 4294901760
    %v3919 = vsub.f32 %v20, %v3918
    %v3920 = vand.u32 %v3919, 4294901760
    %3921 = vmatpush.xpose.msra.mxu0 %v3920
    %v3922 = vand.u32 %v19, 4294901760
    %v3923 = vsub.f32 %v19, %v3922
    %v3924 = vand.u32 %v3923, 4294901760
    %3925 = vmatpush.xpose.msra.mxu0 %v3924
    %v3926 = vand.u32 %v18, 4294901760
    %v3927 = vsub.f32 %v18, %v3926
    %v3928 = vand.u32 %v3927, 4294901760
    %3929 = vmatpush.xpose.msra.mxu0 %v3928
    %v3930 = vand.u32 %v17, 4294901760
    %v3931 = vsub.f32 %v17, %v3930
    %v3932 = vand.u32 %v3931, 4294901760
    %3933 = vmatpush.xpose.msra.mxu0 %v3932
    %v3934 = vand.u32 %v16, 4294901760
    %v3935 = vsub.f32 %v16, %v3934
    %v3936 = vand.u32 %v3935, 4294901760
    %3937 = vmatpush.xpose.msra.mxu0 %v3936
    %v3938 = vand.u32 %v15, 4294901760
    %v3939 = vsub.f32 %v15, %v3938
    %v3940 = vand.u32 %v3939, 4294901760
    %3941 = vmatpush.xpose.msra.mxu0 %v3940
    %v3942 = vand.u32 %v14, 4294901760
    %v3943 = vsub.f32 %v14, %v3942
    %v3944 = vand.u32 %v3943, 4294901760
    %3945 = vmatpush.xpose.msra.mxu0 %v3944
    %v3946 = vand.u32 %v13, 4294901760
    %v3947 = vsub.f32 %v13, %v3946
    %v3948 = vand.u32 %v3947, 4294901760
    %3949 = vmatpush.xpose.msra.mxu0 %v3948
    %v3950 = vand.u32 %v12, 4294901760
    %v3951 = vsub.f32 %v12, %v3950
    %v3952 = vand.u32 %v3951, 4294901760
    %3953 = vmatpush.xpose.msra.mxu0 %v3952
    %v3954 = vand.u32 %v3641, 4294901760
    %3955 = vmatmul.f32.gmra.mxu0 %v3954
    %v3956 = vpop.f32.mrf.mxu0
    %v3957 = vadd.f32 %v3888, %v3956
    %3958 = vdwg.mxu0
    %v3959 = vand.u32 %v27, 4294901760
    %3960 = vmatpush.xpose.msra.mxu0 %v3959
    %v3961 = vand.u32 %v26, 4294901760
    %3962 = vmatpush.xpose.msra.mxu0 %v3961
    %v3963 = vand.u32 %v25, 4294901760
    %3964 = vmatpush.xpose.msra.mxu0 %v3963
    %v3965 = vand.u32 %v24, 4294901760
    %3966 = vmatpush.xpose.msra.mxu0 %v3965
    %v3967 = vand.u32 %v23, 4294901760
    %3968 = vmatpush.xpose.msra.mxu0 %v3967
    %v3969 = vand.u32 %v22, 4294901760
    %3970 = vmatpush.xpose.msra.mxu0 %v3969
    %v3971 = vand.u32 %v21, 4294901760
    %3972 = vmatpush.xpose.msra.mxu0 %v3971
    %v3973 = vand.u32 %v20, 4294901760
    %3974 = vmatpush.xpose.msra.mxu0 %v3973
    %v3975 = vand.u32 %v19, 4294901760
    %3976 = vmatpush.xpose.msra.mxu0 %v3975
    %v3977 = vand.u32 %v18, 4294901760
    %3978 = vmatpush.xpose.msra.mxu0 %v3977
    %v3979 = vand.u32 %v17, 4294901760
    %3980 = vmatpush.xpose.msra.mxu0 %v3979
    %v3981 = vand.u32 %v16, 4294901760
    %3982 = vmatpush.xpose.msra.mxu0 %v3981
    %v3983 = vand.u32 %v15, 4294901760
    %3984 = vmatpush.xpose.msra.mxu0 %v3983
    %v3985 = vand.u32 %v14, 4294901760
    %3986 = vmatpush.xpose.msra.mxu0 %v3985
    %v3987 = vand.u32 %v13, 4294901760
    %3988 = vmatpush.xpose.msra.mxu0 %v3987
    %v3989 = vand.u32 %v12, 4294901760
    %3990 = vmatpush.xpose.msra.mxu0 %v3989
    %v3991 = vand.u32 %v3641, 4294901760
    %3992 = vmatmul.f32.gmra.mxu0 %v3991
    %v3993 = vpop.f32.mrf.mxu0
    %v3994 = vadd.f32 %v3957, %v3993
    %3995 = vdwg.mxu0
    %v3996 = vand.u32 %v27, 4294901760
    %3997 = vmatpush.msra.mxu0 %v3996
    %v3998 = vand.u32 %v26, 4294901760
    %3999 = vmatpush.msra.mxu0 %v3998
    %v4000 = vand.u32 %v25, 4294901760
    %4001 = vmatpush.msra.mxu0 %v4000
    %v4002 = vand.u32 %v24, 4294901760
    %4003 = vmatpush.msra.mxu0 %v4002
    %v4004 = vand.u32 %v23, 4294901760
    %4005 = vmatpush.msra.mxu0 %v4004
    %v4006 = vand.u32 %v22, 4294901760
    %4007 = vmatpush.msra.mxu0 %v4006
    %v4008 = vand.u32 %v21, 4294901760
    %4009 = vmatpush.msra.mxu0 %v4008
    %v4010 = vand.u32 %v20, 4294901760
    %4011 = vmatpush.msra.mxu0 %v4010
    %v4012 = vand.u32 %v19, 4294901760
    %4013 = vmatpush.msra.mxu0 %v4012
    %v4014 = vand.u32 %v18, 4294901760
    %4015 = vmatpush.msra.mxu0 %v4014
    %v4016 = vand.u32 %v17, 4294901760
    %4017 = vmatpush.msra.mxu0 %v4016
    %v4018 = vand.u32 %v16, 4294901760
    %4019 = vmatpush.msra.mxu0 %v4018
    %v4020 = vand.u32 %v15, 4294901760
    %4021 = vmatpush.msra.mxu0 %v4020
    %v4022 = vand.u32 %v14, 4294901760
    %4023 = vmatpush.msra.mxu0 %v4022
    %v4024 = vand.u32 %v13, 4294901760
    %4025 = vmatpush.msra.mxu0 %v4024
    %v4026 = vand.u32 %v12, 4294901760
    %4027 = vmatpush.msra.mxu0 %v4026
    %v4028 = vand.u32 %v3994, 4294901760
    %v4029 = vsub.f32 %v3994, %v4028
    %v4030 = vand.u32 %v4029, 4294901760
    %v4031 = vsub.f32 %v4029, %v4030
    %v4032 = vand.u32 %v4031, 4294901760
    %4033 = vmatmul.f32.gmra.mxu0 %v4032
    %v4034 = vpop.f32.mrf.mxu0
    %v4035 = vadd.f32 0.0, %v4034
    %4036 = vdwg.mxu0
    %v4037 = vand.u32 %v27, 4294901760
    %v4038 = vsub.f32 %v27, %v4037
    %v4039 = vand.u32 %v4038, 4294901760
    %v4040 = vsub.f32 %v4038, %v4039
    %v4041 = vand.u32 %v4040, 4294901760
    %4042 = vmatpush.msra.mxu0 %v4041
    %v4043 = vand.u32 %v26, 4294901760
    %v4044 = vsub.f32 %v26, %v4043
    %v4045 = vand.u32 %v4044, 4294901760
    %v4046 = vsub.f32 %v4044, %v4045
    %v4047 = vand.u32 %v4046, 4294901760
    %4048 = vmatpush.msra.mxu0 %v4047
    %v4049 = vand.u32 %v25, 4294901760
    %v4050 = vsub.f32 %v25, %v4049
    %v4051 = vand.u32 %v4050, 4294901760
    %v4052 = vsub.f32 %v4050, %v4051
    %v4053 = vand.u32 %v4052, 4294901760
    %4054 = vmatpush.msra.mxu0 %v4053
    %v4055 = vand.u32 %v24, 4294901760
    %v4056 = vsub.f32 %v24, %v4055
    %v4057 = vand.u32 %v4056, 4294901760
    %v4058 = vsub.f32 %v4056, %v4057
    %v4059 = vand.u32 %v4058, 4294901760
    %4060 = vmatpush.msra.mxu0 %v4059
    %v4061 = vand.u32 %v23, 4294901760
    %v4062 = vsub.f32 %v23, %v4061
    %v4063 = vand.u32 %v4062, 4294901760
    %v4064 = vsub.f32 %v4062, %v4063
    %v4065 = vand.u32 %v4064, 4294901760
    %4066 = vmatpush.msra.mxu0 %v4065
    %v4067 = vand.u32 %v22, 4294901760
    %v4068 = vsub.f32 %v22, %v4067
    %v4069 = vand.u32 %v4068, 4294901760
    %v4070 = vsub.f32 %v4068, %v4069
    %v4071 = vand.u32 %v4070, 4294901760
    %4072 = vmatpush.msra.mxu0 %v4071
    %v4073 = vand.u32 %v21, 4294901760
    %v4074 = vsub.f32 %v21, %v4073
    %v4075 = vand.u32 %v4074, 4294901760
    %v4076 = vsub.f32 %v4074, %v4075
    %v4077 = vand.u32 %v4076, 4294901760
    %4078 = vmatpush.msra.mxu0 %v4077
    %v4079 = vand.u32 %v20, 4294901760
    %v4080 = vsub.f32 %v20, %v4079
    %v4081 = vand.u32 %v4080, 4294901760
    %v4082 = vsub.f32 %v4080, %v4081
    %v4083 = vand.u32 %v4082, 4294901760
    %4084 = vmatpush.msra.mxu0 %v4083
    %v4085 = vand.u32 %v19, 4294901760
    %v4086 = vsub.f32 %v19, %v4085
    %v4087 = vand.u32 %v4086, 4294901760
    %v4088 = vsub.f32 %v4086, %v4087
    %v4089 = vand.u32 %v4088, 4294901760
    %4090 = vmatpush.msra.mxu0 %v4089
    %v4091 = vand.u32 %v18, 4294901760
    %v4092 = vsub.f32 %v18, %v4091
    %v4093 = vand.u32 %v4092, 4294901760
    %v4094 = vsub.f32 %v4092, %v4093
    %v4095 = vand.u32 %v4094, 4294901760
    %4096 = vmatpush.msra.mxu0 %v4095
    %v4097 = vand.u32 %v17, 4294901760
    %v4098 = vsub.f32 %v17, %v4097
    %v4099 = vand.u32 %v4098, 4294901760
    %v4100 = vsub.f32 %v4098, %v4099
    %v4101 = vand.u32 %v4100, 4294901760
    %4102 = vmatpush.msra.mxu0 %v4101
    %v4103 = vand.u32 %v16, 4294901760
    %v4104 = vsub.f32 %v16, %v4103
    %v4105 = vand.u32 %v4104, 4294901760
    %v4106 = vsub.f32 %v4104, %v4105
    %v4107 = vand.u32 %v4106, 4294901760
    %4108 = vmatpush.msra.mxu0 %v4107
    %v4109 = vand.u32 %v15, 4294901760
    %v4110 = vsub.f32 %v15, %v4109
    %v4111 = vand.u32 %v4110, 4294901760
    %v4112 = vsub.f32 %v4110, %v4111
    %v4113 = vand.u32 %v4112, 4294901760
    %4114 = vmatpush.msra.mxu0 %v4113
    %v4115 = vand.u32 %v14, 4294901760
    %v4116 = vsub.f32 %v14, %v4115
    %v4117 = vand.u32 %v4116, 4294901760
    %v4118 = vsub.f32 %v4116, %v4117
    %v4119 = vand.u32 %v4118, 4294901760
    %4120 = vmatpush.msra.mxu0 %v4119
    %v4121 = vand.u32 %v13, 4294901760
    %v4122 = vsub.f32 %v13, %v4121
    %v4123 = vand.u32 %v4122, 4294901760
    %v4124 = vsub.f32 %v4122, %v4123
    %v4125 = vand.u32 %v4124, 4294901760
    %4126 = vmatpush.msra.mxu0 %v4125
    %v4127 = vand.u32 %v12, 4294901760
    %v4128 = vsub.f32 %v12, %v4127
    %v4129 = vand.u32 %v4128, 4294901760
    %v4130 = vsub.f32 %v4128, %v4129
    %v4131 = vand.u32 %v4130, 4294901760
    %4132 = vmatpush.msra.mxu0 %v4131
    %v4133 = vand.u32 %v3994, 4294901760
    %4134 = vmatmul.f32.gmra.mxu0 %v4133
    %v4135 = vpop.f32.mrf.mxu0
    %v4136 = vadd.f32 %v4035, %v4135
    %4137 = vdwg.mxu0
    %v4138 = vand.u32 %v27, 4294901760
    %v4139 = vsub.f32 %v27, %v4138
    %4140 = vmatpush.msra.mxu0 %v4139
    %v4141 = vand.u32 %v26, 4294901760
    %v4142 = vsub.f32 %v26, %v4141
    %4143 = vmatpush.msra.mxu0 %v4142
    %v4144 = vand.u32 %v25, 4294901760
    %v4145 = vsub.f32 %v25, %v4144
    %4146 = vmatpush.msra.mxu0 %v4145
    %v4147 = vand.u32 %v24, 4294901760
    %v4148 = vsub.f32 %v24, %v4147
    %4149 = vmatpush.msra.mxu0 %v4148
    %v4150 = vand.u32 %v23, 4294901760
    %v4151 = vsub.f32 %v23, %v4150
    %4152 = vmatpush.msra.mxu0 %v4151
    %v4153 = vand.u32 %v22, 4294901760
    %v4154 = vsub.f32 %v22, %v4153
    %4155 = vmatpush.msra.mxu0 %v4154
    %v4156 = vand.u32 %v21, 4294901760
    %v4157 = vsub.f32 %v21, %v4156
    %4158 = vmatpush.msra.mxu0 %v4157
    %v4159 = vand.u32 %v20, 4294901760
    %v4160 = vsub.f32 %v20, %v4159
    %4161 = vmatpush.msra.mxu0 %v4160
    %v4162 = vand.u32 %v19, 4294901760
    %v4163 = vsub.f32 %v19, %v4162
    %4164 = vmatpush.msra.mxu0 %v4163
    %v4165 = vand.u32 %v18, 4294901760
    %v4166 = vsub.f32 %v18, %v4165
    %4167 = vmatpush.msra.mxu0 %v4166
    %v4168 = vand.u32 %v17, 4294901760
    %v4169 = vsub.f32 %v17, %v4168
    %4170 = vmatpush.msra.mxu0 %v4169
    %v4171 = vand.u32 %v16, 4294901760
    %v4172 = vsub.f32 %v16, %v4171
    %4173 = vmatpush.msra.mxu0 %v4172
    %v4174 = vand.u32 %v15, 4294901760
    %v4175 = vsub.f32 %v15, %v4174
    %4176 = vmatpush.msra.mxu0 %v4175
    %v4177 = vand.u32 %v14, 4294901760
    %v4178 = vsub.f32 %v14, %v4177
    %4179 = vmatpush.msra.mxu0 %v4178
    %v4180 = vand.u32 %v13, 4294901760
    %v4181 = vsub.f32 %v13, %v4180
    %4182 = vmatpush.msra.mxu0 %v4181
    %v4183 = vand.u32 %v12, 4294901760
    %v4184 = vsub.f32 %v12, %v4183
    %4185 = vmatpush.msra.mxu0 %v4184
    %v4186 = vand.u32 %v3994, 4294901760
    %v4187 = vsub.f32 %v3994, %v4186
    %4188 = vmatmul.f32.gmra.mxu0 %v4187
    %v4189 = vpop.f32.mrf.mxu0
    %v4190 = vadd.f32 %v4136, %v4189
    %4191 = vdwg.mxu0
    %v4192 = vand.u32 %v27, 4294901760
    %4193 = vmatpush.msra.mxu0 %v4192
    %v4194 = vand.u32 %v26, 4294901760
    %4195 = vmatpush.msra.mxu0 %v4194
    %v4196 = vand.u32 %v25, 4294901760
    %4197 = vmatpush.msra.mxu0 %v4196
    %v4198 = vand.u32 %v24, 4294901760
    %4199 = vmatpush.msra.mxu0 %v4198
    %v4200 = vand.u32 %v23, 4294901760
    %4201 = vmatpush.msra.mxu0 %v4200
    %v4202 = vand.u32 %v22, 4294901760
    %4203 = vmatpush.msra.mxu0 %v4202
    %v4204 = vand.u32 %v21, 4294901760
    %4205 = vmatpush.msra.mxu0 %v4204
    %v4206 = vand.u32 %v20, 4294901760
    %4207 = vmatpush.msra.mxu0 %v4206
    %v4208 = vand.u32 %v19, 4294901760
    %4209 = vmatpush.msra.mxu0 %v4208
    %v4210 = vand.u32 %v18, 4294901760
    %4211 = vmatpush.msra.mxu0 %v4210
    %v4212 = vand.u32 %v17, 4294901760
    %4213 = vmatpush.msra.mxu0 %v4212
    %v4214 = vand.u32 %v16, 4294901760
    %4215 = vmatpush.msra.mxu0 %v4214
    %v4216 = vand.u32 %v15, 4294901760
    %4217 = vmatpush.msra.mxu0 %v4216
    %v4218 = vand.u32 %v14, 4294901760
    %4219 = vmatpush.msra.mxu0 %v4218
    %v4220 = vand.u32 %v13, 4294901760
    %4221 = vmatpush.msra.mxu0 %v4220
    %v4222 = vand.u32 %v12, 4294901760
    %4223 = vmatpush.msra.mxu0 %v4222
    %v4224 = vand.u32 %v3994, 4294901760
    %v4225 = vsub.f32 %v3994, %v4224
    %v4226 = vand.u32 %v4225, 4294901760
    %4227 = vmatmul.f32.gmra.mxu0 %v4226
    %v4228 = vpop.f32.mrf.mxu0
    %v4229 = vadd.f32 %v4190, %v4228
    %4230 = vdwg.mxu0
    %v4231 = vand.u32 %v27, 4294901760
    %v4232 = vsub.f32 %v27, %v4231
    %v4233 = vand.u32 %v4232, 4294901760
    %4234 = vmatpush.msra.mxu0 %v4233
    %v4235 = vand.u32 %v26, 4294901760
    %v4236 = vsub.f32 %v26, %v4235
    %v4237 = vand.u32 %v4236, 4294901760
    %4238 = vmatpush.msra.mxu0 %v4237
    %v4239 = vand.u32 %v25, 4294901760
    %v4240 = vsub.f32 %v25, %v4239
    %v4241 = vand.u32 %v4240, 4294901760
    %4242 = vmatpush.msra.mxu0 %v4241
    %v4243 = vand.u32 %v24, 4294901760
    %v4244 = vsub.f32 %v24, %v4243
    %v4245 = vand.u32 %v4244, 4294901760
    %4246 = vmatpush.msra.mxu0 %v4245
    %v4247 = vand.u32 %v23, 4294901760
    %v4248 = vsub.f32 %v23, %v4247
    %v4249 = vand.u32 %v4248, 4294901760
    %4250 = vmatpush.msra.mxu0 %v4249
    %v4251 = vand.u32 %v22, 4294901760
    %v4252 = vsub.f32 %v22, %v4251
    %v4253 = vand.u32 %v4252, 4294901760
    %4254 = vmatpush.msra.mxu0 %v4253
    %v4255 = vand.u32 %v21, 4294901760
    %v4256 = vsub.f32 %v21, %v4255
    %v4257 = vand.u32 %v4256, 4294901760
    %4258 = vmatpush.msra.mxu0 %v4257
    %v4259 = vand.u32 %v20, 4294901760
    %v4260 = vsub.f32 %v20, %v4259
    %v4261 = vand.u32 %v4260, 4294901760
    %4262 = vmatpush.msra.mxu0 %v4261
    %v4263 = vand.u32 %v19, 4294901760
    %v4264 = vsub.f32 %v19, %v4263
    %v4265 = vand.u32 %v4264, 4294901760
    %4266 = vmatpush.msra.mxu0 %v4265
    %v4267 = vand.u32 %v18, 4294901760
    %v4268 = vsub.f32 %v18, %v4267
    %v4269 = vand.u32 %v4268, 4294901760
    %4270 = vmatpush.msra.mxu0 %v4269
    %v4271 = vand.u32 %v17, 4294901760
    %v4272 = vsub.f32 %v17, %v4271
    %v4273 = vand.u32 %v4272, 4294901760
    %4274 = vmatpush.msra.mxu0 %v4273
    %v4275 = vand.u32 %v16, 4294901760
    %v4276 = vsub.f32 %v16, %v4275
    %v4277 = vand.u32 %v4276, 4294901760
    %4278 = vmatpush.msra.mxu0 %v4277
    %v4279 = vand.u32 %v15, 4294901760
    %v4280 = vsub.f32 %v15, %v4279
    %v4281 = vand.u32 %v4280, 4294901760
    %4282 = vmatpush.msra.mxu0 %v4281
    %v4283 = vand.u32 %v14, 4294901760
    %v4284 = vsub.f32 %v14, %v4283
    %v4285 = vand.u32 %v4284, 4294901760
    %4286 = vmatpush.msra.mxu0 %v4285
    %v4287 = vand.u32 %v13, 4294901760
    %v4288 = vsub.f32 %v13, %v4287
    %v4289 = vand.u32 %v4288, 4294901760
    %4290 = vmatpush.msra.mxu0 %v4289
    %v4291 = vand.u32 %v12, 4294901760
    %v4292 = vsub.f32 %v12, %v4291
    %v4293 = vand.u32 %v4292, 4294901760
    %4294 = vmatpush.msra.mxu0 %v4293
    %v4295 = vand.u32 %v3994, 4294901760
    %4296 = vmatmul.f32.gmra.mxu0 %v4295
    %v4297 = vpop.f32.mrf.mxu0
    %v4298 = vadd.f32 %v4229, %v4297
    %4299 = vdwg.mxu0
    %v4300 = vand.u32 %v27, 4294901760
    %4301 = vmatpush.msra.mxu0 %v4300
    %v4302 = vand.u32 %v26, 4294901760
    %4303 = vmatpush.msra.mxu0 %v4302
    %v4304 = vand.u32 %v25, 4294901760
    %4305 = vmatpush.msra.mxu0 %v4304
    %v4306 = vand.u32 %v24, 4294901760
    %4307 = vmatpush.msra.mxu0 %v4306
    %v4308 = vand.u32 %v23, 4294901760
    %4309 = vmatpush.msra.mxu0 %v4308
    %v4310 = vand.u32 %v22, 4294901760
    %4311 = vmatpush.msra.mxu0 %v4310
    %v4312 = vand.u32 %v21, 4294901760
    %4313 = vmatpush.msra.mxu0 %v4312
    %v4314 = vand.u32 %v20, 4294901760
    %4315 = vmatpush.msra.mxu0 %v4314
    %v4316 = vand.u32 %v19, 4294901760
    %4317 = vmatpush.msra.mxu0 %v4316
    %v4318 = vand.u32 %v18, 4294901760
    %4319 = vmatpush.msra.mxu0 %v4318
    %v4320 = vand.u32 %v17, 4294901760
    %4321 = vmatpush.msra.mxu0 %v4320
    %v4322 = vand.u32 %v16, 4294901760
    %4323 = vmatpush.msra.mxu0 %v4322
    %v4324 = vand.u32 %v15, 4294901760
    %4325 = vmatpush.msra.mxu0 %v4324
    %v4326 = vand.u32 %v14, 4294901760
    %4327 = vmatpush.msra.mxu0 %v4326
    %v4328 = vand.u32 %v13, 4294901760
    %4329 = vmatpush.msra.mxu0 %v4328
    %v4330 = vand.u32 %v12, 4294901760
    %4331 = vmatpush.msra.mxu0 %v4330
    %v4332 = vand.u32 %v3994, 4294901760
    %4333 = vmatmul.f32.gmra.mxu0 %v4332
    %v4334 = vpop.f32.mrf.mxu0
    %v4335 = vadd.f32 %v4298, %v4334
    %4336 = vdwg.mxu0
    %v4337 = vmul.f32 %v4335, %v4335
    %v4338 = vsel %vm712, %v4337, 0.0
    %4339 = vadd.xlane.f32.xlu0 %v4338
    %v4340 = vpop.xlane.xlu0 %4339
    %v4341 = vrot.slane %v4340, 4
    %v4342 = vadd.f32 %v4340, %v4341
    %v4343 = vrot.slane %v4342, 2
    %v4344 = vadd.f32 %v4342, %v4343
    %v4345 = vrot.slane %v4344, 1
    %v4346 = vadd.f32 %v4344, %v4345
    %s4347 = vtos %v4346
    %s4348 = sadd.f32 %s4347, 1e-30
    %v4349 = vstv %s4348
    %v4350 = vrsqrt.pop %v4349
    %v4351 = vmul.f32 %v4350, %v4349
    %v4352 = vmul.f32 %v4351, %v4350
    %v4353 = vmul.f32 0.5, %v4352
    %v4354 = vsub.f32 1.5, %v4353
    %v4355 = vmul.f32 %v4350, %v4354
    %vm4356 = vweird.f32 %v4349
    %vm4357 = vweird.f32 %v4350
    %vm4358 = vmor %vm4356, %vm4357
    %v4359 = vsel %vm4358, %v4350, %v4355
    %s4360 = vtos %v4359
    %v4361 = vstv %s4360
    %v4362 = vmul.f32 %v4335, %v4361
    %v4363 = vsub.f32 %v4362, %v3641
    %s4364 = scalar_select %p3654, 1, 0
    %v4365 = vstv %s4364
    %vm4366 = vcmp.eq.s32.totalorder %v4365, 1
    %v4367 = vsel %vm4366, %v3641, %v4362
    %v4368 = vmul.f32 %v4363, %v4363
    %v4369 = vsel %vm712, %v4368, 0.0
    %4370 = vadd.xlane.f32.xlu0 %v4369
    %v4371 = vpop.xlane.xlu0 %4370
    %v4372 = vrot.slane %v4371, 4
    %v4373 = vadd.f32 %v4371, %v4372
    %v4374 = vrot.slane %v4373, 2
    %v4375 = vadd.f32 %v4373, %v4374
    %v4376 = vrot.slane %v4375, 1
    %v4377 = vadd.f32 %v4375, %v4376
    %s4378 = vtos %v4377
    %p4379 = scmp.lt.f32.partialorder %s4378, 1e-12
    %p4380 = por %p3654, %p4379
    %v4381 = vand.u32 %v27, 4294901760
    %4382 = vmatpush.xpose.msra.mxu0 %v4381
    %v4383 = vand.u32 %v26, 4294901760
    %4384 = vmatpush.xpose.msra.mxu0 %v4383
    %v4385 = vand.u32 %v25, 4294901760
    %4386 = vmatpush.xpose.msra.mxu0 %v4385
    %v4387 = vand.u32 %v24, 4294901760
    %4388 = vmatpush.xpose.msra.mxu0 %v4387
    %v4389 = vand.u32 %v23, 4294901760
    %4390 = vmatpush.xpose.msra.mxu0 %v4389
    %v4391 = vand.u32 %v22, 4294901760
    %4392 = vmatpush.xpose.msra.mxu0 %v4391
    %v4393 = vand.u32 %v21, 4294901760
    %4394 = vmatpush.xpose.msra.mxu0 %v4393
    %v4395 = vand.u32 %v20, 4294901760
    %4396 = vmatpush.xpose.msra.mxu0 %v4395
    %v4397 = vand.u32 %v19, 4294901760
    %4398 = vmatpush.xpose.msra.mxu0 %v4397
    %v4399 = vand.u32 %v18, 4294901760
    %4400 = vmatpush.xpose.msra.mxu0 %v4399
    %v4401 = vand.u32 %v17, 4294901760
    %4402 = vmatpush.xpose.msra.mxu0 %v4401
    %v4403 = vand.u32 %v16, 4294901760
    %4404 = vmatpush.xpose.msra.mxu0 %v4403
    %v4405 = vand.u32 %v15, 4294901760
    %4406 = vmatpush.xpose.msra.mxu0 %v4405
    %v4407 = vand.u32 %v14, 4294901760
    %4408 = vmatpush.xpose.msra.mxu0 %v4407
    %v4409 = vand.u32 %v13, 4294901760
    %4410 = vmatpush.xpose.msra.mxu0 %v4409
    %v4411 = vand.u32 %v12, 4294901760
    %4412 = vmatpush.xpose.msra.mxu0 %v4411
    %v4413 = vand.u32 %v4367, 4294901760
    %v4414 = vsub.f32 %v4367, %v4413
    %v4415 = vand.u32 %v4414, 4294901760
    %v4416 = vsub.f32 %v4414, %v4415
    %v4417 = vand.u32 %v4416, 4294901760
    %4418 = vmatmul.f32.gmra.mxu0 %v4417
    %v4419 = vpop.f32.mrf.mxu0
    %v4420 = vadd.f32 0.0, %v4419
    %4421 = vdwg.mxu0
    %v4422 = vand.u32 %v27, 4294901760
    %v4423 = vsub.f32 %v27, %v4422
    %v4424 = vand.u32 %v4423, 4294901760
    %v4425 = vsub.f32 %v4423, %v4424
    %v4426 = vand.u32 %v4425, 4294901760
    %4427 = vmatpush.xpose.msra.mxu0 %v4426
    %v4428 = vand.u32 %v26, 4294901760
    %v4429 = vsub.f32 %v26, %v4428
    %v4430 = vand.u32 %v4429, 4294901760
    %v4431 = vsub.f32 %v4429, %v4430
    %v4432 = vand.u32 %v4431, 4294901760
    %4433 = vmatpush.xpose.msra.mxu0 %v4432
    %v4434 = vand.u32 %v25, 4294901760
    %v4435 = vsub.f32 %v25, %v4434
    %v4436 = vand.u32 %v4435, 4294901760
    %v4437 = vsub.f32 %v4435, %v4436
    %v4438 = vand.u32 %v4437, 4294901760
    %4439 = vmatpush.xpose.msra.mxu0 %v4438
    %v4440 = vand.u32 %v24, 4294901760
    %v4441 = vsub.f32 %v24, %v4440
    %v4442 = vand.u32 %v4441, 4294901760
    %v4443 = vsub.f32 %v4441, %v4442
    %v4444 = vand.u32 %v4443, 4294901760
    %4445 = vmatpush.xpose.msra.mxu0 %v4444
    %v4446 = vand.u32 %v23, 4294901760
    %v4447 = vsub.f32 %v23, %v4446
    %v4448 = vand.u32 %v4447, 4294901760
    %v4449 = vsub.f32 %v4447, %v4448
    %v4450 = vand.u32 %v4449, 4294901760
    %4451 = vmatpush.xpose.msra.mxu0 %v4450
    %v4452 = vand.u32 %v22, 4294901760
    %v4453 = vsub.f32 %v22, %v4452
    %v4454 = vand.u32 %v4453, 4294901760
    %v4455 = vsub.f32 %v4453, %v4454
    %v4456 = vand.u32 %v4455, 4294901760
    %4457 = vmatpush.xpose.msra.mxu0 %v4456
    %v4458 = vand.u32 %v21, 4294901760
    %v4459 = vsub.f32 %v21, %v4458
    %v4460 = vand.u32 %v4459, 4294901760
    %v4461 = vsub.f32 %v4459, %v4460
    %v4462 = vand.u32 %v4461, 4294901760
    %4463 = vmatpush.xpose.msra.mxu0 %v4462
    %v4464 = vand.u32 %v20, 4294901760
    %v4465 = vsub.f32 %v20, %v4464
    %v4466 = vand.u32 %v4465, 4294901760
    %v4467 = vsub.f32 %v4465, %v4466
    %v4468 = vand.u32 %v4467, 4294901760
    %4469 = vmatpush.xpose.msra.mxu0 %v4468
    %v4470 = vand.u32 %v19, 4294901760
    %v4471 = vsub.f32 %v19, %v4470
    %v4472 = vand.u32 %v4471, 4294901760
    %v4473 = vsub.f32 %v4471, %v4472
    %v4474 = vand.u32 %v4473, 4294901760
    %4475 = vmatpush.xpose.msra.mxu0 %v4474
    %v4476 = vand.u32 %v18, 4294901760
    %v4477 = vsub.f32 %v18, %v4476
    %v4478 = vand.u32 %v4477, 4294901760
    %v4479 = vsub.f32 %v4477, %v4478
    %v4480 = vand.u32 %v4479, 4294901760
    %4481 = vmatpush.xpose.msra.mxu0 %v4480
    %v4482 = vand.u32 %v17, 4294901760
    %v4483 = vsub.f32 %v17, %v4482
    %v4484 = vand.u32 %v4483, 4294901760
    %v4485 = vsub.f32 %v4483, %v4484
    %v4486 = vand.u32 %v4485, 4294901760
    %4487 = vmatpush.xpose.msra.mxu0 %v4486
    %v4488 = vand.u32 %v16, 4294901760
    %v4489 = vsub.f32 %v16, %v4488
    %v4490 = vand.u32 %v4489, 4294901760
    %v4491 = vsub.f32 %v4489, %v4490
    %v4492 = vand.u32 %v4491, 4294901760
    %4493 = vmatpush.xpose.msra.mxu0 %v4492
    %v4494 = vand.u32 %v15, 4294901760
    %v4495 = vsub.f32 %v15, %v4494
    %v4496 = vand.u32 %v4495, 4294901760
    %v4497 = vsub.f32 %v4495, %v4496
    %v4498 = vand.u32 %v4497, 4294901760
    %4499 = vmatpush.xpose.msra.mxu0 %v4498
    %v4500 = vand.u32 %v14, 4294901760
    %v4501 = vsub.f32 %v14, %v4500
    %v4502 = vand.u32 %v4501, 4294901760
    %v4503 = vsub.f32 %v4501, %v4502
    %v4504 = vand.u32 %v4503, 4294901760
    %4505 = vmatpush.xpose.msra.mxu0 %v4504
    %v4506 = vand.u32 %v13, 4294901760
    %v4507 = vsub.f32 %v13, %v4506
    %v4508 = vand.u32 %v4507, 4294901760
    %v4509 = vsub.f32 %v4507, %v4508
    %v4510 = vand.u32 %v4509, 4294901760
    %4511 = vmatpush.xpose.msra.mxu0 %v4510
    %v4512 = vand.u32 %v12, 4294901760
    %v4513 = vsub.f32 %v12, %v4512
    %v4514 = vand.u32 %v4513, 4294901760
    %v4515 = vsub.f32 %v4513, %v4514
    %v4516 = vand.u32 %v4515, 4294901760
    %4517 = vmatpush.xpose.msra.mxu0 %v4516
    %v4518 = vand.u32 %v4367, 4294901760
    %4519 = vmatmul.f32.gmra.mxu0 %v4518
    %v4520 = vpop.f32.mrf.mxu0
    %v4521 = vadd.f32 %v4420, %v4520
    %4522 = vdwg.mxu0
    %v4523 = vand.u32 %v27, 4294901760
    %v4524 = vsub.f32 %v27, %v4523
    %4525 = vmatpush.xpose.msra.mxu0 %v4524
    %v4526 = vand.u32 %v26, 4294901760
    %v4527 = vsub.f32 %v26, %v4526
    %4528 = vmatpush.xpose.msra.mxu0 %v4527
    %v4529 = vand.u32 %v25, 4294901760
    %v4530 = vsub.f32 %v25, %v4529
    %4531 = vmatpush.xpose.msra.mxu0 %v4530
    %v4532 = vand.u32 %v24, 4294901760
    %v4533 = vsub.f32 %v24, %v4532
    %4534 = vmatpush.xpose.msra.mxu0 %v4533
    %v4535 = vand.u32 %v23, 4294901760
    %v4536 = vsub.f32 %v23, %v4535
    %4537 = vmatpush.xpose.msra.mxu0 %v4536
    %v4538 = vand.u32 %v22, 4294901760
    %v4539 = vsub.f32 %v22, %v4538
    %4540 = vmatpush.xpose.msra.mxu0 %v4539
    %v4541 = vand.u32 %v21, 4294901760
    %v4542 = vsub.f32 %v21, %v4541
    %4543 = vmatpush.xpose.msra.mxu0 %v4542
    %v4544 = vand.u32 %v20, 4294901760
    %v4545 = vsub.f32 %v20, %v4544
    %4546 = vmatpush.xpose.msra.mxu0 %v4545
    %v4547 = vand.u32 %v19, 4294901760
    %v4548 = vsub.f32 %v19, %v4547
    %4549 = vmatpush.xpose.msra.mxu0 %v4548
    %v4550 = vand.u32 %v18, 4294901760
    %v4551 = vsub.f32 %v18, %v4550
    %4552 = vmatpush.xpose.msra.mxu0 %v4551
    %v4553 = vand.u32 %v17, 4294901760
    %v4554 = vsub.f32 %v17, %v4553
    %4555 = vmatpush.xpose.msra.mxu0 %v4554
    %v4556 = vand.u32 %v16, 4294901760
    %v4557 = vsub.f32 %v16, %v4556
    %4558 = vmatpush.xpose.msra.mxu0 %v4557
    %v4559 = vand.u32 %v15, 4294901760
    %v4560 = vsub.f32 %v15, %v4559
    %4561 = vmatpush.xpose.msra.mxu0 %v4560
    %v4562 = vand.u32 %v14, 4294901760
    %v4563 = vsub.f32 %v14, %v4562
    %4564 = vmatpush.xpose.msra.mxu0 %v4563
    %v4565 = vand.u32 %v13, 4294901760
    %v4566 = vsub.f32 %v13, %v4565
    %4567 = vmatpush.xpose.msra.mxu0 %v4566
    %v4568 = vand.u32 %v12, 4294901760
    %v4569 = vsub.f32 %v12, %v4568
    %4570 = vmatpush.xpose.msra.mxu0 %v4569
    %v4571 = vand.u32 %v4367, 4294901760
    %v4572 = vsub.f32 %v4367, %v4571
    %4573 = vmatmul.f32.gmra.mxu0 %v4572
    %v4574 = vpop.f32.mrf.mxu0
    %v4575 = vadd.f32 %v4521, %v4574
    %4576 = vdwg.mxu0
    %v4577 = vand.u32 %v27, 4294901760
    %4578 = vmatpush.xpose.msra.mxu0 %v4577
    %v4579 = vand.u32 %v26, 4294901760
    %4580 = vmatpush.xpose.msra.mxu0 %v4579
    %v4581 = vand.u32 %v25, 4294901760
    %4582 = vmatpush.xpose.msra.mxu0 %v4581
    %v4583 = vand.u32 %v24, 4294901760
    %4584 = vmatpush.xpose.msra.mxu0 %v4583
    %v4585 = vand.u32 %v23, 4294901760
    %4586 = vmatpush.xpose.msra.mxu0 %v4585
    %v4587 = vand.u32 %v22, 4294901760
    %4588 = vmatpush.xpose.msra.mxu0 %v4587
    %v4589 = vand.u32 %v21, 4294901760
    %4590 = vmatpush.xpose.msra.mxu0 %v4589
    %v4591 = vand.u32 %v20, 4294901760
    %4592 = vmatpush.xpose.msra.mxu0 %v4591
    %v4593 = vand.u32 %v19, 4294901760
    %4594 = vmatpush.xpose.msra.mxu0 %v4593
    %v4595 = vand.u32 %v18, 4294901760
    %4596 = vmatpush.xpose.msra.mxu0 %v4595
    %v4597 = vand.u32 %v17, 4294901760
    %4598 = vmatpush.xpose.msra.mxu0 %v4597
    %v4599 = vand.u32 %v16, 4294901760
    %4600 = vmatpush.xpose.msra.mxu0 %v4599
    %v4601 = vand.u32 %v15, 4294901760
    %4602 = vmatpush.xpose.msra.mxu0 %v4601
    %v4603 = vand.u32 %v14, 4294901760
    %4604 = vmatpush.xpose.msra.mxu0 %v4603
    %v4605 = vand.u32 %v13, 4294901760
    %4606 = vmatpush.xpose.msra.mxu0 %v4605
    %v4607 = vand.u32 %v12, 4294901760
    %4608 = vmatpush.xpose.msra.mxu0 %v4607
    %v4609 = vand.u32 %v4367, 4294901760
    %v4610 = vsub.f32 %v4367, %v4609
    %v4611 = vand.u32 %v4610, 4294901760
    %4612 = vmatmul.f32.gmra.mxu0 %v4611
    %v4613 = vpop.f32.mrf.mxu0
    %v4614 = vadd.f32 %v4575, %v4613
    %4615 = vdwg.mxu0
    %v4616 = vand.u32 %v27, 4294901760
    %v4617 = vsub.f32 %v27, %v4616
    %v4618 = vand.u32 %v4617, 4294901760
    %4619 = vmatpush.xpose.msra.mxu0 %v4618
    %v4620 = vand.u32 %v26, 4294901760
    %v4621 = vsub.f32 %v26, %v4620
    %v4622 = vand.u32 %v4621, 4294901760
    %4623 = vmatpush.xpose.msra.mxu0 %v4622
    %v4624 = vand.u32 %v25, 4294901760
    %v4625 = vsub.f32 %v25, %v4624
    %v4626 = vand.u32 %v4625, 4294901760
    %4627 = vmatpush.xpose.msra.mxu0 %v4626
    %v4628 = vand.u32 %v24, 4294901760
    %v4629 = vsub.f32 %v24, %v4628
    %v4630 = vand.u32 %v4629, 4294901760
    %4631 = vmatpush.xpose.msra.mxu0 %v4630
    %v4632 = vand.u32 %v23, 4294901760
    %v4633 = vsub.f32 %v23, %v4632
    %v4634 = vand.u32 %v4633, 4294901760
    %4635 = vmatpush.xpose.msra.mxu0 %v4634
    %v4636 = vand.u32 %v22, 4294901760
    %v4637 = vsub.f32 %v22, %v4636
    %v4638 = vand.u32 %v4637, 4294901760
    %4639 = vmatpush.xpose.msra.mxu0 %v4638
    %v4640 = vand.u32 %v21, 4294901760
    %v4641 = vsub.f32 %v21, %v4640
    %v4642 = vand.u32 %v4641, 4294901760
    %4643 = vmatpush.xpose.msra.mxu0 %v4642
    %v4644 = vand.u32 %v20, 4294901760
    %v4645 = vsub.f32 %v20, %v4644
    %v4646 = vand.u32 %v4645, 4294901760
    %4647 = vmatpush.xpose.msra.mxu0 %v4646
    %v4648 = vand.u32 %v19, 4294901760
    %v4649 = vsub.f32 %v19, %v4648
    %v4650 = vand.u32 %v4649, 4294901760
    %4651 = vmatpush.xpose.msra.mxu0 %v4650
    %v4652 = vand.u32 %v18, 4294901760
    %v4653 = vsub.f32 %v18, %v4652
    %v4654 = vand.u32 %v4653, 4294901760
    %4655 = vmatpush.xpose.msra.mxu0 %v4654
    %v4656 = vand.u32 %v17, 4294901760
    %v4657 = vsub.f32 %v17, %v4656
    %v4658 = vand.u32 %v4657, 4294901760
    %4659 = vmatpush.xpose.msra.mxu0 %v4658
    %v4660 = vand.u32 %v16, 4294901760
    %v4661 = vsub.f32 %v16, %v4660
    %v4662 = vand.u32 %v4661, 4294901760
    %4663 = vmatpush.xpose.msra.mxu0 %v4662
    %v4664 = vand.u32 %v15, 4294901760
    %v4665 = vsub.f32 %v15, %v4664
    %v4666 = vand.u32 %v4665, 4294901760
    %4667 = vmatpush.xpose.msra.mxu0 %v4666
    %v4668 = vand.u32 %v14, 4294901760
    %v4669 = vsub.f32 %v14, %v4668
    %v4670 = vand.u32 %v4669, 4294901760
    %4671 = vmatpush.xpose.msra.mxu0 %v4670
    %v4672 = vand.u32 %v13, 4294901760
    %v4673 = vsub.f32 %v13, %v4672
    %v4674 = vand.u32 %v4673, 4294901760
    %4675 = vmatpush.xpose.msra.mxu0 %v4674
    %v4676 = vand.u32 %v12, 4294901760
    %v4677 = vsub.f32 %v12, %v4676
    %v4678 = vand.u32 %v4677, 4294901760
    %4679 = vmatpush.xpose.msra.mxu0 %v4678
    %v4680 = vand.u32 %v4367, 4294901760
    %4681 = vmatmul.f32.gmra.mxu0 %v4680
    %v4682 = vpop.f32.mrf.mxu0
    %v4683 = vadd.f32 %v4614, %v4682
    %4684 = vdwg.mxu0
    %v4685 = vand.u32 %v27, 4294901760
    %4686 = vmatpush.xpose.msra.mxu0 %v4685
    %v4687 = vand.u32 %v26, 4294901760
    %4688 = vmatpush.xpose.msra.mxu0 %v4687
    %v4689 = vand.u32 %v25, 4294901760
    %4690 = vmatpush.xpose.msra.mxu0 %v4689
    %v4691 = vand.u32 %v24, 4294901760
    %4692 = vmatpush.xpose.msra.mxu0 %v4691
    %v4693 = vand.u32 %v23, 4294901760
    %4694 = vmatpush.xpose.msra.mxu0 %v4693
    %v4695 = vand.u32 %v22, 4294901760
    %4696 = vmatpush.xpose.msra.mxu0 %v4695
    %v4697 = vand.u32 %v21, 4294901760
    %4698 = vmatpush.xpose.msra.mxu0 %v4697
    %v4699 = vand.u32 %v20, 4294901760
    %4700 = vmatpush.xpose.msra.mxu0 %v4699
    %v4701 = vand.u32 %v19, 4294901760
    %4702 = vmatpush.xpose.msra.mxu0 %v4701
    %v4703 = vand.u32 %v18, 4294901760
    %4704 = vmatpush.xpose.msra.mxu0 %v4703
    %v4705 = vand.u32 %v17, 4294901760
    %4706 = vmatpush.xpose.msra.mxu0 %v4705
    %v4707 = vand.u32 %v16, 4294901760
    %4708 = vmatpush.xpose.msra.mxu0 %v4707
    %v4709 = vand.u32 %v15, 4294901760
    %4710 = vmatpush.xpose.msra.mxu0 %v4709
    %v4711 = vand.u32 %v14, 4294901760
    %4712 = vmatpush.xpose.msra.mxu0 %v4711
    %v4713 = vand.u32 %v13, 4294901760
    %4714 = vmatpush.xpose.msra.mxu0 %v4713
    %v4715 = vand.u32 %v12, 4294901760
    %4716 = vmatpush.xpose.msra.mxu0 %v4715
    %v4717 = vand.u32 %v4367, 4294901760
    %4718 = vmatmul.f32.gmra.mxu0 %v4717
    %v4719 = vpop.f32.mrf.mxu0
    %v4720 = vadd.f32 %v4683, %v4719
    %4721 = vdwg.mxu0
    %v4722 = vand.u32 %v27, 4294901760
    %4723 = vmatpush.msra.mxu0 %v4722
    %v4724 = vand.u32 %v26, 4294901760
    %4725 = vmatpush.msra.mxu0 %v4724
    %v4726 = vand.u32 %v25, 4294901760
    %4727 = vmatpush.msra.mxu0 %v4726
    %v4728 = vand.u32 %v24, 4294901760
    %4729 = vmatpush.msra.mxu0 %v4728
    %v4730 = vand.u32 %v23, 4294901760
    %4731 = vmatpush.msra.mxu0 %v4730
    %v4732 = vand.u32 %v22, 4294901760
    %4733 = vmatpush.msra.mxu0 %v4732
    %v4734 = vand.u32 %v21, 4294901760
    %4735 = vmatpush.msra.mxu0 %v4734
    %v4736 = vand.u32 %v20, 4294901760
    %4737 = vmatpush.msra.mxu0 %v4736
    %v4738 = vand.u32 %v19, 4294901760
    %4739 = vmatpush.msra.mxu0 %v4738
    %v4740 = vand.u32 %v18, 4294901760
    %4741 = vmatpush.msra.mxu0 %v4740
    %v4742 = vand.u32 %v17, 4294901760
    %4743 = vmatpush.msra.mxu0 %v4742
    %v4744 = vand.u32 %v16, 4294901760
    %4745 = vmatpush.msra.mxu0 %v4744
    %v4746 = vand.u32 %v15, 4294901760
    %4747 = vmatpush.msra.mxu0 %v4746
    %v4748 = vand.u32 %v14, 4294901760
    %4749 = vmatpush.msra.mxu0 %v4748
    %v4750 = vand.u32 %v13, 4294901760
    %4751 = vmatpush.msra.mxu0 %v4750
    %v4752 = vand.u32 %v12, 4294901760
    %4753 = vmatpush.msra.mxu0 %v4752
    %v4754 = vand.u32 %v4720, 4294901760
    %v4755 = vsub.f32 %v4720, %v4754
    %v4756 = vand.u32 %v4755, 4294901760
    %v4757 = vsub.f32 %v4755, %v4756
    %v4758 = vand.u32 %v4757, 4294901760
    %4759 = vmatmul.f32.gmra.mxu0 %v4758
    %v4760 = vpop.f32.mrf.mxu0
    %v4761 = vadd.f32 0.0, %v4760
    %4762 = vdwg.mxu0
    %v4763 = vand.u32 %v27, 4294901760
    %v4764 = vsub.f32 %v27, %v4763
    %v4765 = vand.u32 %v4764, 4294901760
    %v4766 = vsub.f32 %v4764, %v4765
    %v4767 = vand.u32 %v4766, 4294901760
    %4768 = vmatpush.msra.mxu0 %v4767
    %v4769 = vand.u32 %v26, 4294901760
    %v4770 = vsub.f32 %v26, %v4769
    %v4771 = vand.u32 %v4770, 4294901760
    %v4772 = vsub.f32 %v4770, %v4771
    %v4773 = vand.u32 %v4772, 4294901760
    %4774 = vmatpush.msra.mxu0 %v4773
    %v4775 = vand.u32 %v25, 4294901760
    %v4776 = vsub.f32 %v25, %v4775
    %v4777 = vand.u32 %v4776, 4294901760
    %v4778 = vsub.f32 %v4776, %v4777
    %v4779 = vand.u32 %v4778, 4294901760
    %4780 = vmatpush.msra.mxu0 %v4779
    %v4781 = vand.u32 %v24, 4294901760
    %v4782 = vsub.f32 %v24, %v4781
    %v4783 = vand.u32 %v4782, 4294901760
    %v4784 = vsub.f32 %v4782, %v4783
    %v4785 = vand.u32 %v4784, 4294901760
    %4786 = vmatpush.msra.mxu0 %v4785
    %v4787 = vand.u32 %v23, 4294901760
    %v4788 = vsub.f32 %v23, %v4787
    %v4789 = vand.u32 %v4788, 4294901760
    %v4790 = vsub.f32 %v4788, %v4789
    %v4791 = vand.u32 %v4790, 4294901760
    %4792 = vmatpush.msra.mxu0 %v4791
    %v4793 = vand.u32 %v22, 4294901760
    %v4794 = vsub.f32 %v22, %v4793
    %v4795 = vand.u32 %v4794, 4294901760
    %v4796 = vsub.f32 %v4794, %v4795
    %v4797 = vand.u32 %v4796, 4294901760
    %4798 = vmatpush.msra.mxu0 %v4797
    %v4799 = vand.u32 %v21, 4294901760
    %v4800 = vsub.f32 %v21, %v4799
    %v4801 = vand.u32 %v4800, 4294901760
    %v4802 = vsub.f32 %v4800, %v4801
    %v4803 = vand.u32 %v4802, 4294901760
    %4804 = vmatpush.msra.mxu0 %v4803
    %v4805 = vand.u32 %v20, 4294901760
    %v4806 = vsub.f32 %v20, %v4805
    %v4807 = vand.u32 %v4806, 4294901760
    %v4808 = vsub.f32 %v4806, %v4807
    %v4809 = vand.u32 %v4808, 4294901760
    %4810 = vmatpush.msra.mxu0 %v4809
    %v4811 = vand.u32 %v19, 4294901760
    %v4812 = vsub.f32 %v19, %v4811
    %v4813 = vand.u32 %v4812, 4294901760
    %v4814 = vsub.f32 %v4812, %v4813
    %v4815 = vand.u32 %v4814, 4294901760
    %4816 = vmatpush.msra.mxu0 %v4815
    %v4817 = vand.u32 %v18, 4294901760
    %v4818 = vsub.f32 %v18, %v4817
    %v4819 = vand.u32 %v4818, 4294901760
    %v4820 = vsub.f32 %v4818, %v4819
    %v4821 = vand.u32 %v4820, 4294901760
    %4822 = vmatpush.msra.mxu0 %v4821
    %v4823 = vand.u32 %v17, 4294901760
    %v4824 = vsub.f32 %v17, %v4823
    %v4825 = vand.u32 %v4824, 4294901760
    %v4826 = vsub.f32 %v4824, %v4825
    %v4827 = vand.u32 %v4826, 4294901760
    %4828 = vmatpush.msra.mxu0 %v4827
    %v4829 = vand.u32 %v16, 4294901760
    %v4830 = vsub.f32 %v16, %v4829
    %v4831 = vand.u32 %v4830, 4294901760
    %v4832 = vsub.f32 %v4830, %v4831
    %v4833 = vand.u32 %v4832, 4294901760
    %4834 = vmatpush.msra.mxu0 %v4833
    %v4835 = vand.u32 %v15, 4294901760
    %v4836 = vsub.f32 %v15, %v4835
    %v4837 = vand.u32 %v4836, 4294901760
    %v4838 = vsub.f32 %v4836, %v4837
    %v4839 = vand.u32 %v4838, 4294901760
    %4840 = vmatpush.msra.mxu0 %v4839
    %v4841 = vand.u32 %v14, 4294901760
    %v4842 = vsub.f32 %v14, %v4841
    %v4843 = vand.u32 %v4842, 4294901760
    %v4844 = vsub.f32 %v4842, %v4843
    %v4845 = vand.u32 %v4844, 4294901760
    %4846 = vmatpush.msra.mxu0 %v4845
    %v4847 = vand.u32 %v13, 4294901760
    %v4848 = vsub.f32 %v13, %v4847
    %v4849 = vand.u32 %v4848, 4294901760
    %v4850 = vsub.f32 %v4848, %v4849
    %v4851 = vand.u32 %v4850, 4294901760
    %4852 = vmatpush.msra.mxu0 %v4851
    %v4853 = vand.u32 %v12, 4294901760
    %v4854 = vsub.f32 %v12, %v4853
    %v4855 = vand.u32 %v4854, 4294901760
    %v4856 = vsub.f32 %v4854, %v4855
    %v4857 = vand.u32 %v4856, 4294901760
    %4858 = vmatpush.msra.mxu0 %v4857
    %v4859 = vand.u32 %v4720, 4294901760
    %4860 = vmatmul.f32.gmra.mxu0 %v4859
    %v4861 = vpop.f32.mrf.mxu0
    %v4862 = vadd.f32 %v4761, %v4861
    %4863 = vdwg.mxu0
    %v4864 = vand.u32 %v27, 4294901760
    %v4865 = vsub.f32 %v27, %v4864
    %4866 = vmatpush.msra.mxu0 %v4865
    %v4867 = vand.u32 %v26, 4294901760
    %v4868 = vsub.f32 %v26, %v4867
    %4869 = vmatpush.msra.mxu0 %v4868
    %v4870 = vand.u32 %v25, 4294901760
    %v4871 = vsub.f32 %v25, %v4870
    %4872 = vmatpush.msra.mxu0 %v4871
    %v4873 = vand.u32 %v24, 4294901760
    %v4874 = vsub.f32 %v24, %v4873
    %4875 = vmatpush.msra.mxu0 %v4874
    %v4876 = vand.u32 %v23, 4294901760
    %v4877 = vsub.f32 %v23, %v4876
    %4878 = vmatpush.msra.mxu0 %v4877
    %v4879 = vand.u32 %v22, 4294901760
    %v4880 = vsub.f32 %v22, %v4879
    %4881 = vmatpush.msra.mxu0 %v4880
    %v4882 = vand.u32 %v21, 4294901760
    %v4883 = vsub.f32 %v21, %v4882
    %4884 = vmatpush.msra.mxu0 %v4883
    %v4885 = vand.u32 %v20, 4294901760
    %v4886 = vsub.f32 %v20, %v4885
    %4887 = vmatpush.msra.mxu0 %v4886
    %v4888 = vand.u32 %v19, 4294901760
    %v4889 = vsub.f32 %v19, %v4888
    %4890 = vmatpush.msra.mxu0 %v4889
    %v4891 = vand.u32 %v18, 4294901760
    %v4892 = vsub.f32 %v18, %v4891
    %4893 = vmatpush.msra.mxu0 %v4892
    %v4894 = vand.u32 %v17, 4294901760
    %v4895 = vsub.f32 %v17, %v4894
    %4896 = vmatpush.msra.mxu0 %v4895
    %v4897 = vand.u32 %v16, 4294901760
    %v4898 = vsub.f32 %v16, %v4897
    %4899 = vmatpush.msra.mxu0 %v4898
    %v4900 = vand.u32 %v15, 4294901760
    %v4901 = vsub.f32 %v15, %v4900
    %4902 = vmatpush.msra.mxu0 %v4901
    %v4903 = vand.u32 %v14, 4294901760
    %v4904 = vsub.f32 %v14, %v4903
    %4905 = vmatpush.msra.mxu0 %v4904
    %v4906 = vand.u32 %v13, 4294901760
    %v4907 = vsub.f32 %v13, %v4906
    %4908 = vmatpush.msra.mxu0 %v4907
    %v4909 = vand.u32 %v12, 4294901760
    %v4910 = vsub.f32 %v12, %v4909
    %4911 = vmatpush.msra.mxu0 %v4910
    %v4912 = vand.u32 %v4720, 4294901760
    %v4913 = vsub.f32 %v4720, %v4912
    %4914 = vmatmul.f32.gmra.mxu0 %v4913
    %v4915 = vpop.f32.mrf.mxu0
    %v4916 = vadd.f32 %v4862, %v4915
    %4917 = vdwg.mxu0
    %v4918 = vand.u32 %v27, 4294901760
    %4919 = vmatpush.msra.mxu0 %v4918
    %v4920 = vand.u32 %v26, 4294901760
    %4921 = vmatpush.msra.mxu0 %v4920
    %v4922 = vand.u32 %v25, 4294901760
    %4923 = vmatpush.msra.mxu0 %v4922
    %v4924 = vand.u32 %v24, 4294901760
    %4925 = vmatpush.msra.mxu0 %v4924
    %v4926 = vand.u32 %v23, 4294901760
    %4927 = vmatpush.msra.mxu0 %v4926
    %v4928 = vand.u32 %v22, 4294901760
    %4929 = vmatpush.msra.mxu0 %v4928
    %v4930 = vand.u32 %v21, 4294901760
    %4931 = vmatpush.msra.mxu0 %v4930
    %v4932 = vand.u32 %v20, 4294901760
    %4933 = vmatpush.msra.mxu0 %v4932
    %v4934 = vand.u32 %v19, 4294901760
    %4935 = vmatpush.msra.mxu0 %v4934
    %v4936 = vand.u32 %v18, 4294901760
    %4937 = vmatpush.msra.mxu0 %v4936
    %v4938 = vand.u32 %v17, 4294901760
    %4939 = vmatpush.msra.mxu0 %v4938
    %v4940 = vand.u32 %v16, 4294901760
    %4941 = vmatpush.msra.mxu0 %v4940
    %v4942 = vand.u32 %v15, 4294901760
    %4943 = vmatpush.msra.mxu0 %v4942
    %v4944 = vand.u32 %v14, 4294901760
    %4945 = vmatpush.msra.mxu0 %v4944
    %v4946 = vand.u32 %v13, 4294901760
    %4947 = vmatpush.msra.mxu0 %v4946
    %v4948 = vand.u32 %v12, 4294901760
    %4949 = vmatpush.msra.mxu0 %v4948
    %v4950 = vand.u32 %v4720, 4294901760
    %v4951 = vsub.f32 %v4720, %v4950
    %v4952 = vand.u32 %v4951, 4294901760
    %4953 = vmatmul.f32.gmra.mxu0 %v4952
    %v4954 = vpop.f32.mrf.mxu0
    %v4955 = vadd.f32 %v4916, %v4954
    %4956 = vdwg.mxu0
    %v4957 = vand.u32 %v27, 4294901760
    %v4958 = vsub.f32 %v27, %v4957
    %v4959 = vand.u32 %v4958, 4294901760
    %4960 = vmatpush.msra.mxu0 %v4959
    %v4961 = vand.u32 %v26, 4294901760
    %v4962 = vsub.f32 %v26, %v4961
    %v4963 = vand.u32 %v4962, 4294901760
    %4964 = vmatpush.msra.mxu0 %v4963
    %v4965 = vand.u32 %v25, 4294901760
    %v4966 = vsub.f32 %v25, %v4965
    %v4967 = vand.u32 %v4966, 4294901760
    %4968 = vmatpush.msra.mxu0 %v4967
    %v4969 = vand.u32 %v24, 4294901760
    %v4970 = vsub.f32 %v24, %v4969
    %v4971 = vand.u32 %v4970, 4294901760
    %4972 = vmatpush.msra.mxu0 %v4971
    %v4973 = vand.u32 %v23, 4294901760
    %v4974 = vsub.f32 %v23, %v4973
    %v4975 = vand.u32 %v4974, 4294901760
    %4976 = vmatpush.msra.mxu0 %v4975
    %v4977 = vand.u32 %v22, 4294901760
    %v4978 = vsub.f32 %v22, %v4977
    %v4979 = vand.u32 %v4978, 4294901760
    %4980 = vmatpush.msra.mxu0 %v4979
    %v4981 = vand.u32 %v21, 4294901760
    %v4982 = vsub.f32 %v21, %v4981
    %v4983 = vand.u32 %v4982, 4294901760
    %4984 = vmatpush.msra.mxu0 %v4983
    %v4985 = vand.u32 %v20, 4294901760
    %v4986 = vsub.f32 %v20, %v4985
    %v4987 = vand.u32 %v4986, 4294901760
    %4988 = vmatpush.msra.mxu0 %v4987
    %v4989 = vand.u32 %v19, 4294901760
    %v4990 = vsub.f32 %v19, %v4989
    %v4991 = vand.u32 %v4990, 4294901760
    %4992 = vmatpush.msra.mxu0 %v4991
    %v4993 = vand.u32 %v18, 4294901760
    %v4994 = vsub.f32 %v18, %v4993
    %v4995 = vand.u32 %v4994, 4294901760
    %4996 = vmatpush.msra.mxu0 %v4995
    %v4997 = vand.u32 %v17, 4294901760
    %v4998 = vsub.f32 %v17, %v4997
    %v4999 = vand.u32 %v4998, 4294901760
    %5000 = vmatpush.msra.mxu0 %v4999
    %v5001 = vand.u32 %v16, 4294901760
    %v5002 = vsub.f32 %v16, %v5001
    %v5003 = vand.u32 %v5002, 4294901760
    %5004 = vmatpush.msra.mxu0 %v5003
    %v5005 = vand.u32 %v15, 4294901760
    %v5006 = vsub.f32 %v15, %v5005
    %v5007 = vand.u32 %v5006, 4294901760
    %5008 = vmatpush.msra.mxu0 %v5007
    %v5009 = vand.u32 %v14, 4294901760
    %v5010 = vsub.f32 %v14, %v5009
    %v5011 = vand.u32 %v5010, 4294901760
    %5012 = vmatpush.msra.mxu0 %v5011
    %v5013 = vand.u32 %v13, 4294901760
    %v5014 = vsub.f32 %v13, %v5013
    %v5015 = vand.u32 %v5014, 4294901760
    %5016 = vmatpush.msra.mxu0 %v5015
    %v5017 = vand.u32 %v12, 4294901760
    %v5018 = vsub.f32 %v12, %v5017
    %v5019 = vand.u32 %v5018, 4294901760
    %5020 = vmatpush.msra.mxu0 %v5019
    %v5021 = vand.u32 %v4720, 4294901760
    %5022 = vmatmul.f32.gmra.mxu0 %v5021
    %v5023 = vpop.f32.mrf.mxu0
    %v5024 = vadd.f32 %v4955, %v5023
    %5025 = vdwg.mxu0
    %v5026 = vand.u32 %v27, 4294901760
    %5027 = vmatpush.msra.mxu0 %v5026
    %v5028 = vand.u32 %v26, 4294901760
    %5029 = vmatpush.msra.mxu0 %v5028
    %v5030 = vand.u32 %v25, 4294901760
    %5031 = vmatpush.msra.mxu0 %v5030
    %v5032 = vand.u32 %v24, 4294901760
    %5033 = vmatpush.msra.mxu0 %v5032
    %v5034 = vand.u32 %v23, 4294901760
    %5035 = vmatpush.msra.mxu0 %v5034
    %v5036 = vand.u32 %v22, 4294901760
    %5037 = vmatpush.msra.mxu0 %v5036
    %v5038 = vand.u32 %v21, 4294901760
    %5039 = vmatpush.msra.mxu0 %v5038
    %v5040 = vand.u32 %v20, 4294901760
    %5041 = vmatpush.msra.mxu0 %v5040
    %v5042 = vand.u32 %v19, 4294901760
    %5043 = vmatpush.msra.mxu0 %v5042
    %v5044 = vand.u32 %v18, 4294901760
    %5045 = vmatpush.msra.mxu0 %v5044
    %v5046 = vand.u32 %v17, 4294901760
    %5047 = vmatpush.msra.mxu0 %v5046
    %v5048 = vand.u32 %v16, 4294901760
    %5049 = vmatpush.msra.mxu0 %v5048
    %v5050 = vand.u32 %v15, 4294901760
    %5051 = vmatpush.msra.mxu0 %v5050
    %v5052 = vand.u32 %v14, 4294901760
    %5053 = vmatpush.msra.mxu0 %v5052
    %v5054 = vand.u32 %v13, 4294901760
    %5055 = vmatpush.msra.mxu0 %v5054
    %v5056 = vand.u32 %v12, 4294901760
    %5057 = vmatpush.msra.mxu0 %v5056
    %v5058 = vand.u32 %v4720, 4294901760
    %5059 = vmatmul.f32.gmra.mxu0 %v5058
    %v5060 = vpop.f32.mrf.mxu0
    %v5061 = vadd.f32 %v5024, %v5060
    %5062 = vdwg.mxu0
    %v5063 = vmul.f32 %v5061, %v5061
    %v5064 = vsel %vm712, %v5063, 0.0
    %5065 = vadd.xlane.f32.xlu0 %v5064
    %v5066 = vpop.xlane.xlu0 %5065
    %v5067 = vrot.slane %v5066, 4
    %v5068 = vadd.f32 %v5066, %v5067
    %v5069 = vrot.slane %v5068, 2
    %v5070 = vadd.f32 %v5068, %v5069
    %v5071 = vrot.slane %v5070, 1
    %v5072 = vadd.f32 %v5070, %v5071
    %s5073 = vtos %v5072
    %s5074 = sadd.f32 %s5073, 1e-30
    %v5075 = vstv %s5074
    %v5076 = vrsqrt.pop %v5075
    %v5077 = vmul.f32 %v5076, %v5075
    %v5078 = vmul.f32 %v5077, %v5076
    %v5079 = vmul.f32 0.5, %v5078
    %v5080 = vsub.f32 1.5, %v5079
    %v5081 = vmul.f32 %v5076, %v5080
    %vm5082 = vweird.f32 %v5075
    %vm5083 = vweird.f32 %v5076
    %vm5084 = vmor %vm5082, %vm5083
    %v5085 = vsel %vm5084, %v5076, %v5081
    %s5086 = vtos %v5085
    %v5087 = vstv %s5086
    %v5088 = vmul.f32 %v5061, %v5087
    %v5089 = vsub.f32 %v5088, %v4367
    %s5090 = scalar_select %p4380, 1, 0
    %v5091 = vstv %s5090
    %vm5092 = vcmp.eq.s32.totalorder %v5091, 1
    %v5093 = vsel %vm5092, %v4367, %v5088
    %v5094 = vmul.f32 %v5089, %v5089
    %v5095 = vsel %vm712, %v5094, 0.0
    %5096 = vadd.xlane.f32.xlu0 %v5095
    %v5097 = vpop.xlane.xlu0 %5096
    %v5098 = vrot.slane %v5097, 4
    %v5099 = vadd.f32 %v5097, %v5098
    %v5100 = vrot.slane %v5099, 2
    %v5101 = vadd.f32 %v5099, %v5100
    %v5102 = vrot.slane %v5101, 1
    %v5103 = vadd.f32 %v5101, %v5102
    %s5104 = vtos %v5103
    %p5105 = scmp.lt.f32.partialorder %s5104, 1e-12
    %p5106 = por %p4380, %p5105
    %v5107 = vand.u32 %v27, 4294901760
    %5108 = vmatpush.xpose.msra.mxu0 %v5107
    %v5109 = vand.u32 %v26, 4294901760
    %5110 = vmatpush.xpose.msra.mxu0 %v5109
    %v5111 = vand.u32 %v25, 4294901760
    %5112 = vmatpush.xpose.msra.mxu0 %v5111
    %v5113 = vand.u32 %v24, 4294901760
    %5114 = vmatpush.xpose.msra.mxu0 %v5113
    %v5115 = vand.u32 %v23, 4294901760
    %5116 = vmatpush.xpose.msra.mxu0 %v5115
    %v5117 = vand.u32 %v22, 4294901760
    %5118 = vmatpush.xpose.msra.mxu0 %v5117
    %v5119 = vand.u32 %v21, 4294901760
    %5120 = vmatpush.xpose.msra.mxu0 %v5119
    %v5121 = vand.u32 %v20, 4294901760
    %5122 = vmatpush.xpose.msra.mxu0 %v5121
    %v5123 = vand.u32 %v19, 4294901760
    %5124 = vmatpush.xpose.msra.mxu0 %v5123
    %v5125 = vand.u32 %v18, 4294901760
    %5126 = vmatpush.xpose.msra.mxu0 %v5125
    %v5127 = vand.u32 %v17, 4294901760
    %5128 = vmatpush.xpose.msra.mxu0 %v5127
    %v5129 = vand.u32 %v16, 4294901760
    %5130 = vmatpush.xpose.msra.mxu0 %v5129
    %v5131 = vand.u32 %v15, 4294901760
    %5132 = vmatpush.xpose.msra.mxu0 %v5131
    %v5133 = vand.u32 %v14, 4294901760
    %5134 = vmatpush.xpose.msra.mxu0 %v5133
    %v5135 = vand.u32 %v13, 4294901760
    %5136 = vmatpush.xpose.msra.mxu0 %v5135
    %v5137 = vand.u32 %v12, 4294901760
    %5138 = vmatpush.xpose.msra.mxu0 %v5137
    %v5139 = vand.u32 %v5093, 4294901760
    %v5140 = vsub.f32 %v5093, %v5139
    %v5141 = vand.u32 %v5140, 4294901760
    %v5142 = vsub.f32 %v5140, %v5141
    %v5143 = vand.u32 %v5142, 4294901760
    %5144 = vmatmul.f32.gmra.mxu0 %v5143
    %v5145 = vpop.f32.mrf.mxu0
    %v5146 = vadd.f32 0.0, %v5145
    %5147 = vdwg.mxu0
    %v5148 = vand.u32 %v27, 4294901760
    %v5149 = vsub.f32 %v27, %v5148
    %v5150 = vand.u32 %v5149, 4294901760
    %v5151 = vsub.f32 %v5149, %v5150
    %v5152 = vand.u32 %v5151, 4294901760
    %5153 = vmatpush.xpose.msra.mxu0 %v5152
    %v5154 = vand.u32 %v26, 4294901760
    %v5155 = vsub.f32 %v26, %v5154
    %v5156 = vand.u32 %v5155, 4294901760
    %v5157 = vsub.f32 %v5155, %v5156
    %v5158 = vand.u32 %v5157, 4294901760
    %5159 = vmatpush.xpose.msra.mxu0 %v5158
    %v5160 = vand.u32 %v25, 4294901760
    %v5161 = vsub.f32 %v25, %v5160
    %v5162 = vand.u32 %v5161, 4294901760
    %v5163 = vsub.f32 %v5161, %v5162
    %v5164 = vand.u32 %v5163, 4294901760
    %5165 = vmatpush.xpose.msra.mxu0 %v5164
    %v5166 = vand.u32 %v24, 4294901760
    %v5167 = vsub.f32 %v24, %v5166
    %v5168 = vand.u32 %v5167, 4294901760
    %v5169 = vsub.f32 %v5167, %v5168
    %v5170 = vand.u32 %v5169, 4294901760
    %5171 = vmatpush.xpose.msra.mxu0 %v5170
    %v5172 = vand.u32 %v23, 4294901760
    %v5173 = vsub.f32 %v23, %v5172
    %v5174 = vand.u32 %v5173, 4294901760
    %v5175 = vsub.f32 %v5173, %v5174
    %v5176 = vand.u32 %v5175, 4294901760
    %5177 = vmatpush.xpose.msra.mxu0 %v5176
    %v5178 = vand.u32 %v22, 4294901760
    %v5179 = vsub.f32 %v22, %v5178
    %v5180 = vand.u32 %v5179, 4294901760
    %v5181 = vsub.f32 %v5179, %v5180
    %v5182 = vand.u32 %v5181, 4294901760
    %5183 = vmatpush.xpose.msra.mxu0 %v5182
    %v5184 = vand.u32 %v21, 4294901760
    %v5185 = vsub.f32 %v21, %v5184
    %v5186 = vand.u32 %v5185, 4294901760
    %v5187 = vsub.f32 %v5185, %v5186
    %v5188 = vand.u32 %v5187, 4294901760
    %5189 = vmatpush.xpose.msra.mxu0 %v5188
    %v5190 = vand.u32 %v20, 4294901760
    %v5191 = vsub.f32 %v20, %v5190
    %v5192 = vand.u32 %v5191, 4294901760
    %v5193 = vsub.f32 %v5191, %v5192
    %v5194 = vand.u32 %v5193, 4294901760
    %5195 = vmatpush.xpose.msra.mxu0 %v5194
    %v5196 = vand.u32 %v19, 4294901760
    %v5197 = vsub.f32 %v19, %v5196
    %v5198 = vand.u32 %v5197, 4294901760
    %v5199 = vsub.f32 %v5197, %v5198
    %v5200 = vand.u32 %v5199, 4294901760
    %5201 = vmatpush.xpose.msra.mxu0 %v5200
    %v5202 = vand.u32 %v18, 4294901760
    %v5203 = vsub.f32 %v18, %v5202
    %v5204 = vand.u32 %v5203, 4294901760
    %v5205 = vsub.f32 %v5203, %v5204
    %v5206 = vand.u32 %v5205, 4294901760
    %5207 = vmatpush.xpose.msra.mxu0 %v5206
    %v5208 = vand.u32 %v17, 4294901760
    %v5209 = vsub.f32 %v17, %v5208
    %v5210 = vand.u32 %v5209, 4294901760
    %v5211 = vsub.f32 %v5209, %v5210
    %v5212 = vand.u32 %v5211, 4294901760
    %5213 = vmatpush.xpose.msra.mxu0 %v5212
    %v5214 = vand.u32 %v16, 4294901760
    %v5215 = vsub.f32 %v16, %v5214
    %v5216 = vand.u32 %v5215, 4294901760
    %v5217 = vsub.f32 %v5215, %v5216
    %v5218 = vand.u32 %v5217, 4294901760
    %5219 = vmatpush.xpose.msra.mxu0 %v5218
    %v5220 = vand.u32 %v15, 4294901760
    %v5221 = vsub.f32 %v15, %v5220
    %v5222 = vand.u32 %v5221, 4294901760
    %v5223 = vsub.f32 %v5221, %v5222
    %v5224 = vand.u32 %v5223, 4294901760
    %5225 = vmatpush.xpose.msra.mxu0 %v5224
    %v5226 = vand.u32 %v14, 4294901760
    %v5227 = vsub.f32 %v14, %v5226
    %v5228 = vand.u32 %v5227, 4294901760
    %v5229 = vsub.f32 %v5227, %v5228
    %v5230 = vand.u32 %v5229, 4294901760
    %5231 = vmatpush.xpose.msra.mxu0 %v5230
    %v5232 = vand.u32 %v13, 4294901760
    %v5233 = vsub.f32 %v13, %v5232
    %v5234 = vand.u32 %v5233, 4294901760
    %v5235 = vsub.f32 %v5233, %v5234
    %v5236 = vand.u32 %v5235, 4294901760
    %5237 = vmatpush.xpose.msra.mxu0 %v5236
    %v5238 = vand.u32 %v12, 4294901760
    %v5239 = vsub.f32 %v12, %v5238
    %v5240 = vand.u32 %v5239, 4294901760
    %v5241 = vsub.f32 %v5239, %v5240
    %v5242 = vand.u32 %v5241, 4294901760
    %5243 = vmatpush.xpose.msra.mxu0 %v5242
    %v5244 = vand.u32 %v5093, 4294901760
    %5245 = vmatmul.f32.gmra.mxu0 %v5244
    %v5246 = vpop.f32.mrf.mxu0
    %v5247 = vadd.f32 %v5146, %v5246
    %5248 = vdwg.mxu0
    %v5249 = vand.u32 %v27, 4294901760
    %v5250 = vsub.f32 %v27, %v5249
    %5251 = vmatpush.xpose.msra.mxu0 %v5250
    %v5252 = vand.u32 %v26, 4294901760
    %v5253 = vsub.f32 %v26, %v5252
    %5254 = vmatpush.xpose.msra.mxu0 %v5253
    %v5255 = vand.u32 %v25, 4294901760
    %v5256 = vsub.f32 %v25, %v5255
    %5257 = vmatpush.xpose.msra.mxu0 %v5256
    %v5258 = vand.u32 %v24, 4294901760
    %v5259 = vsub.f32 %v24, %v5258
    %5260 = vmatpush.xpose.msra.mxu0 %v5259
    %v5261 = vand.u32 %v23, 4294901760
    %v5262 = vsub.f32 %v23, %v5261
    %5263 = vmatpush.xpose.msra.mxu0 %v5262
    %v5264 = vand.u32 %v22, 4294901760
    %v5265 = vsub.f32 %v22, %v5264
    %5266 = vmatpush.xpose.msra.mxu0 %v5265
    %v5267 = vand.u32 %v21, 4294901760
    %v5268 = vsub.f32 %v21, %v5267
    %5269 = vmatpush.xpose.msra.mxu0 %v5268
    %v5270 = vand.u32 %v20, 4294901760
    %v5271 = vsub.f32 %v20, %v5270
    %5272 = vmatpush.xpose.msra.mxu0 %v5271
    %v5273 = vand.u32 %v19, 4294901760
    %v5274 = vsub.f32 %v19, %v5273
    %5275 = vmatpush.xpose.msra.mxu0 %v5274
    %v5276 = vand.u32 %v18, 4294901760
    %v5277 = vsub.f32 %v18, %v5276
    %5278 = vmatpush.xpose.msra.mxu0 %v5277
    %v5279 = vand.u32 %v17, 4294901760
    %v5280 = vsub.f32 %v17, %v5279
    %5281 = vmatpush.xpose.msra.mxu0 %v5280
    %v5282 = vand.u32 %v16, 4294901760
    %v5283 = vsub.f32 %v16, %v5282
    %5284 = vmatpush.xpose.msra.mxu0 %v5283
    %v5285 = vand.u32 %v15, 4294901760
    %v5286 = vsub.f32 %v15, %v5285
    %5287 = vmatpush.xpose.msra.mxu0 %v5286
    %v5288 = vand.u32 %v14, 4294901760
    %v5289 = vsub.f32 %v14, %v5288
    %5290 = vmatpush.xpose.msra.mxu0 %v5289
    %v5291 = vand.u32 %v13, 4294901760
    %v5292 = vsub.f32 %v13, %v5291
    %5293 = vmatpush.xpose.msra.mxu0 %v5292
    %v5294 = vand.u32 %v12, 4294901760
    %v5295 = vsub.f32 %v12, %v5294
    %5296 = vmatpush.xpose.msra.mxu0 %v5295
    %v5297 = vand.u32 %v5093, 4294901760
    %v5298 = vsub.f32 %v5093, %v5297
    %5299 = vmatmul.f32.gmra.mxu0 %v5298
    %v5300 = vpop.f32.mrf.mxu0
    %v5301 = vadd.f32 %v5247, %v5300
    %5302 = vdwg.mxu0
    %v5303 = vand.u32 %v27, 4294901760
    %5304 = vmatpush.xpose.msra.mxu0 %v5303
    %v5305 = vand.u32 %v26, 4294901760
    %5306 = vmatpush.xpose.msra.mxu0 %v5305
    %v5307 = vand.u32 %v25, 4294901760
    %5308 = vmatpush.xpose.msra.mxu0 %v5307
    %v5309 = vand.u32 %v24, 4294901760
    %5310 = vmatpush.xpose.msra.mxu0 %v5309
    %v5311 = vand.u32 %v23, 4294901760
    %5312 = vmatpush.xpose.msra.mxu0 %v5311
    %v5313 = vand.u32 %v22, 4294901760
    %5314 = vmatpush.xpose.msra.mxu0 %v5313
    %v5315 = vand.u32 %v21, 4294901760
    %5316 = vmatpush.xpose.msra.mxu0 %v5315
    %v5317 = vand.u32 %v20, 4294901760
    %5318 = vmatpush.xpose.msra.mxu0 %v5317
    %v5319 = vand.u32 %v19, 4294901760
    %5320 = vmatpush.xpose.msra.mxu0 %v5319
    %v5321 = vand.u32 %v18, 4294901760
    %5322 = vmatpush.xpose.msra.mxu0 %v5321
    %v5323 = vand.u32 %v17, 4294901760
    %5324 = vmatpush.xpose.msra.mxu0 %v5323
    %v5325 = vand.u32 %v16, 4294901760
    %5326 = vmatpush.xpose.msra.mxu0 %v5325
    %v5327 = vand.u32 %v15, 4294901760
    %5328 = vmatpush.xpose.msra.mxu0 %v5327
    %v5329 = vand.u32 %v14, 4294901760
    %5330 = vmatpush.xpose.msra.mxu0 %v5329
    %v5331 = vand.u32 %v13, 4294901760
    %5332 = vmatpush.xpose.msra.mxu0 %v5331
    %v5333 = vand.u32 %v12, 4294901760
    %5334 = vmatpush.xpose.msra.mxu0 %v5333
    %v5335 = vand.u32 %v5093, 4294901760
    %v5336 = vsub.f32 %v5093, %v5335
    %v5337 = vand.u32 %v5336, 4294901760
    %5338 = vmatmul.f32.gmra.mxu0 %v5337
    %v5339 = vpop.f32.mrf.mxu0
    %v5340 = vadd.f32 %v5301, %v5339
    %5341 = vdwg.mxu0
    %v5342 = vand.u32 %v27, 4294901760
    %v5343 = vsub.f32 %v27, %v5342
    %v5344 = vand.u32 %v5343, 4294901760
    %5345 = vmatpush.xpose.msra.mxu0 %v5344
    %v5346 = vand.u32 %v26, 4294901760
    %v5347 = vsub.f32 %v26, %v5346
    %v5348 = vand.u32 %v5347, 4294901760
    %5349 = vmatpush.xpose.msra.mxu0 %v5348
    %v5350 = vand.u32 %v25, 4294901760
    %v5351 = vsub.f32 %v25, %v5350
    %v5352 = vand.u32 %v5351, 4294901760
    %5353 = vmatpush.xpose.msra.mxu0 %v5352
    %v5354 = vand.u32 %v24, 4294901760
    %v5355 = vsub.f32 %v24, %v5354
    %v5356 = vand.u32 %v5355, 4294901760
    %5357 = vmatpush.xpose.msra.mxu0 %v5356
    %v5358 = vand.u32 %v23, 4294901760
    %v5359 = vsub.f32 %v23, %v5358
    %v5360 = vand.u32 %v5359, 4294901760
    %5361 = vmatpush.xpose.msra.mxu0 %v5360
    %v5362 = vand.u32 %v22, 4294901760
    %v5363 = vsub.f32 %v22, %v5362
    %v5364 = vand.u32 %v5363, 4294901760
    %5365 = vmatpush.xpose.msra.mxu0 %v5364
    %v5366 = vand.u32 %v21, 4294901760
    %v5367 = vsub.f32 %v21, %v5366
    %v5368 = vand.u32 %v5367, 4294901760
    %5369 = vmatpush.xpose.msra.mxu0 %v5368
    %v5370 = vand.u32 %v20, 4294901760
    %v5371 = vsub.f32 %v20, %v5370
    %v5372 = vand.u32 %v5371, 4294901760
    %5373 = vmatpush.xpose.msra.mxu0 %v5372
    %v5374 = vand.u32 %v19, 4294901760
    %v5375 = vsub.f32 %v19, %v5374
    %v5376 = vand.u32 %v5375, 4294901760
    %5377 = vmatpush.xpose.msra.mxu0 %v5376
    %v5378 = vand.u32 %v18, 4294901760
    %v5379 = vsub.f32 %v18, %v5378
    %v5380 = vand.u32 %v5379, 4294901760
    %5381 = vmatpush.xpose.msra.mxu0 %v5380
    %v5382 = vand.u32 %v17, 4294901760
    %v5383 = vsub.f32 %v17, %v5382
    %v5384 = vand.u32 %v5383, 4294901760
    %5385 = vmatpush.xpose.msra.mxu0 %v5384
    %v5386 = vand.u32 %v16, 4294901760
    %v5387 = vsub.f32 %v16, %v5386
    %v5388 = vand.u32 %v5387, 4294901760
    %5389 = vmatpush.xpose.msra.mxu0 %v5388
    %v5390 = vand.u32 %v15, 4294901760
    %v5391 = vsub.f32 %v15, %v5390
    %v5392 = vand.u32 %v5391, 4294901760
    %5393 = vmatpush.xpose.msra.mxu0 %v5392
    %v5394 = vand.u32 %v14, 4294901760
    %v5395 = vsub.f32 %v14, %v5394
    %v5396 = vand.u32 %v5395, 4294901760
    %5397 = vmatpush.xpose.msra.mxu0 %v5396
    %v5398 = vand.u32 %v13, 4294901760
    %v5399 = vsub.f32 %v13, %v5398
    %v5400 = vand.u32 %v5399, 4294901760
    %5401 = vmatpush.xpose.msra.mxu0 %v5400
    %v5402 = vand.u32 %v12, 4294901760
    %v5403 = vsub.f32 %v12, %v5402
    %v5404 = vand.u32 %v5403, 4294901760
    %5405 = vmatpush.xpose.msra.mxu0 %v5404
    %v5406 = vand.u32 %v5093, 4294901760
    %5407 = vmatmul.f32.gmra.mxu0 %v5406
    %v5408 = vpop.f32.mrf.mxu0
    %v5409 = vadd.f32 %v5340, %v5408
    %5410 = vdwg.mxu0
    %v5411 = vand.u32 %v27, 4294901760
    %5412 = vmatpush.xpose.msra.mxu0 %v5411
    %v5413 = vand.u32 %v26, 4294901760
    %5414 = vmatpush.xpose.msra.mxu0 %v5413
    %v5415 = vand.u32 %v25, 4294901760
    %5416 = vmatpush.xpose.msra.mxu0 %v5415
    %v5417 = vand.u32 %v24, 4294901760
    %5418 = vmatpush.xpose.msra.mxu0 %v5417
    %v5419 = vand.u32 %v23, 4294901760
    %5420 = vmatpush.xpose.msra.mxu0 %v5419
    %v5421 = vand.u32 %v22, 4294901760
    %5422 = vmatpush.xpose.msra.mxu0 %v5421
    %v5423 = vand.u32 %v21, 4294901760
    %5424 = vmatpush.xpose.msra.mxu0 %v5423
    %v5425 = vand.u32 %v20, 4294901760
    %5426 = vmatpush.xpose.msra.mxu0 %v5425
    %v5427 = vand.u32 %v19, 4294901760
    %5428 = vmatpush.xpose.msra.mxu0 %v5427
    %v5429 = vand.u32 %v18, 4294901760
    %5430 = vmatpush.xpose.msra.mxu0 %v5429
    %v5431 = vand.u32 %v17, 4294901760
    %5432 = vmatpush.xpose.msra.mxu0 %v5431
    %v5433 = vand.u32 %v16, 4294901760
    %5434 = vmatpush.xpose.msra.mxu0 %v5433
    %v5435 = vand.u32 %v15, 4294901760
    %5436 = vmatpush.xpose.msra.mxu0 %v5435
    %v5437 = vand.u32 %v14, 4294901760
    %5438 = vmatpush.xpose.msra.mxu0 %v5437
    %v5439 = vand.u32 %v13, 4294901760
    %5440 = vmatpush.xpose.msra.mxu0 %v5439
    %v5441 = vand.u32 %v12, 4294901760
    %5442 = vmatpush.xpose.msra.mxu0 %v5441
    %v5443 = vand.u32 %v5093, 4294901760
    %5444 = vmatmul.f32.gmra.mxu0 %v5443
    %v5445 = vpop.f32.mrf.mxu0
    %v5446 = vadd.f32 %v5409, %v5445
    %5447 = vdwg.mxu0
    %v5448 = vand.u32 %v27, 4294901760
    %5449 = vmatpush.msra.mxu0 %v5448
    %v5450 = vand.u32 %v26, 4294901760
    %5451 = vmatpush.msra.mxu0 %v5450
    %v5452 = vand.u32 %v25, 4294901760
    %5453 = vmatpush.msra.mxu0 %v5452
    %v5454 = vand.u32 %v24, 4294901760
    %5455 = vmatpush.msra.mxu0 %v5454
    %v5456 = vand.u32 %v23, 4294901760
    %5457 = vmatpush.msra.mxu0 %v5456
    %v5458 = vand.u32 %v22, 4294901760
    %5459 = vmatpush.msra.mxu0 %v5458
    %v5460 = vand.u32 %v21, 4294901760
    %5461 = vmatpush.msra.mxu0 %v5460
    %v5462 = vand.u32 %v20, 4294901760
    %5463 = vmatpush.msra.mxu0 %v5462
    %v5464 = vand.u32 %v19, 4294901760
    %5465 = vmatpush.msra.mxu0 %v5464
    %v5466 = vand.u32 %v18, 4294901760
    %5467 = vmatpush.msra.mxu0 %v5466
    %v5468 = vand.u32 %v17, 4294901760
    %5469 = vmatpush.msra.mxu0 %v5468
    %v5470 = vand.u32 %v16, 4294901760
    %5471 = vmatpush.msra.mxu0 %v5470
    %v5472 = vand.u32 %v15, 4294901760
    %5473 = vmatpush.msra.mxu0 %v5472
    %v5474 = vand.u32 %v14, 4294901760
    %5475 = vmatpush.msra.mxu0 %v5474
    %v5476 = vand.u32 %v13, 4294901760
    %5477 = vmatpush.msra.mxu0 %v5476
    %v5478 = vand.u32 %v12, 4294901760
    %5479 = vmatpush.msra.mxu0 %v5478
    %v5480 = vand.u32 %v5446, 4294901760
    %v5481 = vsub.f32 %v5446, %v5480
    %v5482 = vand.u32 %v5481, 4294901760
    %v5483 = vsub.f32 %v5481, %v5482
    %v5484 = vand.u32 %v5483, 4294901760
    %5485 = vmatmul.f32.gmra.mxu0 %v5484
    %v5486 = vpop.f32.mrf.mxu0
    %v5487 = vadd.f32 0.0, %v5486
    %5488 = vdwg.mxu0
    %v5489 = vand.u32 %v27, 4294901760
    %v5490 = vsub.f32 %v27, %v5489
    %v5491 = vand.u32 %v5490, 4294901760
    %v5492 = vsub.f32 %v5490, %v5491
    %v5493 = vand.u32 %v5492, 4294901760
    %5494 = vmatpush.msra.mxu0 %v5493
    %v5495 = vand.u32 %v26, 4294901760
    %v5496 = vsub.f32 %v26, %v5495
    %v5497 = vand.u32 %v5496, 4294901760
    %v5498 = vsub.f32 %v5496, %v5497
    %v5499 = vand.u32 %v5498, 4294901760
    %5500 = vmatpush.msra.mxu0 %v5499
    %v5501 = vand.u32 %v25, 4294901760
    %v5502 = vsub.f32 %v25, %v5501
    %v5503 = vand.u32 %v5502, 4294901760
    %v5504 = vsub.f32 %v5502, %v5503
    %v5505 = vand.u32 %v5504, 4294901760
    %5506 = vmatpush.msra.mxu0 %v5505
    %v5507 = vand.u32 %v24, 4294901760
    %v5508 = vsub.f32 %v24, %v5507
    %v5509 = vand.u32 %v5508, 4294901760
    %v5510 = vsub.f32 %v5508, %v5509
    %v5511 = vand.u32 %v5510, 4294901760
    %5512 = vmatpush.msra.mxu0 %v5511
    %v5513 = vand.u32 %v23, 4294901760
    %v5514 = vsub.f32 %v23, %v5513
    %v5515 = vand.u32 %v5514, 4294901760
    %v5516 = vsub.f32 %v5514, %v5515
    %v5517 = vand.u32 %v5516, 4294901760
    %5518 = vmatpush.msra.mxu0 %v5517
    %v5519 = vand.u32 %v22, 4294901760
    %v5520 = vsub.f32 %v22, %v5519
    %v5521 = vand.u32 %v5520, 4294901760
    %v5522 = vsub.f32 %v5520, %v5521
    %v5523 = vand.u32 %v5522, 4294901760
    %5524 = vmatpush.msra.mxu0 %v5523
    %v5525 = vand.u32 %v21, 4294901760
    %v5526 = vsub.f32 %v21, %v5525
    %v5527 = vand.u32 %v5526, 4294901760
    %v5528 = vsub.f32 %v5526, %v5527
    %v5529 = vand.u32 %v5528, 4294901760
    %5530 = vmatpush.msra.mxu0 %v5529
    %v5531 = vand.u32 %v20, 4294901760
    %v5532 = vsub.f32 %v20, %v5531
    %v5533 = vand.u32 %v5532, 4294901760
    %v5534 = vsub.f32 %v5532, %v5533
    %v5535 = vand.u32 %v5534, 4294901760
    %5536 = vmatpush.msra.mxu0 %v5535
    %v5537 = vand.u32 %v19, 4294901760
    %v5538 = vsub.f32 %v19, %v5537
    %v5539 = vand.u32 %v5538, 4294901760
    %v5540 = vsub.f32 %v5538, %v5539
    %v5541 = vand.u32 %v5540, 4294901760
    %5542 = vmatpush.msra.mxu0 %v5541
    %v5543 = vand.u32 %v18, 4294901760
    %v5544 = vsub.f32 %v18, %v5543
    %v5545 = vand.u32 %v5544, 4294901760
    %v5546 = vsub.f32 %v5544, %v5545
    %v5547 = vand.u32 %v5546, 4294901760
    %5548 = vmatpush.msra.mxu0 %v5547
    %v5549 = vand.u32 %v17, 4294901760
    %v5550 = vsub.f32 %v17, %v5549
    %v5551 = vand.u32 %v5550, 4294901760
    %v5552 = vsub.f32 %v5550, %v5551
    %v5553 = vand.u32 %v5552, 4294901760
    %5554 = vmatpush.msra.mxu0 %v5553
    %v5555 = vand.u32 %v16, 4294901760
    %v5556 = vsub.f32 %v16, %v5555
    %v5557 = vand.u32 %v5556, 4294901760
    %v5558 = vsub.f32 %v5556, %v5557
    %v5559 = vand.u32 %v5558, 4294901760
    %5560 = vmatpush.msra.mxu0 %v5559
    %v5561 = vand.u32 %v15, 4294901760
    %v5562 = vsub.f32 %v15, %v5561
    %v5563 = vand.u32 %v5562, 4294901760
    %v5564 = vsub.f32 %v5562, %v5563
    %v5565 = vand.u32 %v5564, 4294901760
    %5566 = vmatpush.msra.mxu0 %v5565
    %v5567 = vand.u32 %v14, 4294901760
    %v5568 = vsub.f32 %v14, %v5567
    %v5569 = vand.u32 %v5568, 4294901760
    %v5570 = vsub.f32 %v5568, %v5569
    %v5571 = vand.u32 %v5570, 4294901760
    %5572 = vmatpush.msra.mxu0 %v5571
    %v5573 = vand.u32 %v13, 4294901760
    %v5574 = vsub.f32 %v13, %v5573
    %v5575 = vand.u32 %v5574, 4294901760
    %v5576 = vsub.f32 %v5574, %v5575
    %v5577 = vand.u32 %v5576, 4294901760
    %5578 = vmatpush.msra.mxu0 %v5577
    %v5579 = vand.u32 %v12, 4294901760
    %v5580 = vsub.f32 %v12, %v5579
    %v5581 = vand.u32 %v5580, 4294901760
    %v5582 = vsub.f32 %v5580, %v5581
    %v5583 = vand.u32 %v5582, 4294901760
    %5584 = vmatpush.msra.mxu0 %v5583
    %v5585 = vand.u32 %v5446, 4294901760
    %5586 = vmatmul.f32.gmra.mxu0 %v5585
    %v5587 = vpop.f32.mrf.mxu0
    %v5588 = vadd.f32 %v5487, %v5587
    %5589 = vdwg.mxu0
    %v5590 = vand.u32 %v27, 4294901760
    %v5591 = vsub.f32 %v27, %v5590
    %5592 = vmatpush.msra.mxu0 %v5591
    %v5593 = vand.u32 %v26, 4294901760
    %v5594 = vsub.f32 %v26, %v5593
    %5595 = vmatpush.msra.mxu0 %v5594
    %v5596 = vand.u32 %v25, 4294901760
    %v5597 = vsub.f32 %v25, %v5596
    %5598 = vmatpush.msra.mxu0 %v5597
    %v5599 = vand.u32 %v24, 4294901760
    %v5600 = vsub.f32 %v24, %v5599
    %5601 = vmatpush.msra.mxu0 %v5600
    %v5602 = vand.u32 %v23, 4294901760
    %v5603 = vsub.f32 %v23, %v5602
    %5604 = vmatpush.msra.mxu0 %v5603
    %v5605 = vand.u32 %v22, 4294901760
    %v5606 = vsub.f32 %v22, %v5605
    %5607 = vmatpush.msra.mxu0 %v5606
    %v5608 = vand.u32 %v21, 4294901760
    %v5609 = vsub.f32 %v21, %v5608
    %5610 = vmatpush.msra.mxu0 %v5609
    %v5611 = vand.u32 %v20, 4294901760
    %v5612 = vsub.f32 %v20, %v5611
    %5613 = vmatpush.msra.mxu0 %v5612
    %v5614 = vand.u32 %v19, 4294901760
    %v5615 = vsub.f32 %v19, %v5614
    %5616 = vmatpush.msra.mxu0 %v5615
    %v5617 = vand.u32 %v18, 4294901760
    %v5618 = vsub.f32 %v18, %v5617
    %5619 = vmatpush.msra.mxu0 %v5618
    %v5620 = vand.u32 %v17, 4294901760
    %v5621 = vsub.f32 %v17, %v5620
    %5622 = vmatpush.msra.mxu0 %v5621
    %v5623 = vand.u32 %v16, 4294901760
    %v5624 = vsub.f32 %v16, %v5623
    %5625 = vmatpush.msra.mxu0 %v5624
    %v5626 = vand.u32 %v15, 4294901760
    %v5627 = vsub.f32 %v15, %v5626
    %5628 = vmatpush.msra.mxu0 %v5627
    %v5629 = vand.u32 %v14, 4294901760
    %v5630 = vsub.f32 %v14, %v5629
    %5631 = vmatpush.msra.mxu0 %v5630
    %v5632 = vand.u32 %v13, 4294901760
    %v5633 = vsub.f32 %v13, %v5632
    %5634 = vmatpush.msra.mxu0 %v5633
    %v5635 = vand.u32 %v12, 4294901760
    %v5636 = vsub.f32 %v12, %v5635
    %5637 = vmatpush.msra.mxu0 %v5636
    %v5638 = vand.u32 %v5446, 4294901760
    %v5639 = vsub.f32 %v5446, %v5638
    %5640 = vmatmul.f32.gmra.mxu0 %v5639
    %v5641 = vpop.f32.mrf.mxu0
    %v5642 = vadd.f32 %v5588, %v5641
    %5643 = vdwg.mxu0
    %v5644 = vand.u32 %v27, 4294901760
    %5645 = vmatpush.msra.mxu0 %v5644
    %v5646 = vand.u32 %v26, 4294901760
    %5647 = vmatpush.msra.mxu0 %v5646
    %v5648 = vand.u32 %v25, 4294901760
    %5649 = vmatpush.msra.mxu0 %v5648
    %v5650 = vand.u32 %v24, 4294901760
    %5651 = vmatpush.msra.mxu0 %v5650
    %v5652 = vand.u32 %v23, 4294901760
    %5653 = vmatpush.msra.mxu0 %v5652
    %v5654 = vand.u32 %v22, 4294901760
    %5655 = vmatpush.msra.mxu0 %v5654
    %v5656 = vand.u32 %v21, 4294901760
    %5657 = vmatpush.msra.mxu0 %v5656
    %v5658 = vand.u32 %v20, 4294901760
    %5659 = vmatpush.msra.mxu0 %v5658
    %v5660 = vand.u32 %v19, 4294901760
    %5661 = vmatpush.msra.mxu0 %v5660
    %v5662 = vand.u32 %v18, 4294901760
    %5663 = vmatpush.msra.mxu0 %v5662
    %v5664 = vand.u32 %v17, 4294901760
    %5665 = vmatpush.msra.mxu0 %v5664
    %v5666 = vand.u32 %v16, 4294901760
    %5667 = vmatpush.msra.mxu0 %v5666
    %v5668 = vand.u32 %v15, 4294901760
    %5669 = vmatpush.msra.mxu0 %v5668
    %v5670 = vand.u32 %v14, 4294901760
    %5671 = vmatpush.msra.mxu0 %v5670
    %v5672 = vand.u32 %v13, 4294901760
    %5673 = vmatpush.msra.mxu0 %v5672
    %v5674 = vand.u32 %v12, 4294901760
    %5675 = vmatpush.msra.mxu0 %v5674
    %v5676 = vand.u32 %v5446, 4294901760
    %v5677 = vsub.f32 %v5446, %v5676
    %v5678 = vand.u32 %v5677, 4294901760
    %5679 = vmatmul.f32.gmra.mxu0 %v5678
    %v5680 = vpop.f32.mrf.mxu0
    %v5681 = vadd.f32 %v5642, %v5680
    %5682 = vdwg.mxu0
    %v5683 = vand.u32 %v27, 4294901760
    %v5684 = vsub.f32 %v27, %v5683
    %v5685 = vand.u32 %v5684, 4294901760
    %5686 = vmatpush.msra.mxu0 %v5685
    %v5687 = vand.u32 %v26, 4294901760
    %v5688 = vsub.f32 %v26, %v5687
    %v5689 = vand.u32 %v5688, 4294901760
    %5690 = vmatpush.msra.mxu0 %v5689
    %v5691 = vand.u32 %v25, 4294901760
    %v5692 = vsub.f32 %v25, %v5691
    %v5693 = vand.u32 %v5692, 4294901760
    %5694 = vmatpush.msra.mxu0 %v5693
    %v5695 = vand.u32 %v24, 4294901760
    %v5696 = vsub.f32 %v24, %v5695
    %v5697 = vand.u32 %v5696, 4294901760
    %5698 = vmatpush.msra.mxu0 %v5697
    %v5699 = vand.u32 %v23, 4294901760
    %v5700 = vsub.f32 %v23, %v5699
    %v5701 = vand.u32 %v5700, 4294901760
    %5702 = vmatpush.msra.mxu0 %v5701
    %v5703 = vand.u32 %v22, 4294901760
    %v5704 = vsub.f32 %v22, %v5703
    %v5705 = vand.u32 %v5704, 4294901760
    %5706 = vmatpush.msra.mxu0 %v5705
    %v5707 = vand.u32 %v21, 4294901760
    %v5708 = vsub.f32 %v21, %v5707
    %v5709 = vand.u32 %v5708, 4294901760
    %5710 = vmatpush.msra.mxu0 %v5709
    %v5711 = vand.u32 %v20, 4294901760
    %v5712 = vsub.f32 %v20, %v5711
    %v5713 = vand.u32 %v5712, 4294901760
    %5714 = vmatpush.msra.mxu0 %v5713
    %v5715 = vand.u32 %v19, 4294901760
    %v5716 = vsub.f32 %v19, %v5715
    %v5717 = vand.u32 %v5716, 4294901760
    %5718 = vmatpush.msra.mxu0 %v5717
    %v5719 = vand.u32 %v18, 4294901760
    %v5720 = vsub.f32 %v18, %v5719
    %v5721 = vand.u32 %v5720, 4294901760
    %5722 = vmatpush.msra.mxu0 %v5721
    %v5723 = vand.u32 %v17, 4294901760
    %v5724 = vsub.f32 %v17, %v5723
    %v5725 = vand.u32 %v5724, 4294901760
    %5726 = vmatpush.msra.mxu0 %v5725
    %v5727 = vand.u32 %v16, 4294901760
    %v5728 = vsub.f32 %v16, %v5727
    %v5729 = vand.u32 %v5728, 4294901760
    %5730 = vmatpush.msra.mxu0 %v5729
    %v5731 = vand.u32 %v15, 4294901760
    %v5732 = vsub.f32 %v15, %v5731
    %v5733 = vand.u32 %v5732, 4294901760
    %5734 = vmatpush.msra.mxu0 %v5733
    %v5735 = vand.u32 %v14, 4294901760
    %v5736 = vsub.f32 %v14, %v5735
    %v5737 = vand.u32 %v5736, 4294901760
    %5738 = vmatpush.msra.mxu0 %v5737
    %v5739 = vand.u32 %v13, 4294901760
    %v5740 = vsub.f32 %v13, %v5739
    %v5741 = vand.u32 %v5740, 4294901760
    %5742 = vmatpush.msra.mxu0 %v5741
    %v5743 = vand.u32 %v12, 4294901760
    %v5744 = vsub.f32 %v12, %v5743
    %v5745 = vand.u32 %v5744, 4294901760
    %5746 = vmatpush.msra.mxu0 %v5745
    %v5747 = vand.u32 %v5446, 4294901760
    %5748 = vmatmul.f32.gmra.mxu0 %v5747
    %v5749 = vpop.f32.mrf.mxu0
    %v5750 = vadd.f32 %v5681, %v5749
    %5751 = vdwg.mxu0
    %v5752 = vand.u32 %v27, 4294901760
    %5753 = vmatpush.msra.mxu0 %v5752
    %v5754 = vand.u32 %v26, 4294901760
    %5755 = vmatpush.msra.mxu0 %v5754
    %v5756 = vand.u32 %v25, 4294901760
    %5757 = vmatpush.msra.mxu0 %v5756
    %v5758 = vand.u32 %v24, 4294901760
    %5759 = vmatpush.msra.mxu0 %v5758
    %v5760 = vand.u32 %v23, 4294901760
    %5761 = vmatpush.msra.mxu0 %v5760
    %v5762 = vand.u32 %v22, 4294901760
    %5763 = vmatpush.msra.mxu0 %v5762
    %v5764 = vand.u32 %v21, 4294901760
    %5765 = vmatpush.msra.mxu0 %v5764
    %v5766 = vand.u32 %v20, 4294901760
    %5767 = vmatpush.msra.mxu0 %v5766
    %v5768 = vand.u32 %v19, 4294901760
    %5769 = vmatpush.msra.mxu0 %v5768
    %v5770 = vand.u32 %v18, 4294901760
    %5771 = vmatpush.msra.mxu0 %v5770
    %v5772 = vand.u32 %v17, 4294901760
    %5773 = vmatpush.msra.mxu0 %v5772
    %v5774 = vand.u32 %v16, 4294901760
    %5775 = vmatpush.msra.mxu0 %v5774
    %v5776 = vand.u32 %v15, 4294901760
    %5777 = vmatpush.msra.mxu0 %v5776
    %v5778 = vand.u32 %v14, 4294901760
    %5779 = vmatpush.msra.mxu0 %v5778
    %v5780 = vand.u32 %v13, 4294901760
    %5781 = vmatpush.msra.mxu0 %v5780
    %v5782 = vand.u32 %v12, 4294901760
    %5783 = vmatpush.msra.mxu0 %v5782
    %v5784 = vand.u32 %v5446, 4294901760
    %5785 = vmatmul.f32.gmra.mxu0 %v5784
    %v5786 = vpop.f32.mrf.mxu0
    %v5787 = vadd.f32 %v5750, %v5786
    %5788 = vdwg.mxu0
    %v5789 = vmul.f32 %v5787, %v5787
    %v5790 = vsel %vm712, %v5789, 0.0
    %5791 = vadd.xlane.f32.xlu0 %v5790
    %v5792 = vpop.xlane.xlu0 %5791
    %v5793 = vrot.slane %v5792, 4
    %v5794 = vadd.f32 %v5792, %v5793
    %v5795 = vrot.slane %v5794, 2
    %v5796 = vadd.f32 %v5794, %v5795
    %v5797 = vrot.slane %v5796, 1
    %v5798 = vadd.f32 %v5796, %v5797
    %s5799 = vtos %v5798
    %s5800 = sadd.f32 %s5799, 1e-30
    %v5801 = vstv %s5800
    %v5802 = vrsqrt.pop %v5801
    %v5803 = vmul.f32 %v5802, %v5801
    %v5804 = vmul.f32 %v5803, %v5802
    %v5805 = vmul.f32 0.5, %v5804
    %v5806 = vsub.f32 1.5, %v5805
    %v5807 = vmul.f32 %v5802, %v5806
    %vm5808 = vweird.f32 %v5801
    %vm5809 = vweird.f32 %v5802
    %vm5810 = vmor %vm5808, %vm5809
    %v5811 = vsel %vm5810, %v5802, %v5807
    %s5812 = vtos %v5811
    %v5813 = vstv %s5812
    %v5814 = vmul.f32 %v5787, %v5813
    %v5815 = vsub.f32 %v5814, %v5093
    %s5816 = scalar_select %p5106, 1, 0
    %v5817 = vstv %s5816
    %vm5818 = vcmp.eq.s32.totalorder %v5817, 1
    %v5819 = vsel %vm5818, %v5093, %v5814
    %v5820 = vmul.f32 %v5815, %v5815
    %v5821 = vsel %vm712, %v5820, 0.0
    %5822 = vadd.xlane.f32.xlu0 %v5821
    %v5823 = vpop.xlane.xlu0 %5822
    %v5824 = vrot.slane %v5823, 4
    %v5825 = vadd.f32 %v5823, %v5824
    %v5826 = vrot.slane %v5825, 2
    %v5827 = vadd.f32 %v5825, %v5826
    %v5828 = vrot.slane %v5827, 1
    %v5829 = vadd.f32 %v5827, %v5828
    %s5830 = vtos %v5829
    %p5831 = scmp.lt.f32.partialorder %s5830, 1e-12
    %p5832 = por %p5106, %p5831
    %v5833 = vand.u32 %v27, 4294901760
    %5834 = vmatpush.xpose.msra.mxu0 %v5833
    %v5835 = vand.u32 %v26, 4294901760
    %5836 = vmatpush.xpose.msra.mxu0 %v5835
    %v5837 = vand.u32 %v25, 4294901760
    %5838 = vmatpush.xpose.msra.mxu0 %v5837
    %v5839 = vand.u32 %v24, 4294901760
    %5840 = vmatpush.xpose.msra.mxu0 %v5839
    %v5841 = vand.u32 %v23, 4294901760
    %5842 = vmatpush.xpose.msra.mxu0 %v5841
    %v5843 = vand.u32 %v22, 4294901760
    %5844 = vmatpush.xpose.msra.mxu0 %v5843
    %v5845 = vand.u32 %v21, 4294901760
    %5846 = vmatpush.xpose.msra.mxu0 %v5845
    %v5847 = vand.u32 %v20, 4294901760
    %5848 = vmatpush.xpose.msra.mxu0 %v5847
    %v5849 = vand.u32 %v19, 4294901760
    %5850 = vmatpush.xpose.msra.mxu0 %v5849
    %v5851 = vand.u32 %v18, 4294901760
    %5852 = vmatpush.xpose.msra.mxu0 %v5851
    %v5853 = vand.u32 %v17, 4294901760
    %5854 = vmatpush.xpose.msra.mxu0 %v5853
    %v5855 = vand.u32 %v16, 4294901760
    %5856 = vmatpush.xpose.msra.mxu0 %v5855
    %v5857 = vand.u32 %v15, 4294901760
    %5858 = vmatpush.xpose.msra.mxu0 %v5857
    %v5859 = vand.u32 %v14, 4294901760
    %5860 = vmatpush.xpose.msra.mxu0 %v5859
    %v5861 = vand.u32 %v13, 4294901760
    %5862 = vmatpush.xpose.msra.mxu0 %v5861
    %v5863 = vand.u32 %v12, 4294901760
    %5864 = vmatpush.xpose.msra.mxu0 %v5863
    %v5865 = vand.u32 %v5819, 4294901760
    %v5866 = vsub.f32 %v5819, %v5865
    %v5867 = vand.u32 %v5866, 4294901760
    %v5868 = vsub.f32 %v5866, %v5867
    %v5869 = vand.u32 %v5868, 4294901760
    %5870 = vmatmul.f32.gmra.mxu0 %v5869
    %v5871 = vpop.f32.mrf.mxu0
    %v5872 = vadd.f32 0.0, %v5871
    %5873 = vdwg.mxu0
    %v5874 = vand.u32 %v27, 4294901760
    %v5875 = vsub.f32 %v27, %v5874
    %v5876 = vand.u32 %v5875, 4294901760
    %v5877 = vsub.f32 %v5875, %v5876
    %v5878 = vand.u32 %v5877, 4294901760
    %5879 = vmatpush.xpose.msra.mxu0 %v5878
    %v5880 = vand.u32 %v26, 4294901760
    %v5881 = vsub.f32 %v26, %v5880
    %v5882 = vand.u32 %v5881, 4294901760
    %v5883 = vsub.f32 %v5881, %v5882
    %v5884 = vand.u32 %v5883, 4294901760
    %5885 = vmatpush.xpose.msra.mxu0 %v5884
    %v5886 = vand.u32 %v25, 4294901760
    %v5887 = vsub.f32 %v25, %v5886
    %v5888 = vand.u32 %v5887, 4294901760
    %v5889 = vsub.f32 %v5887, %v5888
    %v5890 = vand.u32 %v5889, 4294901760
    %5891 = vmatpush.xpose.msra.mxu0 %v5890
    %v5892 = vand.u32 %v24, 4294901760
    %v5893 = vsub.f32 %v24, %v5892
    %v5894 = vand.u32 %v5893, 4294901760
    %v5895 = vsub.f32 %v5893, %v5894
    %v5896 = vand.u32 %v5895, 4294901760
    %5897 = vmatpush.xpose.msra.mxu0 %v5896
    %v5898 = vand.u32 %v23, 4294901760
    %v5899 = vsub.f32 %v23, %v5898
    %v5900 = vand.u32 %v5899, 4294901760
    %v5901 = vsub.f32 %v5899, %v5900
    %v5902 = vand.u32 %v5901, 4294901760
    %5903 = vmatpush.xpose.msra.mxu0 %v5902
    %v5904 = vand.u32 %v22, 4294901760
    %v5905 = vsub.f32 %v22, %v5904
    %v5906 = vand.u32 %v5905, 4294901760
    %v5907 = vsub.f32 %v5905, %v5906
    %v5908 = vand.u32 %v5907, 4294901760
    %5909 = vmatpush.xpose.msra.mxu0 %v5908
    %v5910 = vand.u32 %v21, 4294901760
    %v5911 = vsub.f32 %v21, %v5910
    %v5912 = vand.u32 %v5911, 4294901760
    %v5913 = vsub.f32 %v5911, %v5912
    %v5914 = vand.u32 %v5913, 4294901760
    %5915 = vmatpush.xpose.msra.mxu0 %v5914
    %v5916 = vand.u32 %v20, 4294901760
    %v5917 = vsub.f32 %v20, %v5916
    %v5918 = vand.u32 %v5917, 4294901760
    %v5919 = vsub.f32 %v5917, %v5918
    %v5920 = vand.u32 %v5919, 4294901760
    %5921 = vmatpush.xpose.msra.mxu0 %v5920
    %v5922 = vand.u32 %v19, 4294901760
    %v5923 = vsub.f32 %v19, %v5922
    %v5924 = vand.u32 %v5923, 4294901760
    %v5925 = vsub.f32 %v5923, %v5924
    %v5926 = vand.u32 %v5925, 4294901760
    %5927 = vmatpush.xpose.msra.mxu0 %v5926
    %v5928 = vand.u32 %v18, 4294901760
    %v5929 = vsub.f32 %v18, %v5928
    %v5930 = vand.u32 %v5929, 4294901760
    %v5931 = vsub.f32 %v5929, %v5930
    %v5932 = vand.u32 %v5931, 4294901760
    %5933 = vmatpush.xpose.msra.mxu0 %v5932
    %v5934 = vand.u32 %v17, 4294901760
    %v5935 = vsub.f32 %v17, %v5934
    %v5936 = vand.u32 %v5935, 4294901760
    %v5937 = vsub.f32 %v5935, %v5936
    %v5938 = vand.u32 %v5937, 4294901760
    %5939 = vmatpush.xpose.msra.mxu0 %v5938
    %v5940 = vand.u32 %v16, 4294901760
    %v5941 = vsub.f32 %v16, %v5940
    %v5942 = vand.u32 %v5941, 4294901760
    %v5943 = vsub.f32 %v5941, %v5942
    %v5944 = vand.u32 %v5943, 4294901760
    %5945 = vmatpush.xpose.msra.mxu0 %v5944
    %v5946 = vand.u32 %v15, 4294901760
    %v5947 = vsub.f32 %v15, %v5946
    %v5948 = vand.u32 %v5947, 4294901760
    %v5949 = vsub.f32 %v5947, %v5948
    %v5950 = vand.u32 %v5949, 4294901760
    %5951 = vmatpush.xpose.msra.mxu0 %v5950
    %v5952 = vand.u32 %v14, 4294901760
    %v5953 = vsub.f32 %v14, %v5952
    %v5954 = vand.u32 %v5953, 4294901760
    %v5955 = vsub.f32 %v5953, %v5954
    %v5956 = vand.u32 %v5955, 4294901760
    %5957 = vmatpush.xpose.msra.mxu0 %v5956
    %v5958 = vand.u32 %v13, 4294901760
    %v5959 = vsub.f32 %v13, %v5958
    %v5960 = vand.u32 %v5959, 4294901760
    %v5961 = vsub.f32 %v5959, %v5960
    %v5962 = vand.u32 %v5961, 4294901760
    %5963 = vmatpush.xpose.msra.mxu0 %v5962
    %v5964 = vand.u32 %v12, 4294901760
    %v5965 = vsub.f32 %v12, %v5964
    %v5966 = vand.u32 %v5965, 4294901760
    %v5967 = vsub.f32 %v5965, %v5966
    %v5968 = vand.u32 %v5967, 4294901760
    %5969 = vmatpush.xpose.msra.mxu0 %v5968
    %v5970 = vand.u32 %v5819, 4294901760
    %5971 = vmatmul.f32.gmra.mxu0 %v5970
    %v5972 = vpop.f32.mrf.mxu0
    %v5973 = vadd.f32 %v5872, %v5972
    %5974 = vdwg.mxu0
    %v5975 = vand.u32 %v27, 4294901760
    %v5976 = vsub.f32 %v27, %v5975
    %5977 = vmatpush.xpose.msra.mxu0 %v5976
    %v5978 = vand.u32 %v26, 4294901760
    %v5979 = vsub.f32 %v26, %v5978
    %5980 = vmatpush.xpose.msra.mxu0 %v5979
    %v5981 = vand.u32 %v25, 4294901760
    %v5982 = vsub.f32 %v25, %v5981
    %5983 = vmatpush.xpose.msra.mxu0 %v5982
    %v5984 = vand.u32 %v24, 4294901760
    %v5985 = vsub.f32 %v24, %v5984
    %5986 = vmatpush.xpose.msra.mxu0 %v5985
    %v5987 = vand.u32 %v23, 4294901760
    %v5988 = vsub.f32 %v23, %v5987
    %5989 = vmatpush.xpose.msra.mxu0 %v5988
    %v5990 = vand.u32 %v22, 4294901760
    %v5991 = vsub.f32 %v22, %v5990
    %5992 = vmatpush.xpose.msra.mxu0 %v5991
    %v5993 = vand.u32 %v21, 4294901760
    %v5994 = vsub.f32 %v21, %v5993
    %5995 = vmatpush.xpose.msra.mxu0 %v5994
    %v5996 = vand.u32 %v20, 4294901760
    %v5997 = vsub.f32 %v20, %v5996
    %5998 = vmatpush.xpose.msra.mxu0 %v5997
    %v5999 = vand.u32 %v19, 4294901760
    %v6000 = vsub.f32 %v19, %v5999
    %6001 = vmatpush.xpose.msra.mxu0 %v6000
    %v6002 = vand.u32 %v18, 4294901760
    %v6003 = vsub.f32 %v18, %v6002
    %6004 = vmatpush.xpose.msra.mxu0 %v6003
    %v6005 = vand.u32 %v17, 4294901760
    %v6006 = vsub.f32 %v17, %v6005
    %6007 = vmatpush.xpose.msra.mxu0 %v6006
    %v6008 = vand.u32 %v16, 4294901760
    %v6009 = vsub.f32 %v16, %v6008
    %6010 = vmatpush.xpose.msra.mxu0 %v6009
    %v6011 = vand.u32 %v15, 4294901760
    %v6012 = vsub.f32 %v15, %v6011
    %6013 = vmatpush.xpose.msra.mxu0 %v6012
    %v6014 = vand.u32 %v14, 4294901760
    %v6015 = vsub.f32 %v14, %v6014
    %6016 = vmatpush.xpose.msra.mxu0 %v6015
    %v6017 = vand.u32 %v13, 4294901760
    %v6018 = vsub.f32 %v13, %v6017
    %6019 = vmatpush.xpose.msra.mxu0 %v6018
    %v6020 = vand.u32 %v12, 4294901760
    %v6021 = vsub.f32 %v12, %v6020
    %6022 = vmatpush.xpose.msra.mxu0 %v6021
    %v6023 = vand.u32 %v5819, 4294901760
    %v6024 = vsub.f32 %v5819, %v6023
    %6025 = vmatmul.f32.gmra.mxu0 %v6024
    %v6026 = vpop.f32.mrf.mxu0
    %v6027 = vadd.f32 %v5973, %v6026
    %6028 = vdwg.mxu0
    %v6029 = vand.u32 %v27, 4294901760
    %6030 = vmatpush.xpose.msra.mxu0 %v6029
    %v6031 = vand.u32 %v26, 4294901760
    %6032 = vmatpush.xpose.msra.mxu0 %v6031
    %v6033 = vand.u32 %v25, 4294901760
    %6034 = vmatpush.xpose.msra.mxu0 %v6033
    %v6035 = vand.u32 %v24, 4294901760
    %6036 = vmatpush.xpose.msra.mxu0 %v6035
    %v6037 = vand.u32 %v23, 4294901760
    %6038 = vmatpush.xpose.msra.mxu0 %v6037
    %v6039 = vand.u32 %v22, 4294901760
    %6040 = vmatpush.xpose.msra.mxu0 %v6039
    %v6041 = vand.u32 %v21, 4294901760
    %6042 = vmatpush.xpose.msra.mxu0 %v6041
    %v6043 = vand.u32 %v20, 4294901760
    %6044 = vmatpush.xpose.msra.mxu0 %v6043
    %v6045 = vand.u32 %v19, 4294901760
    %6046 = vmatpush.xpose.msra.mxu0 %v6045
    %v6047 = vand.u32 %v18, 4294901760
    %6048 = vmatpush.xpose.msra.mxu0 %v6047
    %v6049 = vand.u32 %v17, 4294901760
    %6050 = vmatpush.xpose.msra.mxu0 %v6049
    %v6051 = vand.u32 %v16, 4294901760
    %6052 = vmatpush.xpose.msra.mxu0 %v6051
    %v6053 = vand.u32 %v15, 4294901760
    %6054 = vmatpush.xpose.msra.mxu0 %v6053
    %v6055 = vand.u32 %v14, 4294901760
    %6056 = vmatpush.xpose.msra.mxu0 %v6055
    %v6057 = vand.u32 %v13, 4294901760
    %6058 = vmatpush.xpose.msra.mxu0 %v6057
    %v6059 = vand.u32 %v12, 4294901760
    %6060 = vmatpush.xpose.msra.mxu0 %v6059
    %v6061 = vand.u32 %v5819, 4294901760
    %v6062 = vsub.f32 %v5819, %v6061
    %v6063 = vand.u32 %v6062, 4294901760
    %6064 = vmatmul.f32.gmra.mxu0 %v6063
    %v6065 = vpop.f32.mrf.mxu0
    %v6066 = vadd.f32 %v6027, %v6065
    %6067 = vdwg.mxu0
    %v6068 = vand.u32 %v27, 4294901760
    %v6069 = vsub.f32 %v27, %v6068
    %v6070 = vand.u32 %v6069, 4294901760
    %6071 = vmatpush.xpose.msra.mxu0 %v6070
    %v6072 = vand.u32 %v26, 4294901760
    %v6073 = vsub.f32 %v26, %v6072
    %v6074 = vand.u32 %v6073, 4294901760
    %6075 = vmatpush.xpose.msra.mxu0 %v6074
    %v6076 = vand.u32 %v25, 4294901760
    %v6077 = vsub.f32 %v25, %v6076
    %v6078 = vand.u32 %v6077, 4294901760
    %6079 = vmatpush.xpose.msra.mxu0 %v6078
    %v6080 = vand.u32 %v24, 4294901760
    %v6081 = vsub.f32 %v24, %v6080
    %v6082 = vand.u32 %v6081, 4294901760
    %6083 = vmatpush.xpose.msra.mxu0 %v6082
    %v6084 = vand.u32 %v23, 4294901760
    %v6085 = vsub.f32 %v23, %v6084
    %v6086 = vand.u32 %v6085, 4294901760
    %6087 = vmatpush.xpose.msra.mxu0 %v6086
    %v6088 = vand.u32 %v22, 4294901760
    %v6089 = vsub.f32 %v22, %v6088
    %v6090 = vand.u32 %v6089, 4294901760
    %6091 = vmatpush.xpose.msra.mxu0 %v6090
    %v6092 = vand.u32 %v21, 4294901760
    %v6093 = vsub.f32 %v21, %v6092
    %v6094 = vand.u32 %v6093, 4294901760
    %6095 = vmatpush.xpose.msra.mxu0 %v6094
    %v6096 = vand.u32 %v20, 4294901760
    %v6097 = vsub.f32 %v20, %v6096
    %v6098 = vand.u32 %v6097, 4294901760
    %6099 = vmatpush.xpose.msra.mxu0 %v6098
    %v6100 = vand.u32 %v19, 4294901760
    %v6101 = vsub.f32 %v19, %v6100
    %v6102 = vand.u32 %v6101, 4294901760
    %6103 = vmatpush.xpose.msra.mxu0 %v6102
    %v6104 = vand.u32 %v18, 4294901760
    %v6105 = vsub.f32 %v18, %v6104
    %v6106 = vand.u32 %v6105, 4294901760
    %6107 = vmatpush.xpose.msra.mxu0 %v6106
    %v6108 = vand.u32 %v17, 4294901760
    %v6109 = vsub.f32 %v17, %v6108
    %v6110 = vand.u32 %v6109, 4294901760
    %6111 = vmatpush.xpose.msra.mxu0 %v6110
    %v6112 = vand.u32 %v16, 4294901760
    %v6113 = vsub.f32 %v16, %v6112
    %v6114 = vand.u32 %v6113, 4294901760
    %6115 = vmatpush.xpose.msra.mxu0 %v6114
    %v6116 = vand.u32 %v15, 4294901760
    %v6117 = vsub.f32 %v15, %v6116
    %v6118 = vand.u32 %v6117, 4294901760
    %6119 = vmatpush.xpose.msra.mxu0 %v6118
    %v6120 = vand.u32 %v14, 4294901760
    %v6121 = vsub.f32 %v14, %v6120
    %v6122 = vand.u32 %v6121, 4294901760
    %6123 = vmatpush.xpose.msra.mxu0 %v6122
    %v6124 = vand.u32 %v13, 4294901760
    %v6125 = vsub.f32 %v13, %v6124
    %v6126 = vand.u32 %v6125, 4294901760
    %6127 = vmatpush.xpose.msra.mxu0 %v6126
    %v6128 = vand.u32 %v12, 4294901760
    %v6129 = vsub.f32 %v12, %v6128
    %v6130 = vand.u32 %v6129, 4294901760
    %6131 = vmatpush.xpose.msra.mxu0 %v6130
    %v6132 = vand.u32 %v5819, 4294901760
    %6133 = vmatmul.f32.gmra.mxu0 %v6132
    %v6134 = vpop.f32.mrf.mxu0
    %v6135 = vadd.f32 %v6066, %v6134
    %6136 = vdwg.mxu0
    %v6137 = vand.u32 %v27, 4294901760
    %6138 = vmatpush.xpose.msra.mxu0 %v6137
    %v6139 = vand.u32 %v26, 4294901760
    %6140 = vmatpush.xpose.msra.mxu0 %v6139
    %v6141 = vand.u32 %v25, 4294901760
    %6142 = vmatpush.xpose.msra.mxu0 %v6141
    %v6143 = vand.u32 %v24, 4294901760
    %6144 = vmatpush.xpose.msra.mxu0 %v6143
    %v6145 = vand.u32 %v23, 4294901760
    %6146 = vmatpush.xpose.msra.mxu0 %v6145
    %v6147 = vand.u32 %v22, 4294901760
    %6148 = vmatpush.xpose.msra.mxu0 %v6147
    %v6149 = vand.u32 %v21, 4294901760
    %6150 = vmatpush.xpose.msra.mxu0 %v6149
    %v6151 = vand.u32 %v20, 4294901760
    %6152 = vmatpush.xpose.msra.mxu0 %v6151
    %v6153 = vand.u32 %v19, 4294901760
    %6154 = vmatpush.xpose.msra.mxu0 %v6153
    %v6155 = vand.u32 %v18, 4294901760
    %6156 = vmatpush.xpose.msra.mxu0 %v6155
    %v6157 = vand.u32 %v17, 4294901760
    %6158 = vmatpush.xpose.msra.mxu0 %v6157
    %v6159 = vand.u32 %v16, 4294901760
    %6160 = vmatpush.xpose.msra.mxu0 %v6159
    %v6161 = vand.u32 %v15, 4294901760
    %6162 = vmatpush.xpose.msra.mxu0 %v6161
    %v6163 = vand.u32 %v14, 4294901760
    %6164 = vmatpush.xpose.msra.mxu0 %v6163
    %v6165 = vand.u32 %v13, 4294901760
    %6166 = vmatpush.xpose.msra.mxu0 %v6165
    %v6167 = vand.u32 %v12, 4294901760
    %6168 = vmatpush.xpose.msra.mxu0 %v6167
    %v6169 = vand.u32 %v5819, 4294901760
    %6170 = vmatmul.f32.gmra.mxu0 %v6169
    %v6171 = vpop.f32.mrf.mxu0
    %v6172 = vadd.f32 %v6135, %v6171
    %6173 = vdwg.mxu0
    %v6174 = vand.u32 %v27, 4294901760
    %6175 = vmatpush.msra.mxu0 %v6174
    %v6176 = vand.u32 %v26, 4294901760
    %6177 = vmatpush.msra.mxu0 %v6176
    %v6178 = vand.u32 %v25, 4294901760
    %6179 = vmatpush.msra.mxu0 %v6178
    %v6180 = vand.u32 %v24, 4294901760
    %6181 = vmatpush.msra.mxu0 %v6180
    %v6182 = vand.u32 %v23, 4294901760
    %6183 = vmatpush.msra.mxu0 %v6182
    %v6184 = vand.u32 %v22, 4294901760
    %6185 = vmatpush.msra.mxu0 %v6184
    %v6186 = vand.u32 %v21, 4294901760
    %6187 = vmatpush.msra.mxu0 %v6186
    %v6188 = vand.u32 %v20, 4294901760
    %6189 = vmatpush.msra.mxu0 %v6188
    %v6190 = vand.u32 %v19, 4294901760
    %6191 = vmatpush.msra.mxu0 %v6190
    %v6192 = vand.u32 %v18, 4294901760
    %6193 = vmatpush.msra.mxu0 %v6192
    %v6194 = vand.u32 %v17, 4294901760
    %6195 = vmatpush.msra.mxu0 %v6194
    %v6196 = vand.u32 %v16, 4294901760
    %6197 = vmatpush.msra.mxu0 %v6196
    %v6198 = vand.u32 %v15, 4294901760
    %6199 = vmatpush.msra.mxu0 %v6198
    %v6200 = vand.u32 %v14, 4294901760
    %6201 = vmatpush.msra.mxu0 %v6200
    %v6202 = vand.u32 %v13, 4294901760
    %6203 = vmatpush.msra.mxu0 %v6202
    %v6204 = vand.u32 %v12, 4294901760
    %6205 = vmatpush.msra.mxu0 %v6204
    %v6206 = vand.u32 %v6172, 4294901760
    %v6207 = vsub.f32 %v6172, %v6206
    %v6208 = vand.u32 %v6207, 4294901760
    %v6209 = vsub.f32 %v6207, %v6208
    %v6210 = vand.u32 %v6209, 4294901760
    %6211 = vmatmul.f32.gmra.mxu0 %v6210
    %v6212 = vpop.f32.mrf.mxu0
    %v6213 = vadd.f32 0.0, %v6212
    %6214 = vdwg.mxu0
    %v6215 = vand.u32 %v27, 4294901760
    %v6216 = vsub.f32 %v27, %v6215
    %v6217 = vand.u32 %v6216, 4294901760
    %v6218 = vsub.f32 %v6216, %v6217
    %v6219 = vand.u32 %v6218, 4294901760
    %6220 = vmatpush.msra.mxu0 %v6219
    %v6221 = vand.u32 %v26, 4294901760
    %v6222 = vsub.f32 %v26, %v6221
    %v6223 = vand.u32 %v6222, 4294901760
    %v6224 = vsub.f32 %v6222, %v6223
    %v6225 = vand.u32 %v6224, 4294901760
    %6226 = vmatpush.msra.mxu0 %v6225
    %v6227 = vand.u32 %v25, 4294901760
    %v6228 = vsub.f32 %v25, %v6227
    %v6229 = vand.u32 %v6228, 4294901760
    %v6230 = vsub.f32 %v6228, %v6229
    %v6231 = vand.u32 %v6230, 4294901760
    %6232 = vmatpush.msra.mxu0 %v6231
    %v6233 = vand.u32 %v24, 4294901760
    %v6234 = vsub.f32 %v24, %v6233
    %v6235 = vand.u32 %v6234, 4294901760
    %v6236 = vsub.f32 %v6234, %v6235
    %v6237 = vand.u32 %v6236, 4294901760
    %6238 = vmatpush.msra.mxu0 %v6237
    %v6239 = vand.u32 %v23, 4294901760
    %v6240 = vsub.f32 %v23, %v6239
    %v6241 = vand.u32 %v6240, 4294901760
    %v6242 = vsub.f32 %v6240, %v6241
    %v6243 = vand.u32 %v6242, 4294901760
    %6244 = vmatpush.msra.mxu0 %v6243
    %v6245 = vand.u32 %v22, 4294901760
    %v6246 = vsub.f32 %v22, %v6245
    %v6247 = vand.u32 %v6246, 4294901760
    %v6248 = vsub.f32 %v6246, %v6247
    %v6249 = vand.u32 %v6248, 4294901760
    %6250 = vmatpush.msra.mxu0 %v6249
    %v6251 = vand.u32 %v21, 4294901760
    %v6252 = vsub.f32 %v21, %v6251
    %v6253 = vand.u32 %v6252, 4294901760
    %v6254 = vsub.f32 %v6252, %v6253
    %v6255 = vand.u32 %v6254, 4294901760
    %6256 = vmatpush.msra.mxu0 %v6255
    %v6257 = vand.u32 %v20, 4294901760
    %v6258 = vsub.f32 %v20, %v6257
    %v6259 = vand.u32 %v6258, 4294901760
    %v6260 = vsub.f32 %v6258, %v6259
    %v6261 = vand.u32 %v6260, 4294901760
    %6262 = vmatpush.msra.mxu0 %v6261
    %v6263 = vand.u32 %v19, 4294901760
    %v6264 = vsub.f32 %v19, %v6263
    %v6265 = vand.u32 %v6264, 4294901760
    %v6266 = vsub.f32 %v6264, %v6265
    %v6267 = vand.u32 %v6266, 4294901760
    %6268 = vmatpush.msra.mxu0 %v6267
    %v6269 = vand.u32 %v18, 4294901760
    %v6270 = vsub.f32 %v18, %v6269
    %v6271 = vand.u32 %v6270, 4294901760
    %v6272 = vsub.f32 %v6270, %v6271
    %v6273 = vand.u32 %v6272, 4294901760
    %6274 = vmatpush.msra.mxu0 %v6273
    %v6275 = vand.u32 %v17, 4294901760
    %v6276 = vsub.f32 %v17, %v6275
    %v6277 = vand.u32 %v6276, 4294901760
    %v6278 = vsub.f32 %v6276, %v6277
    %v6279 = vand.u32 %v6278, 4294901760
    %6280 = vmatpush.msra.mxu0 %v6279
    %v6281 = vand.u32 %v16, 4294901760
    %v6282 = vsub.f32 %v16, %v6281
    %v6283 = vand.u32 %v6282, 4294901760
    %v6284 = vsub.f32 %v6282, %v6283
    %v6285 = vand.u32 %v6284, 4294901760
    %6286 = vmatpush.msra.mxu0 %v6285
    %v6287 = vand.u32 %v15, 4294901760
    %v6288 = vsub.f32 %v15, %v6287
    %v6289 = vand.u32 %v6288, 4294901760
    %v6290 = vsub.f32 %v6288, %v6289
    %v6291 = vand.u32 %v6290, 4294901760
    %6292 = vmatpush.msra.mxu0 %v6291
    %v6293 = vand.u32 %v14, 4294901760
    %v6294 = vsub.f32 %v14, %v6293
    %v6295 = vand.u32 %v6294, 4294901760
    %v6296 = vsub.f32 %v6294, %v6295
    %v6297 = vand.u32 %v6296, 4294901760
    %6298 = vmatpush.msra.mxu0 %v6297
    %v6299 = vand.u32 %v13, 4294901760
    %v6300 = vsub.f32 %v13, %v6299
    %v6301 = vand.u32 %v6300, 4294901760
    %v6302 = vsub.f32 %v6300, %v6301
    %v6303 = vand.u32 %v6302, 4294901760
    %6304 = vmatpush.msra.mxu0 %v6303
    %v6305 = vand.u32 %v12, 4294901760
    %v6306 = vsub.f32 %v12, %v6305
    %v6307 = vand.u32 %v6306, 4294901760
    %v6308 = vsub.f32 %v6306, %v6307
    %v6309 = vand.u32 %v6308, 4294901760
    %6310 = vmatpush.msra.mxu0 %v6309
    %v6311 = vand.u32 %v6172, 4294901760
    %6312 = vmatmul.f32.gmra.mxu0 %v6311
    %v6313 = vpop.f32.mrf.mxu0
    %v6314 = vadd.f32 %v6213, %v6313
    %6315 = vdwg.mxu0
    %v6316 = vand.u32 %v27, 4294901760
    %v6317 = vsub.f32 %v27, %v6316
    %6318 = vmatpush.msra.mxu0 %v6317
    %v6319 = vand.u32 %v26, 4294901760
    %v6320 = vsub.f32 %v26, %v6319
    %6321 = vmatpush.msra.mxu0 %v6320
    %v6322 = vand.u32 %v25, 4294901760
    %v6323 = vsub.f32 %v25, %v6322
    %6324 = vmatpush.msra.mxu0 %v6323
    %v6325 = vand.u32 %v24, 4294901760
    %v6326 = vsub.f32 %v24, %v6325
    %6327 = vmatpush.msra.mxu0 %v6326
    %v6328 = vand.u32 %v23, 4294901760
    %v6329 = vsub.f32 %v23, %v6328
    %6330 = vmatpush.msra.mxu0 %v6329
    %v6331 = vand.u32 %v22, 4294901760
    %v6332 = vsub.f32 %v22, %v6331
    %6333 = vmatpush.msra.mxu0 %v6332
    %v6334 = vand.u32 %v21, 4294901760
    %v6335 = vsub.f32 %v21, %v6334
    %6336 = vmatpush.msra.mxu0 %v6335
    %v6337 = vand.u32 %v20, 4294901760
    %v6338 = vsub.f32 %v20, %v6337
    %6339 = vmatpush.msra.mxu0 %v6338
    %v6340 = vand.u32 %v19, 4294901760
    %v6341 = vsub.f32 %v19, %v6340
    %6342 = vmatpush.msra.mxu0 %v6341
    %v6343 = vand.u32 %v18, 4294901760
    %v6344 = vsub.f32 %v18, %v6343
    %6345 = vmatpush.msra.mxu0 %v6344
    %v6346 = vand.u32 %v17, 4294901760
    %v6347 = vsub.f32 %v17, %v6346
    %6348 = vmatpush.msra.mxu0 %v6347
    %v6349 = vand.u32 %v16, 4294901760
    %v6350 = vsub.f32 %v16, %v6349
    %6351 = vmatpush.msra.mxu0 %v6350
    %v6352 = vand.u32 %v15, 4294901760
    %v6353 = vsub.f32 %v15, %v6352
    %6354 = vmatpush.msra.mxu0 %v6353
    %v6355 = vand.u32 %v14, 4294901760
    %v6356 = vsub.f32 %v14, %v6355
    %6357 = vmatpush.msra.mxu0 %v6356
    %v6358 = vand.u32 %v13, 4294901760
    %v6359 = vsub.f32 %v13, %v6358
    %6360 = vmatpush.msra.mxu0 %v6359
    %v6361 = vand.u32 %v12, 4294901760
    %v6362 = vsub.f32 %v12, %v6361
    %6363 = vmatpush.msra.mxu0 %v6362
    %v6364 = vand.u32 %v6172, 4294901760
    %v6365 = vsub.f32 %v6172, %v6364
    %6366 = vmatmul.f32.gmra.mxu0 %v6365
    %v6367 = vpop.f32.mrf.mxu0
    %v6368 = vadd.f32 %v6314, %v6367
    %6369 = vdwg.mxu0
    %v6370 = vand.u32 %v27, 4294901760
    %6371 = vmatpush.msra.mxu0 %v6370
    %v6372 = vand.u32 %v26, 4294901760
    %6373 = vmatpush.msra.mxu0 %v6372
    %v6374 = vand.u32 %v25, 4294901760
    %6375 = vmatpush.msra.mxu0 %v6374
    %v6376 = vand.u32 %v24, 4294901760
    %6377 = vmatpush.msra.mxu0 %v6376
    %v6378 = vand.u32 %v23, 4294901760
    %6379 = vmatpush.msra.mxu0 %v6378
    %v6380 = vand.u32 %v22, 4294901760
    %6381 = vmatpush.msra.mxu0 %v6380
    %v6382 = vand.u32 %v21, 4294901760
    %6383 = vmatpush.msra.mxu0 %v6382
    %v6384 = vand.u32 %v20, 4294901760
    %6385 = vmatpush.msra.mxu0 %v6384
    %v6386 = vand.u32 %v19, 4294901760
    %6387 = vmatpush.msra.mxu0 %v6386
    %v6388 = vand.u32 %v18, 4294901760
    %6389 = vmatpush.msra.mxu0 %v6388
    %v6390 = vand.u32 %v17, 4294901760
    %6391 = vmatpush.msra.mxu0 %v6390
    %v6392 = vand.u32 %v16, 4294901760
    %6393 = vmatpush.msra.mxu0 %v6392
    %v6394 = vand.u32 %v15, 4294901760
    %6395 = vmatpush.msra.mxu0 %v6394
    %v6396 = vand.u32 %v14, 4294901760
    %6397 = vmatpush.msra.mxu0 %v6396
    %v6398 = vand.u32 %v13, 4294901760
    %6399 = vmatpush.msra.mxu0 %v6398
    %v6400 = vand.u32 %v12, 4294901760
    %6401 = vmatpush.msra.mxu0 %v6400
    %v6402 = vand.u32 %v6172, 4294901760
    %v6403 = vsub.f32 %v6172, %v6402
    %v6404 = vand.u32 %v6403, 4294901760
    %6405 = vmatmul.f32.gmra.mxu0 %v6404
    %v6406 = vpop.f32.mrf.mxu0
    %v6407 = vadd.f32 %v6368, %v6406
    %6408 = vdwg.mxu0
    %v6409 = vand.u32 %v27, 4294901760
    %v6410 = vsub.f32 %v27, %v6409
    %v6411 = vand.u32 %v6410, 4294901760
    %6412 = vmatpush.msra.mxu0 %v6411
    %v6413 = vand.u32 %v26, 4294901760
    %v6414 = vsub.f32 %v26, %v6413
    %v6415 = vand.u32 %v6414, 4294901760
    %6416 = vmatpush.msra.mxu0 %v6415
    %v6417 = vand.u32 %v25, 4294901760
    %v6418 = vsub.f32 %v25, %v6417
    %v6419 = vand.u32 %v6418, 4294901760
    %6420 = vmatpush.msra.mxu0 %v6419
    %v6421 = vand.u32 %v24, 4294901760
    %v6422 = vsub.f32 %v24, %v6421
    %v6423 = vand.u32 %v6422, 4294901760
    %6424 = vmatpush.msra.mxu0 %v6423
    %v6425 = vand.u32 %v23, 4294901760
    %v6426 = vsub.f32 %v23, %v6425
    %v6427 = vand.u32 %v6426, 4294901760
    %6428 = vmatpush.msra.mxu0 %v6427
    %v6429 = vand.u32 %v22, 4294901760
    %v6430 = vsub.f32 %v22, %v6429
    %v6431 = vand.u32 %v6430, 4294901760
    %6432 = vmatpush.msra.mxu0 %v6431
    %v6433 = vand.u32 %v21, 4294901760
    %v6434 = vsub.f32 %v21, %v6433
    %v6435 = vand.u32 %v6434, 4294901760
    %6436 = vmatpush.msra.mxu0 %v6435
    %v6437 = vand.u32 %v20, 4294901760
    %v6438 = vsub.f32 %v20, %v6437
    %v6439 = vand.u32 %v6438, 4294901760
    %6440 = vmatpush.msra.mxu0 %v6439
    %v6441 = vand.u32 %v19, 4294901760
    %v6442 = vsub.f32 %v19, %v6441
    %v6443 = vand.u32 %v6442, 4294901760
    %6444 = vmatpush.msra.mxu0 %v6443
    %v6445 = vand.u32 %v18, 4294901760
    %v6446 = vsub.f32 %v18, %v6445
    %v6447 = vand.u32 %v6446, 4294901760
    %6448 = vmatpush.msra.mxu0 %v6447
    %v6449 = vand.u32 %v17, 4294901760
    %v6450 = vsub.f32 %v17, %v6449
    %v6451 = vand.u32 %v6450, 4294901760
    %6452 = vmatpush.msra.mxu0 %v6451
    %v6453 = vand.u32 %v16, 4294901760
    %v6454 = vsub.f32 %v16, %v6453
    %v6455 = vand.u32 %v6454, 4294901760
    %6456 = vmatpush.msra.mxu0 %v6455
    %v6457 = vand.u32 %v15, 4294901760
    %v6458 = vsub.f32 %v15, %v6457
    %v6459 = vand.u32 %v6458, 4294901760
    %6460 = vmatpush.msra.mxu0 %v6459
    %v6461 = vand.u32 %v14, 4294901760
    %v6462 = vsub.f32 %v14, %v6461
    %v6463 = vand.u32 %v6462, 4294901760
    %6464 = vmatpush.msra.mxu0 %v6463
    %v6465 = vand.u32 %v13, 4294901760
    %v6466 = vsub.f32 %v13, %v6465
    %v6467 = vand.u32 %v6466, 4294901760
    %6468 = vmatpush.msra.mxu0 %v6467
    %v6469 = vand.u32 %v12, 4294901760
    %v6470 = vsub.f32 %v12, %v6469
    %v6471 = vand.u32 %v6470, 4294901760
    %6472 = vmatpush.msra.mxu0 %v6471
    %v6473 = vand.u32 %v6172, 4294901760
    %6474 = vmatmul.f32.gmra.mxu0 %v6473
    %v6475 = vpop.f32.mrf.mxu0
    %v6476 = vadd.f32 %v6407, %v6475
    %6477 = vdwg.mxu0
    %v6478 = vand.u32 %v27, 4294901760
    %6479 = vmatpush.msra.mxu0 %v6478
    %v6480 = vand.u32 %v26, 4294901760
    %6481 = vmatpush.msra.mxu0 %v6480
    %v6482 = vand.u32 %v25, 4294901760
    %6483 = vmatpush.msra.mxu0 %v6482
    %v6484 = vand.u32 %v24, 4294901760
    %6485 = vmatpush.msra.mxu0 %v6484
    %v6486 = vand.u32 %v23, 4294901760
    %6487 = vmatpush.msra.mxu0 %v6486
    %v6488 = vand.u32 %v22, 4294901760
    %6489 = vmatpush.msra.mxu0 %v6488
    %v6490 = vand.u32 %v21, 4294901760
    %6491 = vmatpush.msra.mxu0 %v6490
    %v6492 = vand.u32 %v20, 4294901760
    %6493 = vmatpush.msra.mxu0 %v6492
    %v6494 = vand.u32 %v19, 4294901760
    %6495 = vmatpush.msra.mxu0 %v6494
    %v6496 = vand.u32 %v18, 4294901760
    %6497 = vmatpush.msra.mxu0 %v6496
    %v6498 = vand.u32 %v17, 4294901760
    %6499 = vmatpush.msra.mxu0 %v6498
    %v6500 = vand.u32 %v16, 4294901760
    %6501 = vmatpush.msra.mxu0 %v6500
    %v6502 = vand.u32 %v15, 4294901760
    %6503 = vmatpush.msra.mxu0 %v6502
    %v6504 = vand.u32 %v14, 4294901760
    %6505 = vmatpush.msra.mxu0 %v6504
    %v6506 = vand.u32 %v13, 4294901760
    %6507 = vmatpush.msra.mxu0 %v6506
    %v6508 = vand.u32 %v12, 4294901760
    %6509 = vmatpush.msra.mxu0 %v6508
    %v6510 = vand.u32 %v6172, 4294901760
    %6511 = vmatmul.f32.gmra.mxu0 %v6510
    %v6512 = vpop.f32.mrf.mxu0
    %v6513 = vadd.f32 %v6476, %v6512
    %6514 = vdwg.mxu0
    %v6515 = vmul.f32 %v6513, %v6513
    %v6516 = vsel %vm712, %v6515, 0.0
    %6517 = vadd.xlane.f32.xlu0 %v6516
    %v6518 = vpop.xlane.xlu0 %6517
    %v6519 = vrot.slane %v6518, 4
    %v6520 = vadd.f32 %v6518, %v6519
    %v6521 = vrot.slane %v6520, 2
    %v6522 = vadd.f32 %v6520, %v6521
    %v6523 = vrot.slane %v6522, 1
    %v6524 = vadd.f32 %v6522, %v6523
    %s6525 = vtos %v6524
    %s6526 = sadd.f32 %s6525, 1e-30
    %v6527 = vstv %s6526
    %v6528 = vrsqrt.pop %v6527
    %v6529 = vmul.f32 %v6528, %v6527
    %v6530 = vmul.f32 %v6529, %v6528
    %v6531 = vmul.f32 0.5, %v6530
    %v6532 = vsub.f32 1.5, %v6531
    %v6533 = vmul.f32 %v6528, %v6532
    %vm6534 = vweird.f32 %v6527
    %vm6535 = vweird.f32 %v6528
    %vm6536 = vmor %vm6534, %vm6535
    %v6537 = vsel %vm6536, %v6528, %v6533
    %s6538 = vtos %v6537
    %v6539 = vstv %s6538
    %v6540 = vmul.f32 %v6513, %v6539
    %v6541 = vsub.f32 %v6540, %v5819
    %s6542 = scalar_select %p5832, 1, 0
    %v6543 = vstv %s6542
    %vm6544 = vcmp.eq.s32.totalorder %v6543, 1
    %v6545 = vsel %vm6544, %v5819, %v6540
    %v6546 = vmul.f32 %v6541, %v6541
    %v6547 = vsel %vm712, %v6546, 0.0
    %6548 = vadd.xlane.f32.xlu0 %v6547
    %v6549 = vpop.xlane.xlu0 %6548
    %v6550 = vrot.slane %v6549, 4
    %v6551 = vadd.f32 %v6549, %v6550
    %v6552 = vrot.slane %v6551, 2
    %v6553 = vadd.f32 %v6551, %v6552
    %v6554 = vrot.slane %v6553, 1
    %v6555 = vadd.f32 %v6553, %v6554
    %s6556 = vtos %v6555
    %p6557 = scmp.lt.f32.partialorder %s6556, 1e-12
    %p6558 = por %p5832, %p6557
    %v6559 = vand.u32 %v27, 4294901760
    %6560 = vmatpush.xpose.msra.mxu0 %v6559
    %v6561 = vand.u32 %v26, 4294901760
    %6562 = vmatpush.xpose.msra.mxu0 %v6561
    %v6563 = vand.u32 %v25, 4294901760
    %6564 = vmatpush.xpose.msra.mxu0 %v6563
    %v6565 = vand.u32 %v24, 4294901760
    %6566 = vmatpush.xpose.msra.mxu0 %v6565
    %v6567 = vand.u32 %v23, 4294901760
    %6568 = vmatpush.xpose.msra.mxu0 %v6567
    %v6569 = vand.u32 %v22, 4294901760
    %6570 = vmatpush.xpose.msra.mxu0 %v6569
    %v6571 = vand.u32 %v21, 4294901760
    %6572 = vmatpush.xpose.msra.mxu0 %v6571
    %v6573 = vand.u32 %v20, 4294901760
    %6574 = vmatpush.xpose.msra.mxu0 %v6573
    %v6575 = vand.u32 %v19, 4294901760
    %6576 = vmatpush.xpose.msra.mxu0 %v6575
    %v6577 = vand.u32 %v18, 4294901760
    %6578 = vmatpush.xpose.msra.mxu0 %v6577
    %v6579 = vand.u32 %v17, 4294901760
    %6580 = vmatpush.xpose.msra.mxu0 %v6579
    %v6581 = vand.u32 %v16, 4294901760
    %6582 = vmatpush.xpose.msra.mxu0 %v6581
    %v6583 = vand.u32 %v15, 4294901760
    %6584 = vmatpush.xpose.msra.mxu0 %v6583
    %v6585 = vand.u32 %v14, 4294901760
    %6586 = vmatpush.xpose.msra.mxu0 %v6585
    %v6587 = vand.u32 %v13, 4294901760
    %6588 = vmatpush.xpose.msra.mxu0 %v6587
    %v6589 = vand.u32 %v12, 4294901760
    %6590 = vmatpush.xpose.msra.mxu0 %v6589
    %v6591 = vand.u32 %v6545, 4294901760
    %v6592 = vsub.f32 %v6545, %v6591
    %v6593 = vand.u32 %v6592, 4294901760
    %v6594 = vsub.f32 %v6592, %v6593
    %v6595 = vand.u32 %v6594, 4294901760
    %6596 = vmatmul.f32.gmra.mxu0 %v6595
    %v6597 = vpop.f32.mrf.mxu0
    %v6598 = vadd.f32 0.0, %v6597
    %6599 = vdwg.mxu0
    %v6600 = vand.u32 %v27, 4294901760
    %v6601 = vsub.f32 %v27, %v6600
    %v6602 = vand.u32 %v6601, 4294901760
    %v6603 = vsub.f32 %v6601, %v6602
    %v6604 = vand.u32 %v6603, 4294901760
    %6605 = vmatpush.xpose.msra.mxu0 %v6604
    %v6606 = vand.u32 %v26, 4294901760
    %v6607 = vsub.f32 %v26, %v6606
    %v6608 = vand.u32 %v6607, 4294901760
    %v6609 = vsub.f32 %v6607, %v6608
    %v6610 = vand.u32 %v6609, 4294901760
    %6611 = vmatpush.xpose.msra.mxu0 %v6610
    %v6612 = vand.u32 %v25, 4294901760
    %v6613 = vsub.f32 %v25, %v6612
    %v6614 = vand.u32 %v6613, 4294901760
    %v6615 = vsub.f32 %v6613, %v6614
    %v6616 = vand.u32 %v6615, 4294901760
    %6617 = vmatpush.xpose.msra.mxu0 %v6616
    %v6618 = vand.u32 %v24, 4294901760
    %v6619 = vsub.f32 %v24, %v6618
    %v6620 = vand.u32 %v6619, 4294901760
    %v6621 = vsub.f32 %v6619, %v6620
    %v6622 = vand.u32 %v6621, 4294901760
    %6623 = vmatpush.xpose.msra.mxu0 %v6622
    %v6624 = vand.u32 %v23, 4294901760
    %v6625 = vsub.f32 %v23, %v6624
    %v6626 = vand.u32 %v6625, 4294901760
    %v6627 = vsub.f32 %v6625, %v6626
    %v6628 = vand.u32 %v6627, 4294901760
    %6629 = vmatpush.xpose.msra.mxu0 %v6628
    %v6630 = vand.u32 %v22, 4294901760
    %v6631 = vsub.f32 %v22, %v6630
    %v6632 = vand.u32 %v6631, 4294901760
    %v6633 = vsub.f32 %v6631, %v6632
    %v6634 = vand.u32 %v6633, 4294901760
    %6635 = vmatpush.xpose.msra.mxu0 %v6634
    %v6636 = vand.u32 %v21, 4294901760
    %v6637 = vsub.f32 %v21, %v6636
    %v6638 = vand.u32 %v6637, 4294901760
    %v6639 = vsub.f32 %v6637, %v6638
    %v6640 = vand.u32 %v6639, 4294901760
    %6641 = vmatpush.xpose.msra.mxu0 %v6640
    %v6642 = vand.u32 %v20, 4294901760
    %v6643 = vsub.f32 %v20, %v6642
    %v6644 = vand.u32 %v6643, 4294901760
    %v6645 = vsub.f32 %v6643, %v6644
    %v6646 = vand.u32 %v6645, 4294901760
    %6647 = vmatpush.xpose.msra.mxu0 %v6646
    %v6648 = vand.u32 %v19, 4294901760
    %v6649 = vsub.f32 %v19, %v6648
    %v6650 = vand.u32 %v6649, 4294901760
    %v6651 = vsub.f32 %v6649, %v6650
    %v6652 = vand.u32 %v6651, 4294901760
    %6653 = vmatpush.xpose.msra.mxu0 %v6652
    %v6654 = vand.u32 %v18, 4294901760
    %v6655 = vsub.f32 %v18, %v6654
    %v6656 = vand.u32 %v6655, 4294901760
    %v6657 = vsub.f32 %v6655, %v6656
    %v6658 = vand.u32 %v6657, 4294901760
    %6659 = vmatpush.xpose.msra.mxu0 %v6658
    %v6660 = vand.u32 %v17, 4294901760
    %v6661 = vsub.f32 %v17, %v6660
    %v6662 = vand.u32 %v6661, 4294901760
    %v6663 = vsub.f32 %v6661, %v6662
    %v6664 = vand.u32 %v6663, 4294901760
    %6665 = vmatpush.xpose.msra.mxu0 %v6664
    %v6666 = vand.u32 %v16, 4294901760
    %v6667 = vsub.f32 %v16, %v6666
    %v6668 = vand.u32 %v6667, 4294901760
    %v6669 = vsub.f32 %v6667, %v6668
    %v6670 = vand.u32 %v6669, 4294901760
    %6671 = vmatpush.xpose.msra.mxu0 %v6670
    %v6672 = vand.u32 %v15, 4294901760
    %v6673 = vsub.f32 %v15, %v6672
    %v6674 = vand.u32 %v6673, 4294901760
    %v6675 = vsub.f32 %v6673, %v6674
    %v6676 = vand.u32 %v6675, 4294901760
    %6677 = vmatpush.xpose.msra.mxu0 %v6676
    %v6678 = vand.u32 %v14, 4294901760
    %v6679 = vsub.f32 %v14, %v6678
    %v6680 = vand.u32 %v6679, 4294901760
    %v6681 = vsub.f32 %v6679, %v6680
    %v6682 = vand.u32 %v6681, 4294901760
    %6683 = vmatpush.xpose.msra.mxu0 %v6682
    %v6684 = vand.u32 %v13, 4294901760
    %v6685 = vsub.f32 %v13, %v6684
    %v6686 = vand.u32 %v6685, 4294901760
    %v6687 = vsub.f32 %v6685, %v6686
    %v6688 = vand.u32 %v6687, 4294901760
    %6689 = vmatpush.xpose.msra.mxu0 %v6688
    %v6690 = vand.u32 %v12, 4294901760
    %v6691 = vsub.f32 %v12, %v6690
    %v6692 = vand.u32 %v6691, 4294901760
    %v6693 = vsub.f32 %v6691, %v6692
    %v6694 = vand.u32 %v6693, 4294901760
    %6695 = vmatpush.xpose.msra.mxu0 %v6694
    %v6696 = vand.u32 %v6545, 4294901760
    %6697 = vmatmul.f32.gmra.mxu0 %v6696
    %v6698 = vpop.f32.mrf.mxu0
    %v6699 = vadd.f32 %v6598, %v6698
    %6700 = vdwg.mxu0
    %v6701 = vand.u32 %v27, 4294901760
    %v6702 = vsub.f32 %v27, %v6701
    %6703 = vmatpush.xpose.msra.mxu0 %v6702
    %v6704 = vand.u32 %v26, 4294901760
    %v6705 = vsub.f32 %v26, %v6704
    %6706 = vmatpush.xpose.msra.mxu0 %v6705
    %v6707 = vand.u32 %v25, 4294901760
    %v6708 = vsub.f32 %v25, %v6707
    %6709 = vmatpush.xpose.msra.mxu0 %v6708
    %v6710 = vand.u32 %v24, 4294901760
    %v6711 = vsub.f32 %v24, %v6710
    %6712 = vmatpush.xpose.msra.mxu0 %v6711
    %v6713 = vand.u32 %v23, 4294901760
    %v6714 = vsub.f32 %v23, %v6713
    %6715 = vmatpush.xpose.msra.mxu0 %v6714
    %v6716 = vand.u32 %v22, 4294901760
    %v6717 = vsub.f32 %v22, %v6716
    %6718 = vmatpush.xpose.msra.mxu0 %v6717
    %v6719 = vand.u32 %v21, 4294901760
    %v6720 = vsub.f32 %v21, %v6719
    %6721 = vmatpush.xpose.msra.mxu0 %v6720
    %v6722 = vand.u32 %v20, 4294901760
    %v6723 = vsub.f32 %v20, %v6722
    %6724 = vmatpush.xpose.msra.mxu0 %v6723
    %v6725 = vand.u32 %v19, 4294901760
    %v6726 = vsub.f32 %v19, %v6725
    %6727 = vmatpush.xpose.msra.mxu0 %v6726
    %v6728 = vand.u32 %v18, 4294901760
    %v6729 = vsub.f32 %v18, %v6728
    %6730 = vmatpush.xpose.msra.mxu0 %v6729
    %v6731 = vand.u32 %v17, 4294901760
    %v6732 = vsub.f32 %v17, %v6731
    %6733 = vmatpush.xpose.msra.mxu0 %v6732
    %v6734 = vand.u32 %v16, 4294901760
    %v6735 = vsub.f32 %v16, %v6734
    %6736 = vmatpush.xpose.msra.mxu0 %v6735
    %v6737 = vand.u32 %v15, 4294901760
    %v6738 = vsub.f32 %v15, %v6737
    %6739 = vmatpush.xpose.msra.mxu0 %v6738
    %v6740 = vand.u32 %v14, 4294901760
    %v6741 = vsub.f32 %v14, %v6740
    %6742 = vmatpush.xpose.msra.mxu0 %v6741
    %v6743 = vand.u32 %v13, 4294901760
    %v6744 = vsub.f32 %v13, %v6743
    %6745 = vmatpush.xpose.msra.mxu0 %v6744
    %v6746 = vand.u32 %v12, 4294901760
    %v6747 = vsub.f32 %v12, %v6746
    %6748 = vmatpush.xpose.msra.mxu0 %v6747
    %v6749 = vand.u32 %v6545, 4294901760
    %v6750 = vsub.f32 %v6545, %v6749
    %6751 = vmatmul.f32.gmra.mxu0 %v6750
    %v6752 = vpop.f32.mrf.mxu0
    %v6753 = vadd.f32 %v6699, %v6752
    %6754 = vdwg.mxu0
    %v6755 = vand.u32 %v27, 4294901760
    %6756 = vmatpush.xpose.msra.mxu0 %v6755
    %v6757 = vand.u32 %v26, 4294901760
    %6758 = vmatpush.xpose.msra.mxu0 %v6757
    %v6759 = vand.u32 %v25, 4294901760
    %6760 = vmatpush.xpose.msra.mxu0 %v6759
    %v6761 = vand.u32 %v24, 4294901760
    %6762 = vmatpush.xpose.msra.mxu0 %v6761
    %v6763 = vand.u32 %v23, 4294901760
    %6764 = vmatpush.xpose.msra.mxu0 %v6763
    %v6765 = vand.u32 %v22, 4294901760
    %6766 = vmatpush.xpose.msra.mxu0 %v6765
    %v6767 = vand.u32 %v21, 4294901760
    %6768 = vmatpush.xpose.msra.mxu0 %v6767
    %v6769 = vand.u32 %v20, 4294901760
    %6770 = vmatpush.xpose.msra.mxu0 %v6769
    %v6771 = vand.u32 %v19, 4294901760
    %6772 = vmatpush.xpose.msra.mxu0 %v6771
    %v6773 = vand.u32 %v18, 4294901760
    %6774 = vmatpush.xpose.msra.mxu0 %v6773
    %v6775 = vand.u32 %v17, 4294901760
    %6776 = vmatpush.xpose.msra.mxu0 %v6775
    %v6777 = vand.u32 %v16, 4294901760
    %6778 = vmatpush.xpose.msra.mxu0 %v6777
    %v6779 = vand.u32 %v15, 4294901760
    %6780 = vmatpush.xpose.msra.mxu0 %v6779
    %v6781 = vand.u32 %v14, 4294901760
    %6782 = vmatpush.xpose.msra.mxu0 %v6781
    %v6783 = vand.u32 %v13, 4294901760
    %6784 = vmatpush.xpose.msra.mxu0 %v6783
    %v6785 = vand.u32 %v12, 4294901760
    %6786 = vmatpush.xpose.msra.mxu0 %v6785
    %v6787 = vand.u32 %v6545, 4294901760
    %v6788 = vsub.f32 %v6545, %v6787
    %v6789 = vand.u32 %v6788, 4294901760
    %6790 = vmatmul.f32.gmra.mxu0 %v6789
    %v6791 = vpop.f32.mrf.mxu0
    %v6792 = vadd.f32 %v6753, %v6791
    %6793 = vdwg.mxu0
    %v6794 = vand.u32 %v27, 4294901760
    %v6795 = vsub.f32 %v27, %v6794
    %v6796 = vand.u32 %v6795, 4294901760
    %6797 = vmatpush.xpose.msra.mxu0 %v6796
    %v6798 = vand.u32 %v26, 4294901760
    %v6799 = vsub.f32 %v26, %v6798
    %v6800 = vand.u32 %v6799, 4294901760
    %6801 = vmatpush.xpose.msra.mxu0 %v6800
    %v6802 = vand.u32 %v25, 4294901760
    %v6803 = vsub.f32 %v25, %v6802
    %v6804 = vand.u32 %v6803, 4294901760
    %6805 = vmatpush.xpose.msra.mxu0 %v6804
    %v6806 = vand.u32 %v24, 4294901760
    %v6807 = vsub.f32 %v24, %v6806
    %v6808 = vand.u32 %v6807, 4294901760
    %6809 = vmatpush.xpose.msra.mxu0 %v6808
    %v6810 = vand.u32 %v23, 4294901760
    %v6811 = vsub.f32 %v23, %v6810
    %v6812 = vand.u32 %v6811, 4294901760
    %6813 = vmatpush.xpose.msra.mxu0 %v6812
    %v6814 = vand.u32 %v22, 4294901760
    %v6815 = vsub.f32 %v22, %v6814
    %v6816 = vand.u32 %v6815, 4294901760
    %6817 = vmatpush.xpose.msra.mxu0 %v6816
    %v6818 = vand.u32 %v21, 4294901760
    %v6819 = vsub.f32 %v21, %v6818
    %v6820 = vand.u32 %v6819, 4294901760
    %6821 = vmatpush.xpose.msra.mxu0 %v6820
    %v6822 = vand.u32 %v20, 4294901760
    %v6823 = vsub.f32 %v20, %v6822
    %v6824 = vand.u32 %v6823, 4294901760
    %6825 = vmatpush.xpose.msra.mxu0 %v6824
    %v6826 = vand.u32 %v19, 4294901760
    %v6827 = vsub.f32 %v19, %v6826
    %v6828 = vand.u32 %v6827, 4294901760
    %6829 = vmatpush.xpose.msra.mxu0 %v6828
    %v6830 = vand.u32 %v18, 4294901760
    %v6831 = vsub.f32 %v18, %v6830
    %v6832 = vand.u32 %v6831, 4294901760
    %6833 = vmatpush.xpose.msra.mxu0 %v6832
    %v6834 = vand.u32 %v17, 4294901760
    %v6835 = vsub.f32 %v17, %v6834
    %v6836 = vand.u32 %v6835, 4294901760
    %6837 = vmatpush.xpose.msra.mxu0 %v6836
    %v6838 = vand.u32 %v16, 4294901760
    %v6839 = vsub.f32 %v16, %v6838
    %v6840 = vand.u32 %v6839, 4294901760
    %6841 = vmatpush.xpose.msra.mxu0 %v6840
    %v6842 = vand.u32 %v15, 4294901760
    %v6843 = vsub.f32 %v15, %v6842
    %v6844 = vand.u32 %v6843, 4294901760
    %6845 = vmatpush.xpose.msra.mxu0 %v6844
    %v6846 = vand.u32 %v14, 4294901760
    %v6847 = vsub.f32 %v14, %v6846
    %v6848 = vand.u32 %v6847, 4294901760
    %6849 = vmatpush.xpose.msra.mxu0 %v6848
    %v6850 = vand.u32 %v13, 4294901760
    %v6851 = vsub.f32 %v13, %v6850
    %v6852 = vand.u32 %v6851, 4294901760
    %6853 = vmatpush.xpose.msra.mxu0 %v6852
    %v6854 = vand.u32 %v12, 4294901760
    %v6855 = vsub.f32 %v12, %v6854
    %v6856 = vand.u32 %v6855, 4294901760
    %6857 = vmatpush.xpose.msra.mxu0 %v6856
    %v6858 = vand.u32 %v6545, 4294901760
    %6859 = vmatmul.f32.gmra.mxu0 %v6858
    %v6860 = vpop.f32.mrf.mxu0
    %v6861 = vadd.f32 %v6792, %v6860
    %6862 = vdwg.mxu0
    %v6863 = vand.u32 %v27, 4294901760
    %6864 = vmatpush.xpose.msra.mxu0 %v6863
    %v6865 = vand.u32 %v26, 4294901760
    %6866 = vmatpush.xpose.msra.mxu0 %v6865
    %v6867 = vand.u32 %v25, 4294901760
    %6868 = vmatpush.xpose.msra.mxu0 %v6867
    %v6869 = vand.u32 %v24, 4294901760
    %6870 = vmatpush.xpose.msra.mxu0 %v6869
    %v6871 = vand.u32 %v23, 4294901760
    %6872 = vmatpush.xpose.msra.mxu0 %v6871
    %v6873 = vand.u32 %v22, 4294901760
    %6874 = vmatpush.xpose.msra.mxu0 %v6873
    %v6875 = vand.u32 %v21, 4294901760
    %6876 = vmatpush.xpose.msra.mxu0 %v6875
    %v6877 = vand.u32 %v20, 4294901760
    %6878 = vmatpush.xpose.msra.mxu0 %v6877
    %v6879 = vand.u32 %v19, 4294901760
    %6880 = vmatpush.xpose.msra.mxu0 %v6879
    %v6881 = vand.u32 %v18, 4294901760
    %6882 = vmatpush.xpose.msra.mxu0 %v6881
    %v6883 = vand.u32 %v17, 4294901760
    %6884 = vmatpush.xpose.msra.mxu0 %v6883
    %v6885 = vand.u32 %v16, 4294901760
    %6886 = vmatpush.xpose.msra.mxu0 %v6885
    %v6887 = vand.u32 %v15, 4294901760
    %6888 = vmatpush.xpose.msra.mxu0 %v6887
    %v6889 = vand.u32 %v14, 4294901760
    %6890 = vmatpush.xpose.msra.mxu0 %v6889
    %v6891 = vand.u32 %v13, 4294901760
    %6892 = vmatpush.xpose.msra.mxu0 %v6891
    %v6893 = vand.u32 %v12, 4294901760
    %6894 = vmatpush.xpose.msra.mxu0 %v6893
    %v6895 = vand.u32 %v6545, 4294901760
    %6896 = vmatmul.f32.gmra.mxu0 %v6895
    %v6897 = vpop.f32.mrf.mxu0
    %v6898 = vadd.f32 %v6861, %v6897
    %6899 = vdwg.mxu0
    %v6900 = vand.u32 %v27, 4294901760
    %6901 = vmatpush.msra.mxu0 %v6900
    %v6902 = vand.u32 %v26, 4294901760
    %6903 = vmatpush.msra.mxu0 %v6902
    %v6904 = vand.u32 %v25, 4294901760
    %6905 = vmatpush.msra.mxu0 %v6904
    %v6906 = vand.u32 %v24, 4294901760
    %6907 = vmatpush.msra.mxu0 %v6906
    %v6908 = vand.u32 %v23, 4294901760
    %6909 = vmatpush.msra.mxu0 %v6908
    %v6910 = vand.u32 %v22, 4294901760
    %6911 = vmatpush.msra.mxu0 %v6910
    %v6912 = vand.u32 %v21, 4294901760
    %6913 = vmatpush.msra.mxu0 %v6912
    %v6914 = vand.u32 %v20, 4294901760
    %6915 = vmatpush.msra.mxu0 %v6914
    %v6916 = vand.u32 %v19, 4294901760
    %6917 = vmatpush.msra.mxu0 %v6916
    %v6918 = vand.u32 %v18, 4294901760
    %6919 = vmatpush.msra.mxu0 %v6918
    %v6920 = vand.u32 %v17, 4294901760
    %6921 = vmatpush.msra.mxu0 %v6920
    %v6922 = vand.u32 %v16, 4294901760
    %6923 = vmatpush.msra.mxu0 %v6922
    %v6924 = vand.u32 %v15, 4294901760
    %6925 = vmatpush.msra.mxu0 %v6924
    %v6926 = vand.u32 %v14, 4294901760
    %6927 = vmatpush.msra.mxu0 %v6926
    %v6928 = vand.u32 %v13, 4294901760
    %6929 = vmatpush.msra.mxu0 %v6928
    %v6930 = vand.u32 %v12, 4294901760
    %6931 = vmatpush.msra.mxu0 %v6930
    %v6932 = vand.u32 %v6898, 4294901760
    %v6933 = vsub.f32 %v6898, %v6932
    %v6934 = vand.u32 %v6933, 4294901760
    %v6935 = vsub.f32 %v6933, %v6934
    %v6936 = vand.u32 %v6935, 4294901760
    %6937 = vmatmul.f32.gmra.mxu0 %v6936
    %v6938 = vpop.f32.mrf.mxu0
    %v6939 = vadd.f32 0.0, %v6938
    %6940 = vdwg.mxu0
    %v6941 = vand.u32 %v27, 4294901760
    %v6942 = vsub.f32 %v27, %v6941
    %v6943 = vand.u32 %v6942, 4294901760
    %v6944 = vsub.f32 %v6942, %v6943
    %v6945 = vand.u32 %v6944, 4294901760
    %6946 = vmatpush.msra.mxu0 %v6945
    %v6947 = vand.u32 %v26, 4294901760
    %v6948 = vsub.f32 %v26, %v6947
    %v6949 = vand.u32 %v6948, 4294901760
    %v6950 = vsub.f32 %v6948, %v6949
    %v6951 = vand.u32 %v6950, 4294901760
    %6952 = vmatpush.msra.mxu0 %v6951
    %v6953 = vand.u32 %v25, 4294901760
    %v6954 = vsub.f32 %v25, %v6953
    %v6955 = vand.u32 %v6954, 4294901760
    %v6956 = vsub.f32 %v6954, %v6955
    %v6957 = vand.u32 %v6956, 4294901760
    %6958 = vmatpush.msra.mxu0 %v6957
    %v6959 = vand.u32 %v24, 4294901760
    %v6960 = vsub.f32 %v24, %v6959
    %v6961 = vand.u32 %v6960, 4294901760
    %v6962 = vsub.f32 %v6960, %v6961
    %v6963 = vand.u32 %v6962, 4294901760
    %6964 = vmatpush.msra.mxu0 %v6963
    %v6965 = vand.u32 %v23, 4294901760
    %v6966 = vsub.f32 %v23, %v6965
    %v6967 = vand.u32 %v6966, 4294901760
    %v6968 = vsub.f32 %v6966, %v6967
    %v6969 = vand.u32 %v6968, 4294901760
    %6970 = vmatpush.msra.mxu0 %v6969
    %v6971 = vand.u32 %v22, 4294901760
    %v6972 = vsub.f32 %v22, %v6971
    %v6973 = vand.u32 %v6972, 4294901760
    %v6974 = vsub.f32 %v6972, %v6973
    %v6975 = vand.u32 %v6974, 4294901760
    %6976 = vmatpush.msra.mxu0 %v6975
    %v6977 = vand.u32 %v21, 4294901760
    %v6978 = vsub.f32 %v21, %v6977
    %v6979 = vand.u32 %v6978, 4294901760
    %v6980 = vsub.f32 %v6978, %v6979
    %v6981 = vand.u32 %v6980, 4294901760
    %6982 = vmatpush.msra.mxu0 %v6981
    %v6983 = vand.u32 %v20, 4294901760
    %v6984 = vsub.f32 %v20, %v6983
    %v6985 = vand.u32 %v6984, 4294901760
    %v6986 = vsub.f32 %v6984, %v6985
    %v6987 = vand.u32 %v6986, 4294901760
    %6988 = vmatpush.msra.mxu0 %v6987
    %v6989 = vand.u32 %v19, 4294901760
    %v6990 = vsub.f32 %v19, %v6989
    %v6991 = vand.u32 %v6990, 4294901760
    %v6992 = vsub.f32 %v6990, %v6991
    %v6993 = vand.u32 %v6992, 4294901760
    %6994 = vmatpush.msra.mxu0 %v6993
    %v6995 = vand.u32 %v18, 4294901760
    %v6996 = vsub.f32 %v18, %v6995
    %v6997 = vand.u32 %v6996, 4294901760
    %v6998 = vsub.f32 %v6996, %v6997
    %v6999 = vand.u32 %v6998, 4294901760
    %7000 = vmatpush.msra.mxu0 %v6999
    %v7001 = vand.u32 %v17, 4294901760
    %v7002 = vsub.f32 %v17, %v7001
    %v7003 = vand.u32 %v7002, 4294901760
    %v7004 = vsub.f32 %v7002, %v7003
    %v7005 = vand.u32 %v7004, 4294901760
    %7006 = vmatpush.msra.mxu0 %v7005
    %v7007 = vand.u32 %v16, 4294901760
    %v7008 = vsub.f32 %v16, %v7007
    %v7009 = vand.u32 %v7008, 4294901760
    %v7010 = vsub.f32 %v7008, %v7009
    %v7011 = vand.u32 %v7010, 4294901760
    %7012 = vmatpush.msra.mxu0 %v7011
    %v7013 = vand.u32 %v15, 4294901760
    %v7014 = vsub.f32 %v15, %v7013
    %v7015 = vand.u32 %v7014, 4294901760
    %v7016 = vsub.f32 %v7014, %v7015
    %v7017 = vand.u32 %v7016, 4294901760
    %7018 = vmatpush.msra.mxu0 %v7017
    %v7019 = vand.u32 %v14, 4294901760
    %v7020 = vsub.f32 %v14, %v7019
    %v7021 = vand.u32 %v7020, 4294901760
    %v7022 = vsub.f32 %v7020, %v7021
    %v7023 = vand.u32 %v7022, 4294901760
    %7024 = vmatpush.msra.mxu0 %v7023
    %v7025 = vand.u32 %v13, 4294901760
    %v7026 = vsub.f32 %v13, %v7025
    %v7027 = vand.u32 %v7026, 4294901760
    %v7028 = vsub.f32 %v7026, %v7027
    %v7029 = vand.u32 %v7028, 4294901760
    %7030 = vmatpush.msra.mxu0 %v7029
    %v7031 = vand.u32 %v12, 4294901760
    %v7032 = vsub.f32 %v12, %v7031
    %v7033 = vand.u32 %v7032, 4294901760
    %v7034 = vsub.f32 %v7032, %v7033
    %v7035 = vand.u32 %v7034, 4294901760
    %7036 = vmatpush.msra.mxu0 %v7035
    %v7037 = vand.u32 %v6898, 4294901760
    %7038 = vmatmul.f32.gmra.mxu0 %v7037
    %v7039 = vpop.f32.mrf.mxu0
    %v7040 = vadd.f32 %v6939, %v7039
    %7041 = vdwg.mxu0
    %v7042 = vand.u32 %v27, 4294901760
    %v7043 = vsub.f32 %v27, %v7042
    %7044 = vmatpush.msra.mxu0 %v7043
    %v7045 = vand.u32 %v26, 4294901760
    %v7046 = vsub.f32 %v26, %v7045
    %7047 = vmatpush.msra.mxu0 %v7046
    %v7048 = vand.u32 %v25, 4294901760
    %v7049 = vsub.f32 %v25, %v7048
    %7050 = vmatpush.msra.mxu0 %v7049
    %v7051 = vand.u32 %v24, 4294901760
    %v7052 = vsub.f32 %v24, %v7051
    %7053 = vmatpush.msra.mxu0 %v7052
    %v7054 = vand.u32 %v23, 4294901760
    %v7055 = vsub.f32 %v23, %v7054
    %7056 = vmatpush.msra.mxu0 %v7055
    %v7057 = vand.u32 %v22, 4294901760
    %v7058 = vsub.f32 %v22, %v7057
    %7059 = vmatpush.msra.mxu0 %v7058
    %v7060 = vand.u32 %v21, 4294901760
    %v7061 = vsub.f32 %v21, %v7060
    %7062 = vmatpush.msra.mxu0 %v7061
    %v7063 = vand.u32 %v20, 4294901760
    %v7064 = vsub.f32 %v20, %v7063
    %7065 = vmatpush.msra.mxu0 %v7064
    %v7066 = vand.u32 %v19, 4294901760
    %v7067 = vsub.f32 %v19, %v7066
    %7068 = vmatpush.msra.mxu0 %v7067
    %v7069 = vand.u32 %v18, 4294901760
    %v7070 = vsub.f32 %v18, %v7069
    %7071 = vmatpush.msra.mxu0 %v7070
    %v7072 = vand.u32 %v17, 4294901760
    %v7073 = vsub.f32 %v17, %v7072
    %7074 = vmatpush.msra.mxu0 %v7073
    %v7075 = vand.u32 %v16, 4294901760
    %v7076 = vsub.f32 %v16, %v7075
    %7077 = vmatpush.msra.mxu0 %v7076
    %v7078 = vand.u32 %v15, 4294901760
    %v7079 = vsub.f32 %v15, %v7078
    %7080 = vmatpush.msra.mxu0 %v7079
    %v7081 = vand.u32 %v14, 4294901760
    %v7082 = vsub.f32 %v14, %v7081
    %7083 = vmatpush.msra.mxu0 %v7082
    %v7084 = vand.u32 %v13, 4294901760
    %v7085 = vsub.f32 %v13, %v7084
    %7086 = vmatpush.msra.mxu0 %v7085
    %v7087 = vand.u32 %v12, 4294901760
    %v7088 = vsub.f32 %v12, %v7087
    %7089 = vmatpush.msra.mxu0 %v7088
    %v7090 = vand.u32 %v6898, 4294901760
    %v7091 = vsub.f32 %v6898, %v7090
    %7092 = vmatmul.f32.gmra.mxu0 %v7091
    %v7093 = vpop.f32.mrf.mxu0
    %v7094 = vadd.f32 %v7040, %v7093
    %7095 = vdwg.mxu0
    %v7096 = vand.u32 %v27, 4294901760
    %7097 = vmatpush.msra.mxu0 %v7096
    %v7098 = vand.u32 %v26, 4294901760
    %7099 = vmatpush.msra.mxu0 %v7098
    %v7100 = vand.u32 %v25, 4294901760
    %7101 = vmatpush.msra.mxu0 %v7100
    %v7102 = vand.u32 %v24, 4294901760
    %7103 = vmatpush.msra.mxu0 %v7102
    %v7104 = vand.u32 %v23, 4294901760
    %7105 = vmatpush.msra.mxu0 %v7104
    %v7106 = vand.u32 %v22, 4294901760
    %7107 = vmatpush.msra.mxu0 %v7106
    %v7108 = vand.u32 %v21, 4294901760
    %7109 = vmatpush.msra.mxu0 %v7108
    %v7110 = vand.u32 %v20, 4294901760
    %7111 = vmatpush.msra.mxu0 %v7110
    %v7112 = vand.u32 %v19, 4294901760
    %7113 = vmatpush.msra.mxu0 %v7112
    %v7114 = vand.u32 %v18, 4294901760
    %7115 = vmatpush.msra.mxu0 %v7114
    %v7116 = vand.u32 %v17, 4294901760
    %7117 = vmatpush.msra.mxu0 %v7116
    %v7118 = vand.u32 %v16, 4294901760
    %7119 = vmatpush.msra.mxu0 %v7118
    %v7120 = vand.u32 %v15, 4294901760
    %7121 = vmatpush.msra.mxu0 %v7120
    %v7122 = vand.u32 %v14, 4294901760
    %7123 = vmatpush.msra.mxu0 %v7122
    %v7124 = vand.u32 %v13, 4294901760
    %7125 = vmatpush.msra.mxu0 %v7124
    %v7126 = vand.u32 %v12, 4294901760
    %7127 = vmatpush.msra.mxu0 %v7126
    %v7128 = vand.u32 %v6898, 4294901760
    %v7129 = vsub.f32 %v6898, %v7128
    %v7130 = vand.u32 %v7129, 4294901760
    %7131 = vmatmul.f32.gmra.mxu0 %v7130
    %v7132 = vpop.f32.mrf.mxu0
    %v7133 = vadd.f32 %v7094, %v7132
    %7134 = vdwg.mxu0
    %v7135 = vand.u32 %v27, 4294901760
    %v7136 = vsub.f32 %v27, %v7135
    %v7137 = vand.u32 %v7136, 4294901760
    %7138 = vmatpush.msra.mxu0 %v7137
    %v7139 = vand.u32 %v26, 4294901760
    %v7140 = vsub.f32 %v26, %v7139
    %v7141 = vand.u32 %v7140, 4294901760
    %7142 = vmatpush.msra.mxu0 %v7141
    %v7143 = vand.u32 %v25, 4294901760
    %v7144 = vsub.f32 %v25, %v7143
    %v7145 = vand.u32 %v7144, 4294901760
    %7146 = vmatpush.msra.mxu0 %v7145
    %v7147 = vand.u32 %v24, 4294901760
    %v7148 = vsub.f32 %v24, %v7147
    %v7149 = vand.u32 %v7148, 4294901760
    %7150 = vmatpush.msra.mxu0 %v7149
    %v7151 = vand.u32 %v23, 4294901760
    %v7152 = vsub.f32 %v23, %v7151
    %v7153 = vand.u32 %v7152, 4294901760
    %7154 = vmatpush.msra.mxu0 %v7153
    %v7155 = vand.u32 %v22, 4294901760
    %v7156 = vsub.f32 %v22, %v7155
    %v7157 = vand.u32 %v7156, 4294901760
    %7158 = vmatpush.msra.mxu0 %v7157
    %v7159 = vand.u32 %v21, 4294901760
    %v7160 = vsub.f32 %v21, %v7159
    %v7161 = vand.u32 %v7160, 4294901760
    %7162 = vmatpush.msra.mxu0 %v7161
    %v7163 = vand.u32 %v20, 4294901760
    %v7164 = vsub.f32 %v20, %v7163
    %v7165 = vand.u32 %v7164, 4294901760
    %7166 = vmatpush.msra.mxu0 %v7165
    %v7167 = vand.u32 %v19, 4294901760
    %v7168 = vsub.f32 %v19, %v7167
    %v7169 = vand.u32 %v7168, 4294901760
    %7170 = vmatpush.msra.mxu0 %v7169
    %v7171 = vand.u32 %v18, 4294901760
    %v7172 = vsub.f32 %v18, %v7171
    %v7173 = vand.u32 %v7172, 4294901760
    %7174 = vmatpush.msra.mxu0 %v7173
    %v7175 = vand.u32 %v17, 4294901760
    %v7176 = vsub.f32 %v17, %v7175
    %v7177 = vand.u32 %v7176, 4294901760
    %7178 = vmatpush.msra.mxu0 %v7177
    %v7179 = vand.u32 %v16, 4294901760
    %v7180 = vsub.f32 %v16, %v7179
    %v7181 = vand.u32 %v7180, 4294901760
    %7182 = vmatpush.msra.mxu0 %v7181
    %v7183 = vand.u32 %v15, 4294901760
    %v7184 = vsub.f32 %v15, %v7183
    %v7185 = vand.u32 %v7184, 4294901760
    %7186 = vmatpush.msra.mxu0 %v7185
    %v7187 = vand.u32 %v14, 4294901760
    %v7188 = vsub.f32 %v14, %v7187
    %v7189 = vand.u32 %v7188, 4294901760
    %7190 = vmatpush.msra.mxu0 %v7189
    %v7191 = vand.u32 %v13, 4294901760
    %v7192 = vsub.f32 %v13, %v7191
    %v7193 = vand.u32 %v7192, 4294901760
    %7194 = vmatpush.msra.mxu0 %v7193
    %v7195 = vand.u32 %v12, 4294901760
    %v7196 = vsub.f32 %v12, %v7195
    %v7197 = vand.u32 %v7196, 4294901760
    %7198 = vmatpush.msra.mxu0 %v7197
    %v7199 = vand.u32 %v6898, 4294901760
    %7200 = vmatmul.f32.gmra.mxu0 %v7199
    %v7201 = vpop.f32.mrf.mxu0
    %v7202 = vadd.f32 %v7133, %v7201
    %7203 = vdwg.mxu0
    %v7204 = vand.u32 %v27, 4294901760
    %7205 = vmatpush.msra.mxu0 %v7204
    %v7206 = vand.u32 %v26, 4294901760
    %7207 = vmatpush.msra.mxu0 %v7206
    %v7208 = vand.u32 %v25, 4294901760
    %7209 = vmatpush.msra.mxu0 %v7208
    %v7210 = vand.u32 %v24, 4294901760
    %7211 = vmatpush.msra.mxu0 %v7210
    %v7212 = vand.u32 %v23, 4294901760
    %7213 = vmatpush.msra.mxu0 %v7212
    %v7214 = vand.u32 %v22, 4294901760
    %7215 = vmatpush.msra.mxu0 %v7214
    %v7216 = vand.u32 %v21, 4294901760
    %7217 = vmatpush.msra.mxu0 %v7216
    %v7218 = vand.u32 %v20, 4294901760
    %7219 = vmatpush.msra.mxu0 %v7218
    %v7220 = vand.u32 %v19, 4294901760
    %7221 = vmatpush.msra.mxu0 %v7220
    %v7222 = vand.u32 %v18, 4294901760
    %7223 = vmatpush.msra.mxu0 %v7222
    %v7224 = vand.u32 %v17, 4294901760
    %7225 = vmatpush.msra.mxu0 %v7224
    %v7226 = vand.u32 %v16, 4294901760
    %7227 = vmatpush.msra.mxu0 %v7226
    %v7228 = vand.u32 %v15, 4294901760
    %7229 = vmatpush.msra.mxu0 %v7228
    %v7230 = vand.u32 %v14, 4294901760
    %7231 = vmatpush.msra.mxu0 %v7230
    %v7232 = vand.u32 %v13, 4294901760
    %7233 = vmatpush.msra.mxu0 %v7232
    %v7234 = vand.u32 %v12, 4294901760
    %7235 = vmatpush.msra.mxu0 %v7234
    %v7236 = vand.u32 %v6898, 4294901760
    %7237 = vmatmul.f32.gmra.mxu0 %v7236
    %v7238 = vpop.f32.mrf.mxu0
    %v7239 = vadd.f32 %v7202, %v7238
    %7240 = vdwg.mxu0
    %v7241 = vmul.f32 %v7239, %v7239
    %v7242 = vsel %vm712, %v7241, 0.0
    %7243 = vadd.xlane.f32.xlu0 %v7242
    %v7244 = vpop.xlane.xlu0 %7243
    %v7245 = vrot.slane %v7244, 4
    %v7246 = vadd.f32 %v7244, %v7245
    %v7247 = vrot.slane %v7246, 2
    %v7248 = vadd.f32 %v7246, %v7247
    %v7249 = vrot.slane %v7248, 1
    %v7250 = vadd.f32 %v7248, %v7249
    %s7251 = vtos %v7250
    %s7252 = sadd.f32 %s7251, 1e-30
    %v7253 = vstv %s7252
    %v7254 = vrsqrt.pop %v7253
    %v7255 = vmul.f32 %v7254, %v7253
    %v7256 = vmul.f32 %v7255, %v7254
    %v7257 = vmul.f32 0.5, %v7256
    %v7258 = vsub.f32 1.5, %v7257
    %v7259 = vmul.f32 %v7254, %v7258
    %vm7260 = vweird.f32 %v7253
    %vm7261 = vweird.f32 %v7254
    %vm7262 = vmor %vm7260, %vm7261
    %v7263 = vsel %vm7262, %v7254, %v7259
    %s7264 = vtos %v7263
    %v7265 = vstv %s7264
    %v7266 = vmul.f32 %v7239, %v7265
    %s7267 = scalar_select %p6558, 1, 0
    %v7268 = vstv %s7267
    %vm7269 = vcmp.eq.s32.totalorder %v7268, 1
    %v7270 = vsel %vm7269, %v6545, %v7266
    %v7271 = vand.u32 %v27, 4294901760
    %7272 = vmatpush.xpose.msra.mxu0 %v7271
    %v7273 = vand.u32 %v26, 4294901760
    %7274 = vmatpush.xpose.msra.mxu0 %v7273
    %v7275 = vand.u32 %v25, 4294901760
    %7276 = vmatpush.xpose.msra.mxu0 %v7275
    %v7277 = vand.u32 %v24, 4294901760
    %7278 = vmatpush.xpose.msra.mxu0 %v7277
    %v7279 = vand.u32 %v23, 4294901760
    %7280 = vmatpush.xpose.msra.mxu0 %v7279
    %v7281 = vand.u32 %v22, 4294901760
    %7282 = vmatpush.xpose.msra.mxu0 %v7281
    %v7283 = vand.u32 %v21, 4294901760
    %7284 = vmatpush.xpose.msra.mxu0 %v7283
    %v7285 = vand.u32 %v20, 4294901760
    %7286 = vmatpush.xpose.msra.mxu0 %v7285
    %v7287 = vand.u32 %v19, 4294901760
    %7288 = vmatpush.xpose.msra.mxu0 %v7287
    %v7289 = vand.u32 %v18, 4294901760
    %7290 = vmatpush.xpose.msra.mxu0 %v7289
    %v7291 = vand.u32 %v17, 4294901760
    %7292 = vmatpush.xpose.msra.mxu0 %v7291
    %v7293 = vand.u32 %v16, 4294901760
    %7294 = vmatpush.xpose.msra.mxu0 %v7293
    %v7295 = vand.u32 %v15, 4294901760
    %7296 = vmatpush.xpose.msra.mxu0 %v7295
    %v7297 = vand.u32 %v14, 4294901760
    %7298 = vmatpush.xpose.msra.mxu0 %v7297
    %v7299 = vand.u32 %v13, 4294901760
    %7300 = vmatpush.xpose.msra.mxu0 %v7299
    %v7301 = vand.u32 %v12, 4294901760
    %7302 = vmatpush.xpose.msra.mxu0 %v7301
    %v7303 = vand.u32 %v7270, 4294901760
    %v7304 = vsub.f32 %v7270, %v7303
    %v7305 = vand.u32 %v7304, 4294901760
    %v7306 = vsub.f32 %v7304, %v7305
    %v7307 = vand.u32 %v7306, 4294901760
    %7308 = vmatmul.f32.gmra.mxu0 %v7307
    %v7309 = vpop.f32.mrf.mxu0
    %v7310 = vadd.f32 0.0, %v7309
    %7311 = vdwg.mxu0
    %v7312 = vand.u32 %v27, 4294901760
    %v7313 = vsub.f32 %v27, %v7312
    %v7314 = vand.u32 %v7313, 4294901760
    %v7315 = vsub.f32 %v7313, %v7314
    %v7316 = vand.u32 %v7315, 4294901760
    %7317 = vmatpush.xpose.msra.mxu0 %v7316
    %v7318 = vand.u32 %v26, 4294901760
    %v7319 = vsub.f32 %v26, %v7318
    %v7320 = vand.u32 %v7319, 4294901760
    %v7321 = vsub.f32 %v7319, %v7320
    %v7322 = vand.u32 %v7321, 4294901760
    %7323 = vmatpush.xpose.msra.mxu0 %v7322
    %v7324 = vand.u32 %v25, 4294901760
    %v7325 = vsub.f32 %v25, %v7324
    %v7326 = vand.u32 %v7325, 4294901760
    %v7327 = vsub.f32 %v7325, %v7326
    %v7328 = vand.u32 %v7327, 4294901760
    %7329 = vmatpush.xpose.msra.mxu0 %v7328
    %v7330 = vand.u32 %v24, 4294901760
    %v7331 = vsub.f32 %v24, %v7330
    %v7332 = vand.u32 %v7331, 4294901760
    %v7333 = vsub.f32 %v7331, %v7332
    %v7334 = vand.u32 %v7333, 4294901760
    %7335 = vmatpush.xpose.msra.mxu0 %v7334
    %v7336 = vand.u32 %v23, 4294901760
    %v7337 = vsub.f32 %v23, %v7336
    %v7338 = vand.u32 %v7337, 4294901760
    %v7339 = vsub.f32 %v7337, %v7338
    %v7340 = vand.u32 %v7339, 4294901760
    %7341 = vmatpush.xpose.msra.mxu0 %v7340
    %v7342 = vand.u32 %v22, 4294901760
    %v7343 = vsub.f32 %v22, %v7342
    %v7344 = vand.u32 %v7343, 4294901760
    %v7345 = vsub.f32 %v7343, %v7344
    %v7346 = vand.u32 %v7345, 4294901760
    %7347 = vmatpush.xpose.msra.mxu0 %v7346
    %v7348 = vand.u32 %v21, 4294901760
    %v7349 = vsub.f32 %v21, %v7348
    %v7350 = vand.u32 %v7349, 4294901760
    %v7351 = vsub.f32 %v7349, %v7350
    %v7352 = vand.u32 %v7351, 4294901760
    %7353 = vmatpush.xpose.msra.mxu0 %v7352
    %v7354 = vand.u32 %v20, 4294901760
    %v7355 = vsub.f32 %v20, %v7354
    %v7356 = vand.u32 %v7355, 4294901760
    %v7357 = vsub.f32 %v7355, %v7356
    %v7358 = vand.u32 %v7357, 4294901760
    %7359 = vmatpush.xpose.msra.mxu0 %v7358
    %v7360 = vand.u32 %v19, 4294901760
    %v7361 = vsub.f32 %v19, %v7360
    %v7362 = vand.u32 %v7361, 4294901760
    %v7363 = vsub.f32 %v7361, %v7362
    %v7364 = vand.u32 %v7363, 4294901760
    %7365 = vmatpush.xpose.msra.mxu0 %v7364
    %v7366 = vand.u32 %v18, 4294901760
    %v7367 = vsub.f32 %v18, %v7366
    %v7368 = vand.u32 %v7367, 4294901760
    %v7369 = vsub.f32 %v7367, %v7368
    %v7370 = vand.u32 %v7369, 4294901760
    %7371 = vmatpush.xpose.msra.mxu0 %v7370
    %v7372 = vand.u32 %v17, 4294901760
    %v7373 = vsub.f32 %v17, %v7372
    %v7374 = vand.u32 %v7373, 4294901760
    %v7375 = vsub.f32 %v7373, %v7374
    %v7376 = vand.u32 %v7375, 4294901760
    %7377 = vmatpush.xpose.msra.mxu0 %v7376
    %v7378 = vand.u32 %v16, 4294901760
    %v7379 = vsub.f32 %v16, %v7378
    %v7380 = vand.u32 %v7379, 4294901760
    %v7381 = vsub.f32 %v7379, %v7380
    %v7382 = vand.u32 %v7381, 4294901760
    %7383 = vmatpush.xpose.msra.mxu0 %v7382
    %v7384 = vand.u32 %v15, 4294901760
    %v7385 = vsub.f32 %v15, %v7384
    %v7386 = vand.u32 %v7385, 4294901760
    %v7387 = vsub.f32 %v7385, %v7386
    %v7388 = vand.u32 %v7387, 4294901760
    %7389 = vmatpush.xpose.msra.mxu0 %v7388
    %v7390 = vand.u32 %v14, 4294901760
    %v7391 = vsub.f32 %v14, %v7390
    %v7392 = vand.u32 %v7391, 4294901760
    %v7393 = vsub.f32 %v7391, %v7392
    %v7394 = vand.u32 %v7393, 4294901760
    %7395 = vmatpush.xpose.msra.mxu0 %v7394
    %v7396 = vand.u32 %v13, 4294901760
    %v7397 = vsub.f32 %v13, %v7396
    %v7398 = vand.u32 %v7397, 4294901760
    %v7399 = vsub.f32 %v7397, %v7398
    %v7400 = vand.u32 %v7399, 4294901760
    %7401 = vmatpush.xpose.msra.mxu0 %v7400
    %v7402 = vand.u32 %v12, 4294901760
    %v7403 = vsub.f32 %v12, %v7402
    %v7404 = vand.u32 %v7403, 4294901760
    %v7405 = vsub.f32 %v7403, %v7404
    %v7406 = vand.u32 %v7405, 4294901760
    %7407 = vmatpush.xpose.msra.mxu0 %v7406
    %v7408 = vand.u32 %v7270, 4294901760
    %7409 = vmatmul.f32.gmra.mxu0 %v7408
    %v7410 = vpop.f32.mrf.mxu0
    %v7411 = vadd.f32 %v7310, %v7410
    %7412 = vdwg.mxu0
    %v7413 = vand.u32 %v27, 4294901760
    %v7414 = vsub.f32 %v27, %v7413
    %7415 = vmatpush.xpose.msra.mxu0 %v7414
    %v7416 = vand.u32 %v26, 4294901760
    %v7417 = vsub.f32 %v26, %v7416
    %7418 = vmatpush.xpose.msra.mxu0 %v7417
    %v7419 = vand.u32 %v25, 4294901760
    %v7420 = vsub.f32 %v25, %v7419
    %7421 = vmatpush.xpose.msra.mxu0 %v7420
    %v7422 = vand.u32 %v24, 4294901760
    %v7423 = vsub.f32 %v24, %v7422
    %7424 = vmatpush.xpose.msra.mxu0 %v7423
    %v7425 = vand.u32 %v23, 4294901760
    %v7426 = vsub.f32 %v23, %v7425
    %7427 = vmatpush.xpose.msra.mxu0 %v7426
    %v7428 = vand.u32 %v22, 4294901760
    %v7429 = vsub.f32 %v22, %v7428
    %7430 = vmatpush.xpose.msra.mxu0 %v7429
    %v7431 = vand.u32 %v21, 4294901760
    %v7432 = vsub.f32 %v21, %v7431
    %7433 = vmatpush.xpose.msra.mxu0 %v7432
    %v7434 = vand.u32 %v20, 4294901760
    %v7435 = vsub.f32 %v20, %v7434
    %7436 = vmatpush.xpose.msra.mxu0 %v7435
    %v7437 = vand.u32 %v19, 4294901760
    %v7438 = vsub.f32 %v19, %v7437
    %7439 = vmatpush.xpose.msra.mxu0 %v7438
    %v7440 = vand.u32 %v18, 4294901760
    %v7441 = vsub.f32 %v18, %v7440
    %7442 = vmatpush.xpose.msra.mxu0 %v7441
    %v7443 = vand.u32 %v17, 4294901760
    %v7444 = vsub.f32 %v17, %v7443
    %7445 = vmatpush.xpose.msra.mxu0 %v7444
    %v7446 = vand.u32 %v16, 4294901760
    %v7447 = vsub.f32 %v16, %v7446
    %7448 = vmatpush.xpose.msra.mxu0 %v7447
    %v7449 = vand.u32 %v15, 4294901760
    %v7450 = vsub.f32 %v15, %v7449
    %7451 = vmatpush.xpose.msra.mxu0 %v7450
    %v7452 = vand.u32 %v14, 4294901760
    %v7453 = vsub.f32 %v14, %v7452
    %7454 = vmatpush.xpose.msra.mxu0 %v7453
    %v7455 = vand.u32 %v13, 4294901760
    %v7456 = vsub.f32 %v13, %v7455
    %7457 = vmatpush.xpose.msra.mxu0 %v7456
    %v7458 = vand.u32 %v12, 4294901760
    %v7459 = vsub.f32 %v12, %v7458
    %7460 = vmatpush.xpose.msra.mxu0 %v7459
    %v7461 = vand.u32 %v7270, 4294901760
    %v7462 = vsub.f32 %v7270, %v7461
    %7463 = vmatmul.f32.gmra.mxu0 %v7462
    %v7464 = vpop.f32.mrf.mxu0
    %v7465 = vadd.f32 %v7411, %v7464
    %7466 = vdwg.mxu0
    %v7467 = vand.u32 %v27, 4294901760
    %7468 = vmatpush.xpose.msra.mxu0 %v7467
    %v7469 = vand.u32 %v26, 4294901760
    %7470 = vmatpush.xpose.msra.mxu0 %v7469
    %v7471 = vand.u32 %v25, 4294901760
    %7472 = vmatpush.xpose.msra.mxu0 %v7471
    %v7473 = vand.u32 %v24, 4294901760
    %7474 = vmatpush.xpose.msra.mxu0 %v7473
    %v7475 = vand.u32 %v23, 4294901760
    %7476 = vmatpush.xpose.msra.mxu0 %v7475
    %v7477 = vand.u32 %v22, 4294901760
    %7478 = vmatpush.xpose.msra.mxu0 %v7477
    %v7479 = vand.u32 %v21, 4294901760
    %7480 = vmatpush.xpose.msra.mxu0 %v7479
    %v7481 = vand.u32 %v20, 4294901760
    %7482 = vmatpush.xpose.msra.mxu0 %v7481
    %v7483 = vand.u32 %v19, 4294901760
    %7484 = vmatpush.xpose.msra.mxu0 %v7483
    %v7485 = vand.u32 %v18, 4294901760
    %7486 = vmatpush.xpose.msra.mxu0 %v7485
    %v7487 = vand.u32 %v17, 4294901760
    %7488 = vmatpush.xpose.msra.mxu0 %v7487
    %v7489 = vand.u32 %v16, 4294901760
    %7490 = vmatpush.xpose.msra.mxu0 %v7489
    %v7491 = vand.u32 %v15, 4294901760
    %7492 = vmatpush.xpose.msra.mxu0 %v7491
    %v7493 = vand.u32 %v14, 4294901760
    %7494 = vmatpush.xpose.msra.mxu0 %v7493
    %v7495 = vand.u32 %v13, 4294901760
    %7496 = vmatpush.xpose.msra.mxu0 %v7495
    %v7497 = vand.u32 %v12, 4294901760
    %7498 = vmatpush.xpose.msra.mxu0 %v7497
    %v7499 = vand.u32 %v7270, 4294901760
    %v7500 = vsub.f32 %v7270, %v7499
    %v7501 = vand.u32 %v7500, 4294901760
    %7502 = vmatmul.f32.gmra.mxu0 %v7501
    %v7503 = vpop.f32.mrf.mxu0
    %v7504 = vadd.f32 %v7465, %v7503
    %7505 = vdwg.mxu0
    %v7506 = vand.u32 %v27, 4294901760
    %v7507 = vsub.f32 %v27, %v7506
    %v7508 = vand.u32 %v7507, 4294901760
    %7509 = vmatpush.xpose.msra.mxu0 %v7508
    %v7510 = vand.u32 %v26, 4294901760
    %v7511 = vsub.f32 %v26, %v7510
    %v7512 = vand.u32 %v7511, 4294901760
    %7513 = vmatpush.xpose.msra.mxu0 %v7512
    %v7514 = vand.u32 %v25, 4294901760
    %v7515 = vsub.f32 %v25, %v7514
    %v7516 = vand.u32 %v7515, 4294901760
    %7517 = vmatpush.xpose.msra.mxu0 %v7516
    %v7518 = vand.u32 %v24, 4294901760
    %v7519 = vsub.f32 %v24, %v7518
    %v7520 = vand.u32 %v7519, 4294901760
    %7521 = vmatpush.xpose.msra.mxu0 %v7520
    %v7522 = vand.u32 %v23, 4294901760
    %v7523 = vsub.f32 %v23, %v7522
    %v7524 = vand.u32 %v7523, 4294901760
    %7525 = vmatpush.xpose.msra.mxu0 %v7524
    %v7526 = vand.u32 %v22, 4294901760
    %v7527 = vsub.f32 %v22, %v7526
    %v7528 = vand.u32 %v7527, 4294901760
    %7529 = vmatpush.xpose.msra.mxu0 %v7528
    %v7530 = vand.u32 %v21, 4294901760
    %v7531 = vsub.f32 %v21, %v7530
    %v7532 = vand.u32 %v7531, 4294901760
    %7533 = vmatpush.xpose.msra.mxu0 %v7532
    %v7534 = vand.u32 %v20, 4294901760
    %v7535 = vsub.f32 %v20, %v7534
    %v7536 = vand.u32 %v7535, 4294901760
    %7537 = vmatpush.xpose.msra.mxu0 %v7536
    %v7538 = vand.u32 %v19, 4294901760
    %v7539 = vsub.f32 %v19, %v7538
    %v7540 = vand.u32 %v7539, 4294901760
    %7541 = vmatpush.xpose.msra.mxu0 %v7540
    %v7542 = vand.u32 %v18, 4294901760
    %v7543 = vsub.f32 %v18, %v7542
    %v7544 = vand.u32 %v7543, 4294901760
    %7545 = vmatpush.xpose.msra.mxu0 %v7544
    %v7546 = vand.u32 %v17, 4294901760
    %v7547 = vsub.f32 %v17, %v7546
    %v7548 = vand.u32 %v7547, 4294901760
    %7549 = vmatpush.xpose.msra.mxu0 %v7548
    %v7550 = vand.u32 %v16, 4294901760
    %v7551 = vsub.f32 %v16, %v7550
    %v7552 = vand.u32 %v7551, 4294901760
    %7553 = vmatpush.xpose.msra.mxu0 %v7552
    %v7554 = vand.u32 %v15, 4294901760
    %v7555 = vsub.f32 %v15, %v7554
    %v7556 = vand.u32 %v7555, 4294901760
    %7557 = vmatpush.xpose.msra.mxu0 %v7556
    %v7558 = vand.u32 %v14, 4294901760
    %v7559 = vsub.f32 %v14, %v7558
    %v7560 = vand.u32 %v7559, 4294901760
    %7561 = vmatpush.xpose.msra.mxu0 %v7560
    %v7562 = vand.u32 %v13, 4294901760
    %v7563 = vsub.f32 %v13, %v7562
    %v7564 = vand.u32 %v7563, 4294901760
    %7565 = vmatpush.xpose.msra.mxu0 %v7564
    %v7566 = vand.u32 %v12, 4294901760
    %v7567 = vsub.f32 %v12, %v7566
    %v7568 = vand.u32 %v7567, 4294901760
    %7569 = vmatpush.xpose.msra.mxu0 %v7568
    %v7570 = vand.u32 %v7270, 4294901760
    %7571 = vmatmul.f32.gmra.mxu0 %v7570
    %v7572 = vpop.f32.mrf.mxu0
    %v7573 = vadd.f32 %v7504, %v7572
    %7574 = vdwg.mxu0
    %v7575 = vand.u32 %v27, 4294901760
    %7576 = vmatpush.xpose.msra.mxu0 %v7575
    %v7577 = vand.u32 %v26, 4294901760
    %7578 = vmatpush.xpose.msra.mxu0 %v7577
    %v7579 = vand.u32 %v25, 4294901760
    %7580 = vmatpush.xpose.msra.mxu0 %v7579
    %v7581 = vand.u32 %v24, 4294901760
    %7582 = vmatpush.xpose.msra.mxu0 %v7581
    %v7583 = vand.u32 %v23, 4294901760
    %7584 = vmatpush.xpose.msra.mxu0 %v7583
    %v7585 = vand.u32 %v22, 4294901760
    %7586 = vmatpush.xpose.msra.mxu0 %v7585
    %v7587 = vand.u32 %v21, 4294901760
    %7588 = vmatpush.xpose.msra.mxu0 %v7587
    %v7589 = vand.u32 %v20, 4294901760
    %7590 = vmatpush.xpose.msra.mxu0 %v7589
    %v7591 = vand.u32 %v19, 4294901760
    %7592 = vmatpush.xpose.msra.mxu0 %v7591
    %v7593 = vand.u32 %v18, 4294901760
    %7594 = vmatpush.xpose.msra.mxu0 %v7593
    %v7595 = vand.u32 %v17, 4294901760
    %7596 = vmatpush.xpose.msra.mxu0 %v7595
    %v7597 = vand.u32 %v16, 4294901760
    %7598 = vmatpush.xpose.msra.mxu0 %v7597
    %v7599 = vand.u32 %v15, 4294901760
    %7600 = vmatpush.xpose.msra.mxu0 %v7599
    %v7601 = vand.u32 %v14, 4294901760
    %7602 = vmatpush.xpose.msra.mxu0 %v7601
    %v7603 = vand.u32 %v13, 4294901760
    %7604 = vmatpush.xpose.msra.mxu0 %v7603
    %v7605 = vand.u32 %v12, 4294901760
    %7606 = vmatpush.xpose.msra.mxu0 %v7605
    %v7607 = vand.u32 %v7270, 4294901760
    %7608 = vmatmul.f32.gmra.mxu0 %v7607
    %v7609 = vpop.f32.mrf.mxu0
    %v7610 = vadd.f32 %v7573, %v7609
    %7611 = vdwg.mxu0
    %v7612 = vmul.f32 %v7610, %v7610
    %v7613 = vsel %vm712, %v7612, 0.0
    %7614 = vadd.xlane.f32.xlu0 %v7613
    %v7615 = vpop.xlane.xlu0 %7614
    %v7616 = vrot.slane %v7615, 4
    %v7617 = vadd.f32 %v7615, %v7616
    %v7618 = vrot.slane %v7617, 2
    %v7619 = vadd.f32 %v7617, %v7618
    %v7620 = vrot.slane %v7619, 1
    %v7621 = vadd.f32 %v7619, %v7620
    %s7622 = vtos %v7621
    %v7623 = vstv %s7622
    %v7624 = vrsqrt.pop %v7623
    %v7625 = vmul.f32 %v7624, %v7623
    %v7626 = vmul.f32 %v7625, %v7624
    %v7627 = vmul.f32 0.5, %v7626
    %v7628 = vsub.f32 1.5, %v7627
    %v7629 = vmul.f32 %v7624, %v7628
    %v7630 = vmul.f32 %v7623, %v7629
    %vm7631 = vcmp.eq.f32.partialorder %v7623, inf
    %v7632 = vsel %vm7631, %v7623, %v7630
    %vm7633 = vcmp.eq.f32.partialorder %v7623, 0.0
    %v7634 = vand.u32 %v7623, 2147483648
    %v7635 = vsel %vm7633, %v7634, %v7632
    %s7636 = vtos %v7635
    %s7637 = smax.f32 %s7636, 1e-12
    %v7638 = vstv %s7637
    %v7639 = vrcp.pop %v7638
    %v7640 = vmul.f32 %v7638, %v7639
    %v7641 = vsub.f32 1.0, %v7640
    %v7642 = vmul.f32 %v7639, %v7641
    %v7643 = vadd.f32 %v7639, %v7642
    %vm7644 = vweird.f32 %v7638
    %vm7645 = vweird.f32 %v7639
    %vm7646 = vmor %vm7644, %vm7645
    %v7647 = vsel %vm7646, %v7639, %v7643
    %v7648 = vand.u32 2147483647, %v7638
    %vm7649 = vcmp.eq.f32.partialorder %v7648, 8.507059e+37
    %v7650 = vand.u32 %v7638, 2147483648
    %v7651 = vor.u32 1.1754944e-38, %v7650
    %v7652 = vsel %vm7649, %v7651, %v7647
    %s7653 = vtos %v7652
    %v7654 = vstv %s7653
    %v7655 = vmul.f32 %v12, %v7654
    %v7656 = vmul.f32 %v13, %v7654
    %v7657 = vmul.f32 %v14, %v7654
    %v7658 = vmul.f32 %v15, %v7654
    %v7659 = vmul.f32 %v16, %v7654
    %v7660 = vmul.f32 %v17, %v7654
    %v7661 = vmul.f32 %v18, %v7654
    %v7662 = vmul.f32 %v19, %v7654
    %v7663 = vmul.f32 %v20, %v7654
    %v7664 = vmul.f32 %v21, %v7654
    %v7665 = vmul.f32 %v22, %v7654
    %v7666 = vmul.f32 %v23, %v7654
    %v7667 = vmul.f32 %v24, %v7654
    %v7668 = vmul.f32 %v25, %v7654
    %v7669 = vmul.f32 %v26, %v7654
    %v7670 = vmul.f32 %v27, %v7654
    %7671 = vst [vmem:[#allocation2] sm:$0xff] %v7655
    %7672 = vst [vmem:[#allocation2 + $0x8] sm:$0xff] %v7656
    %7673 = vst [vmem:[#allocation2 + $0x10] sm:$0xff] %v7657
    %7674 = vst [vmem:[#allocation2 + $0x18] sm:$0xff] %v7658
    %7675 = vst [vmem:[#allocation2 + $0x20] sm:$0xff] %v7659
    %7676 = vst [vmem:[#allocation2 + $0x28] sm:$0xff] %v7660
    %7677 = vst [vmem:[#allocation2 + $0x30] sm:$0xff] %v7661
    %7678 = vst [vmem:[#allocation2 + $0x38] sm:$0xff] %v7662
    %7679 = vst [vmem:[#allocation2 + $0x40] sm:$0xff] %v7663
    %7680 = vst [vmem:[#allocation2 + $0x48] sm:$0xff] %v7664
    %7681 = vst [vmem:[#allocation2 + $0x50] sm:$0xff] %v7665
    %7682 = vst [vmem:[#allocation2 + $0x58] sm:$0xff] %v7666
    %7683 = vst [vmem:[#allocation2 + $0x60] sm:$0xff] %v7667
    %7684 = vst [vmem:[#allocation2 + $0x68] sm:$0xff] %v7668
    %7685 = vst [vmem:[#allocation2 + $0x70] sm:$0xff] %v7669
    %7686 = vst [vmem:[#allocation2 + $0x78] sm:$0xff] %v7670
    %v7687 = vlaneseq
    %v7688 = vshrl.u32 %v7687, 7
    %v7689 = vadd.s32 %v7688, 8
    %v7690 = vadd.s32 %v7688, 16
    %v7691 = vadd.s32 %v7688, 24
    %v7692 = vadd.s32 %v7688, 32
    %v7693 = vadd.s32 %v7688, 40
    %v7694 = vadd.s32 %v7688, 48
    %v7695 = vadd.s32 %v7688, 56
    %v7696 = vadd.s32 %v7688, 64
    %v7697 = vadd.s32 %v7688, 72
    %v7698 = vadd.s32 %v7688, 80
    %v7699 = vadd.s32 %v7688, 88
    %v7700 = vadd.s32 %v7688, 96
    %v7701 = vadd.s32 %v7688, 104
    %v7702 = vadd.s32 %v7688, 112
    %v7703 = vadd.s32 %v7688, 120
    %v7704 = vlaneseq
    %v7705 = vand.u32 %v7704, 127
    %vm7706 = vcmp.eq.s32.totalorder %v7688, %v7705
    %vm7707 = vcmp.eq.s32.totalorder %v7689, %v7705
    %vm7708 = vcmp.eq.s32.totalorder %v7690, %v7705
    %vm7709 = vcmp.eq.s32.totalorder %v7691, %v7705
    %vm7710 = vcmp.eq.s32.totalorder %v7692, %v7705
    %vm7711 = vcmp.eq.s32.totalorder %v7693, %v7705
    %vm7712 = vcmp.eq.s32.totalorder %v7694, %v7705
    %vm7713 = vcmp.eq.s32.totalorder %v7695, %v7705
    %vm7714 = vcmp.eq.s32.totalorder %v7696, %v7705
    %vm7715 = vcmp.eq.s32.totalorder %v7697, %v7705
    %vm7716 = vcmp.eq.s32.totalorder %v7698, %v7705
    %vm7717 = vcmp.eq.s32.totalorder %v7699, %v7705
    %vm7718 = vcmp.eq.s32.totalorder %v7700, %v7705
    %vm7719 = vcmp.eq.s32.totalorder %v7701, %v7705
    %vm7720 = vcmp.eq.s32.totalorder %v7702, %v7705
    %vm7721 = vcmp.eq.s32.totalorder %v7703, %v7705
    %vm7722 = vcmp.lt.s32.totalorder %v7688, 32
    %vm7723 = vcmp.lt.s32.totalorder %v7689, 32
    %vm7724 = vcmp.lt.s32.totalorder %v7690, 32
    %vm7725 = vcmp.lt.s32.totalorder %v7691, 32
    %vm7726 = vcmp.lt.s32.totalorder %v7692, 32
    %vm7727 = vcmp.lt.s32.totalorder %v7693, 32
    %vm7728 = vcmp.lt.s32.totalorder %v7694, 32
    %vm7729 = vcmp.lt.s32.totalorder %v7695, 32
    %vm7730 = vcmp.lt.s32.totalorder %v7696, 32
    %vm7731 = vcmp.lt.s32.totalorder %v7697, 32
    %vm7732 = vcmp.lt.s32.totalorder %v7698, 32
    %vm7733 = vcmp.lt.s32.totalorder %v7699, 32
    %vm7734 = vcmp.lt.s32.totalorder %v7700, 32
    %vm7735 = vcmp.lt.s32.totalorder %v7701, 32
    %vm7736 = vcmp.lt.s32.totalorder %v7702, 32
    %vm7737 = vcmp.lt.s32.totalorder %v7703, 32
    %vm7738 = vmand %vm7706, %vm7722
    %vm7739 = vmand %vm7707, %vm7723
    %vm7740 = vmand %vm7708, %vm7724
    %vm7741 = vmand %vm7709, %vm7725
    %vm7742 = vmand %vm7710, %vm7726
    %vm7743 = vmand %vm7711, %vm7727
    %vm7744 = vmand %vm7712, %vm7728
    %vm7745 = vmand %vm7713, %vm7729
    %vm7746 = vmand %vm7714, %vm7730
    %vm7747 = vmand %vm7715, %vm7731
    %vm7748 = vmand %vm7716, %vm7732
    %vm7749 = vmand %vm7717, %vm7733
    %vm7750 = vmand %vm7718, %vm7734
    %vm7751 = vmand %vm7719, %vm7735
    %vm7752 = vmand %vm7720, %vm7736
    %vm7753 = vmand %vm7721, %vm7737
    %v7754 = vsel %vm7738, 1.0, 0.0
    %v7755 = vsel %vm7739, 1.0, 0.0
    %v7756 = vsel %vm7740, 1.0, 0.0
    %v7757 = vsel %vm7741, 1.0, 0.0
    %v7758 = vsel %vm7742, 1.0, 0.0
    %v7759 = vsel %vm7743, 1.0, 0.0
    %v7760 = vsel %vm7744, 1.0, 0.0
    %v7761 = vsel %vm7745, 1.0, 0.0
    %v7762 = vsel %vm7746, 1.0, 0.0
    %v7763 = vsel %vm7747, 1.0, 0.0
    %v7764 = vsel %vm7748, 1.0, 0.0
    %v7765 = vsel %vm7749, 1.0, 0.0
    %v7766 = vsel %vm7750, 1.0, 0.0
    %v7767 = vsel %vm7751, 1.0, 0.0
    %v7768 = vsel %vm7752, 1.0, 0.0
    %v7769 = vsel %vm7753, 1.0, 0.0
    %s7770 = scalar_lea.smem [#allocation3], 0
    %7771 = sst [smem:[%s7770]] 0
    loop: start=0, step=1, limit=20
    $region10: #{bjorck_orthonormal_weight_t.1} parent=1 // loop_pre_header
      _
    $region11: #{bjorck_orthonormal_weight_t.1} parent=1 // loop_header
      %s7773 = sphi 0, %s7777
      %p7774 = scmp.ge.s32.totalorder %s7773, 20
    $region12: #{bjorck_orthonormal_weight_t.1} parent=1 // loop_header_branch
      %7776 = sbr.rel (%p7774) target = $region16
    $region13: #{bjorck_orthonormal_weight_t.1} parent=1 // loop_body
      %s7778 = sld [smem:[#allocation3]]
      %p7779 = scmp.eq.s32.totalorder %s7778, 0
      // Predicated region
      $region17: #{bjorck_orthonormal_weight_t.1} parent=13 // pred_check
        %p7780 = pneg %p7779
      $region18: #{bjorck_orthonormal_weight_t.1} parent=13 // pred_check_branch
        %7782 = sbr.rel (%p7780) target = $region20
      $region19: #{bjorck_orthonormal_weight_t.1} parent=13 // pred_region
        %v7783 = vld [vmem:[#allocation2] sm:$0xff]
        %v7784 = vld [vmem:[#allocation2 + $0x8] sm:$0xff]
        %v7785 = vld [vmem:[#allocation2 + $0x10] sm:$0xff]
        %v7786 = vld [vmem:[#allocation2 + $0x18] sm:$0xff]
        %v7787 = vld [vmem:[#allocation2 + $0x20] sm:$0xff]
        %v7788 = vld [vmem:[#allocation2 + $0x28] sm:$0xff]
        %v7789 = vld [vmem:[#allocation2 + $0x30] sm:$0xff]
        %v7790 = vld [vmem:[#allocation2 + $0x38] sm:$0xff]
        %v7791 = vld [vmem:[#allocation2 + $0x40] sm:$0xff]
        %v7792 = vld [vmem:[#allocation2 + $0x48] sm:$0xff]
        %v7793 = vld [vmem:[#allocation2 + $0x50] sm:$0xff]
        %v7794 = vld [vmem:[#allocation2 + $0x58] sm:$0xff]
        %v7795 = vld [vmem:[#allocation2 + $0x60] sm:$0xff]
        %v7796 = vld [vmem:[#allocation2 + $0x68] sm:$0xff]
        %v7797 = vld [vmem:[#allocation2 + $0x70] sm:$0xff]
        %v7798 = vld [vmem:[#allocation2 + $0x78] sm:$0xff]
        %v7799 = vand.u32 %v7798, 4294901760
        %7800 = vmatpush.xpose.msra.mxu0 %v7799
        %v7801 = vand.u32 %v7797, 4294901760
        %7802 = vmatpush.xpose.msra.mxu0 %v7801
        %v7803 = vand.u32 %v7796, 4294901760
        %7804 = vmatpush.xpose.msra.mxu0 %v7803
        %v7805 = vand.u32 %v7795, 4294901760
        %7806 = vmatpush.xpose.msra.mxu0 %v7805
        %v7807 = vand.u32 %v7794, 4294901760
        %7808 = vmatpush.xpose.msra.mxu0 %v7807
        %v7809 = vand.u32 %v7793, 4294901760
        %7810 = vmatpush.xpose.msra.mxu0 %v7809
        %v7811 = vand.u32 %v7792, 4294901760
        %7812 = vmatpush.xpose.msra.mxu0 %v7811
        %v7813 = vand.u32 %v7791, 4294901760
        %7814 = vmatpush.xpose.msra.mxu0 %v7813
        %v7815 = vand.u32 %v7790, 4294901760
        %7816 = vmatpush.xpose.msra.mxu0 %v7815
        %v7817 = vand.u32 %v7789, 4294901760
        %7818 = vmatpush.xpose.msra.mxu0 %v7817
        %v7819 = vand.u32 %v7788, 4294901760
        %7820 = vmatpush.xpose.msra.mxu0 %v7819
        %v7821 = vand.u32 %v7787, 4294901760
        %7822 = vmatpush.xpose.msra.mxu0 %v7821
        %v7823 = vand.u32 %v7786, 4294901760
        %7824 = vmatpush.xpose.msra.mxu0 %v7823
        %v7825 = vand.u32 %v7785, 4294901760
        %7826 = vmatpush.xpose.msra.mxu0 %v7825
        %v7827 = vand.u32 %v7784, 4294901760
        %7828 = vmatpush.xpose.msra.mxu0 %v7827
        %v7829 = vand.u32 %v7783, 4294901760
        %7830 = vmatpush.xpose.msra.mxu0 %v7829
        %v7831 = vand.u32 %v7783, 4294901760
        %v7832 = vsub.f32 %v7783, %v7831
        %v7833 = vand.u32 %v7832, 4294901760
        %v7834 = vsub.f32 %v7832, %v7833
        %v7835 = vand.u32 %v7834, 4294901760
        %7836 = vmatmul.f32.gmra.mxu0 %v7835
        %v7837 = vpop.f32.mrf.mxu0
        %v7838 = vadd.f32 0.0, %v7837
        %v7839 = vand.u32 %v7784, 4294901760
        %v7840 = vsub.f32 %v7784, %v7839
        %v7841 = vand.u32 %v7840, 4294901760
        %v7842 = vsub.f32 %v7840, %v7841
        %v7843 = vand.u32 %v7842, 4294901760
        %7844 = vmatmul.f32.gmra.mxu0 %v7843
        %v7845 = vpop.f32.mrf.mxu0
        %v7846 = vadd.f32 0.0, %v7845
        %v7847 = vand.u32 %v7785, 4294901760
        %v7848 = vsub.f32 %v7785, %v7847
        %v7849 = vand.u32 %v7848, 4294901760
        %v7850 = vsub.f32 %v7848, %v7849
        %v7851 = vand.u32 %v7850, 4294901760
        %7852 = vmatmul.f32.gmra.mxu0 %v7851
        %v7853 = vpop.f32.mrf.mxu0
        %v7854 = vadd.f32 0.0, %v7853
        %v7855 = vand.u32 %v7786, 4294901760
        %v7856 = vsub.f32 %v7786, %v7855
        %v7857 = vand.u32 %v7856, 4294901760
        %v7858 = vsub.f32 %v7856, %v7857
        %v7859 = vand.u32 %v7858, 4294901760
        %7860 = vmatmul.f32.gmra.mxu0 %v7859
        %v7861 = vpop.f32.mrf.mxu0
        %v7862 = vadd.f32 0.0, %v7861
        %v7863 = vand.u32 %v7787, 4294901760
        %v7864 = vsub.f32 %v7787, %v7863
        %v7865 = vand.u32 %v7864, 4294901760
        %v7866 = vsub.f32 %v7864, %v7865
        %v7867 = vand.u32 %v7866, 4294901760
        %7868 = vmatmul.f32.gmra.mxu0 %v7867
        %v7869 = vpop.f32.mrf.mxu0
        %v7870 = vadd.f32 0.0, %v7869
        %v7871 = vand.u32 %v7788, 4294901760
        %v7872 = vsub.f32 %v7788, %v7871
        %v7873 = vand.u32 %v7872, 4294901760
        %v7874 = vsub.f32 %v7872, %v7873
        %v7875 = vand.u32 %v7874, 4294901760
        %7876 = vmatmul.f32.gmra.mxu0 %v7875
        %v7877 = vpop.f32.mrf.mxu0
        %v7878 = vadd.f32 0.0, %v7877
        %v7879 = vand.u32 %v7789, 4294901760
        %v7880 = vsub.f32 %v7789, %v7879
        %v7881 = vand.u32 %v7880, 4294901760
        %v7882 = vsub.f32 %v7880, %v7881
        %v7883 = vand.u32 %v7882, 4294901760
        %7884 = vmatmul.f32.gmra.mxu0 %v7883
        %v7885 = vpop.f32.mrf.mxu0
        %v7886 = vadd.f32 0.0, %v7885
        %v7887 = vand.u32 %v7790, 4294901760
        %v7888 = vsub.f32 %v7790, %v7887
        %v7889 = vand.u32 %v7888, 4294901760
        %v7890 = vsub.f32 %v7888, %v7889
        %v7891 = vand.u32 %v7890, 4294901760
        %7892 = vmatmul.f32.gmra.mxu0 %v7891
        %v7893 = vpop.f32.mrf.mxu0
        %v7894 = vadd.f32 0.0, %v7893
        %v7895 = vand.u32 %v7791, 4294901760
        %v7896 = vsub.f32 %v7791, %v7895
        %v7897 = vand.u32 %v7896, 4294901760
        %v7898 = vsub.f32 %v7896, %v7897
        %v7899 = vand.u32 %v7898, 4294901760
        %7900 = vmatmul.f32.gmra.mxu0 %v7899
        %v7901 = vpop.f32.mrf.mxu0
        %v7902 = vadd.f32 0.0, %v7901
        %v7903 = vand.u32 %v7792, 4294901760
        %v7904 = vsub.f32 %v7792, %v7903
        %v7905 = vand.u32 %v7904, 4294901760
        %v7906 = vsub.f32 %v7904, %v7905
        %v7907 = vand.u32 %v7906, 4294901760
        %7908 = vmatmul.f32.gmra.mxu0 %v7907
        %v7909 = vpop.f32.mrf.mxu0
        %v7910 = vadd.f32 0.0, %v7909
        %v7911 = vand.u32 %v7793, 4294901760
        %v7912 = vsub.f32 %v7793, %v7911
        %v7913 = vand.u32 %v7912, 4294901760
        %v7914 = vsub.f32 %v7912, %v7913
        %v7915 = vand.u32 %v7914, 4294901760
        %7916 = vmatmul.f32.gmra.mxu0 %v7915
        %v7917 = vpop.f32.mrf.mxu0
        %v7918 = vadd.f32 0.0, %v7917
        %v7919 = vand.u32 %v7794, 4294901760
        %v7920 = vsub.f32 %v7794, %v7919
        %v7921 = vand.u32 %v7920, 4294901760
        %v7922 = vsub.f32 %v7920, %v7921
        %v7923 = vand.u32 %v7922, 4294901760
        %7924 = vmatmul.f32.gmra.mxu0 %v7923
        %v7925 = vpop.f32.mrf.mxu0
        %v7926 = vadd.f32 0.0, %v7925
        %v7927 = vand.u32 %v7795, 4294901760
        %v7928 = vsub.f32 %v7795, %v7927
        %v7929 = vand.u32 %v7928, 4294901760
        %v7930 = vsub.f32 %v7928, %v7929
        %v7931 = vand.u32 %v7930, 4294901760
        %7932 = vmatmul.f32.gmra.mxu0 %v7931
        %v7933 = vpop.f32.mrf.mxu0
        %v7934 = vadd.f32 0.0, %v7933
        %v7935 = vand.u32 %v7796, 4294901760
        %v7936 = vsub.f32 %v7796, %v7935
        %v7937 = vand.u32 %v7936, 4294901760
        %v7938 = vsub.f32 %v7936, %v7937
        %v7939 = vand.u32 %v7938, 4294901760
        %7940 = vmatmul.f32.gmra.mxu0 %v7939
        %v7941 = vpop.f32.mrf.mxu0
        %v7942 = vadd.f32 0.0, %v7941
        %v7943 = vand.u32 %v7797, 4294901760
        %v7944 = vsub.f32 %v7797, %v7943
        %v7945 = vand.u32 %v7944, 4294901760
        %v7946 = vsub.f32 %v7944, %v7945
        %v7947 = vand.u32 %v7946, 4294901760
        %7948 = vmatmul.f32.gmra.mxu0 %v7947
        %v7949 = vpop.f32.mrf.mxu0
        %v7950 = vadd.f32 0.0, %v7949
        %v7951 = vand.u32 %v7798, 4294901760
        %v7952 = vsub.f32 %v7798, %v7951
        %v7953 = vand.u32 %v7952, 4294901760
        %v7954 = vsub.f32 %v7952, %v7953
        %v7955 = vand.u32 %v7954, 4294901760
        %7956 = vmatmul.f32.gmra.mxu0 %v7955
        %v7957 = vpop.f32.mrf.mxu0
        %v7958 = vadd.f32 0.0, %v7957
        %7959 = vdwg.mxu0
        %v7960 = vand.u32 %v7798, 4294901760
        %v7961 = vsub.f32 %v7798, %v7960
        %v7962 = vand.u32 %v7961, 4294901760
        %v7963 = vsub.f32 %v7961, %v7962
        %v7964 = vand.u32 %v7963, 4294901760
        %7965 = vmatpush.xpose.msra.mxu0 %v7964
        %v7966 = vand.u32 %v7797, 4294901760
        %v7967 = vsub.f32 %v7797, %v7966
        %v7968 = vand.u32 %v7967, 4294901760
        %v7969 = vsub.f32 %v7967, %v7968
        %v7970 = vand.u32 %v7969, 4294901760
        %7971 = vmatpush.xpose.msra.mxu0 %v7970
        %v7972 = vand.u32 %v7796, 4294901760
        %v7973 = vsub.f32 %v7796, %v7972
        %v7974 = vand.u32 %v7973, 4294901760
        %v7975 = vsub.f32 %v7973, %v7974
        %v7976 = vand.u32 %v7975, 4294901760
        %7977 = vmatpush.xpose.msra.mxu0 %v7976
        %v7978 = vand.u32 %v7795, 4294901760
        %v7979 = vsub.f32 %v7795, %v7978
        %v7980 = vand.u32 %v7979, 4294901760
        %v7981 = vsub.f32 %v7979, %v7980
        %v7982 = vand.u32 %v7981, 4294901760
        %7983 = vmatpush.xpose.msra.mxu0 %v7982
        %v7984 = vand.u32 %v7794, 4294901760
        %v7985 = vsub.f32 %v7794, %v7984
        %v7986 = vand.u32 %v7985, 4294901760
        %v7987 = vsub.f32 %v7985, %v7986
        %v7988 = vand.u32 %v7987, 4294901760
        %7989 = vmatpush.xpose.msra.mxu0 %v7988
        %v7990 = vand.u32 %v7793, 4294901760
        %v7991 = vsub.f32 %v7793, %v7990
        %v7992 = vand.u32 %v7991, 4294901760
        %v7993 = vsub.f32 %v7991, %v7992
        %v7994 = vand.u32 %v7993, 4294901760
        %7995 = vmatpush.xpose.msra.mxu0 %v7994
        %v7996 = vand.u32 %v7792, 4294901760
        %v7997 = vsub.f32 %v7792, %v7996
        %v7998 = vand.u32 %v7997, 4294901760
        %v7999 = vsub.f32 %v7997, %v7998
        %v8000 = vand.u32 %v7999, 4294901760
        %8001 = vmatpush.xpose.msra.mxu0 %v8000
        %v8002 = vand.u32 %v7791, 4294901760
        %v8003 = vsub.f32 %v7791, %v8002
        %v8004 = vand.u32 %v8003, 4294901760
        %v8005 = vsub.f32 %v8003, %v8004
        %v8006 = vand.u32 %v8005, 4294901760
        %8007 = vmatpush.xpose.msra.mxu0 %v8006
        %v8008 = vand.u32 %v7790, 4294901760
        %v8009 = vsub.f32 %v7790, %v8008
        %v8010 = vand.u32 %v8009, 4294901760
        %v8011 = vsub.f32 %v8009, %v8010
        %v8012 = vand.u32 %v8011, 4294901760
        %8013 = vmatpush.xpose.msra.mxu0 %v8012
        %v8014 = vand.u32 %v7789, 4294901760
        %v8015 = vsub.f32 %v7789, %v8014
        %v8016 = vand.u32 %v8015, 4294901760
        %v8017 = vsub.f32 %v8015, %v8016
        %v8018 = vand.u32 %v8017, 4294901760
        %8019 = vmatpush.xpose.msra.mxu0 %v8018
        %v8020 = vand.u32 %v7788, 4294901760
        %v8021 = vsub.f32 %v7788, %v8020
        %v8022 = vand.u32 %v8021, 4294901760
        %v8023 = vsub.f32 %v8021, %v8022
        %v8024 = vand.u32 %v8023, 4294901760
        %8025 = vmatpush.xpose.msra.mxu0 %v8024
        %v8026 = vand.u32 %v7787, 4294901760
        %v8027 = vsub.f32 %v7787, %v8026
        %v8028 = vand.u32 %v8027, 4294901760
        %v8029 = vsub.f32 %v8027, %v8028
        %v8030 = vand.u32 %v8029, 4294901760
        %8031 = vmatpush.xpose.msra.mxu0 %v8030
        %v8032 = vand.u32 %v7786, 4294901760
        %v8033 = vsub.f32 %v7786, %v8032
        %v8034 = vand.u32 %v8033, 4294901760
        %v8035 = vsub.f32 %v8033, %v8034
        %v8036 = vand.u32 %v8035, 4294901760
        %8037 = vmatpush.xpose.msra.mxu0 %v8036
        %v8038 = vand.u32 %v7785, 4294901760
        %v8039 = vsub.f32 %v7785, %v8038
        %v8040 = vand.u32 %v8039, 4294901760
        %v8041 = vsub.f32 %v8039, %v8040
        %v8042 = vand.u32 %v8041, 4294901760
        %8043 = vmatpush.xpose.msra.mxu0 %v8042
        %v8044 = vand.u32 %v7784, 4294901760
        %v8045 = vsub.f32 %v7784, %v8044
        %v8046 = vand.u32 %v8045, 4294901760
        %v8047 = vsub.f32 %v8045, %v8046
        %v8048 = vand.u32 %v8047, 4294901760
        %8049 = vmatpush.xpose.msra.mxu0 %v8048
        %v8050 = vand.u32 %v7783, 4294901760
        %v8051 = vsub.f32 %v7783, %v8050
        %v8052 = vand.u32 %v8051, 4294901760
        %v8053 = vsub.f32 %v8051, %v8052
        %v8054 = vand.u32 %v8053, 4294901760
        %8055 = vmatpush.xpose.msra.mxu0 %v8054
        %v8056 = vand.u32 %v7783, 4294901760
        %8057 = vmatmul.f32.gmra.mxu0 %v8056
        %v8058 = vpop.f32.mrf.mxu0
        %v8059 = vadd.f32 %v7838, %v8058
        %v8060 = vand.u32 %v7784, 4294901760
        %8061 = vmatmul.f32.gmra.mxu0 %v8060
        %v8062 = vpop.f32.mrf.mxu0
        %v8063 = vadd.f32 %v7846, %v8062
        %v8064 = vand.u32 %v7785, 4294901760
        %8065 = vmatmul.f32.gmra.mxu0 %v8064
        %v8066 = vpop.f32.mrf.mxu0
        %v8067 = vadd.f32 %v7854, %v8066
        %v8068 = vand.u32 %v7786, 4294901760
        %8069 = vmatmul.f32.gmra.mxu0 %v8068
        %v8070 = vpop.f32.mrf.mxu0
        %v8071 = vadd.f32 %v7862, %v8070
        %v8072 = vand.u32 %v7787, 4294901760
        %8073 = vmatmul.f32.gmra.mxu0 %v8072
        %v8074 = vpop.f32.mrf.mxu0
        %v8075 = vadd.f32 %v7870, %v8074
        %v8076 = vand.u32 %v7788, 4294901760
        %8077 = vmatmul.f32.gmra.mxu0 %v8076
        %v8078 = vpop.f32.mrf.mxu0
        %v8079 = vadd.f32 %v7878, %v8078
        %v8080 = vand.u32 %v7789, 4294901760
        %8081 = vmatmul.f32.gmra.mxu0 %v8080
        %v8082 = vpop.f32.mrf.mxu0
        %v8083 = vadd.f32 %v7886, %v8082
        %v8084 = vand.u32 %v7790, 4294901760
        %8085 = vmatmul.f32.gmra.mxu0 %v8084
        %v8086 = vpop.f32.mrf.mxu0
        %v8087 = vadd.f32 %v7894, %v8086
        %v8088 = vand.u32 %v7791, 4294901760
        %8089 = vmatmul.f32.gmra.mxu0 %v8088
        %v8090 = vpop.f32.mrf.mxu0
        %v8091 = vadd.f32 %v7902, %v8090
        %v8092 = vand.u32 %v7792, 4294901760
        %8093 = vmatmul.f32.gmra.mxu0 %v8092
        %v8094 = vpop.f32.mrf.mxu0
        %v8095 = vadd.f32 %v7910, %v8094
        %v8096 = vand.u32 %v7793, 4294901760
        %8097 = vmatmul.f32.gmra.mxu0 %v8096
        %v8098 = vpop.f32.mrf.mxu0
        %v8099 = vadd.f32 %v7918, %v8098
        %v8100 = vand.u32 %v7794, 4294901760
        %8101 = vmatmul.f32.gmra.mxu0 %v8100
        %v8102 = vpop.f32.mrf.mxu0
        %v8103 = vadd.f32 %v7926, %v8102
        %v8104 = vand.u32 %v7795, 4294901760
        %8105 = vmatmul.f32.gmra.mxu0 %v8104
        %v8106 = vpop.f32.mrf.mxu0
        %v8107 = vadd.f32 %v7934, %v8106
        %v8108 = vand.u32 %v7796, 4294901760
        %8109 = vmatmul.f32.gmra.mxu0 %v8108
        %v8110 = vpop.f32.mrf.mxu0
        %v8111 = vadd.f32 %v7942, %v8110
        %v8112 = vand.u32 %v7797, 4294901760
        %8113 = vmatmul.f32.gmra.mxu0 %v8112
        %v8114 = vpop.f32.mrf.mxu0
        %v8115 = vadd.f32 %v7950, %v8114
        %v8116 = vand.u32 %v7798, 4294901760
        %8117 = vmatmul.f32.gmra.mxu0 %v8116
        %v8118 = vpop.f32.mrf.mxu0
        %v8119 = vadd.f32 %v7958, %v8118
        %8120 = vdwg.mxu0
        %v8121 = vand.u32 %v7798, 4294901760
        %v8122 = vsub.f32 %v7798, %v8121
        %8123 = vmatpush.xpose.msra.mxu0 %v8122
        %v8124 = vand.u32 %v7797, 4294901760
        %v8125 = vsub.f32 %v7797, %v8124
        %8126 = vmatpush.xpose.msra.mxu0 %v8125
        %v8127 = vand.u32 %v7796, 4294901760
        %v8128 = vsub.f32 %v7796, %v8127
        %8129 = vmatpush.xpose.msra.mxu0 %v8128
        %v8130 = vand.u32 %v7795, 4294901760
        %v8131 = vsub.f32 %v7795, %v8130
        %8132 = vmatpush.xpose.msra.mxu0 %v8131
        %v8133 = vand.u32 %v7794, 4294901760
        %v8134 = vsub.f32 %v7794, %v8133
        %8135 = vmatpush.xpose.msra.mxu0 %v8134
        %v8136 = vand.u32 %v7793, 4294901760
        %v8137 = vsub.f32 %v7793, %v8136
        %8138 = vmatpush.xpose.msra.mxu0 %v8137
        %v8139 = vand.u32 %v7792, 4294901760
        %v8140 = vsub.f32 %v7792, %v8139
        %8141 = vmatpush.xpose.msra.mxu0 %v8140
        %v8142 = vand.u32 %v7791, 4294901760
        %v8143 = vsub.f32 %v7791, %v8142
        %8144 = vmatpush.xpose.msra.mxu0 %v8143
        %v8145 = vand.u32 %v7790, 4294901760
        %v8146 = vsub.f32 %v7790, %v8145
        %8147 = vmatpush.xpose.msra.mxu0 %v8146
        %v8148 = vand.u32 %v7789, 4294901760
        %v8149 = vsub.f32 %v7789, %v8148
        %8150 = vmatpush.xpose.msra.mxu0 %v8149
        %v8151 = vand.u32 %v7788, 4294901760
        %v8152 = vsub.f32 %v7788, %v8151
        %8153 = vmatpush.xpose.msra.mxu0 %v8152
        %v8154 = vand.u32 %v7787, 4294901760
        %v8155 = vsub.f32 %v7787, %v8154
        %8156 = vmatpush.xpose.msra.mxu0 %v8155
        %v8157 = vand.u32 %v7786, 4294901760
        %v8158 = vsub.f32 %v7786, %v8157
        %8159 = vmatpush.xpose.msra.mxu0 %v8158
        %v8160 = vand.u32 %v7785, 4294901760
        %v8161 = vsub.f32 %v7785, %v8160
        %8162 = vmatpush.xpose.msra.mxu0 %v8161
        %v8163 = vand.u32 %v7784, 4294901760
        %v8164 = vsub.f32 %v7784, %v8163
        %8165 = vmatpush.xpose.msra.mxu0 %v8164
        %v8166 = vand.u32 %v7783, 4294901760
        %v8167 = vsub.f32 %v7783, %v8166
        %8168 = vmatpush.xpose.msra.mxu0 %v8167
        %v8169 = vand.u32 %v7783, 4294901760
        %v8170 = vsub.f32 %v7783, %v8169
        %8171 = vmatmul.f32.gmra.mxu0 %v8170
        %v8172 = vpop.f32.mrf.mxu0
        %v8173 = vadd.f32 %v8059, %v8172
        %v8174 = vand.u32 %v7784, 4294901760
        %v8175 = vsub.f32 %v7784, %v8174
        %8176 = vmatmul.f32.gmra.mxu0 %v8175
        %v8177 = vpop.f32.mrf.mxu0
        %v8178 = vadd.f32 %v8063, %v8177
        %v8179 = vand.u32 %v7785, 4294901760
        %v8180 = vsub.f32 %v7785, %v8179
        %8181 = vmatmul.f32.gmra.mxu0 %v8180
        %v8182 = vpop.f32.mrf.mxu0
        %v8183 = vadd.f32 %v8067, %v8182
        %v8184 = vand.u32 %v7786, 4294901760
        %v8185 = vsub.f32 %v7786, %v8184
        %8186 = vmatmul.f32.gmra.mxu0 %v8185
        %v8187 = vpop.f32.mrf.mxu0
        %v8188 = vadd.f32 %v8071, %v8187
        %v8189 = vand.u32 %v7787, 4294901760
        %v8190 = vsub.f32 %v7787, %v8189
        %8191 = vmatmul.f32.gmra.mxu0 %v8190
        %v8192 = vpop.f32.mrf.mxu0
        %v8193 = vadd.f32 %v8075, %v8192
        %v8194 = vand.u32 %v7788, 4294901760
        %v8195 = vsub.f32 %v7788, %v8194
        %8196 = vmatmul.f32.gmra.mxu0 %v8195
        %v8197 = vpop.f32.mrf.mxu0
        %v8198 = vadd.f32 %v8079, %v8197
        %v8199 = vand.u32 %v7789, 4294901760
        %v8200 = vsub.f32 %v7789, %v8199
        %8201 = vmatmul.f32.gmra.mxu0 %v8200
        %v8202 = vpop.f32.mrf.mxu0
        %v8203 = vadd.f32 %v8083, %v8202
        %v8204 = vand.u32 %v7790, 4294901760
        %v8205 = vsub.f32 %v7790, %v8204
        %8206 = vmatmul.f32.gmra.mxu0 %v8205
        %v8207 = vpop.f32.mrf.mxu0
        %v8208 = vadd.f32 %v8087, %v8207
        %v8209 = vand.u32 %v7791, 4294901760
        %v8210 = vsub.f32 %v7791, %v8209
        %8211 = vmatmul.f32.gmra.mxu0 %v8210
        %v8212 = vpop.f32.mrf.mxu0
        %v8213 = vadd.f32 %v8091, %v8212
        %v8214 = vand.u32 %v7792, 4294901760
        %v8215 = vsub.f32 %v7792, %v8214
        %8216 = vmatmul.f32.gmra.mxu0 %v8215
        %v8217 = vpop.f32.mrf.mxu0
        %v8218 = vadd.f32 %v8095, %v8217
        %v8219 = vand.u32 %v7793, 4294901760
        %v8220 = vsub.f32 %v7793, %v8219
        %8221 = vmatmul.f32.gmra.mxu0 %v8220
        %v8222 = vpop.f32.mrf.mxu0
        %v8223 = vadd.f32 %v8099, %v8222
        %v8224 = vand.u32 %v7794, 4294901760
        %v8225 = vsub.f32 %v7794, %v8224
        %8226 = vmatmul.f32.gmra.mxu0 %v8225
        %v8227 = vpop.f32.mrf.mxu0
        %v8228 = vadd.f32 %v8103, %v8227
        %v8229 = vand.u32 %v7795, 4294901760
        %v8230 = vsub.f32 %v7795, %v8229
        %8231 = vmatmul.f32.gmra.mxu0 %v8230
        %v8232 = vpop.f32.mrf.mxu0
        %v8233 = vadd.f32 %v8107, %v8232
        %v8234 = vand.u32 %v7796, 4294901760
        %v8235 = vsub.f32 %v7796, %v8234
        %8236 = vmatmul.f32.gmra.mxu0 %v8235
        %v8237 = vpop.f32.mrf.mxu0
        %v8238 = vadd.f32 %v8111, %v8237
        %v8239 = vand.u32 %v7797, 4294901760
        %v8240 = vsub.f32 %v7797, %v8239
        %8241 = vmatmul.f32.gmra.mxu0 %v8240
        %v8242 = vpop.f32.mrf.mxu0
        %v8243 = vadd.f32 %v8115, %v8242
        %v8244 = vand.u32 %v7798, 4294901760
        %v8245 = vsub.f32 %v7798, %v8244
        %8246 = vmatmul.f32.gmra.mxu0 %v8245
        %v8247 = vpop.f32.mrf.mxu0
        %v8248 = vadd.f32 %v8119, %v8247
        %8249 = vdwg.mxu0
        %v8250 = vand.u32 %v7798, 4294901760
        %8251 = vmatpush.xpose.msra.mxu0 %v8250
        %v8252 = vand.u32 %v7797, 4294901760
        %8253 = vmatpush.xpose.msra.mxu0 %v8252
        %v8254 = vand.u32 %v7796, 4294901760
        %8255 = vmatpush.xpose.msra.mxu0 %v8254
        %v8256 = vand.u32 %v7795, 4294901760
        %8257 = vmatpush.xpose.msra.mxu0 %v8256
        %v8258 = vand.u32 %v7794, 4294901760
        %8259 = vmatpush.xpose.msra.mxu0 %v8258
        %v8260 = vand.u32 %v7793, 4294901760
        %8261 = vmatpush.xpose.msra.mxu0 %v8260
        %v8262 = vand.u32 %v7792, 4294901760
        %8263 = vmatpush.xpose.msra.mxu0 %v8262
        %v8264 = vand.u32 %v7791, 4294901760
        %8265 = vmatpush.xpose.msra.mxu0 %v8264
        %v8266 = vand.u32 %v7790, 4294901760
        %8267 = vmatpush.xpose.msra.mxu0 %v8266
        %v8268 = vand.u32 %v7789, 4294901760
        %8269 = vmatpush.xpose.msra.mxu0 %v8268
        %v8270 = vand.u32 %v7788, 4294901760
        %8271 = vmatpush.xpose.msra.mxu0 %v8270
        %v8272 = vand.u32 %v7787, 4294901760
        %8273 = vmatpush.xpose.msra.mxu0 %v8272
        %v8274 = vand.u32 %v7786, 4294901760
        %8275 = vmatpush.xpose.msra.mxu0 %v8274
        %v8276 = vand.u32 %v7785, 4294901760
        %8277 = vmatpush.xpose.msra.mxu0 %v8276
        %v8278 = vand.u32 %v7784, 4294901760
        %8279 = vmatpush.xpose.msra.mxu0 %v8278
        %v8280 = vand.u32 %v7783, 4294901760
        %8281 = vmatpush.xpose.msra.mxu0 %v8280
        %v8282 = vand.u32 %v7783, 4294901760
        %v8283 = vsub.f32 %v7783, %v8282
        %v8284 = vand.u32 %v8283, 4294901760
        %8285 = vmatmul.f32.gmra.mxu0 %v8284
        %v8286 = vpop.f32.mrf.mxu0
        %v8287 = vadd.f32 %v8173, %v8286
        %v8288 = vand.u32 %v7784, 4294901760
        %v8289 = vsub.f32 %v7784, %v8288
        %v8290 = vand.u32 %v8289, 4294901760
        %8291 = vmatmul.f32.gmra.mxu0 %v8290
        %v8292 = vpop.f32.mrf.mxu0
        %v8293 = vadd.f32 %v8178, %v8292
        %v8294 = vand.u32 %v7785, 4294901760
        %v8295 = vsub.f32 %v7785, %v8294
        %v8296 = vand.u32 %v8295, 4294901760
        %8297 = vmatmul.f32.gmra.mxu0 %v8296
        %v8298 = vpop.f32.mrf.mxu0
        %v8299 = vadd.f32 %v8183, %v8298
        %v8300 = vand.u32 %v7786, 4294901760
        %v8301 = vsub.f32 %v7786, %v8300
        %v8302 = vand.u32 %v8301, 4294901760
        %8303 = vmatmul.f32.gmra.mxu0 %v8302
        %v8304 = vpop.f32.mrf.mxu0
        %v8305 = vadd.f32 %v8188, %v8304
        %v8306 = vand.u32 %v7787, 4294901760
        %v8307 = vsub.f32 %v7787, %v8306
        %v8308 = vand.u32 %v8307, 4294901760
        %8309 = vmatmul.f32.gmra.mxu0 %v8308
        %v8310 = vpop.f32.mrf.mxu0
        %v8311 = vadd.f32 %v8193, %v8310
        %v8312 = vand.u32 %v7788, 4294901760
        %v8313 = vsub.f32 %v7788, %v8312
        %v8314 = vand.u32 %v8313, 4294901760
        %8315 = vmatmul.f32.gmra.mxu0 %v8314
        %v8316 = vpop.f32.mrf.mxu0
        %v8317 = vadd.f32 %v8198, %v8316
        %v8318 = vand.u32 %v7789, 4294901760
        %v8319 = vsub.f32 %v7789, %v8318
        %v8320 = vand.u32 %v8319, 4294901760
        %8321 = vmatmul.f32.gmra.mxu0 %v8320
        %v8322 = vpop.f32.mrf.mxu0
        %v8323 = vadd.f32 %v8203, %v8322
        %v8324 = vand.u32 %v7790, 4294901760
        %v8325 = vsub.f32 %v7790, %v8324
        %v8326 = vand.u32 %v8325, 4294901760
        %8327 = vmatmul.f32.gmra.mxu0 %v8326
        %v8328 = vpop.f32.mrf.mxu0
        %v8329 = vadd.f32 %v8208, %v8328
        %v8330 = vand.u32 %v7791, 4294901760
        %v8331 = vsub.f32 %v7791, %v8330
        %v8332 = vand.u32 %v8331, 4294901760
        %8333 = vmatmul.f32.gmra.mxu0 %v8332
        %v8334 = vpop.f32.mrf.mxu0
        %v8335 = vadd.f32 %v8213, %v8334
        %v8336 = vand.u32 %v7792, 4294901760
        %v8337 = vsub.f32 %v7792, %v8336
        %v8338 = vand.u32 %v8337, 4294901760
        %8339 = vmatmul.f32.gmra.mxu0 %v8338
        %v8340 = vpop.f32.mrf.mxu0
        %v8341 = vadd.f32 %v8218, %v8340
        %v8342 = vand.u32 %v7793, 4294901760
        %v8343 = vsub.f32 %v7793, %v8342
        %v8344 = vand.u32 %v8343, 4294901760
        %8345 = vmatmul.f32.gmra.mxu0 %v8344
        %v8346 = vpop.f32.mrf.mxu0
        %v8347 = vadd.f32 %v8223, %v8346
        %v8348 = vand.u32 %v7794, 4294901760
        %v8349 = vsub.f32 %v7794, %v8348
        %v8350 = vand.u32 %v8349, 4294901760
        %8351 = vmatmul.f32.gmra.mxu0 %v8350
        %v8352 = vpop.f32.mrf.mxu0
        %v8353 = vadd.f32 %v8228, %v8352
        %v8354 = vand.u32 %v7795, 4294901760
        %v8355 = vsub.f32 %v7795, %v8354
        %v8356 = vand.u32 %v8355, 4294901760
        %8357 = vmatmul.f32.gmra.mxu0 %v8356
        %v8358 = vpop.f32.mrf.mxu0
        %v8359 = vadd.f32 %v8233, %v8358
        %v8360 = vand.u32 %v7796, 4294901760
        %v8361 = vsub.f32 %v7796, %v8360
        %v8362 = vand.u32 %v8361, 4294901760
        %8363 = vmatmul.f32.gmra.mxu0 %v8362
        %v8364 = vpop.f32.mrf.mxu0
        %v8365 = vadd.f32 %v8238, %v8364
        %v8366 = vand.u32 %v7797, 4294901760
        %v8367 = vsub.f32 %v7797, %v8366
        %v8368 = vand.u32 %v8367, 4294901760
        %8369 = vmatmul.f32.gmra.mxu0 %v8368
        %v8370 = vpop.f32.mrf.mxu0
        %v8371 = vadd.f32 %v8243, %v8370
        %v8372 = vand.u32 %v7798, 4294901760
        %v8373 = vsub.f32 %v7798, %v8372
        %v8374 = vand.u32 %v8373, 4294901760
        %8375 = vmatmul.f32.gmra.mxu0 %v8374
        %v8376 = vpop.f32.mrf.mxu0
        %v8377 = vadd.f32 %v8248, %v8376
        %8378 = vdwg.mxu0
        %v8379 = vand.u32 %v7798, 4294901760
        %v8380 = vsub.f32 %v7798, %v8379
        %v8381 = vand.u32 %v8380, 4294901760
        %8382 = vmatpush.xpose.msra.mxu0 %v8381
        %v8383 = vand.u32 %v7797, 4294901760
        %v8384 = vsub.f32 %v7797, %v8383
        %v8385 = vand.u32 %v8384, 4294901760
        %8386 = vmatpush.xpose.msra.mxu0 %v8385
        %v8387 = vand.u32 %v7796, 4294901760
        %v8388 = vsub.f32 %v7796, %v8387
        %v8389 = vand.u32 %v8388, 4294901760
        %8390 = vmatpush.xpose.msra.mxu0 %v8389
        %v8391 = vand.u32 %v7795, 4294901760
        %v8392 = vsub.f32 %v7795, %v8391
        %v8393 = vand.u32 %v8392, 4294901760
        %8394 = vmatpush.xpose.msra.mxu0 %v8393
        %v8395 = vand.u32 %v7794, 4294901760
        %v8396 = vsub.f32 %v7794, %v8395
        %v8397 = vand.u32 %v8396, 4294901760
        %8398 = vmatpush.xpose.msra.mxu0 %v8397
        %v8399 = vand.u32 %v7793, 4294901760
        %v8400 = vsub.f32 %v7793, %v8399
        %v8401 = vand.u32 %v8400, 4294901760
        %8402 = vmatpush.xpose.msra.mxu0 %v8401
        %v8403 = vand.u32 %v7792, 4294901760
        %v8404 = vsub.f32 %v7792, %v8403
        %v8405 = vand.u32 %v8404, 4294901760
        %8406 = vmatpush.xpose.msra.mxu0 %v8405
        %v8407 = vand.u32 %v7791, 4294901760
        %v8408 = vsub.f32 %v7791, %v8407
        %v8409 = vand.u32 %v8408, 4294901760
        %8410 = vmatpush.xpose.msra.mxu0 %v8409
        %v8411 = vand.u32 %v7790, 4294901760
        %v8412 = vsub.f32 %v7790, %v8411
        %v8413 = vand.u32 %v8412, 4294901760
        %8414 = vmatpush.xpose.msra.mxu0 %v8413
        %v8415 = vand.u32 %v7789, 4294901760
        %v8416 = vsub.f32 %v7789, %v8415
        %v8417 = vand.u32 %v8416, 4294901760
        %8418 = vmatpush.xpose.msra.mxu0 %v8417
        %v8419 = vand.u32 %v7788, 4294901760
        %v8420 = vsub.f32 %v7788, %v8419
        %v8421 = vand.u32 %v8420, 4294901760
        %8422 = vmatpush.xpose.msra.mxu0 %v8421
        %v8423 = vand.u32 %v7787, 4294901760
        %v8424 = vsub.f32 %v7787, %v8423
        %v8425 = vand.u32 %v8424, 4294901760
        %8426 = vmatpush.xpose.msra.mxu0 %v8425
        %v8427 = vand.u32 %v7786, 4294901760
        %v8428 = vsub.f32 %v7786, %v8427
        %v8429 = vand.u32 %v8428, 4294901760
        %8430 = vmatpush.xpose.msra.mxu0 %v8429
        %v8431 = vand.u32 %v7785, 4294901760
        %v8432 = vsub.f32 %v7785, %v8431
        %v8433 = vand.u32 %v8432, 4294901760
        %8434 = vmatpush.xpose.msra.mxu0 %v8433
        %v8435 = vand.u32 %v7784, 4294901760
        %v8436 = vsub.f32 %v7784, %v8435
        %v8437 = vand.u32 %v8436, 4294901760
        %8438 = vmatpush.xpose.msra.mxu0 %v8437
        %v8439 = vand.u32 %v7783, 4294901760
        %v8440 = vsub.f32 %v7783, %v8439
        %v8441 = vand.u32 %v8440, 4294901760
        %8442 = vmatpush.xpose.msra.mxu0 %v8441
        %v8443 = vand.u32 %v7783, 4294901760
        %8444 = vmatmul.f32.gmra.mxu0 %v8443
        %v8445 = vpop.f32.mrf.mxu0
        %v8446 = vadd.f32 %v8287, %v8445
        %v8447 = vand.u32 %v7784, 4294901760
        %8448 = vmatmul.f32.gmra.mxu0 %v8447
        %v8449 = vpop.f32.mrf.mxu0
        %v8450 = vadd.f32 %v8293, %v8449
        %v8451 = vand.u32 %v7785, 4294901760
        %8452 = vmatmul.f32.gmra.mxu0 %v8451
        %v8453 = vpop.f32.mrf.mxu0
        %v8454 = vadd.f32 %v8299, %v8453
        %v8455 = vand.u32 %v7786, 4294901760
        %8456 = vmatmul.f32.gmra.mxu0 %v8455
        %v8457 = vpop.f32.mrf.mxu0
        %v8458 = vadd.f32 %v8305, %v8457
        %v8459 = vand.u32 %v7787, 4294901760
        %8460 = vmatmul.f32.gmra.mxu0 %v8459
        %v8461 = vpop.f32.mrf.mxu0
        %v8462 = vadd.f32 %v8311, %v8461
        %v8463 = vand.u32 %v7788, 4294901760
        %8464 = vmatmul.f32.gmra.mxu0 %v8463
        %v8465 = vpop.f32.mrf.mxu0
        %v8466 = vadd.f32 %v8317, %v8465
        %v8467 = vand.u32 %v7789, 4294901760
        %8468 = vmatmul.f32.gmra.mxu0 %v8467
        %v8469 = vpop.f32.mrf.mxu0
        %v8470 = vadd.f32 %v8323, %v8469
        %v8471 = vand.u32 %v7790, 4294901760
        %8472 = vmatmul.f32.gmra.mxu0 %v8471
        %v8473 = vpop.f32.mrf.mxu0
        %v8474 = vadd.f32 %v8329, %v8473
        %v8475 = vand.u32 %v7791, 4294901760
        %8476 = vmatmul.f32.gmra.mxu0 %v8475
        %v8477 = vpop.f32.mrf.mxu0
        %v8478 = vadd.f32 %v8335, %v8477
        %v8479 = vand.u32 %v7792, 4294901760
        %8480 = vmatmul.f32.gmra.mxu0 %v8479
        %v8481 = vpop.f32.mrf.mxu0
        %v8482 = vadd.f32 %v8341, %v8481
        %v8483 = vand.u32 %v7793, 4294901760
        %8484 = vmatmul.f32.gmra.mxu0 %v8483
        %v8485 = vpop.f32.mrf.mxu0
        %v8486 = vadd.f32 %v8347, %v8485
        %v8487 = vand.u32 %v7794, 4294901760
        %8488 = vmatmul.f32.gmra.mxu0 %v8487
        %v8489 = vpop.f32.mrf.mxu0
        %v8490 = vadd.f32 %v8353, %v8489
        %v8491 = vand.u32 %v7795, 4294901760
        %8492 = vmatmul.f32.gmra.mxu0 %v8491
        %v8493 = vpop.f32.mrf.mxu0
        %v8494 = vadd.f32 %v8359, %v8493
        %v8495 = vand.u32 %v7796, 4294901760
        %8496 = vmatmul.f32.gmra.mxu0 %v8495
        %v8497 = vpop.f32.mrf.mxu0
        %v8498 = vadd.f32 %v8365, %v8497
        %v8499 = vand.u32 %v7797, 4294901760
        %8500 = vmatmul.f32.gmra.mxu0 %v8499
        %v8501 = vpop.f32.mrf.mxu0
        %v8502 = vadd.f32 %v8371, %v8501
        %v8503 = vand.u32 %v7798, 4294901760
        %8504 = vmatmul.f32.gmra.mxu0 %v8503
        %v8505 = vpop.f32.mrf.mxu0
        %v8506 = vadd.f32 %v8377, %v8505
        %8507 = vdwg.mxu0
        %v8508 = vand.u32 %v7798, 4294901760
        %8509 = vmatpush.xpose.msra.mxu0 %v8508
        %v8510 = vand.u32 %v7797, 4294901760
        %8511 = vmatpush.xpose.msra.mxu0 %v8510
        %v8512 = vand.u32 %v7796, 4294901760
        %8513 = vmatpush.xpose.msra.mxu0 %v8512
        %v8514 = vand.u32 %v7795, 4294901760
        %8515 = vmatpush.xpose.msra.mxu0 %v8514
        %v8516 = vand.u32 %v7794, 4294901760
        %8517 = vmatpush.xpose.msra.mxu0 %v8516
        %v8518 = vand.u32 %v7793, 4294901760
        %8519 = vmatpush.xpose.msra.mxu0 %v8518
        %v8520 = vand.u32 %v7792, 4294901760
        %8521 = vmatpush.xpose.msra.mxu0 %v8520
        %v8522 = vand.u32 %v7791, 4294901760
        %8523 = vmatpush.xpose.msra.mxu0 %v8522
        %v8524 = vand.u32 %v7790, 4294901760
        %8525 = vmatpush.xpose.msra.mxu0 %v8524
        %v8526 = vand.u32 %v7789, 4294901760
        %8527 = vmatpush.xpose.msra.mxu0 %v8526
        %v8528 = vand.u32 %v7788, 4294901760
        %8529 = vmatpush.xpose.msra.mxu0 %v8528
        %v8530 = vand.u32 %v7787, 4294901760
        %8531 = vmatpush.xpose.msra.mxu0 %v8530
        %v8532 = vand.u32 %v7786, 4294901760
        %8533 = vmatpush.xpose.msra.mxu0 %v8532
        %v8534 = vand.u32 %v7785, 4294901760
        %8535 = vmatpush.xpose.msra.mxu0 %v8534
        %v8536 = vand.u32 %v7784, 4294901760
        %8537 = vmatpush.xpose.msra.mxu0 %v8536
        %v8538 = vand.u32 %v7783, 4294901760
        %8539 = vmatpush.xpose.msra.mxu0 %v8538
        %v8540 = vand.u32 %v7783, 4294901760
        %8541 = vmatmul.f32.gmra.mxu0 %v8540
        %v8542 = vpop.f32.mrf.mxu0
        %v8543 = vadd.f32 %v8446, %v8542
        %v8544 = vand.u32 %v7784, 4294901760
        %8545 = vmatmul.f32.gmra.mxu0 %v8544
        %v8546 = vpop.f32.mrf.mxu0
        %v8547 = vadd.f32 %v8450, %v8546
        %v8548 = vand.u32 %v7785, 4294901760
        %8549 = vmatmul.f32.gmra.mxu0 %v8548
        %v8550 = vpop.f32.mrf.mxu0
        %v8551 = vadd.f32 %v8454, %v8550
        %v8552 = vand.u32 %v7786, 4294901760
        %8553 = vmatmul.f32.gmra.mxu0 %v8552
        %v8554 = vpop.f32.mrf.mxu0
        %v8555 = vadd.f32 %v8458, %v8554
        %v8556 = vand.u32 %v7787, 4294901760
        %8557 = vmatmul.f32.gmra.mxu0 %v8556
        %v8558 = vpop.f32.mrf.mxu0
        %v8559 = vadd.f32 %v8462, %v8558
        %v8560 = vand.u32 %v7788, 4294901760
        %8561 = vmatmul.f32.gmra.mxu0 %v8560
        %v8562 = vpop.f32.mrf.mxu0
        %v8563 = vadd.f32 %v8466, %v8562
        %v8564 = vand.u32 %v7789, 4294901760
        %8565 = vmatmul.f32.gmra.mxu0 %v8564
        %v8566 = vpop.f32.mrf.mxu0
        %v8567 = vadd.f32 %v8470, %v8566
        %v8568 = vand.u32 %v7790, 4294901760
        %8569 = vmatmul.f32.gmra.mxu0 %v8568
        %v8570 = vpop.f32.mrf.mxu0
        %v8571 = vadd.f32 %v8474, %v8570
        %v8572 = vand.u32 %v7791, 4294901760
        %8573 = vmatmul.f32.gmra.mxu0 %v8572
        %v8574 = vpop.f32.mrf.mxu0
        %v8575 = vadd.f32 %v8478, %v8574
        %v8576 = vand.u32 %v7792, 4294901760
        %8577 = vmatmul.f32.gmra.mxu0 %v8576
        %v8578 = vpop.f32.mrf.mxu0
        %v8579 = vadd.f32 %v8482, %v8578
        %v8580 = vand.u32 %v7793, 4294901760
        %8581 = vmatmul.f32.gmra.mxu0 %v8580
        %v8582 = vpop.f32.mrf.mxu0
        %v8583 = vadd.f32 %v8486, %v8582
        %v8584 = vand.u32 %v7794, 4294901760
        %8585 = vmatmul.f32.gmra.mxu0 %v8584
        %v8586 = vpop.f32.mrf.mxu0
        %v8587 = vadd.f32 %v8490, %v8586
        %v8588 = vand.u32 %v7795, 4294901760
        %8589 = vmatmul.f32.gmra.mxu0 %v8588
        %v8590 = vpop.f32.mrf.mxu0
        %v8591 = vadd.f32 %v8494, %v8590
        %v8592 = vand.u32 %v7796, 4294901760
        %8593 = vmatmul.f32.gmra.mxu0 %v8592
        %v8594 = vpop.f32.mrf.mxu0
        %v8595 = vadd.f32 %v8498, %v8594
        %v8596 = vand.u32 %v7797, 4294901760
        %8597 = vmatmul.f32.gmra.mxu0 %v8596
        %v8598 = vpop.f32.mrf.mxu0
        %v8599 = vadd.f32 %v8502, %v8598
        %v8600 = vand.u32 %v7798, 4294901760
        %8601 = vmatmul.f32.gmra.mxu0 %v8600
        %v8602 = vpop.f32.mrf.mxu0
        %v8603 = vadd.f32 %v8506, %v8602
        %8604 = vdwg.mxu0
        %v8605 = vand.u32 %v7798, 4294901760
        %8606 = vmatpush.msra.mxu0 %v8605
        %v8607 = vand.u32 %v7797, 4294901760
        %8608 = vmatpush.msra.mxu0 %v8607
        %v8609 = vand.u32 %v7796, 4294901760
        %8610 = vmatpush.msra.mxu0 %v8609
        %v8611 = vand.u32 %v7795, 4294901760
        %8612 = vmatpush.msra.mxu0 %v8611
        %v8613 = vand.u32 %v7794, 4294901760
        %8614 = vmatpush.msra.mxu0 %v8613
        %v8615 = vand.u32 %v7793, 4294901760
        %8616 = vmatpush.msra.mxu0 %v8615
        %v8617 = vand.u32 %v7792, 4294901760
        %8618 = vmatpush.msra.mxu0 %v8617
        %v8619 = vand.u32 %v7791, 4294901760
        %8620 = vmatpush.msra.mxu0 %v8619
        %v8621 = vand.u32 %v7790, 4294901760
        %8622 = vmatpush.msra.mxu0 %v8621
        %v8623 = vand.u32 %v7789, 4294901760
        %8624 = vmatpush.msra.mxu0 %v8623
        %v8625 = vand.u32 %v7788, 4294901760
        %8626 = vmatpush.msra.mxu0 %v8625
        %v8627 = vand.u32 %v7787, 4294901760
        %8628 = vmatpush.msra.mxu0 %v8627
        %v8629 = vand.u32 %v7786, 4294901760
        %8630 = vmatpush.msra.mxu0 %v8629
        %v8631 = vand.u32 %v7785, 4294901760
        %8632 = vmatpush.msra.mxu0 %v8631
        %v8633 = vand.u32 %v7784, 4294901760
        %8634 = vmatpush.msra.mxu0 %v8633
        %v8635 = vand.u32 %v7783, 4294901760
        %8636 = vmatpush.msra.mxu0 %v8635
        %v8637 = vand.u32 %v8543, 4294901760
        %v8638 = vsub.f32 %v8543, %v8637
        %v8639 = vand.u32 %v8638, 4294901760
        %v8640 = vsub.f32 %v8638, %v8639
        %v8641 = vand.u32 %v8640, 4294901760
        %8642 = vmatmul.f32.gmra.mxu0 %v8641
        %v8643 = vpop.f32.mrf.mxu0
        %v8644 = vadd.f32 0.0, %v8643
        %v8645 = vand.u32 %v8547, 4294901760
        %v8646 = vsub.f32 %v8547, %v8645
        %v8647 = vand.u32 %v8646, 4294901760
        %v8648 = vsub.f32 %v8646, %v8647
        %v8649 = vand.u32 %v8648, 4294901760
        %8650 = vmatmul.f32.gmra.mxu0 %v8649
        %v8651 = vpop.f32.mrf.mxu0
        %v8652 = vadd.f32 0.0, %v8651
        %v8653 = vand.u32 %v8551, 4294901760
        %v8654 = vsub.f32 %v8551, %v8653
        %v8655 = vand.u32 %v8654, 4294901760
        %v8656 = vsub.f32 %v8654, %v8655
        %v8657 = vand.u32 %v8656, 4294901760
        %8658 = vmatmul.f32.gmra.mxu0 %v8657
        %v8659 = vpop.f32.mrf.mxu0
        %v8660 = vadd.f32 0.0, %v8659
        %v8661 = vand.u32 %v8555, 4294901760
        %v8662 = vsub.f32 %v8555, %v8661
        %v8663 = vand.u32 %v8662, 4294901760
        %v8664 = vsub.f32 %v8662, %v8663
        %v8665 = vand.u32 %v8664, 4294901760
        %8666 = vmatmul.f32.gmra.mxu0 %v8665
        %v8667 = vpop.f32.mrf.mxu0
        %v8668 = vadd.f32 0.0, %v8667
        %v8669 = vand.u32 %v8559, 4294901760
        %v8670 = vsub.f32 %v8559, %v8669
        %v8671 = vand.u32 %v8670, 4294901760
        %v8672 = vsub.f32 %v8670, %v8671
        %v8673 = vand.u32 %v8672, 4294901760
        %8674 = vmatmul.f32.gmra.mxu0 %v8673
        %v8675 = vpop.f32.mrf.mxu0
        %v8676 = vadd.f32 0.0, %v8675
        %v8677 = vand.u32 %v8563, 4294901760
        %v8678 = vsub.f32 %v8563, %v8677
        %v8679 = vand.u32 %v8678, 4294901760
        %v8680 = vsub.f32 %v8678, %v8679
        %v8681 = vand.u32 %v8680, 4294901760
        %8682 = vmatmul.f32.gmra.mxu0 %v8681
        %v8683 = vpop.f32.mrf.mxu0
        %v8684 = vadd.f32 0.0, %v8683
        %v8685 = vand.u32 %v8567, 4294901760
        %v8686 = vsub.f32 %v8567, %v8685
        %v8687 = vand.u32 %v8686, 4294901760
        %v8688 = vsub.f32 %v8686, %v8687
        %v8689 = vand.u32 %v8688, 4294901760
        %8690 = vmatmul.f32.gmra.mxu0 %v8689
        %v8691 = vpop.f32.mrf.mxu0
        %v8692 = vadd.f32 0.0, %v8691
        %v8693 = vand.u32 %v8571, 4294901760
        %v8694 = vsub.f32 %v8571, %v8693
        %v8695 = vand.u32 %v8694, 4294901760
        %v8696 = vsub.f32 %v8694, %v8695
        %v8697 = vand.u32 %v8696, 4294901760
        %8698 = vmatmul.f32.gmra.mxu0 %v8697
        %v8699 = vpop.f32.mrf.mxu0
        %v8700 = vadd.f32 0.0, %v8699
        %v8701 = vand.u32 %v8575, 4294901760
        %v8702 = vsub.f32 %v8575, %v8701
        %v8703 = vand.u32 %v8702, 4294901760
        %v8704 = vsub.f32 %v8702, %v8703
        %v8705 = vand.u32 %v8704, 4294901760
        %8706 = vmatmul.f32.gmra.mxu0 %v8705
        %v8707 = vpop.f32.mrf.mxu0
        %v8708 = vadd.f32 0.0, %v8707
        %v8709 = vand.u32 %v8579, 4294901760
        %v8710 = vsub.f32 %v8579, %v8709
        %v8711 = vand.u32 %v8710, 4294901760
        %v8712 = vsub.f32 %v8710, %v8711
        %v8713 = vand.u32 %v8712, 4294901760
        %8714 = vmatmul.f32.gmra.mxu0 %v8713
        %v8715 = vpop.f32.mrf.mxu0
        %v8716 = vadd.f32 0.0, %v8715
        %v8717 = vand.u32 %v8583, 4294901760
        %v8718 = vsub.f32 %v8583, %v8717
        %v8719 = vand.u32 %v8718, 4294901760
        %v8720 = vsub.f32 %v8718, %v8719
        %v8721 = vand.u32 %v8720, 4294901760
        %8722 = vmatmul.f32.gmra.mxu0 %v8721
        %v8723 = vpop.f32.mrf.mxu0
        %v8724 = vadd.f32 0.0, %v8723
        %v8725 = vand.u32 %v8587, 4294901760
        %v8726 = vsub.f32 %v8587, %v8725
        %v8727 = vand.u32 %v8726, 4294901760
        %v8728 = vsub.f32 %v8726, %v8727
        %v8729 = vand.u32 %v8728, 4294901760
        %8730 = vmatmul.f32.gmra.mxu0 %v8729
        %v8731 = vpop.f32.mrf.mxu0
        %v8732 = vadd.f32 0.0, %v8731
        %v8733 = vand.u32 %v8591, 4294901760
        %v8734 = vsub.f32 %v8591, %v8733
        %v8735 = vand.u32 %v8734, 4294901760
        %v8736 = vsub.f32 %v8734, %v8735
        %v8737 = vand.u32 %v8736, 4294901760
        %8738 = vmatmul.f32.gmra.mxu0 %v8737
        %v8739 = vpop.f32.mrf.mxu0
        %v8740 = vadd.f32 0.0, %v8739
        %v8741 = vand.u32 %v8595, 4294901760
        %v8742 = vsub.f32 %v8595, %v8741
        %v8743 = vand.u32 %v8742, 4294901760
        %v8744 = vsub.f32 %v8742, %v8743
        %v8745 = vand.u32 %v8744, 4294901760
        %8746 = vmatmul.f32.gmra.mxu0 %v8745
        %v8747 = vpop.f32.mrf.mxu0
        %v8748 = vadd.f32 0.0, %v8747
        %v8749 = vand.u32 %v8599, 4294901760
        %v8750 = vsub.f32 %v8599, %v8749
        %v8751 = vand.u32 %v8750, 4294901760
        %v8752 = vsub.f32 %v8750, %v8751
        %v8753 = vand.u32 %v8752, 4294901760
        %8754 = vmatmul.f32.gmra.mxu0 %v8753
        %v8755 = vpop.f32.mrf.mxu0
        %v8756 = vadd.f32 0.0, %v8755
        %v8757 = vand.u32 %v8603, 4294901760
        %v8758 = vsub.f32 %v8603, %v8757
        %v8759 = vand.u32 %v8758, 4294901760
        %v8760 = vsub.f32 %v8758, %v8759
        %v8761 = vand.u32 %v8760, 4294901760
        %8762 = vmatmul.f32.gmra.mxu0 %v8761
        %v8763 = vpop.f32.mrf.mxu0
        %v8764 = vadd.f32 0.0, %v8763
        %8765 = vdwg.mxu0
        %v8766 = vand.u32 %v7798, 4294901760
        %v8767 = vsub.f32 %v7798, %v8766
        %v8768 = vand.u32 %v8767, 4294901760
        %v8769 = vsub.f32 %v8767, %v8768
        %v8770 = vand.u32 %v8769, 4294901760
        %8771 = vmatpush.msra.mxu0 %v8770
        %v8772 = vand.u32 %v7797, 4294901760
        %v8773 = vsub.f32 %v7797, %v8772
        %v8774 = vand.u32 %v8773, 4294901760
        %v8775 = vsub.f32 %v8773, %v8774
        %v8776 = vand.u32 %v8775, 4294901760
        %8777 = vmatpush.msra.mxu0 %v8776
        %v8778 = vand.u32 %v7796, 4294901760
        %v8779 = vsub.f32 %v7796, %v8778
        %v8780 = vand.u32 %v8779, 4294901760
        %v8781 = vsub.f32 %v8779, %v8780
        %v8782 = vand.u32 %v8781, 4294901760
        %8783 = vmatpush.msra.mxu0 %v8782
        %v8784 = vand.u32 %v7795, 4294901760
        %v8785 = vsub.f32 %v7795, %v8784
        %v8786 = vand.u32 %v8785, 4294901760
        %v8787 = vsub.f32 %v8785, %v8786
        %v8788 = vand.u32 %v8787, 4294901760
        %8789 = vmatpush.msra.mxu0 %v8788
        %v8790 = vand.u32 %v7794, 4294901760
        %v8791 = vsub.f32 %v7794, %v8790
        %v8792 = vand.u32 %v8791, 4294901760
        %v8793 = vsub.f32 %v8791, %v8792
        %v8794 = vand.u32 %v8793, 4294901760
        %8795 = vmatpush.msra.mxu0 %v8794
        %v8796 = vand.u32 %v7793, 4294901760
        %v8797 = vsub.f32 %v7793, %v8796
        %v8798 = vand.u32 %v8797, 4294901760
        %v8799 = vsub.f32 %v8797, %v8798
        %v8800 = vand.u32 %v8799, 4294901760
        %8801 = vmatpush.msra.mxu0 %v8800
        %v8802 = vand.u32 %v7792, 4294901760
        %v8803 = vsub.f32 %v7792, %v8802
        %v8804 = vand.u32 %v8803, 4294901760
        %v8805 = vsub.f32 %v8803, %v8804
        %v8806 = vand.u32 %v8805, 4294901760
        %8807 = vmatpush.msra.mxu0 %v8806
        %v8808 = vand.u32 %v7791, 4294901760
        %v8809 = vsub.f32 %v7791, %v8808
        %v8810 = vand.u32 %v8809, 4294901760
        %v8811 = vsub.f32 %v8809, %v8810
        %v8812 = vand.u32 %v8811, 4294901760
        %8813 = vmatpush.msra.mxu0 %v8812
        %v8814 = vand.u32 %v7790, 4294901760
        %v8815 = vsub.f32 %v7790, %v8814
        %v8816 = vand.u32 %v8815, 4294901760
        %v8817 = vsub.f32 %v8815, %v8816
        %v8818 = vand.u32 %v8817, 4294901760
        %8819 = vmatpush.msra.mxu0 %v8818
        %v8820 = vand.u32 %v7789, 4294901760
        %v8821 = vsub.f32 %v7789, %v8820
        %v8822 = vand.u32 %v8821, 4294901760
        %v8823 = vsub.f32 %v8821, %v8822
        %v8824 = vand.u32 %v8823, 4294901760
        %8825 = vmatpush.msra.mxu0 %v8824
        %v8826 = vand.u32 %v7788, 4294901760
        %v8827 = vsub.f32 %v7788, %v8826
        %v8828 = vand.u32 %v8827, 4294901760
        %v8829 = vsub.f32 %v8827, %v8828
        %v8830 = vand.u32 %v8829, 4294901760
        %8831 = vmatpush.msra.mxu0 %v8830
        %v8832 = vand.u32 %v7787, 4294901760
        %v8833 = vsub.f32 %v7787, %v8832
        %v8834 = vand.u32 %v8833, 4294901760
        %v8835 = vsub.f32 %v8833, %v8834
        %v8836 = vand.u32 %v8835, 4294901760
        %8837 = vmatpush.msra.mxu0 %v8836
        %v8838 = vand.u32 %v7786, 4294901760
        %v8839 = vsub.f32 %v7786, %v8838
        %v8840 = vand.u32 %v8839, 4294901760
        %v8841 = vsub.f32 %v8839, %v8840
        %v8842 = vand.u32 %v8841, 4294901760
        %8843 = vmatpush.msra.mxu0 %v8842
        %v8844 = vand.u32 %v7785, 4294901760
        %v8845 = vsub.f32 %v7785, %v8844
        %v8846 = vand.u32 %v8845, 4294901760
        %v8847 = vsub.f32 %v8845, %v8846
        %v8848 = vand.u32 %v8847, 4294901760
        %8849 = vmatpush.msra.mxu0 %v8848
        %v8850 = vand.u32 %v7784, 4294901760
        %v8851 = vsub.f32 %v7784, %v8850
        %v8852 = vand.u32 %v8851, 4294901760
        %v8853 = vsub.f32 %v8851, %v8852
        %v8854 = vand.u32 %v8853, 4294901760
        %8855 = vmatpush.msra.mxu0 %v8854
        %v8856 = vand.u32 %v7783, 4294901760
        %v8857 = vsub.f32 %v7783, %v8856
        %v8858 = vand.u32 %v8857, 4294901760
        %v8859 = vsub.f32 %v8857, %v8858
        %v8860 = vand.u32 %v8859, 4294901760
        %8861 = vmatpush.msra.mxu0 %v8860
        %v8862 = vand.u32 %v8543, 4294901760
        %8863 = vmatmul.f32.gmra.mxu0 %v8862
        %v8864 = vpop.f32.mrf.mxu0
        %v8865 = vadd.f32 %v8644, %v8864
        %v8866 = vand.u32 %v8547, 4294901760
        %8867 = vmatmul.f32.gmra.mxu0 %v8866
        %v8868 = vpop.f32.mrf.mxu0
        %v8869 = vadd.f32 %v8652, %v8868
        %v8870 = vand.u32 %v8551, 4294901760
        %8871 = vmatmul.f32.gmra.mxu0 %v8870
        %v8872 = vpop.f32.mrf.mxu0
        %v8873 = vadd.f32 %v8660, %v8872
        %v8874 = vand.u32 %v8555, 4294901760
        %8875 = vmatmul.f32.gmra.mxu0 %v8874
        %v8876 = vpop.f32.mrf.mxu0
        %v8877 = vadd.f32 %v8668, %v8876
        %v8878 = vand.u32 %v8559, 4294901760
        %8879 = vmatmul.f32.gmra.mxu0 %v8878
        %v8880 = vpop.f32.mrf.mxu0
        %v8881 = vadd.f32 %v8676, %v8880
        %v8882 = vand.u32 %v8563, 4294901760
        %8883 = vmatmul.f32.gmra.mxu0 %v8882
        %v8884 = vpop.f32.mrf.mxu0
        %v8885 = vadd.f32 %v8684, %v8884
        %v8886 = vand.u32 %v8567, 4294901760
        %8887 = vmatmul.f32.gmra.mxu0 %v8886
        %v8888 = vpop.f32.mrf.mxu0
        %v8889 = vadd.f32 %v8692, %v8888
        %v8890 = vand.u32 %v8571, 4294901760
        %8891 = vmatmul.f32.gmra.mxu0 %v8890
        %v8892 = vpop.f32.mrf.mxu0
        %v8893 = vadd.f32 %v8700, %v8892
        %v8894 = vand.u32 %v8575, 4294901760
        %8895 = vmatmul.f32.gmra.mxu0 %v8894
        %v8896 = vpop.f32.mrf.mxu0
        %v8897 = vadd.f32 %v8708, %v8896
        %v8898 = vand.u32 %v8579, 4294901760
        %8899 = vmatmul.f32.gmra.mxu0 %v8898
        %v8900 = vpop.f32.mrf.mxu0
        %v8901 = vadd.f32 %v8716, %v8900
        %v8902 = vand.u32 %v8583, 4294901760
        %8903 = vmatmul.f32.gmra.mxu0 %v8902
        %v8904 = vpop.f32.mrf.mxu0
        %v8905 = vadd.f32 %v8724, %v8904
        %v8906 = vand.u32 %v8587, 4294901760
        %8907 = vmatmul.f32.gmra.mxu0 %v8906
        %v8908 = vpop.f32.mrf.mxu0
        %v8909 = vadd.f32 %v8732, %v8908
        %v8910 = vand.u32 %v8591, 4294901760
        %8911 = vmatmul.f32.gmra.mxu0 %v8910
        %v8912 = vpop.f32.mrf.mxu0
        %v8913 = vadd.f32 %v8740, %v8912
        %v8914 = vand.u32 %v8595, 4294901760
        %8915 = vmatmul.f32.gmra.mxu0 %v8914
        %v8916 = vpop.f32.mrf.mxu0
        %v8917 = vadd.f32 %v8748, %v8916
        %v8918 = vand.u32 %v8599, 4294901760
        %8919 = vmatmul.f32.gmra.mxu0 %v8918
        %v8920 = vpop.f32.mrf.mxu0
        %v8921 = vadd.f32 %v8756, %v8920
        %v8922 = vand.u32 %v8603, 4294901760
        %8923 = vmatmul.f32.gmra.mxu0 %v8922
        %v8924 = vpop.f32.mrf.mxu0
        %v8925 = vadd.f32 %v8764, %v8924
        %8926 = vdwg.mxu0
        %v8927 = vand.u32 %v7798, 4294901760
        %v8928 = vsub.f32 %v7798, %v8927
        %8929 = vmatpush.msra.mxu0 %v8928
        %v8930 = vand.u32 %v7797, 4294901760
        %v8931 = vsub.f32 %v7797, %v8930
        %8932 = vmatpush.msra.mxu0 %v8931
        %v8933 = vand.u32 %v7796, 4294901760
        %v8934 = vsub.f32 %v7796, %v8933
        %8935 = vmatpush.msra.mxu0 %v8934
        %v8936 = vand.u32 %v7795, 4294901760
        %v8937 = vsub.f32 %v7795, %v8936
        %8938 = vmatpush.msra.mxu0 %v8937
        %v8939 = vand.u32 %v7794, 4294901760
        %v8940 = vsub.f32 %v7794, %v8939
        %8941 = vmatpush.msra.mxu0 %v8940
        %v8942 = vand.u32 %v7793, 4294901760
        %v8943 = vsub.f32 %v7793, %v8942
        %8944 = vmatpush.msra.mxu0 %v8943
        %v8945 = vand.u32 %v7792, 4294901760
        %v8946 = vsub.f32 %v7792, %v8945
        %8947 = vmatpush.msra.mxu0 %v8946
        %v8948 = vand.u32 %v7791, 4294901760
        %v8949 = vsub.f32 %v7791, %v8948
        %8950 = vmatpush.msra.mxu0 %v8949
        %v8951 = vand.u32 %v7790, 4294901760
        %v8952 = vsub.f32 %v7790, %v8951
        %8953 = vmatpush.msra.mxu0 %v8952
        %v8954 = vand.u32 %v7789, 4294901760
        %v8955 = vsub.f32 %v7789, %v8954
        %8956 = vmatpush.msra.mxu0 %v8955
        %v8957 = vand.u32 %v7788, 4294901760
        %v8958 = vsub.f32 %v7788, %v8957
        %8959 = vmatpush.msra.mxu0 %v8958
        %v8960 = vand.u32 %v7787, 4294901760
        %v8961 = vsub.f32 %v7787, %v8960
        %8962 = vmatpush.msra.mxu0 %v8961
        %v8963 = vand.u32 %v7786, 4294901760
        %v8964 = vsub.f32 %v7786, %v8963
        %8965 = vmatpush.msra.mxu0 %v8964
        %v8966 = vand.u32 %v7785, 4294901760
        %v8967 = vsub.f32 %v7785, %v8966
        %8968 = vmatpush.msra.mxu0 %v8967
        %v8969 = vand.u32 %v7784, 4294901760
        %v8970 = vsub.f32 %v7784, %v8969
        %8971 = vmatpush.msra.mxu0 %v8970
        %v8972 = vand.u32 %v7783, 4294901760
        %v8973 = vsub.f32 %v7783, %v8972
        %8974 = vmatpush.msra.mxu0 %v8973
        %v8975 = vand.u32 %v8543, 4294901760
        %v8976 = vsub.f32 %v8543, %v8975
        %8977 = vmatmul.f32.gmra.mxu0 %v8976
        %v8978 = vpop.f32.mrf.mxu0
        %v8979 = vadd.f32 %v8865, %v8978
        %v8980 = vand.u32 %v8547, 4294901760
        %v8981 = vsub.f32 %v8547, %v8980
        %8982 = vmatmul.f32.gmra.mxu0 %v8981
        %v8983 = vpop.f32.mrf.mxu0
        %v8984 = vadd.f32 %v8869, %v8983
        %v8985 = vand.u32 %v8551, 4294901760
        %v8986 = vsub.f32 %v8551, %v8985
        %8987 = vmatmul.f32.gmra.mxu0 %v8986
        %v8988 = vpop.f32.mrf.mxu0
        %v8989 = vadd.f32 %v8873, %v8988
        %v8990 = vand.u32 %v8555, 4294901760
        %v8991 = vsub.f32 %v8555, %v8990
        %8992 = vmatmul.f32.gmra.mxu0 %v8991
        %v8993 = vpop.f32.mrf.mxu0
        %v8994 = vadd.f32 %v8877, %v8993
        %v8995 = vand.u32 %v8559, 4294901760
        %v8996 = vsub.f32 %v8559, %v8995
        %8997 = vmatmul.f32.gmra.mxu0 %v8996
        %v8998 = vpop.f32.mrf.mxu0
        %v8999 = vadd.f32 %v8881, %v8998
        %v9000 = vand.u32 %v8563, 4294901760
        %v9001 = vsub.f32 %v8563, %v9000
        %9002 = vmatmul.f32.gmra.mxu0 %v9001
        %v9003 = vpop.f32.mrf.mxu0
        %v9004 = vadd.f32 %v8885, %v9003
        %v9005 = vand.u32 %v8567, 4294901760
        %v9006 = vsub.f32 %v8567, %v9005
        %9007 = vmatmul.f32.gmra.mxu0 %v9006
        %v9008 = vpop.f32.mrf.mxu0
        %v9009 = vadd.f32 %v8889, %v9008
        %v9010 = vand.u32 %v8571, 4294901760
        %v9011 = vsub.f32 %v8571, %v9010
        %9012 = vmatmul.f32.gmra.mxu0 %v9011
        %v9013 = vpop.f32.mrf.mxu0
        %v9014 = vadd.f32 %v8893, %v9013
        %v9015 = vand.u32 %v8575, 4294901760
        %v9016 = vsub.f32 %v8575, %v9015
        %9017 = vmatmul.f32.gmra.mxu0 %v9016
        %v9018 = vpop.f32.mrf.mxu0
        %v9019 = vadd.f32 %v8897, %v9018
        %v9020 = vand.u32 %v8579, 4294901760
        %v9021 = vsub.f32 %v8579, %v9020
        %9022 = vmatmul.f32.gmra.mxu0 %v9021
        %v9023 = vpop.f32.mrf.mxu0
        %v9024 = vadd.f32 %v8901, %v9023
        %v9025 = vand.u32 %v8583, 4294901760
        %v9026 = vsub.f32 %v8583, %v9025
        %9027 = vmatmul.f32.gmra.mxu0 %v9026
        %v9028 = vpop.f32.mrf.mxu0
        %v9029 = vadd.f32 %v8905, %v9028
        %v9030 = vand.u32 %v8587, 4294901760
        %v9031 = vsub.f32 %v8587, %v9030
        %9032 = vmatmul.f32.gmra.mxu0 %v9031
        %v9033 = vpop.f32.mrf.mxu0
        %v9034 = vadd.f32 %v8909, %v9033
        %v9035 = vand.u32 %v8591, 4294901760
        %v9036 = vsub.f32 %v8591, %v9035
        %9037 = vmatmul.f32.gmra.mxu0 %v9036
        %v9038 = vpop.f32.mrf.mxu0
        %v9039 = vadd.f32 %v8913, %v9038
        %v9040 = vand.u32 %v8595, 4294901760
        %v9041 = vsub.f32 %v8595, %v9040
        %9042 = vmatmul.f32.gmra.mxu0 %v9041
        %v9043 = vpop.f32.mrf.mxu0
        %v9044 = vadd.f32 %v8917, %v9043
        %v9045 = vand.u32 %v8599, 4294901760
        %v9046 = vsub.f32 %v8599, %v9045
        %9047 = vmatmul.f32.gmra.mxu0 %v9046
        %v9048 = vpop.f32.mrf.mxu0
        %v9049 = vadd.f32 %v8921, %v9048
        %v9050 = vand.u32 %v8603, 4294901760
        %v9051 = vsub.f32 %v8603, %v9050
        %9052 = vmatmul.f32.gmra.mxu0 %v9051
        %v9053 = vpop.f32.mrf.mxu0
        %v9054 = vadd.f32 %v8925, %v9053
        %9055 = vdwg.mxu0
        %v9056 = vand.u32 %v7798, 4294901760
        %9057 = vmatpush.msra.mxu0 %v9056
        %v9058 = vand.u32 %v7797, 4294901760
        %9059 = vmatpush.msra.mxu0 %v9058
        %v9060 = vand.u32 %v7796, 4294901760
        %9061 = vmatpush.msra.mxu0 %v9060
        %v9062 = vand.u32 %v7795, 4294901760
        %9063 = vmatpush.msra.mxu0 %v9062
        %v9064 = vand.u32 %v7794, 4294901760
        %9065 = vmatpush.msra.mxu0 %v9064
        %v9066 = vand.u32 %v7793, 4294901760
        %9067 = vmatpush.msra.mxu0 %v9066
        %v9068 = vand.u32 %v7792, 4294901760
        %9069 = vmatpush.msra.mxu0 %v9068
        %v9070 = vand.u32 %v7791, 4294901760
        %9071 = vmatpush.msra.mxu0 %v9070
        %v9072 = vand.u32 %v7790, 4294901760
        %9073 = vmatpush.msra.mxu0 %v9072
        %v9074 = vand.u32 %v7789, 4294901760
        %9075 = vmatpush.msra.mxu0 %v9074
        %v9076 = vand.u32 %v7788, 4294901760
        %9077 = vmatpush.msra.mxu0 %v9076
        %v9078 = vand.u32 %v7787, 4294901760
        %9079 = vmatpush.msra.mxu0 %v9078
        %v9080 = vand.u32 %v7786, 4294901760
        %9081 = vmatpush.msra.mxu0 %v9080
        %v9082 = vand.u32 %v7785, 4294901760
        %9083 = vmatpush.msra.mxu0 %v9082
        %v9084 = vand.u32 %v7784, 4294901760
        %9085 = vmatpush.msra.mxu0 %v9084
        %v9086 = vand.u32 %v7783, 4294901760
        %9087 = vmatpush.msra.mxu0 %v9086
        %v9088 = vand.u32 %v8543, 4294901760
        %v9089 = vsub.f32 %v8543, %v9088
        %v9090 = vand.u32 %v9089, 4294901760
        %9091 = vmatmul.f32.gmra.mxu0 %v9090
        %v9092 = vpop.f32.mrf.mxu0
        %v9093 = vadd.f32 %v8979, %v9092
        %v9094 = vand.u32 %v8547, 4294901760
        %v9095 = vsub.f32 %v8547, %v9094
        %v9096 = vand.u32 %v9095, 4294901760
        %9097 = vmatmul.f32.gmra.mxu0 %v9096
        %v9098 = vpop.f32.mrf.mxu0
        %v9099 = vadd.f32 %v8984, %v9098
        %v9100 = vand.u32 %v8551, 4294901760
        %v9101 = vsub.f32 %v8551, %v9100
        %v9102 = vand.u32 %v9101, 4294901760
        %9103 = vmatmul.f32.gmra.mxu0 %v9102
        %v9104 = vpop.f32.mrf.mxu0
        %v9105 = vadd.f32 %v8989, %v9104
        %v9106 = vand.u32 %v8555, 4294901760
        %v9107 = vsub.f32 %v8555, %v9106
        %v9108 = vand.u32 %v9107, 4294901760
        %9109 = vmatmul.f32.gmra.mxu0 %v9108
        %v9110 = vpop.f32.mrf.mxu0
        %v9111 = vadd.f32 %v8994, %v9110
        %v9112 = vand.u32 %v8559, 4294901760
        %v9113 = vsub.f32 %v8559, %v9112
        %v9114 = vand.u32 %v9113, 4294901760
        %9115 = vmatmul.f32.gmra.mxu0 %v9114
        %v9116 = vpop.f32.mrf.mxu0
        %v9117 = vadd.f32 %v8999, %v9116
        %v9118 = vand.u32 %v8563, 4294901760
        %v9119 = vsub.f32 %v8563, %v9118
        %v9120 = vand.u32 %v9119, 4294901760
        %9121 = vmatmul.f32.gmra.mxu0 %v9120
        %v9122 = vpop.f32.mrf.mxu0
        %v9123 = vadd.f32 %v9004, %v9122
        %v9124 = vand.u32 %v8567, 4294901760
        %v9125 = vsub.f32 %v8567, %v9124
        %v9126 = vand.u32 %v9125, 4294901760
        %9127 = vmatmul.f32.gmra.mxu0 %v9126
        %v9128 = vpop.f32.mrf.mxu0
        %v9129 = vadd.f32 %v9009, %v9128
        %v9130 = vand.u32 %v8571, 4294901760
        %v9131 = vsub.f32 %v8571, %v9130
        %v9132 = vand.u32 %v9131, 4294901760
        %9133 = vmatmul.f32.gmra.mxu0 %v9132
        %v9134 = vpop.f32.mrf.mxu0
        %v9135 = vadd.f32 %v9014, %v9134
        %v9136 = vand.u32 %v8575, 4294901760
        %v9137 = vsub.f32 %v8575, %v9136
        %v9138 = vand.u32 %v9137, 4294901760
        %9139 = vmatmul.f32.gmra.mxu0 %v9138
        %v9140 = vpop.f32.mrf.mxu0
        %v9141 = vadd.f32 %v9019, %v9140
        %v9142 = vand.u32 %v8579, 4294901760
        %v9143 = vsub.f32 %v8579, %v9142
        %v9144 = vand.u32 %v9143, 4294901760
        %9145 = vmatmul.f32.gmra.mxu0 %v9144
        %v9146 = vpop.f32.mrf.mxu0
        %v9147 = vadd.f32 %v9024, %v9146
        %v9148 = vand.u32 %v8583, 4294901760
        %v9149 = vsub.f32 %v8583, %v9148
        %v9150 = vand.u32 %v9149, 4294901760
        %9151 = vmatmul.f32.gmra.mxu0 %v9150
        %v9152 = vpop.f32.mrf.mxu0
        %v9153 = vadd.f32 %v9029, %v9152
        %v9154 = vand.u32 %v8587, 4294901760
        %v9155 = vsub.f32 %v8587, %v9154
        %v9156 = vand.u32 %v9155, 4294901760
        %9157 = vmatmul.f32.gmra.mxu0 %v9156
        %v9158 = vpop.f32.mrf.mxu0
        %v9159 = vadd.f32 %v9034, %v9158
        %v9160 = vand.u32 %v8591, 4294901760
        %v9161 = vsub.f32 %v8591, %v9160
        %v9162 = vand.u32 %v9161, 4294901760
        %9163 = vmatmul.f32.gmra.mxu0 %v9162
        %v9164 = vpop.f32.mrf.mxu0
        %v9165 = vadd.f32 %v9039, %v9164
        %v9166 = vand.u32 %v8595, 4294901760
        %v9167 = vsub.f32 %v8595, %v9166
        %v9168 = vand.u32 %v9167, 4294901760
        %9169 = vmatmul.f32.gmra.mxu0 %v9168
        %v9170 = vpop.f32.mrf.mxu0
        %v9171 = vadd.f32 %v9044, %v9170
        %v9172 = vand.u32 %v8599, 4294901760
        %v9173 = vsub.f32 %v8599, %v9172
        %v9174 = vand.u32 %v9173, 4294901760
        %9175 = vmatmul.f32.gmra.mxu0 %v9174
        %v9176 = vpop.f32.mrf.mxu0
        %v9177 = vadd.f32 %v9049, %v9176
        %v9178 = vand.u32 %v8603, 4294901760
        %v9179 = vsub.f32 %v8603, %v9178
        %v9180 = vand.u32 %v9179, 4294901760
        %9181 = vmatmul.f32.gmra.mxu0 %v9180
        %v9182 = vpop.f32.mrf.mxu0
        %v9183 = vadd.f32 %v9054, %v9182
        %9184 = vdwg.mxu0
        %v9185 = vand.u32 %v7798, 4294901760
        %v9186 = vsub.f32 %v7798, %v9185
        %v9187 = vand.u32 %v9186, 4294901760
        %9188 = vmatpush.msra.mxu0 %v9187
        %v9189 = vand.u32 %v7797, 4294901760
        %v9190 = vsub.f32 %v7797, %v9189
        %v9191 = vand.u32 %v9190, 4294901760
        %9192 = vmatpush.msra.mxu0 %v9191
        %v9193 = vand.u32 %v7796, 4294901760
        %v9194 = vsub.f32 %v7796, %v9193
        %v9195 = vand.u32 %v9194, 4294901760
        %9196 = vmatpush.msra.mxu0 %v9195
        %v9197 = vand.u32 %v7795, 4294901760
        %v9198 = vsub.f32 %v7795, %v9197
        %v9199 = vand.u32 %v9198, 4294901760
        %9200 = vmatpush.msra.mxu0 %v9199
        %v9201 = vand.u32 %v7794, 4294901760
        %v9202 = vsub.f32 %v7794, %v9201
        %v9203 = vand.u32 %v9202, 4294901760
        %9204 = vmatpush.msra.mxu0 %v9203
        %v9205 = vand.u32 %v7793, 4294901760
        %v9206 = vsub.f32 %v7793, %v9205
        %v9207 = vand.u32 %v9206, 4294901760
        %9208 = vmatpush.msra.mxu0 %v9207
        %v9209 = vand.u32 %v7792, 4294901760
        %v9210 = vsub.f32 %v7792, %v9209
        %v9211 = vand.u32 %v9210, 4294901760
        %9212 = vmatpush.msra.mxu0 %v9211
        %v9213 = vand.u32 %v7791, 4294901760
        %v9214 = vsub.f32 %v7791, %v9213
        %v9215 = vand.u32 %v9214, 4294901760
        %9216 = vmatpush.msra.mxu0 %v9215
        %v9217 = vand.u32 %v7790, 4294901760
        %v9218 = vsub.f32 %v7790, %v9217
        %v9219 = vand.u32 %v9218, 4294901760
        %9220 = vmatpush.msra.mxu0 %v9219
        %v9221 = vand.u32 %v7789, 4294901760
        %v9222 = vsub.f32 %v7789, %v9221
        %v9223 = vand.u32 %v9222, 4294901760
        %9224 = vmatpush.msra.mxu0 %v9223
        %v9225 = vand.u32 %v7788, 4294901760
        %v9226 = vsub.f32 %v7788, %v9225
        %v9227 = vand.u32 %v9226, 4294901760
        %9228 = vmatpush.msra.mxu0 %v9227
        %v9229 = vand.u32 %v7787, 4294901760
        %v9230 = vsub.f32 %v7787, %v9229
        %v9231 = vand.u32 %v9230, 4294901760
        %9232 = vmatpush.msra.mxu0 %v9231
        %v9233 = vand.u32 %v7786, 4294901760
        %v9234 = vsub.f32 %v7786, %v9233
        %v9235 = vand.u32 %v9234, 4294901760
        %9236 = vmatpush.msra.mxu0 %v9235
        %v9237 = vand.u32 %v7785, 4294901760
        %v9238 = vsub.f32 %v7785, %v9237
        %v9239 = vand.u32 %v9238, 4294901760
        %9240 = vmatpush.msra.mxu0 %v9239
        %v9241 = vand.u32 %v7784, 4294901760
        %v9242 = vsub.f32 %v7784, %v9241
        %v9243 = vand.u32 %v9242, 4294901760
        %9244 = vmatpush.msra.mxu0 %v9243
        %v9245 = vand.u32 %v7783, 4294901760
        %v9246 = vsub.f32 %v7783, %v9245
        %v9247 = vand.u32 %v9246, 4294901760
        %9248 = vmatpush.msra.mxu0 %v9247
        %v9249 = vand.u32 %v8543, 4294901760
        %9250 = vmatmul.f32.gmra.mxu0 %v9249
        %v9251 = vpop.f32.mrf.mxu0
        %v9252 = vadd.f32 %v9093, %v9251
        %v9253 = vand.u32 %v8547, 4294901760
        %9254 = vmatmul.f32.gmra.mxu0 %v9253
        %v9255 = vpop.f32.mrf.mxu0
        %v9256 = vadd.f32 %v9099, %v9255
        %v9257 = vand.u32 %v8551, 4294901760
        %9258 = vmatmul.f32.gmra.mxu0 %v9257
        %v9259 = vpop.f32.mrf.mxu0
        %v9260 = vadd.f32 %v9105, %v9259
        %v9261 = vand.u32 %v8555, 4294901760
        %9262 = vmatmul.f32.gmra.mxu0 %v9261
        %v9263 = vpop.f32.mrf.mxu0
        %v9264 = vadd.f32 %v9111, %v9263
        %v9265 = vand.u32 %v8559, 4294901760
        %9266 = vmatmul.f32.gmra.mxu0 %v9265
        %v9267 = vpop.f32.mrf.mxu0
        %v9268 = vadd.f32 %v9117, %v9267
        %v9269 = vand.u32 %v8563, 4294901760
        %9270 = vmatmul.f32.gmra.mxu0 %v9269
        %v9271 = vpop.f32.mrf.mxu0
        %v9272 = vadd.f32 %v9123, %v9271
        %v9273 = vand.u32 %v8567, 4294901760
        %9274 = vmatmul.f32.gmra.mxu0 %v9273
        %v9275 = vpop.f32.mrf.mxu0
        %v9276 = vadd.f32 %v9129, %v9275
        %v9277 = vand.u32 %v8571, 4294901760
        %9278 = vmatmul.f32.gmra.mxu0 %v9277
        %v9279 = vpop.f32.mrf.mxu0
        %v9280 = vadd.f32 %v9135, %v9279
        %v9281 = vand.u32 %v8575, 4294901760
        %9282 = vmatmul.f32.gmra.mxu0 %v9281
        %v9283 = vpop.f32.mrf.mxu0
        %v9284 = vadd.f32 %v9141, %v9283
        %v9285 = vand.u32 %v8579, 4294901760
        %9286 = vmatmul.f32.gmra.mxu0 %v9285
        %v9287 = vpop.f32.mrf.mxu0
        %v9288 = vadd.f32 %v9147, %v9287
        %v9289 = vand.u32 %v8583, 4294901760
        %9290 = vmatmul.f32.gmra.mxu0 %v9289
        %v9291 = vpop.f32.mrf.mxu0
        %v9292 = vadd.f32 %v9153, %v9291
        %v9293 = vand.u32 %v8587, 4294901760
        %9294 = vmatmul.f32.gmra.mxu0 %v9293
        %v9295 = vpop.f32.mrf.mxu0
        %v9296 = vadd.f32 %v9159, %v9295
        %v9297 = vand.u32 %v8591, 4294901760
        %9298 = vmatmul.f32.gmra.mxu0 %v9297
        %v9299 = vpop.f32.mrf.mxu0
        %v9300 = vadd.f32 %v9165, %v9299
        %v9301 = vand.u32 %v8595, 4294901760
        %9302 = vmatmul.f32.gmra.mxu0 %v9301
        %v9303 = vpop.f32.mrf.mxu0
        %v9304 = vadd.f32 %v9171, %v9303
        %v9305 = vand.u32 %v8599, 4294901760
        %9306 = vmatmul.f32.gmra.mxu0 %v9305
        %v9307 = vpop.f32.mrf.mxu0
        %v9308 = vadd.f32 %v9177, %v9307
        %v9309 = vand.u32 %v8603, 4294901760
        %9310 = vmatmul.f32.gmra.mxu0 %v9309
        %v9311 = vpop.f32.mrf.mxu0
        %v9312 = vadd.f32 %v9183, %v9311
        %9313 = vdwg.mxu0
        %v9314 = vand.u32 %v7798, 4294901760
        %9315 = vmatpush.msra.mxu0 %v9314
        %v9316 = vand.u32 %v7797, 4294901760
        %9317 = vmatpush.msra.mxu0 %v9316
        %v9318 = vand.u32 %v7796, 4294901760
        %9319 = vmatpush.msra.mxu0 %v9318
        %v9320 = vand.u32 %v7795, 4294901760
        %9321 = vmatpush.msra.mxu0 %v9320
        %v9322 = vand.u32 %v7794, 4294901760
        %9323 = vmatpush.msra.mxu0 %v9322
        %v9324 = vand.u32 %v7793, 4294901760
        %9325 = vmatpush.msra.mxu0 %v9324
        %v9326 = vand.u32 %v7792, 4294901760
        %9327 = vmatpush.msra.mxu0 %v9326
        %v9328 = vand.u32 %v7791, 4294901760
        %9329 = vmatpush.msra.mxu0 %v9328
        %v9330 = vand.u32 %v7790, 4294901760
        %9331 = vmatpush.msra.mxu0 %v9330
        %v9332 = vand.u32 %v7789, 4294901760
        %9333 = vmatpush.msra.mxu0 %v9332
        %v9334 = vand.u32 %v7788, 4294901760
        %9335 = vmatpush.msra.mxu0 %v9334
        %v9336 = vand.u32 %v7787, 4294901760
        %9337 = vmatpush.msra.mxu0 %v9336
        %v9338 = vand.u32 %v7786, 4294901760
        %9339 = vmatpush.msra.mxu0 %v9338
        %v9340 = vand.u32 %v7785, 4294901760
        %9341 = vmatpush.msra.mxu0 %v9340
        %v9342 = vand.u32 %v7784, 4294901760
        %9343 = vmatpush.msra.mxu0 %v9342
        %v9344 = vand.u32 %v7783, 4294901760
        %9345 = vmatpush.msra.mxu0 %v9344
        %v9346 = vand.u32 %v8543, 4294901760
        %9347 = vmatmul.f32.gmra.mxu0 %v9346
        %v9348 = vpop.f32.mrf.mxu0
        %v9349 = vadd.f32 %v9252, %v9348
        %v9350 = vand.u32 %v8547, 4294901760
        %9351 = vmatmul.f32.gmra.mxu0 %v9350
        %v9352 = vpop.f32.mrf.mxu0
        %v9353 = vadd.f32 %v9256, %v9352
        %v9354 = vand.u32 %v8551, 4294901760
        %9355 = vmatmul.f32.gmra.mxu0 %v9354
        %v9356 = vpop.f32.mrf.mxu0
        %v9357 = vadd.f32 %v9260, %v9356
        %v9358 = vand.u32 %v8555, 4294901760
        %9359 = vmatmul.f32.gmra.mxu0 %v9358
        %v9360 = vpop.f32.mrf.mxu0
        %v9361 = vadd.f32 %v9264, %v9360
        %v9362 = vand.u32 %v8559, 4294901760
        %9363 = vmatmul.f32.gmra.mxu0 %v9362
        %v9364 = vpop.f32.mrf.mxu0
        %v9365 = vadd.f32 %v9268, %v9364
        %v9366 = vand.u32 %v8563, 4294901760
        %9367 = vmatmul.f32.gmra.mxu0 %v9366
        %v9368 = vpop.f32.mrf.mxu0
        %v9369 = vadd.f32 %v9272, %v9368
        %v9370 = vand.u32 %v8567, 4294901760
        %9371 = vmatmul.f32.gmra.mxu0 %v9370
        %v9372 = vpop.f32.mrf.mxu0
        %v9373 = vadd.f32 %v9276, %v9372
        %v9374 = vand.u32 %v8571, 4294901760
        %9375 = vmatmul.f32.gmra.mxu0 %v9374
        %v9376 = vpop.f32.mrf.mxu0
        %v9377 = vadd.f32 %v9280, %v9376
        %v9378 = vand.u32 %v8575, 4294901760
        %9379 = vmatmul.f32.gmra.mxu0 %v9378
        %v9380 = vpop.f32.mrf.mxu0
        %v9381 = vadd.f32 %v9284, %v9380
        %v9382 = vand.u32 %v8579, 4294901760
        %9383 = vmatmul.f32.gmra.mxu0 %v9382
        %v9384 = vpop.f32.mrf.mxu0
        %v9385 = vadd.f32 %v9288, %v9384
        %v9386 = vand.u32 %v8583, 4294901760
        %9387 = vmatmul.f32.gmra.mxu0 %v9386
        %v9388 = vpop.f32.mrf.mxu0
        %v9389 = vadd.f32 %v9292, %v9388
        %v9390 = vand.u32 %v8587, 4294901760
        %9391 = vmatmul.f32.gmra.mxu0 %v9390
        %v9392 = vpop.f32.mrf.mxu0
        %v9393 = vadd.f32 %v9296, %v9392
        %v9394 = vand.u32 %v8591, 4294901760
        %9395 = vmatmul.f32.gmra.mxu0 %v9394
        %v9396 = vpop.f32.mrf.mxu0
        %v9397 = vadd.f32 %v9300, %v9396
        %v9398 = vand.u32 %v8595, 4294901760
        %9399 = vmatmul.f32.gmra.mxu0 %v9398
        %v9400 = vpop.f32.mrf.mxu0
        %v9401 = vadd.f32 %v9304, %v9400
        %v9402 = vand.u32 %v8599, 4294901760
        %9403 = vmatmul.f32.gmra.mxu0 %v9402
        %v9404 = vpop.f32.mrf.mxu0
        %v9405 = vadd.f32 %v9308, %v9404
        %v9406 = vand.u32 %v8603, 4294901760
        %9407 = vmatmul.f32.gmra.mxu0 %v9406
        %v9408 = vpop.f32.mrf.mxu0
        %v9409 = vadd.f32 %v9312, %v9408
        %9410 = vdwg.mxu0
        %v9411 = vmul.f32 %v7783, 1.5
        %v9412 = vmul.f32 %v7784, 1.5
        %v9413 = vmul.f32 %v7785, 1.5
        %v9414 = vmul.f32 %v7786, 1.5
        %v9415 = vmul.f32 %v7787, 1.5
        %v9416 = vmul.f32 %v7788, 1.5
        %v9417 = vmul.f32 %v7789, 1.5
        %v9418 = vmul.f32 %v7790, 1.5
        %v9419 = vmul.f32 %v7791, 1.5
        %v9420 = vmul.f32 %v7792, 1.5
        %v9421 = vmul.f32 %v7793, 1.5
        %v9422 = vmul.f32 %v7794, 1.5
        %v9423 = vmul.f32 %v7795, 1.5
        %v9424 = vmul.f32 %v7796, 1.5
        %v9425 = vmul.f32 %v7797, 1.5
        %v9426 = vmul.f32 %v7798, 1.5
        %v9427 = vmul.f32 %v9349, 0.5
        %v9428 = vmul.f32 %v9353, 0.5
        %v9429 = vmul.f32 %v9357, 0.5
        %v9430 = vmul.f32 %v9361, 0.5
        %v9431 = vmul.f32 %v9365, 0.5
        %v9432 = vmul.f32 %v9369, 0.5
        %v9433 = vmul.f32 %v9373, 0.5
        %v9434 = vmul.f32 %v9377, 0.5
        %v9435 = vmul.f32 %v9381, 0.5
        %v9436 = vmul.f32 %v9385, 0.5
        %v9437 = vmul.f32 %v9389, 0.5
        %v9438 = vmul.f32 %v9393, 0.5
        %v9439 = vmul.f32 %v9397, 0.5
        %v9440 = vmul.f32 %v9401, 0.5
        %v9441 = vmul.f32 %v9405, 0.5
        %v9442 = vmul.f32 %v9409, 0.5
        %v9443 = vsub.f32 %v9411, %v9427
        %v9444 = vsub.f32 %v9412, %v9428
        %v9445 = vsub.f32 %v9413, %v9429
        %v9446 = vsub.f32 %v9414, %v9430
        %v9447 = vsub.f32 %v9415, %v9431
        %v9448 = vsub.f32 %v9416, %v9432
        %v9449 = vsub.f32 %v9417, %v9433
        %v9450 = vsub.f32 %v9418, %v9434
        %v9451 = vsub.f32 %v9419, %v9435
        %v9452 = vsub.f32 %v9420, %v9436
        %v9453 = vsub.f32 %v9421, %v9437
        %v9454 = vsub.f32 %v9422, %v9438
        %v9455 = vsub.f32 %v9423, %v9439
        %v9456 = vsub.f32 %v9424, %v9440
        %v9457 = vsub.f32 %v9425, %v9441
        %v9458 = vsub.f32 %v9426, %v9442
        %9459 = vst [vmem:[#allocation2] sm:$0xff] %v9443
        %9460 = vst [vmem:[#allocation2 + $0x8] sm:$0xff] %v9444
        %9461 = vst [vmem:[#allocation2 + $0x10] sm:$0xff] %v9445
        %9462 = vst [vmem:[#allocation2 + $0x18] sm:$0xff] %v9446
        %9463 = vst [vmem:[#allocation2 + $0x20] sm:$0xff] %v9447
        %9464 = vst [vmem:[#allocation2 + $0x28] sm:$0xff] %v9448
        %9465 = vst [vmem:[#allocation2 + $0x30] sm:$0xff] %v9449
        %9466 = vst [vmem:[#allocation2 + $0x38] sm:$0xff] %v9450
        %9467 = vst [vmem:[#allocation2 + $0x40] sm:$0xff] %v9451
        %9468 = vst [vmem:[#allocation2 + $0x48] sm:$0xff] %v9452
        %9469 = vst [vmem:[#allocation2 + $0x50] sm:$0xff] %v9453
        %9470 = vst [vmem:[#allocation2 + $0x58] sm:$0xff] %v9454
        %9471 = vst [vmem:[#allocation2 + $0x60] sm:$0xff] %v9455
        %9472 = vst [vmem:[#allocation2 + $0x68] sm:$0xff] %v9456
        %9473 = vst [vmem:[#allocation2 + $0x70] sm:$0xff] %v9457
        %9474 = vst [vmem:[#allocation2 + $0x78] sm:$0xff] %v9458
        %v9475 = vsub.f32 %v8543, %v7754
        %v9476 = vsub.f32 %v8547, %v7755
        %v9477 = vsub.f32 %v8551, %v7756
        %v9478 = vsub.f32 %v8555, %v7757
        %v9479 = vsub.f32 %v8559, %v7758
        %v9480 = vsub.f32 %v8563, %v7759
        %v9481 = vsub.f32 %v8567, %v7760
        %v9482 = vsub.f32 %v8571, %v7761
        %v9483 = vsub.f32 %v8575, %v7762
        %v9484 = vsub.f32 %v8579, %v7763
        %v9485 = vsub.f32 %v8583, %v7764
        %v9486 = vsub.f32 %v8587, %v7765
        %v9487 = vsub.f32 %v8591, %v7766
        %v9488 = vsub.f32 %v8595, %v7767
        %v9489 = vsub.f32 %v8599, %v7768
        %v9490 = vsub.f32 %v8603, %v7769
        %v9491 = vmul.f32 %v9475, %v9475
        %v9492 = vmul.f32 %v9476, %v9476
        %v9493 = vmul.f32 %v9477, %v9477
        %v9494 = vmul.f32 %v9478, %v9478
        %v9495 = vmul.f32 %v9479, %v9479
        %v9496 = vmul.f32 %v9480, %v9480
        %v9497 = vmul.f32 %v9481, %v9481
        %v9498 = vmul.f32 %v9482, %v9482
        %v9499 = vmul.f32 %v9483, %v9483
        %v9500 = vmul.f32 %v9484, %v9484
        %v9501 = vmul.f32 %v9485, %v9485
        %v9502 = vmul.f32 %v9486, %v9486
        %v9503 = vmul.f32 %v9487, %v9487
        %v9504 = vmul.f32 %v9488, %v9488
        %v9505 = vmul.f32 %v9489, %v9489
        %v9506 = vmul.f32 %v9490, %v9490
        %v9507 = vadd.f32 %v9491, %v9492
        %v9508 = vadd.f32 %v9507, %v9493
        %v9509 = vadd.f32 %v9508, %v9494
        %v9510 = vadd.f32 %v9509, %v9495
        %v9511 = vadd.f32 %v9510, %v9496
        %v9512 = vadd.f32 %v9511, %v9497
        %v9513 = vadd.f32 %v9512, %v9498
        %v9514 = vadd.f32 %v9513, %v9499
        %v9515 = vadd.f32 %v9514, %v9500
        %v9516 = vadd.f32 %v9515, %v9501
        %v9517 = vadd.f32 %v9516, %v9502
        %v9518 = vadd.f32 %v9517, %v9503
        %v9519 = vadd.f32 %v9518, %v9504
        %v9520 = vadd.f32 %v9519, %v9505
        %v9521 = vadd.f32 %v9520, %v9506
        %9522 = vadd.xlane.f32.xlu0 %v9521
        %v9523 = vpop.xlane.xlu0 %9522
        %v9524 = vrot.slane %v9523, 4
        %v9525 = vadd.f32 %v9523, %v9524
        %v9526 = vrot.slane %v9525, 2
        %v9527 = vadd.f32 %v9525, %v9526
        %v9528 = vrot.slane %v9527, 1
        %v9529 = vadd.f32 %v9527, %v9528
        %s9530 = vtos %v9529
        %s9531 = smul.f32 %s9530, 0.25
        %p9532 = scmp.lt.f32.partialorder %s9531, 1e-12
        %s9533 = scalar_select %p9532, 1, 0
        %9534 = sst [smem:[%s7770]] %s9533
      $region20: #{bjorck_orthonormal_weight_t.1} parent=13 // pred_fallthru
        _
    $region14: #{bjorck_orthonormal_weight_t.1} parent=1 // loop_footer
      %s7777 = sadd.s32 1, %s7773
    $region15: #{bjorck_orthonormal_weight_t.1} parent=1 // loop_footer_branch
      %7772 = sbr.rel target = $region11
    $region16: #{bjorck_orthonormal_weight_t.1} parent=1 // loop_exit
      _
    %v9535 = vld [vmem:[#allocation2] sm:$0xff]
    %v9536 = vld [vmem:[#allocation2 + $0x8] sm:$0xff]
    %v9537 = vld [vmem:[#allocation2 + $0x10] sm:$0xff]
    %v9538 = vld [vmem:[#allocation2 + $0x18] sm:$0xff]
    %v9539 = vld [vmem:[#allocation2 + $0x20] sm:$0xff]
    %v9540 = vld [vmem:[#allocation2 + $0x28] sm:$0xff]
    %v9541 = vld [vmem:[#allocation2 + $0x30] sm:$0xff]
    %v9542 = vld [vmem:[#allocation2 + $0x38] sm:$0xff]
    %v9543 = vld [vmem:[#allocation2 + $0x40] sm:$0xff]
    %v9544 = vld [vmem:[#allocation2 + $0x48] sm:$0xff]
    %v9545 = vld [vmem:[#allocation2 + $0x50] sm:$0xff]
    %v9546 = vld [vmem:[#allocation2 + $0x58] sm:$0xff]
    %v9547 = vld [vmem:[#allocation2 + $0x60] sm:$0xff]
    %v9548 = vld [vmem:[#allocation2 + $0x68] sm:$0xff]
    %v9549 = vld [vmem:[#allocation2 + $0x70] sm:$0xff]
    %v9550 = vld [vmem:[#allocation2 + $0x78] sm:$0xff]
    %9551 = vxpose.xlu0.b32.start [1/16] %v9535, 128
    %9552 = vxpose.xlu0.b32.cont [2/16] %v9536, 128
    %9553 = vxpose.xlu0.b32.cont [3/16] %v9537, 128
    %9554 = vxpose.xlu0.b32.cont [4/16] %v9538, 128
    %9555 = vxpose.xlu0.b32.cont [5/16] %v9539, 128
    %9556 = vxpose.xlu0.b32.cont [6/16] %v9540, 128
    %9557 = vxpose.xlu0.b32.cont [7/16] %v9541, 128
    %9558 = vxpose.xlu0.b32.cont [8/16] %v9542, 128
    %9559 = vxpose.xlu0.b32.cont [9/16] %v9543, 128
    %9560 = vxpose.xlu0.b32.cont [10/16] %v9544, 128
    %9561 = vxpose.xlu0.b32.cont [11/16] %v9545, 128
    %9562 = vxpose.xlu0.b32.cont [12/16] %v9546, 128
    %9563 = vxpose.xlu0.b32.cont [13/16] %v9547, 128
    %9564 = vxpose.xlu0.b32.cont [14/16] %v9548, 128
    %9565 = vxpose.xlu0.b32.cont [15/16] %v9549, 128
    %9566 = vxpose.xlu0.b32.end [16/16] %v9550, 128
    %v9567 = vpop.trf.xlu0
    %v9568 = vpop.trf.xlu0
    %v9569 = vpop.trf.xlu0
    %v9570 = vpop.trf.xlu0
    %v9571 = vpop.trf.xlu0
    %v9572 = vpop.trf.xlu0
    %v9573 = vpop.trf.xlu0
    %v9574 = vpop.trf.xlu0
    %v9575 = vpop.trf.xlu0
    %v9576 = vpop.trf.xlu0
    %v9577 = vpop.trf.xlu0
    %v9578 = vpop.trf.xlu0
    %v9579 = vpop.trf.xlu0
    %v9580 = vpop.trf.xlu0
    %v9581 = vpop.trf.xlu0
    %v9582 = vpop.trf.xlu0
    %9583 = vst [vmem:[#allocation4] sm:$0xff] %v9567
    %9584 = vst [vmem:[#allocation4 + $0x8] sm:$0xff] %v9568
    %9585 = vst [vmem:[#allocation4 + $0x10] sm:$0xff] %v9569
    %9586 = vst [vmem:[#allocation4 + $0x18] sm:$0xff] %v9570
    %9587 = vst [vmem:[#allocation4 + $0x20] sm:$0xff] %v9571
    %9588 = vst [vmem:[#allocation4 + $0x28] sm:$0xff] %v9572
    %9589 = vst [vmem:[#allocation4 + $0x30] sm:$0xff] %v9573
    %9590 = vst [vmem:[#allocation4 + $0x38] sm:$0xff] %v9574
    %9591 = vst [vmem:[#allocation4 + $0x40] sm:$0xff] %v9575
    %9592 = vst [vmem:[#allocation4 + $0x48] sm:$0xff] %v9576
    %9593 = vst [vmem:[#allocation4 + $0x50] sm:$0xff] %v9577
    %9594 = vst [vmem:[#allocation4 + $0x58] sm:$0xff] %v9578
    %9595 = vst [vmem:[#allocation4 + $0x60] sm:$0xff] %v9579
    %9596 = vst [vmem:[#allocation4 + $0x68] sm:$0xff] %v9580
    %9597 = vst [vmem:[#allocation4 + $0x70] sm:$0xff] %v9581
    %9598 = vst [vmem:[#allocation4 + $0x78] sm:$0xff] %v9582
    // Predicated region
    $region21: #{bjorck_orthonormal_weight_t.1} parent=1 // pred_check
      _
    $region22: #{bjorck_orthonormal_weight_t.1} parent=1 // pred_check_branch
      %9600 = sbr.rel (0) target = $region24
    $region23: #{bjorck_orthonormal_weight_t.1} parent=1 // pred_region
      %9602 = vsyncadd [#allocation5], 0
      %s9603 = sshll.u32 [#allocation4], 4
      %s9604 = int_to_ptr.vmem [resolvable:$true] %s9603
      %s9605 = sshll.u32 %s2, 4
      %s9606 = int_to_ptr.hbm [resolvable:$true] %s9605
      %9611 = dma.vmem_to_hbm [thread:$0]  %s9604, 2048, %s9606, [#allocation5], 128, 128, 8
    $region24: #{bjorck_orthonormal_weight_t.1} parent=1 // pred_fallthru
      _
    // Predicated region
    $region25: #{bjorck_orthonormal_weight_t.1} parent=1 // pred_check
      _
    $region26: #{bjorck_orthonormal_weight_t.1} parent=1 // pred_check_branch
      %9613 = sbr.rel (0) target = $region28
    $region27: #{bjorck_orthonormal_weight_t.1} parent=1 // pred_region
      %9615 = dma.done [#allocation5], 2048
    $region28: #{bjorck_orthonormal_weight_t.1} parent=1 // pred_fallthru
      _
    %9616 = vsyncpa [#allocation5], 1

</llo_original>
